<compile_context>
chip_gen: v5e
topology: v5e:2x2
jax: 0.10.0
libtpu: 0.0.40
codegen_flags: <defaults>
</compile_context>

<pallas_src>
import jax
import jax.numpy as jnp
from jax.experimental import pallas as pl
from jax.experimental.pallas import tpu as pltpu

# ----------------------------- static geometry -----------------------------
N = 2                         # batch
H0, W0 = 45, 61               # raw input (gives 16*4*6 = 384 conv features)
HP, WP = H0 + 2, W0 + 2       # conv1 padding=1 -> 47, 63

S1 = WP                       # 63 : row stride of conv1 output (lanes)
S2 = 60                       # row stride of pool1 / conv2 buffers
S3 = 56                       # row stride of pool2 / conv3 buffers

H1, W1 = 44, 60               # conv1 valid
H1P, W1P = 22, 30             # pool1
H2, W2 = 20, 28               # conv2
H2P, W2P = 10, 14             # pool2
H3, W3 = 8, 12                # conv3
H3P, W3P = 4, 6               # pool3

A1 = H1 * S1                                   # 2772 lanes written by conv1
OUT2 = (H2 - 1) * S2 + 2 * (W2 - 1) + 1        # 1195 lanes written by conv2
OUT3 = (H3 - 1) * S3 + 4 * (W3 - 1) + 1        # 437  lanes written by conv3

_CONV1_CHUNKS = ((0, 768), (768, 768), (1536, 768), (2304, A1 - 2304))
_CONV2_CHUNKS = ((0, 400), (400, 400), (800, OUT2 - 800))


# ------------------------------- the kernel --------------------------------
def _cnn_kernel(xs_ref, z_ref, w1_ref, b1_ref, w2_ref, b2_ref, w3_ref, b3_ref,
                wfc1_ref, wz_ref, bfc1_ref, wfc2_ref, bfc2_ref, wout_ref, bout_ref,
                out_ref,
                a1, p1, a2, p2, a3, p3s, featbuf):
    f32, bf16 = jnp.float32, jnp.bfloat16
    n = pl.program_id(0)

    # ---- conv1 (1->32, k=4, pad=1) + ReLU: one MXU matmul per lane chunk ----
    w1 = w1_ref[...]                         # (32, 16) bf16
    b1 = b1_ref[...]                         # (32, 1)  f32
    for c, cs in _CONV1_CHUNKS:
        rhs = xs_ref[0, :, c:c + cs]         # (16, cs) bf16 im2col stack slice
        acc = jnp.dot(w1, rhs, preferred_element_type=f32)
        a1[:, c:c + cs] = jnp.maximum(acc + b1, 0.0).astype(bf16)

    # ---- pool1: compact rows (stride 63 -> 60), columns stay dilated x2 ----
    for hp in range(H1P):                                        # 22 rows
        r0 = a1[:, (2 * hp) * S1:(2 * hp) * S1 + S2 + 1]         # (32, 61)
        r1 = a1[:, (2 * hp + 1) * S1:(2 * hp + 1) * S1 + S2 + 1]
        m = jnp.maximum(r0, r1)
        mm = jnp.maximum(m[:, :S2], m[:, 1:S2 + 1])              # (32, 60)
        p1[:, hp * S2: hp * S2 + S2] = mm

    # ---- conv2 (32->16, k=3) + ReLU: K=96 stacked taps, lane-dense spans ----
    b2 = b2_ref[...]                          # (16, 1)
    for c, cs in _CONV2_CHUNKS:
        acc = None
        for di in range(3):
            slab = p1[:, c + di * S2: c + di * S2 + cs + 4]      # (32, cs+4)
            stack = jnp.concatenate(
                [slab[:, 0:cs], slab[:, 2:cs + 2], slab[:, 4:cs + 4]], axis=0)
            d = jnp.dot(w2_ref[di], stack, preferred_element_type=f32)
            acc = d if acc is None else acc + d
        a2[:, c:c + cs] = jnp.maximum(acc + b2, 0.0).astype(bf16)

    # ---- pool2: compact rows (stride 60 -> 56), column dilation 2 -> 4 ----
    for hp in range(H2P):                                        # 10 rows
        r0 = a2[:, (2 * hp) * S2:(2 * hp) * S2 + S3 + 2]         # (16, 58)
        r1 = a2[:, (2 * hp + 1) * S2:(2 * hp + 1) * S2 + S3 + 2]
        m = jnp.maximum(r0, r1)
        mm = jnp.maximum(m[:, :S3], m[:, 2:S3 + 2])              # (16, 56)
        p2[:, hp * S3: hp * S3 + S3] = mm

    # ---- conv3 (16->16, k=3) + ReLU: K=48 stacked taps, single span ----
    b3 = b3_ref[...]
    acc = None
    for di in range(3):
        slab = p2[:, di * S3: di * S3 + OUT3 + 8]                # (16, 445)
        stack = jnp.concatenate(
            [slab[:, 0:OUT3], slab[:, 4:OUT3 + 4], slab[:, 8:OUT3 + 8]], axis=0)
        d = jnp.dot(w3_ref[di], stack, preferred_element_type=f32)
        acc = d if acc is None else acc + d
    a3[:, 0:OUT3] = jnp.maximum(acc + b3, 0.0).astype(bf16)

    # ---- pool3 + gather the (16,4,6) map into a contiguous (1,384) row ----
    for hp in range(H3P):                                        # 4 rows
        r0 = a3[:, (2 * hp) * S3:(2 * hp) * S3 + 45]             # (16, 45)
        r1 = a3[:, (2 * hp + 1) * S3:(2 * hp + 1) * S3 + 45]
        m = jnp.maximum(r0, r1)
        mm = jnp.maximum(m[:, :41], m[:, 4:45]).astype(f32)      # valid at 8*w
        for w in range(W3P):                                     # 6 cols
            p3s[:, hp * W3P + w: hp * W3P + w + 1] = mm[:, 8 * w: 8 * w + 1]

    featbuf[...] = jnp.zeros((8, 384), f32)
    for cch in range(16):                    # torch (C, H, W) flatten order
        featbuf[0:1, 24 * cch: 24 * cch + 24] = p3s[cch:cch + 1, :]
    feat = featbuf[...]                      # (8, 384) f32; only row 0 is real

    # ---- FC head (z folded into fc1; dropout = identity at inference) ----
    # TODO(synk): nn.Dropout(p=0.15) is identity here (eval/inference mode).
    zval = z_ref[n]
    h1 = (jnp.dot(feat, wfc1_ref[...], preferred_element_type=f32)
          + zval * wz_ref[...] + bfc1_ref[...])
    h1 = jnp.maximum(h1, 0.0)
    h2 = jnp.maximum(jnp.dot(h1, wfc2_ref[...], preferred_element_type=f32)
                     + bfc2_ref[...], 0.0)
    logits = jnp.dot(h2, wout_ref[...], preferred_element_type=f32) + bout_ref[...]
    out_ref[0, :, :] = logits[0:1, :]


# ------------------------------- JAX wrapper --------------------------------
def _vmem():
    return pl.BlockSpec(memory_space=pltpu.MemorySpace.VMEM)


@jax.jit
def cnn_forward(params, X_nchw, z):
    f32, bf16 = jnp.float32, jnp.bfloat16
    assert X_nchw.shape == (N, 1, H0, W0)

    # conv1 im2col stack: stack[n, t, l] = xpad_flat[n, l + (t//4)*63 + (t%4)]
    xpad = jnp.pad(X_nchw[:, 0, :, :], ((0, 0), (1, 1), (1, 1)))     # (N, 47, 63)
    flat = xpad.reshape(N, HP * WP)
    flat = jnp.pad(flat, ((0, 0), (0, 3 * WP + 4)))
    xs = jnp.stack([flat[:, i * WP + j: i * WP + j + A1]
                    for i in range(4) for j in range(4)], axis=1)    # (N, 16, 2772)
    xs = xs.astype(bf16)

    w1 = params["w1"].reshape(32, 16).astype(bf16)
    b1 = params["b1"].reshape(32, 1).astype(f32)
    # (co, ci, di, dj) -> (di, co, dj*Cin + ci) for the K-stacked tap matmuls.
    w2 = jnp.transpose(params["w2"], (2, 0, 3, 1)).reshape(3, 16, 96).astype(bf16)
    b2 = params["b2"].reshape(16, 1).astype(f32)
    w3 = jnp.transpose(params["w3"], (2, 0, 3, 1)).reshape(3, 16, 48).astype(bf16)
    b3 = params["b3"].reshape(16, 1).astype(f32)
    wfc1 = params["wfc1"][:384].astype(f32)       # rows already in (C,H,W) order
    wz = params["wfc1"][384:385].astype(f32)      # z feature row
    bfc1 = params["bfc1"].reshape(1, 128).astype(f32)
    wfc2 = params["wfc2"].astype(f32)
    bfc2 = params["bfc2"].reshape(1, 64).astype(f32)
    wout = params["wout"].astype(f32)
    bout = params["bout"].reshape(1, 2).astype(f32)
    zf = z.reshape(N).astype(f32)

    out = pl.pallas_call(
        _cnn_kernel,
        out_shape=jax.ShapeDtypeStruct((N, 1, 2), f32),
        grid=(N,),
        in_specs=[
            pl.BlockSpec((1, 16, A1), lambda b: (b, 0, 0)),              # im2col stack
            pl.BlockSpec(memory_space=pltpu.MemorySpace.SMEM),           # z scalars
            _vmem(), _vmem(), _vmem(), _vmem(), _vmem(), _vmem(),        # conv weights
            _vmem(), _vmem(), _vmem(), _vmem(), _vmem(), _vmem(), _vmem(),  # fc weights
        ],
        out_specs=pl.BlockSpec((1, 1, 2), lambda b: (b, 0, 0)),
        scratch_shapes=[
            pltpu.VMEM((32, 2816), bf16),   # a1  conv1 out (stride 63)
            pltpu.VMEM((32, 1344), bf16),   # p1  pool1 out (stride 60, cols x2 dilated)
            pltpu.VMEM((16, 1216), bf16),   # a2  conv2 out (stride 60)
            pltpu.VMEM((16, 576), bf16),    # p2  pool2 out (stride 56, cols x4 dilated)
            pltpu.VMEM((16, 448), bf16),    # a3  conv3 out (stride 56)
            pltpu.VMEM((16, 24), f32),      # p3s compact pooled (c, h*6+w) map
            pltpu.VMEM((8, 384), f32),      # featbuf: contiguous fc1 input row
        ],
        compiler_params=pltpu.CompilerParams(
            dimension_semantics=("parallel",),
            vmem_limit_bytes=32 * 1024 * 1024),
    )(xs, zf, w1, b1, w2, b2, w3, b3, wfc1, wz, bfc1, wfc2, bfc2, wout, bout)
    return out


def init_params(key):
    """Deterministic init (PyTorch-style uniform(-1/sqrt(fan_in), +))."""
    def u(k, shape, fan_in):
        bound = 1.0 / float(fan_in) ** 0.5
        return jax.random.uniform(k, shape, jnp.float32, -bound, bound)

    ks = jax.random.split(key, 12)
    return {
        "w1": u(ks[0], (32, 1, 4, 4), 1 * 4 * 4),
        "b1": u(ks[1], (32,), 1 * 4 * 4),
        "w2": u(ks[2], (16, 32, 3, 3), 32 * 3 * 3),
        "b2": u(ks[3], (16,), 32 * 3 * 3),
        "w3": u(ks[4], (16, 16, 3, 3), 16 * 3 * 3),
        "b3": u(ks[5], (16,), 16 * 3 * 3),
        "wfc1": u(ks[6], (385, 128), 385),
        "bfc1": u(ks[7], (128,), 385),
        "wfc2": u(ks[8], (128, 64), 128),
        "bfc2": u(ks[9], (64,), 128),
        "wout": u(ks[10], (64, 2), 64),
        "bout": u(ks[11], (2,), 64),
    }


if __name__ == "__main__":
    key = jax.random.PRNGKey(0)
    kp, kx, kz = jax.random.split(key, 3)
    params = init_params(kp)
    # Input sized so the flattened conv features = 384 and z adds 1 feature
    # -> fc1 input = 385, matching nn.Linear(385, 128).
    X = jax.random.normal(kx, (N, 1, H0, W0), jnp.float32)   # NCHW
    z = jax.random.normal(kz, (N, 1), jnp.float32)
    out = cnn_forward(params, X, z)
    jax.block_until_ready(out)
    assert out.shape == (N, 1, 2) and out.dtype == jnp.float32
    print("KERNEL_OK")
</pallas_src>

<mosaic_0001>
module attributes {stable_mosaic.version = 11 : i64} {
  func.func @_cnn_kernel(%arg0: i32, %arg1: memref<1x16x2772xbf16, #tpu.memory_space<vmem>>, %arg2: memref<2xf32, #tpu.memory_space<smem>>, %arg3: memref<32x16xbf16, #tpu.memory_space<vmem>>, %arg4: memref<32x1xf32, #tpu.memory_space<vmem>>, %arg5: memref<3x16x96xbf16, #tpu.memory_space<vmem>>, %arg6: memref<16x1xf32, #tpu.memory_space<vmem>>, %arg7: memref<3x16x48xbf16, #tpu.memory_space<vmem>>, %arg8: memref<16x1xf32, #tpu.memory_space<vmem>>, %arg9: memref<384x128xf32, #tpu.memory_space<vmem>>, %arg10: memref<1x128xf32, #tpu.memory_space<vmem>>, %arg11: memref<1x128xf32, #tpu.memory_space<vmem>>, %arg12: memref<128x64xf32, #tpu.memory_space<vmem>>, %arg13: memref<1x64xf32, #tpu.memory_space<vmem>>, %arg14: memref<64x2xf32, #tpu.memory_space<vmem>>, %arg15: memref<1x2xf32, #tpu.memory_space<vmem>>, %arg16: memref<1x1x2xf32, #tpu.memory_space<vmem>>, %arg17: memref<32x2816xbf16, #tpu.memory_space<vmem>>, %arg18: memref<32x1344xbf16, #tpu.memory_space<vmem>>, %arg19: memref<16x1216xbf16, #tpu.memory_space<vmem>>, %arg20: memref<16x576xbf16, #tpu.memory_space<vmem>>, %arg21: memref<16x448xbf16, #tpu.memory_space<vmem>>, %arg22: memref<16x24xf32, #tpu.memory_space<vmem>>, %arg23: memref<8x384xf32, #tpu.memory_space<vmem>>) attributes {dimension_semantics = [#tpu.dimension_semantics<parallel>], iteration_bounds = array<i64: 2>, scalar_prefetch = 0 : i64, scratch_operands = 7 : i64, tpu.core_type = #tpu.core_type<tc>, window_params = [{transform_indices = @transform_0, window_bounds = array<i64: 1, 16, 2772>}, {transform_indices = @transform_1, window_bounds = array<i64: 2>}, {pipeline_mode = #tpu.pipeline_mode<synchronous>, transform_indices = @transform_2, window_bounds = array<i64: 32, 16>}, {pipeline_mode = #tpu.pipeline_mode<synchronous>, transform_indices = @transform_3, window_bounds = array<i64: 32, 1>}, {pipeline_mode = #tpu.pipeline_mode<synchronous>, transform_indices = @transform_4, window_bounds = array<i64: 3, 16, 96>}, {pipeline_mode = #tpu.pipeline_mode<synchronous>, transform_indices = @transform_5, window_bounds = array<i64: 16, 1>}, {pipeline_mode = #tpu.pipeline_mode<synchronous>, transform_indices = @transform_6, window_bounds = array<i64: 3, 16, 48>}, {pipeline_mode = #tpu.pipeline_mode<synchronous>, transform_indices = @transform_7, window_bounds = array<i64: 16, 1>}, {pipeline_mode = #tpu.pipeline_mode<synchronous>, transform_indices = @transform_8, window_bounds = array<i64: 384, 128>}, {pipeline_mode = #tpu.pipeline_mode<synchronous>, transform_indices = @transform_9, window_bounds = array<i64: 1, 128>}, {pipeline_mode = #tpu.pipeline_mode<synchronous>, transform_indices = @transform_10, window_bounds = array<i64: 1, 128>}, {pipeline_mode = #tpu.pipeline_mode<synchronous>, transform_indices = @transform_11, window_bounds = array<i64: 128, 64>}, {pipeline_mode = #tpu.pipeline_mode<synchronous>, transform_indices = @transform_12, window_bounds = array<i64: 1, 64>}, {pipeline_mode = #tpu.pipeline_mode<synchronous>, transform_indices = @transform_13, window_bounds = array<i64: 64, 2>}, {pipeline_mode = #tpu.pipeline_mode<synchronous>, transform_indices = @transform_14, window_bounds = array<i64: 1, 2>}, {transform_indices = @transform_15, window_bounds = array<i64: 1, 1, 2>}]} {
    %c0 = arith.constant 0 : index
    %c0_0 = arith.constant 0 : index
    %0 = vector.load %arg3[%c0, %c0_0] : memref<32x16xbf16, #tpu.memory_space<vmem>>, vector<32x16xbf16>
    %c0_1 = arith.constant 0 : index
    %c0_2 = arith.constant 0 : index
    %1 = vector.load %arg4[%c0_1, %c0_2] : memref<32x1xf32, #tpu.memory_space<vmem>>, vector<32x1xf32>
    %c0_3 = arith.constant 0 : index
    %c0_4 = arith.constant 0 : index
    %c0_5 = arith.constant 0 : index
    %2 = vector.load %arg1[%c0_3, %c0_4, %c0_5] : memref<1x16x2772xbf16, #tpu.memory_space<vmem>>, vector<1x16x768xbf16>
    %3 = vector.shape_cast %2 : vector<1x16x768xbf16> to vector<16x768xbf16>
    %cst = arith.constant dense<0.000000e+00> : vector<32x768xf32>
    %4 = tpu.matmul %0, %3, %cst {dimension_numbers = #tpu.dot_dimension_numbers<[1], [0], [0], [1], [0, 0, 1, 1], [], []>} : vector<32x16xbf16>, vector<16x768xbf16>, vector<32x768xf32> -> vector<32x768xf32>
    %5 = vector.broadcast %1 : vector<32x1xf32> to vector<32x768xf32>
    %6 = arith.addf %4, %5 : vector<32x768xf32>
    %cst_6 = arith.constant 0.000000e+00 : f32
    %7 = vector.broadcast %cst_6 : f32 to vector<32x768xf32>
    %8 = arith.maximumf %6, %7 : vector<32x768xf32>
    %9 = arith.truncf %8 : vector<32x768xf32> to vector<32x768xbf16>
    %c0_7 = arith.constant 0 : index
    %c0_8 = arith.constant 0 : index
    %10 = vector.load %arg17[%c0_7, %c0_8] : memref<32x2816xbf16, #tpu.memory_space<vmem>>, vector<32x768xbf16>
    tpu.vector_store %arg17[%c0_7, %c0_8], %9 {strides = array<i32>} : memref<32x2816xbf16, #tpu.memory_space<vmem>>, vector<32x768xbf16>,
    %c0_9 = arith.constant 0 : index
    %c0_10 = arith.constant 0 : index
    %c768 = arith.constant 768 : index
    %11 = vector.load %arg1[%c0_9, %c0_10, %c768] : memref<1x16x2772xbf16, #tpu.memory_space<vmem>>, vector<1x16x768xbf16>
    %12 = vector.shape_cast %11 : vector<1x16x768xbf16> to vector<16x768xbf16>
    %cst_11 = arith.constant dense<0.000000e+00> : vector<32x768xf32>
    %13 = tpu.matmul %0, %12, %cst_11 {dimension_numbers = #tpu.dot_dimension_numbers<[1], [0], [0], [1], [0, 0, 1, 1], [], []>} : vector<32x16xbf16>, vector<16x768xbf16>, vector<32x768xf32> -> vector<32x768xf32>
    %14 = vector.broadcast %1 : vector<32x1xf32> to vector<32x768xf32>
    %15 = arith.addf %13, %14 : vector<32x768xf32>
    %cst_12 = arith.constant 0.000000e+00 : f32
    %16 = vector.broadcast %cst_12 : f32 to vector<32x768xf32>
    %17 = arith.maximumf %15, %16 : vector<32x768xf32>
    %18 = arith.truncf %17 : vector<32x768xf32> to vector<32x768xbf16>
    %c0_13 = arith.constant 0 : index
    %c768_14 = arith.constant 768 : index
    %19 = vector.load %arg17[%c0_13, %c768_14] : memref<32x2816xbf16, #tpu.memory_space<vmem>>, vector<32x768xbf16>
    tpu.vector_store %arg17[%c0_13, %c768_14], %18 {strides = array<i32>} : memref<32x2816xbf16, #tpu.memory_space<vmem>>, vector<32x768xbf16>,
    %c0_15 = arith.constant 0 : index
    %c0_16 = arith.constant 0 : index
    %c1536 = arith.constant 1536 : index
    %20 = vector.load %arg1[%c0_15, %c0_16, %c1536] : memref<1x16x2772xbf16, #tpu.memory_space<vmem>>, vector<1x16x768xbf16>
    %21 = vector.shape_cast %20 : vector<1x16x768xbf16> to vector<16x768xbf16>
    %cst_17 = arith.constant dense<0.000000e+00> : vector<32x768xf32>
    %22 = tpu.matmul %0, %21, %cst_17 {dimension_numbers = #tpu.dot_dimension_numbers<[1], [0], [0], [1], [0, 0, 1, 1], [], []>} : vector<32x16xbf16>, vector<16x768xbf16>, vector<32x768xf32> -> vector<32x768xf32>
    %23 = vector.broadcast %1 : vector<32x1xf32> to vector<32x768xf32>
    %24 = arith.addf %22, %23 : vector<32x768xf32>
    %cst_18 = arith.constant 0.000000e+00 : f32
    %25 = vector.broadcast %cst_18 : f32 to vector<32x768xf32>
    %26 = arith.maximumf %24, %25 : vector<32x768xf32>
    %27 = arith.truncf %26 : vector<32x768xf32> to vector<32x768xbf16>
    %c0_19 = arith.constant 0 : index
    %c1536_20 = arith.constant 1536 : index
    %28 = vector.load %arg17[%c0_19, %c1536_20] : memref<32x2816xbf16, #tpu.memory_space<vmem>>, vector<32x768xbf16>
    tpu.vector_store %arg17[%c0_19, %c1536_20], %27 {strides = array<i32>} : memref<32x2816xbf16, #tpu.memory_space<vmem>>, vector<32x768xbf16>,
    %c0_21 = arith.constant 0 : index
    %c0_22 = arith.constant 0 : index
    %c2304 = arith.constant 2304 : index
    %29 = vector.load %arg1[%c0_21, %c0_22, %c2304] : memref<1x16x2772xbf16, #tpu.memory_space<vmem>>, vector<1x16x468xbf16>
    %30 = vector.shape_cast %29 : vector<1x16x468xbf16> to vector<16x468xbf16>
    %cst_23 = arith.constant dense<0.000000e+00> : vector<32x468xf32>
    %31 = tpu.matmul %0, %30, %cst_23 {dimension_numbers = #tpu.dot_dimension_numbers<[1], [0], [0], [1], [0, 0, 1, 1], [], []>} : vector<32x16xbf16>, vector<16x468xbf16>, vector<32x468xf32> -> vector<32x468xf32>
    %32 = vector.broadcast %1 : vector<32x1xf32> to vector<32x468xf32>
    %33 = arith.addf %31, %32 : vector<32x468xf32>
    %cst_24 = arith.constant 0.000000e+00 : f32
    %34 = vector.broadcast %cst_24 : f32 to vector<32x468xf32>
    %35 = arith.maximumf %33, %34 : vector<32x468xf32>
    %36 = arith.truncf %35 : vector<32x468xf32> to vector<32x468xbf16>
    %c0_25 = arith.constant 0 : index
    %c2304_26 = arith.constant 2304 : index
    %37 = vector.load %arg17[%c0_25, %c2304_26] : memref<32x2816xbf16, #tpu.memory_space<vmem>>, vector<32x468xbf16>
    tpu.vector_store %arg17[%c0_25, %c2304_26], %36 {strides = array<i32>} : memref<32x2816xbf16, #tpu.memory_space<vmem>>, vector<32x468xbf16>,
    %c0_27 = arith.constant 0 : index
    %c0_28 = arith.constant 0 : index
    %38 = vector.load %arg17[%c0_27, %c0_28] : memref<32x2816xbf16, #tpu.memory_space<vmem>>, vector<32x61xbf16>
    %c0_29 = arith.constant 0 : index
    %c63 = arith.constant 63 : index
    %39 = vector.load %arg17[%c0_29, %c63] : memref<32x2816xbf16, #tpu.memory_space<vmem>>, vector<32x61xbf16>
    %40 = arith.maximumf %38, %39 : vector<32x61xbf16>
    %41 = vector.extract_strided_slice %40 {offsets = [0, 0], sizes = [32, 60], strides = [1, 1]} : vector<32x61xbf16> to vector<32x60xbf16>
    %42 = vector.extract_strided_slice %40 {offsets = [0, 1], sizes = [32, 60], strides = [1, 1]} : vector<32x61xbf16> to vector<32x60xbf16>
    %43 = arith.maximumf %41, %42 : vector<32x60xbf16>
    %c0_30 = arith.constant 0 : index
    %c0_31 = arith.constant 0 : index
    %44 = vector.load %arg18[%c0_30, %c0_31] : memref<32x1344xbf16, #tpu.memory_space<vmem>>, vector<32x60xbf16>
    tpu.vector_store %arg18[%c0_30, %c0_31], %43 {strides = array<i32>} : memref<32x1344xbf16, #tpu.memory_space<vmem>>, vector<32x60xbf16>,
    %c0_32 = arith.constant 0 : index
    %c126 = arith.constant 126 : index
    %45 = vector.load %arg17[%c0_32, %c126] : memref<32x2816xbf16, #tpu.memory_space<vmem>>, vector<32x61xbf16>
    %c0_33 = arith.constant 0 : index
    %c189 = arith.constant 189 : index
    %46 = vector.load %arg17[%c0_33, %c189] : memref<32x2816xbf16, #tpu.memory_space<vmem>>, vector<32x61xbf16>
    %47 = arith.maximumf %45, %46 : vector<32x61xbf16>
    %48 = vector.extract_strided_slice %47 {offsets = [0, 0], sizes = [32, 60], strides = [1, 1]} : vector<32x61xbf16> to vector<32x60xbf16>
    %49 = vector.extract_strided_slice %47 {offsets = [0, 1], sizes = [32, 60], strides = [1, 1]} : vector<32x61xbf16> to vector<32x60xbf16>
    %50 = arith.maximumf %48, %49 : vector<32x60xbf16>
    %c0_34 = arith.constant 0 : index
    %c60 = arith.constant 60 : index
    %51 = vector.load %arg18[%c0_34, %c60] : memref<32x1344xbf16, #tpu.memory_space<vmem>>, vector<32x60xbf16>
    tpu.vector_store %arg18[%c0_34, %c60], %50 {strides = array<i32>} : memref<32x1344xbf16, #tpu.memory_space<vmem>>, vector<32x60xbf16>,
    %c0_35 = arith.constant 0 : index
    %c252 = arith.constant 252 : index
    %52 = vector.load %arg17[%c0_35, %c252] : memref<32x2816xbf16, #tpu.memory_space<vmem>>, vector<32x61xbf16>
    %c0_36 = arith.constant 0 : index
    %c315 = arith.constant 315 : index
    %53 = vector.load %arg17[%c0_36, %c315] : memref<32x2816xbf16, #tpu.memory_space<vmem>>, vector<32x61xbf16>
    %54 = arith.maximumf %52, %53 : vector<32x61xbf16>
    %55 = vector.extract_strided_slice %54 {offsets = [0, 0], sizes = [32, 60], strides = [1, 1]} : vector<32x61xbf16> to vector<32x60xbf16>
    %56 = vector.extract_strided_slice %54 {offsets = [0, 1], sizes = [32, 60], strides = [1, 1]} : vector<32x61xbf16> to vector<32x60xbf16>
    %57 = arith.maximumf %55, %56 : vector<32x60xbf16>
    %c0_37 = arith.constant 0 : index
    %c120 = arith.constant 120 : index
    %58 = vector.load %arg18[%c0_37, %c120] : memref<32x1344xbf16, #tpu.memory_space<vmem>>, vector<32x60xbf16>
    tpu.vector_store %arg18[%c0_37, %c120], %57 {strides = array<i32>} : memref<32x1344xbf16, #tpu.memory_space<vmem>>, vector<32x60xbf16>,
    %c0_38 = arith.constant 0 : index
    %c378 = arith.constant 378 : index
    %59 = vector.load %arg17[%c0_38, %c378] : memref<32x2816xbf16, #tpu.memory_space<vmem>>, vector<32x61xbf16>
    %c0_39 = arith.constant 0 : index
    %c441 = arith.constant 441 : index
    %60 = vector.load %arg17[%c0_39, %c441] : memref<32x2816xbf16, #tpu.memory_space<vmem>>, vector<32x61xbf16>
    %61 = arith.maximumf %59, %60 : vector<32x61xbf16>
    %62 = vector.extract_strided_slice %61 {offsets = [0, 0], sizes = [32, 60], strides = [1, 1]} : vector<32x61xbf16> to vector<32x60xbf16>
    %63 = vector.extract_strided_slice %61 {offsets = [0, 1], sizes = [32, 60], strides = [1, 1]} : vector<32x61xbf16> to vector<32x60xbf16>
    %64 = arith.maximumf %62, %63 : vector<32x60xbf16>
    %c0_40 = arith.constant 0 : index
    %c180 = arith.constant 180 : index
    %65 = vector.load %arg18[%c0_40, %c180] : memref<32x1344xbf16, #tpu.memory_space<vmem>>, vector<32x60xbf16>
    tpu.vector_store %arg18[%c0_40, %c180], %64 {strides = array<i32>} : memref<32x1344xbf16, #tpu.memory_space<vmem>>, vector<32x60xbf16>,
    %c0_41 = arith.constant 0 : index
    %c504 = arith.constant 504 : index
    %66 = vector.load %arg17[%c0_41, %c504] : memref<32x2816xbf16, #tpu.memory_space<vmem>>, vector<32x61xbf16>
    %c0_42 = arith.constant 0 : index
    %c567 = arith.constant 567 : index
    %67 = vector.load %arg17[%c0_42, %c567] : memref<32x2816xbf16, #tpu.memory_space<vmem>>, vector<32x61xbf16>
    %68 = arith.maximumf %66, %67 : vector<32x61xbf16>
    %69 = vector.extract_strided_slice %68 {offsets = [0, 0], sizes = [32, 60], strides = [1, 1]} : vector<32x61xbf16> to vector<32x60xbf16>
    %70 = vector.extract_strided_slice %68 {offsets = [0, 1], sizes = [32, 60], strides = [1, 1]} : vector<32x61xbf16> to vector<32x60xbf16>
    %71 = arith.maximumf %69, %70 : vector<32x60xbf16>
    %c0_43 = arith.constant 0 : index
    %c240 = arith.constant 240 : index
    %72 = vector.load %arg18[%c0_43, %c240] : memref<32x1344xbf16, #tpu.memory_space<vmem>>, vector<32x60xbf16>
    tpu.vector_store %arg18[%c0_43, %c240], %71 {strides = array<i32>} : memref<32x1344xbf16, #tpu.memory_space<vmem>>, vector<32x60xbf16>,
    %c0_44 = arith.constant 0 : index
    %c630 = arith.constant 630 : index
    %73 = vector.load %arg17[%c0_44, %c630] : memref<32x2816xbf16, #tpu.memory_space<vmem>>, vector<32x61xbf16>
    %c0_45 = arith.constant 0 : index
    %c693 = arith.constant 693 : index
    %74 = vector.load %arg17[%c0_45, %c693] : memref<32x2816xbf16, #tpu.memory_space<vmem>>, vector<32x61xbf16>
    %75 = arith.maximumf %73, %74 : vector<32x61xbf16>
    %76 = vector.extract_strided_slice %75 {offsets = [0, 0], sizes = [32, 60], strides = [1, 1]} : vector<32x61xbf16> to vector<32x60xbf16>
    %77 = vector.extract_strided_slice %75 {offsets = [0, 1], sizes = [32, 60], strides = [1, 1]} : vector<32x61xbf16> to vector<32x60xbf16>
    %78 = arith.maximumf %76, %77 : vector<32x60xbf16>
    %c0_46 = arith.constant 0 : index
    %c300 = arith.constant 300 : index
    %79 = vector.load %arg18[%c0_46, %c300] : memref<32x1344xbf16, #tpu.memory_space<vmem>>, vector<32x60xbf16>
    tpu.vector_store %arg18[%c0_46, %c300], %78 {strides = array<i32>} : memref<32x1344xbf16, #tpu.memory_space<vmem>>, vector<32x60xbf16>,
    %c0_47 = arith.constant 0 : index
    %c756 = arith.constant 756 : index
    %80 = vector.load %arg17[%c0_47, %c756] : memref<32x2816xbf16, #tpu.memory_space<vmem>>, vector<32x61xbf16>
    %c0_48 = arith.constant 0 : index
    %c819 = arith.constant 819 : index
    %81 = vector.load %arg17[%c0_48, %c819] : memref<32x2816xbf16, #tpu.memory_space<vmem>>, vector<32x61xbf16>
    %82 = arith.maximumf %80, %81 : vector<32x61xbf16>
    %83 = vector.extract_strided_slice %82 {offsets = [0, 0], sizes = [32, 60], strides = [1, 1]} : vector<32x61xbf16> to vector<32x60xbf16>
    %84 = vector.extract_strided_slice %82 {offsets = [0, 1], sizes = [32, 60], strides = [1, 1]} : vector<32x61xbf16> to vector<32x60xbf16>
    %85 = arith.maximumf %83, %84 : vector<32x60xbf16>
    %c0_49 = arith.constant 0 : index
    %c360 = arith.constant 360 : index
    %86 = vector.load %arg18[%c0_49, %c360] : memref<32x1344xbf16, #tpu.memory_space<vmem>>, vector<32x60xbf16>
    tpu.vector_store %arg18[%c0_49, %c360], %85 {strides = array<i32>} : memref<32x1344xbf16, #tpu.memory_space<vmem>>, vector<32x60xbf16>,
    %c0_50 = arith.constant 0 : index
    %c882 = arith.constant 882 : index
    %87 = vector.load %arg17[%c0_50, %c882] : memref<32x2816xbf16, #tpu.memory_space<vmem>>, vector<32x61xbf16>
    %c0_51 = arith.constant 0 : index
    %c945 = arith.constant 945 : index
    %88 = vector.load %arg17[%c0_51, %c945] : memref<32x2816xbf16, #tpu.memory_space<vmem>>, vector<32x61xbf16>
    %89 = arith.maximumf %87, %88 : vector<32x61xbf16>
    %90 = vector.extract_strided_slice %89 {offsets = [0, 0], sizes = [32, 60], strides = [1, 1]} : vector<32x61xbf16> to vector<32x60xbf16>
    %91 = vector.extract_strided_slice %89 {offsets = [0, 1], sizes = [32, 60], strides = [1, 1]} : vector<32x61xbf16> to vector<32x60xbf16>
    %92 = arith.maximumf %90, %91 : vector<32x60xbf16>
    %c0_52 = arith.constant 0 : index
    %c420 = arith.constant 420 : index
    %93 = vector.load %arg18[%c0_52, %c420] : memref<32x1344xbf16, #tpu.memory_space<vmem>>, vector<32x60xbf16>
    tpu.vector_store %arg18[%c0_52, %c420], %92 {strides = array<i32>} : memref<32x1344xbf16, #tpu.memory_space<vmem>>, vector<32x60xbf16>,
    %c0_53 = arith.constant 0 : index
    %c1008 = arith.constant 1008 : index
    %94 = vector.load %arg17[%c0_53, %c1008] : memref<32x2816xbf16, #tpu.memory_space<vmem>>, vector<32x61xbf16>
    %c0_54 = arith.constant 0 : index
    %c1071 = arith.constant 1071 : index
    %95 = vector.load %arg17[%c0_54, %c1071] : memref<32x2816xbf16, #tpu.memory_space<vmem>>, vector<32x61xbf16>
    %96 = arith.maximumf %94, %95 : vector<32x61xbf16>
    %97 = vector.extract_strided_slice %96 {offsets = [0, 0], sizes = [32, 60], strides = [1, 1]} : vector<32x61xbf16> to vector<32x60xbf16>
    %98 = vector.extract_strided_slice %96 {offsets = [0, 1], sizes = [32, 60], strides = [1, 1]} : vector<32x61xbf16> to vector<32x60xbf16>
    %99 = arith.maximumf %97, %98 : vector<32x60xbf16>
    %c0_55 = arith.constant 0 : index
    %c480 = arith.constant 480 : index
    %100 = vector.load %arg18[%c0_55, %c480] : memref<32x1344xbf16, #tpu.memory_space<vmem>>, vector<32x60xbf16>
    tpu.vector_store %arg18[%c0_55, %c480], %99 {strides = array<i32>} : memref<32x1344xbf16, #tpu.memory_space<vmem>>, vector<32x60xbf16>,
    %c0_56 = arith.constant 0 : index
    %c1134 = arith.constant 1134 : index
    %101 = vector.load %arg17[%c0_56, %c1134] : memref<32x2816xbf16, #tpu.memory_space<vmem>>, vector<32x61xbf16>
    %c0_57 = arith.constant 0 : index
    %c1197 = arith.constant 1197 : index
    %102 = vector.load %arg17[%c0_57, %c1197] : memref<32x2816xbf16, #tpu.memory_space<vmem>>, vector<32x61xbf16>
    %103 = arith.maximumf %101, %102 : vector<32x61xbf16>
    %104 = vector.extract_strided_slice %103 {offsets = [0, 0], sizes = [32, 60], strides = [1, 1]} : vector<32x61xbf16> to vector<32x60xbf16>
    %105 = vector.extract_strided_slice %103 {offsets = [0, 1], sizes = [32, 60], strides = [1, 1]} : vector<32x61xbf16> to vector<32x60xbf16>
    %106 = arith.maximumf %104, %105 : vector<32x60xbf16>
    %c0_58 = arith.constant 0 : index
    %c540 = arith.constant 540 : index
    %107 = vector.load %arg18[%c0_58, %c540] : memref<32x1344xbf16, #tpu.memory_space<vmem>>, vector<32x60xbf16>
    tpu.vector_store %arg18[%c0_58, %c540], %106 {strides = array<i32>} : memref<32x1344xbf16, #tpu.memory_space<vmem>>, vector<32x60xbf16>,
    %c0_59 = arith.constant 0 : index
    %c1260 = arith.constant 1260 : index
    %108 = vector.load %arg17[%c0_59, %c1260] : memref<32x2816xbf16, #tpu.memory_space<vmem>>, vector<32x61xbf16>
    %c0_60 = arith.constant 0 : index
    %c1323 = arith.constant 1323 : index
    %109 = vector.load %arg17[%c0_60, %c1323] : memref<32x2816xbf16, #tpu.memory_space<vmem>>, vector<32x61xbf16>
    %110 = arith.maximumf %108, %109 : vector<32x61xbf16>
    %111 = vector.extract_strided_slice %110 {offsets = [0, 0], sizes = [32, 60], strides = [1, 1]} : vector<32x61xbf16> to vector<32x60xbf16>
    %112 = vector.extract_strided_slice %110 {offsets = [0, 1], sizes = [32, 60], strides = [1, 1]} : vector<32x61xbf16> to vector<32x60xbf16>
    %113 = arith.maximumf %111, %112 : vector<32x60xbf16>
    %c0_61 = arith.constant 0 : index
    %c600 = arith.constant 600 : index
    %114 = vector.load %arg18[%c0_61, %c600] : memref<32x1344xbf16, #tpu.memory_space<vmem>>, vector<32x60xbf16>
    tpu.vector_store %arg18[%c0_61, %c600], %113 {strides = array<i32>} : memref<32x1344xbf16, #tpu.memory_space<vmem>>, vector<32x60xbf16>,
    %c0_62 = arith.constant 0 : index
    %c1386 = arith.constant 1386 : index
    %115 = vector.load %arg17[%c0_62, %c1386] : memref<32x2816xbf16, #tpu.memory_space<vmem>>, vector<32x61xbf16>
    %c0_63 = arith.constant 0 : index
    %c1449 = arith.constant 1449 : index
    %116 = vector.load %arg17[%c0_63, %c1449] : memref<32x2816xbf16, #tpu.memory_space<vmem>>, vector<32x61xbf16>
    %117 = arith.maximumf %115, %116 : vector<32x61xbf16>
    %118 = vector.extract_strided_slice %117 {offsets = [0, 0], sizes = [32, 60], strides = [1, 1]} : vector<32x61xbf16> to vector<32x60xbf16>
    %119 = vector.extract_strided_slice %117 {offsets = [0, 1], sizes = [32, 60], strides = [1, 1]} : vector<32x61xbf16> to vector<32x60xbf16>
    %120 = arith.maximumf %118, %119 : vector<32x60xbf16>
    %c0_64 = arith.constant 0 : index
    %c660 = arith.constant 660 : index
    %121 = vector.load %arg18[%c0_64, %c660] : memref<32x1344xbf16, #tpu.memory_space<vmem>>, vector<32x60xbf16>
    tpu.vector_store %arg18[%c0_64, %c660], %120 {strides = array<i32>} : memref<32x1344xbf16, #tpu.memory_space<vmem>>, vector<32x60xbf16>,
    %c0_65 = arith.constant 0 : index
    %c1512 = arith.constant 1512 : index
    %122 = vector.load %arg17[%c0_65, %c1512] : memref<32x2816xbf16, #tpu.memory_space<vmem>>, vector<32x61xbf16>
    %c0_66 = arith.constant 0 : index
    %c1575 = arith.constant 1575 : index
    %123 = vector.load %arg17[%c0_66, %c1575] : memref<32x2816xbf16, #tpu.memory_space<vmem>>, vector<32x61xbf16>
    %124 = arith.maximumf %122, %123 : vector<32x61xbf16>
    %125 = vector.extract_strided_slice %124 {offsets = [0, 0], sizes = [32, 60], strides = [1, 1]} : vector<32x61xbf16> to vector<32x60xbf16>
    %126 = vector.extract_strided_slice %124 {offsets = [0, 1], sizes = [32, 60], strides = [1, 1]} : vector<32x61xbf16> to vector<32x60xbf16>
    %127 = arith.maximumf %125, %126 : vector<32x60xbf16>
    %c0_67 = arith.constant 0 : index
    %c720 = arith.constant 720 : index
    %128 = vector.load %arg18[%c0_67, %c720] : memref<32x1344xbf16, #tpu.memory_space<vmem>>, vector<32x60xbf16>
    tpu.vector_store %arg18[%c0_67, %c720], %127 {strides = array<i32>} : memref<32x1344xbf16, #tpu.memory_space<vmem>>, vector<32x60xbf16>,
    %c0_68 = arith.constant 0 : index
    %c1638 = arith.constant 1638 : index
    %129 = vector.load %arg17[%c0_68, %c1638] : memref<32x2816xbf16, #tpu.memory_space<vmem>>, vector<32x61xbf16>
    %c0_69 = arith.constant 0 : index
    %c1701 = arith.constant 1701 : index
    %130 = vector.load %arg17[%c0_69, %c1701] : memref<32x2816xbf16, #tpu.memory_space<vmem>>, vector<32x61xbf16>
    %131 = arith.maximumf %129, %130 : vector<32x61xbf16>
    %132 = vector.extract_strided_slice %131 {offsets = [0, 0], sizes = [32, 60], strides = [1, 1]} : vector<32x61xbf16> to vector<32x60xbf16>
    %133 = vector.extract_strided_slice %131 {offsets = [0, 1], sizes = [32, 60], strides = [1, 1]} : vector<32x61xbf16> to vector<32x60xbf16>
    %134 = arith.maximumf %132, %133 : vector<32x60xbf16>
    %c0_70 = arith.constant 0 : index
    %c780 = arith.constant 780 : index
    %135 = vector.load %arg18[%c0_70, %c780] : memref<32x1344xbf16, #tpu.memory_space<vmem>>, vector<32x60xbf16>
    tpu.vector_store %arg18[%c0_70, %c780], %134 {strides = array<i32>} : memref<32x1344xbf16, #tpu.memory_space<vmem>>, vector<32x60xbf16>,
    %c0_71 = arith.constant 0 : index
    %c1764 = arith.constant 1764 : index
    %136 = vector.load %arg17[%c0_71, %c1764] : memref<32x2816xbf16, #tpu.memory_space<vmem>>, vector<32x61xbf16>
    %c0_72 = arith.constant 0 : index
    %c1827 = arith.constant 1827 : index
    %137 = vector.load %arg17[%c0_72, %c1827] : memref<32x2816xbf16, #tpu.memory_space<vmem>>, vector<32x61xbf16>
    %138 = arith.maximumf %136, %137 : vector<32x61xbf16>
    %139 = vector.extract_strided_slice %138 {offsets = [0, 0], sizes = [32, 60], strides = [1, 1]} : vector<32x61xbf16> to vector<32x60xbf16>
    %140 = vector.extract_strided_slice %138 {offsets = [0, 1], sizes = [32, 60], strides = [1, 1]} : vector<32x61xbf16> to vector<32x60xbf16>
    %141 = arith.maximumf %139, %140 : vector<32x60xbf16>
    %c0_73 = arith.constant 0 : index
    %c840 = arith.constant 840 : index
    %142 = vector.load %arg18[%c0_73, %c840] : memref<32x1344xbf16, #tpu.memory_space<vmem>>, vector<32x60xbf16>
    tpu.vector_store %arg18[%c0_73, %c840], %141 {strides = array<i32>} : memref<32x1344xbf16, #tpu.memory_space<vmem>>, vector<32x60xbf16>,
    %c0_74 = arith.constant 0 : index
    %c1890 = arith.constant 1890 : index
    %143 = vector.load %arg17[%c0_74, %c1890] : memref<32x2816xbf16, #tpu.memory_space<vmem>>, vector<32x61xbf16>
    %c0_75 = arith.constant 0 : index
    %c1953 = arith.constant 1953 : index
    %144 = vector.load %arg17[%c0_75, %c1953] : memref<32x2816xbf16, #tpu.memory_space<vmem>>, vector<32x61xbf16>
    %145 = arith.maximumf %143, %144 : vector<32x61xbf16>
    %146 = vector.extract_strided_slice %145 {offsets = [0, 0], sizes = [32, 60], strides = [1, 1]} : vector<32x61xbf16> to vector<32x60xbf16>
    %147 = vector.extract_strided_slice %145 {offsets = [0, 1], sizes = [32, 60], strides = [1, 1]} : vector<32x61xbf16> to vector<32x60xbf16>
    %148 = arith.maximumf %146, %147 : vector<32x60xbf16>
    %c0_76 = arith.constant 0 : index
    %c900 = arith.constant 900 : index
    %149 = vector.load %arg18[%c0_76, %c900] : memref<32x1344xbf16, #tpu.memory_space<vmem>>, vector<32x60xbf16>
    tpu.vector_store %arg18[%c0_76, %c900], %148 {strides = array<i32>} : memref<32x1344xbf16, #tpu.memory_space<vmem>>, vector<32x60xbf16>,
    %c0_77 = arith.constant 0 : index
    %c2016 = arith.constant 2016 : index
    %150 = vector.load %arg17[%c0_77, %c2016] : memref<32x2816xbf16, #tpu.memory_space<vmem>>, vector<32x61xbf16>
    %c0_78 = arith.constant 0 : index
    %c2079 = arith.constant 2079 : index
    %151 = vector.load %arg17[%c0_78, %c2079] : memref<32x2816xbf16, #tpu.memory_space<vmem>>, vector<32x61xbf16>
    %152 = arith.maximumf %150, %151 : vector<32x61xbf16>
    %153 = vector.extract_strided_slice %152 {offsets = [0, 0], sizes = [32, 60], strides = [1, 1]} : vector<32x61xbf16> to vector<32x60xbf16>
    %154 = vector.extract_strided_slice %152 {offsets = [0, 1], sizes = [32, 60], strides = [1, 1]} : vector<32x61xbf16> to vector<32x60xbf16>
    %155 = arith.maximumf %153, %154 : vector<32x60xbf16>
    %c0_79 = arith.constant 0 : index
    %c960 = arith.constant 960 : index
    %156 = vector.load %arg18[%c0_79, %c960] : memref<32x1344xbf16, #tpu.memory_space<vmem>>, vector<32x60xbf16>
    tpu.vector_store %arg18[%c0_79, %c960], %155 {strides = array<i32>} : memref<32x1344xbf16, #tpu.memory_space<vmem>>, vector<32x60xbf16>,
    %c0_80 = arith.constant 0 : index
    %c2142 = arith.constant 2142 : index
    %157 = vector.load %arg17[%c0_80, %c2142] : memref<32x2816xbf16, #tpu.memory_space<vmem>>, vector<32x61xbf16>
    %c0_81 = arith.constant 0 : index
    %c2205 = arith.constant 2205 : index
    %158 = vector.load %arg17[%c0_81, %c2205] : memref<32x2816xbf16, #tpu.memory_space<vmem>>, vector<32x61xbf16>
    %159 = arith.maximumf %157, %158 : vector<32x61xbf16>
    %160 = vector.extract_strided_slice %159 {offsets = [0, 0], sizes = [32, 60], strides = [1, 1]} : vector<32x61xbf16> to vector<32x60xbf16>
    %161 = vector.extract_strided_slice %159 {offsets = [0, 1], sizes = [32, 60], strides = [1, 1]} : vector<32x61xbf16> to vector<32x60xbf16>
    %162 = arith.maximumf %160, %161 : vector<32x60xbf16>
    %c0_82 = arith.constant 0 : index
    %c1020 = arith.constant 1020 : index
    %163 = vector.load %arg18[%c0_82, %c1020] : memref<32x1344xbf16, #tpu.memory_space<vmem>>, vector<32x60xbf16>
    tpu.vector_store %arg18[%c0_82, %c1020], %162 {strides = array<i32>} : memref<32x1344xbf16, #tpu.memory_space<vmem>>, vector<32x60xbf16>,
    %c0_83 = arith.constant 0 : index
    %c2268 = arith.constant 2268 : index
    %164 = vector.load %arg17[%c0_83, %c2268] : memref<32x2816xbf16, #tpu.memory_space<vmem>>, vector<32x61xbf16>
    %c0_84 = arith.constant 0 : index
    %c2331 = arith.constant 2331 : index
    %165 = vector.load %arg17[%c0_84, %c2331] : memref<32x2816xbf16, #tpu.memory_space<vmem>>, vector<32x61xbf16>
    %166 = arith.maximumf %164, %165 : vector<32x61xbf16>
    %167 = vector.extract_strided_slice %166 {offsets = [0, 0], sizes = [32, 60], strides = [1, 1]} : vector<32x61xbf16> to vector<32x60xbf16>
    %168 = vector.extract_strided_slice %166 {offsets = [0, 1], sizes = [32, 60], strides = [1, 1]} : vector<32x61xbf16> to vector<32x60xbf16>
    %169 = arith.maximumf %167, %168 : vector<32x60xbf16>
    %c0_85 = arith.constant 0 : index
    %c1080 = arith.constant 1080 : index
    %170 = vector.load %arg18[%c0_85, %c1080] : memref<32x1344xbf16, #tpu.memory_space<vmem>>, vector<32x60xbf16>
    tpu.vector_store %arg18[%c0_85, %c1080], %169 {strides = array<i32>} : memref<32x1344xbf16, #tpu.memory_space<vmem>>, vector<32x60xbf16>,
    %c0_86 = arith.constant 0 : index
    %c2394 = arith.constant 2394 : index
    %171 = vector.load %arg17[%c0_86, %c2394] : memref<32x2816xbf16, #tpu.memory_space<vmem>>, vector<32x61xbf16>
    %c0_87 = arith.constant 0 : index
    %c2457 = arith.constant 2457 : index
    %172 = vector.load %arg17[%c0_87, %c2457] : memref<32x2816xbf16, #tpu.memory_space<vmem>>, vector<32x61xbf16>
    %173 = arith.maximumf %171, %172 : vector<32x61xbf16>
    %174 = vector.extract_strided_slice %173 {offsets = [0, 0], sizes = [32, 60], strides = [1, 1]} : vector<32x61xbf16> to vector<32x60xbf16>
    %175 = vector.extract_strided_slice %173 {offsets = [0, 1], sizes = [32, 60], strides = [1, 1]} : vector<32x61xbf16> to vector<32x60xbf16>
    %176 = arith.maximumf %174, %175 : vector<32x60xbf16>
    %c0_88 = arith.constant 0 : index
    %c1140 = arith.constant 1140 : index
    %177 = vector.load %arg18[%c0_88, %c1140] : memref<32x1344xbf16, #tpu.memory_space<vmem>>, vector<32x60xbf16>
    tpu.vector_store %arg18[%c0_88, %c1140], %176 {strides = array<i32>} : memref<32x1344xbf16, #tpu.memory_space<vmem>>, vector<32x60xbf16>,
    %c0_89 = arith.constant 0 : index
    %c2520 = arith.constant 2520 : index
    %178 = vector.load %arg17[%c0_89, %c2520] : memref<32x2816xbf16, #tpu.memory_space<vmem>>, vector<32x61xbf16>
    %c0_90 = arith.constant 0 : index
    %c2583 = arith.constant 2583 : index
    %179 = vector.load %arg17[%c0_90, %c2583] : memref<32x2816xbf16, #tpu.memory_space<vmem>>, vector<32x61xbf16>
    %180 = arith.maximumf %178, %179 : vector<32x61xbf16>
    %181 = vector.extract_strided_slice %180 {offsets = [0, 0], sizes = [32, 60], strides = [1, 1]} : vector<32x61xbf16> to vector<32x60xbf16>
    %182 = vector.extract_strided_slice %180 {offsets = [0, 1], sizes = [32, 60], strides = [1, 1]} : vector<32x61xbf16> to vector<32x60xbf16>
    %183 = arith.maximumf %181, %182 : vector<32x60xbf16>
    %c0_91 = arith.constant 0 : index
    %c1200 = arith.constant 1200 : index
    %184 = vector.load %arg18[%c0_91, %c1200] : memref<32x1344xbf16, #tpu.memory_space<vmem>>, vector<32x60xbf16>
    tpu.vector_store %arg18[%c0_91, %c1200], %183 {strides = array<i32>} : memref<32x1344xbf16, #tpu.memory_space<vmem>>, vector<32x60xbf16>,
    %c0_92 = arith.constant 0 : index
    %c2646 = arith.constant 2646 : index
    %185 = vector.load %arg17[%c0_92, %c2646] : memref<32x2816xbf16, #tpu.memory_space<vmem>>, vector<32x61xbf16>
    %c0_93 = arith.constant 0 : index
    %c2709 = arith.constant 2709 : index
    %186 = vector.load %arg17[%c0_93, %c2709] : memref<32x2816xbf16, #tpu.memory_space<vmem>>, vector<32x61xbf16>
    %187 = arith.maximumf %185, %186 : vector<32x61xbf16>
    %188 = vector.extract_strided_slice %187 {offsets = [0, 0], sizes = [32, 60], strides = [1, 1]} : vector<32x61xbf16> to vector<32x60xbf16>
    %189 = vector.extract_strided_slice %187 {offsets = [0, 1], sizes = [32, 60], strides = [1, 1]} : vector<32x61xbf16> to vector<32x60xbf16>
    %190 = arith.maximumf %188, %189 : vector<32x60xbf16>
    %c0_94 = arith.constant 0 : index
    %c1260_95 = arith.constant 1260 : index
    %191 = vector.load %arg18[%c0_94, %c1260_95] : memref<32x1344xbf16, #tpu.memory_space<vmem>>, vector<32x60xbf16>
    tpu.vector_store %arg18[%c0_94, %c1260_95], %190 {strides = array<i32>} : memref<32x1344xbf16, #tpu.memory_space<vmem>>, vector<32x60xbf16>,
    %c0_96 = arith.constant 0 : index
    %c0_97 = arith.constant 0 : index
    %192 = vector.load %arg6[%c0_96, %c0_97] : memref<16x1xf32, #tpu.memory_space<vmem>>, vector<16x1xf32>
    %c0_98 = arith.constant 0 : index
    %c0_99 = arith.constant 0 : index
    %193 = vector.load %arg18[%c0_98, %c0_99] : memref<32x1344xbf16, #tpu.memory_space<vmem>>, vector<32x404xbf16>
    %194 = vector.extract_strided_slice %193 {offsets = [0, 0], sizes = [32, 400], strides = [1, 1]} : vector<32x404xbf16> to vector<32x400xbf16>
    %195 = vector.extract_strided_slice %193 {offsets = [0, 2], sizes = [32, 400], strides = [1, 1]} : vector<32x404xbf16> to vector<32x400xbf16>
    %196 = vector.extract_strided_slice %193 {offsets = [0, 4], sizes = [32, 400], strides = [1, 1]} : vector<32x404xbf16> to vector<32x400xbf16>
    %197 = tpu.concatenate %194, %195, %196 in 0 : vector<32x400xbf16>, vector<32x400xbf16>, vector<32x400xbf16> -> vector<96x400xbf16>
    %c0_100 = arith.constant 0 : index
    %c0_101 = arith.constant 0 : index
    %c0_102 = arith.constant 0 : index
    %198 = vector.load %arg5[%c0_100, %c0_101, %c0_102] : memref<3x16x96xbf16, #tpu.memory_space<vmem>>, vector<1x16x96xbf16>
    %199 = vector.shape_cast %198 : vector<1x16x96xbf16> to vector<16x96xbf16>
    %cst_103 = arith.constant dense<0.000000e+00> : vector<16x400xf32>
    %200 = tpu.matmul %199, %197, %cst_103 {dimension_numbers = #tpu.dot_dimension_numbers<[1], [0], [0], [1], [0, 0, 1, 1], [], []>} : vector<16x96xbf16>, vector<96x400xbf16>, vector<16x400xf32> -> vector<16x400xf32>
    %c0_104 = arith.constant 0 : index
    %c60_105 = arith.constant 60 : index
    %201 = vector.load %arg18[%c0_104, %c60_105] : memref<32x1344xbf16, #tpu.memory_space<vmem>>, vector<32x404xbf16>
    %202 = vector.extract_strided_slice %201 {offsets = [0, 0], sizes = [32, 400], strides = [1, 1]} : vector<32x404xbf16> to vector<32x400xbf16>
    %203 = vector.extract_strided_slice %201 {offsets = [0, 2], sizes = [32, 400], strides = [1, 1]} : vector<32x404xbf16> to vector<32x400xbf16>
    %204 = vector.extract_strided_slice %201 {offsets = [0, 4], sizes = [32, 400], strides = [1, 1]} : vector<32x404xbf16> to vector<32x400xbf16>
    %205 = tpu.concatenate %202, %203, %204 in 0 : vector<32x400xbf16>, vector<32x400xbf16>, vector<32x400xbf16> -> vector<96x400xbf16>
    %c1 = arith.constant 1 : index
    %c0_106 = arith.constant 0 : index
    %c0_107 = arith.constant 0 : index
    %206 = vector.load %arg5[%c1, %c0_106, %c0_107] : memref<3x16x96xbf16, #tpu.memory_space<vmem>>, vector<1x16x96xbf16>
    %207 = vector.shape_cast %206 : vector<1x16x96xbf16> to vector<16x96xbf16>
    %cst_108 = arith.constant dense<0.000000e+00> : vector<16x400xf32>
    %208 = tpu.matmul %207, %205, %cst_108 {dimension_numbers = #tpu.dot_dimension_numbers<[1], [0], [0], [1], [0, 0, 1, 1], [], []>} : vector<16x96xbf16>, vector<96x400xbf16>, vector<16x400xf32> -> vector<16x400xf32>
    %209 = arith.addf %200, %208 : vector<16x400xf32>
    %c0_109 = arith.constant 0 : index
    %c120_110 = arith.constant 120 : index
    %210 = vector.load %arg18[%c0_109, %c120_110] : memref<32x1344xbf16, #tpu.memory_space<vmem>>, vector<32x404xbf16>
    %211 = vector.extract_strided_slice %210 {offsets = [0, 0], sizes = [32, 400], strides = [1, 1]} : vector<32x404xbf16> to vector<32x400xbf16>
    %212 = vector.extract_strided_slice %210 {offsets = [0, 2], sizes = [32, 400], strides = [1, 1]} : vector<32x404xbf16> to vector<32x400xbf16>
    %213 = vector.extract_strided_slice %210 {offsets = [0, 4], sizes = [32, 400], strides = [1, 1]} : vector<32x404xbf16> to vector<32x400xbf16>
    %214 = tpu.concatenate %211, %212, %213 in 0 : vector<32x400xbf16>, vector<32x400xbf16>, vector<32x400xbf16> -> vector<96x400xbf16>
    %c2 = arith.constant 2 : index
    %c0_111 = arith.constant 0 : index
    %c0_112 = arith.constant 0 : index
    %215 = vector.load %arg5[%c2, %c0_111, %c0_112] : memref<3x16x96xbf16, #tpu.memory_space<vmem>>, vector<1x16x96xbf16>
    %216 = vector.shape_cast %215 : vector<1x16x96xbf16> to vector<16x96xbf16>
    %cst_113 = arith.constant dense<0.000000e+00> : vector<16x400xf32>
    %217 = tpu.matmul %216, %214, %cst_113 {dimension_numbers = #tpu.dot_dimension_numbers<[1], [0], [0], [1], [0, 0, 1, 1], [], []>} : vector<16x96xbf16>, vector<96x400xbf16>, vector<16x400xf32> -> vector<16x400xf32>
    %218 = arith.addf %209, %217 : vector<16x400xf32>
    %219 = vector.broadcast %192 : vector<16x1xf32> to vector<16x400xf32>
    %220 = arith.addf %218, %219 : vector<16x400xf32>
    %cst_114 = arith.constant 0.000000e+00 : f32
    %221 = vector.broadcast %cst_114 : f32 to vector<16x400xf32>
    %222 = arith.maximumf %220, %221 : vector<16x400xf32>
    %223 = arith.truncf %222 : vector<16x400xf32> to vector<16x400xbf16>
    %c0_115 = arith.constant 0 : index
    %c0_116 = arith.constant 0 : index
    %224 = vector.load %arg19[%c0_115, %c0_116] : memref<16x1216xbf16, #tpu.memory_space<vmem>>, vector<16x400xbf16>
    tpu.vector_store %arg19[%c0_115, %c0_116], %223 {strides = array<i32>} : memref<16x1216xbf16, #tpu.memory_space<vmem>>, vector<16x400xbf16>,
    %c0_117 = arith.constant 0 : index
    %c400 = arith.constant 400 : index
    %225 = vector.load %arg18[%c0_117, %c400] : memref<32x1344xbf16, #tpu.memory_space<vmem>>, vector<32x404xbf16>
    %226 = vector.extract_strided_slice %225 {offsets = [0, 0], sizes = [32, 400], strides = [1, 1]} : vector<32x404xbf16> to vector<32x400xbf16>
    %227 = vector.extract_strided_slice %225 {offsets = [0, 2], sizes = [32, 400], strides = [1, 1]} : vector<32x404xbf16> to vector<32x400xbf16>
    %228 = vector.extract_strided_slice %225 {offsets = [0, 4], sizes = [32, 400], strides = [1, 1]} : vector<32x404xbf16> to vector<32x400xbf16>
    %229 = tpu.concatenate %226, %227, %228 in 0 : vector<32x400xbf16>, vector<32x400xbf16>, vector<32x400xbf16> -> vector<96x400xbf16>
    %c0_118 = arith.constant 0 : index
    %c0_119 = arith.constant 0 : index
    %c0_120 = arith.constant 0 : index
    %230 = vector.load %arg5[%c0_118, %c0_119, %c0_120] : memref<3x16x96xbf16, #tpu.memory_space<vmem>>, vector<1x16x96xbf16>
    %231 = vector.shape_cast %230 : vector<1x16x96xbf16> to vector<16x96xbf16>
    %cst_121 = arith.constant dense<0.000000e+00> : vector<16x400xf32>
    %232 = tpu.matmul %231, %229, %cst_121 {dimension_numbers = #tpu.dot_dimension_numbers<[1], [0], [0], [1], [0, 0, 1, 1], [], []>} : vector<16x96xbf16>, vector<96x400xbf16>, vector<16x400xf32> -> vector<16x400xf32>
    %c0_122 = arith.constant 0 : index
    %c460 = arith.constant 460 : index
    %233 = vector.load %arg18[%c0_122, %c460] : memref<32x1344xbf16, #tpu.memory_space<vmem>>, vector<32x404xbf16>
    %234 = vector.extract_strided_slice %233 {offsets = [0, 0], sizes = [32, 400], strides = [1, 1]} : vector<32x404xbf16> to vector<32x400xbf16>
    %235 = vector.extract_strided_slice %233 {offsets = [0, 2], sizes = [32, 400], strides = [1, 1]} : vector<32x404xbf16> to vector<32x400xbf16>
    %236 = vector.extract_strided_slice %233 {offsets = [0, 4], sizes = [32, 400], strides = [1, 1]} : vector<32x404xbf16> to vector<32x400xbf16>
    %237 = tpu.concatenate %234, %235, %236 in 0 : vector<32x400xbf16>, vector<32x400xbf16>, vector<32x400xbf16> -> vector<96x400xbf16>
    %c1_123 = arith.constant 1 : index
    %c0_124 = arith.constant 0 : index
    %c0_125 = arith.constant 0 : index
    %238 = vector.load %arg5[%c1_123, %c0_124, %c0_125] : memref<3x16x96xbf16, #tpu.memory_space<vmem>>, vector<1x16x96xbf16>
    %239 = vector.shape_cast %238 : vector<1x16x96xbf16> to vector<16x96xbf16>
    %cst_126 = arith.constant dense<0.000000e+00> : vector<16x400xf32>
    %240 = tpu.matmul %239, %237, %cst_126 {dimension_numbers = #tpu.dot_dimension_numbers<[1], [0], [0], [1], [0, 0, 1, 1], [], []>} : vector<16x96xbf16>, vector<96x400xbf16>, vector<16x400xf32> -> vector<16x400xf32>
    %241 = arith.addf %232, %240 : vector<16x400xf32>
    %c0_127 = arith.constant 0 : index
    %c520 = arith.constant 520 : index
    %242 = vector.load %arg18[%c0_127, %c520] : memref<32x1344xbf16, #tpu.memory_space<vmem>>, vector<32x404xbf16>
    %243 = vector.extract_strided_slice %242 {offsets = [0, 0], sizes = [32, 400], strides = [1, 1]} : vector<32x404xbf16> to vector<32x400xbf16>
    %244 = vector.extract_strided_slice %242 {offsets = [0, 2], sizes = [32, 400], strides = [1, 1]} : vector<32x404xbf16> to vector<32x400xbf16>
    %245 = vector.extract_strided_slice %242 {offsets = [0, 4], sizes = [32, 400], strides = [1, 1]} : vector<32x404xbf16> to vector<32x400xbf16>
    %246 = tpu.concatenate %243, %244, %245 in 0 : vector<32x400xbf16>, vector<32x400xbf16>, vector<32x400xbf16> -> vector<96x400xbf16>
    %c2_128 = arith.constant 2 : index
    %c0_129 = arith.constant 0 : index
    %c0_130 = arith.constant 0 : index
    %247 = vector.load %arg5[%c2_128, %c0_129, %c0_130] : memref<3x16x96xbf16, #tpu.memory_space<vmem>>, vector<1x16x96xbf16>
    %248 = vector.shape_cast %247 : vector<1x16x96xbf16> to vector<16x96xbf16>
    %cst_131 = arith.constant dense<0.000000e+00> : vector<16x400xf32>
    %249 = tpu.matmul %248, %246, %cst_131 {dimension_numbers = #tpu.dot_dimension_numbers<[1], [0], [0], [1], [0, 0, 1, 1], [], []>} : vector<16x96xbf16>, vector<96x400xbf16>, vector<16x400xf32> -> vector<16x400xf32>
    %250 = arith.addf %241, %249 : vector<16x400xf32>
    %251 = vector.broadcast %192 : vector<16x1xf32> to vector<16x400xf32>
    %252 = arith.addf %250, %251 : vector<16x400xf32>
    %cst_132 = arith.constant 0.000000e+00 : f32
    %253 = vector.broadcast %cst_132 : f32 to vector<16x400xf32>
    %254 = arith.maximumf %252, %253 : vector<16x400xf32>
    %255 = arith.truncf %254 : vector<16x400xf32> to vector<16x400xbf16>
    %c0_133 = arith.constant 0 : index
    %c400_134 = arith.constant 400 : index
    %256 = vector.load %arg19[%c0_133, %c400_134] : memref<16x1216xbf16, #tpu.memory_space<vmem>>, vector<16x400xbf16>
    tpu.vector_store %arg19[%c0_133, %c400_134], %255 {strides = array<i32>} : memref<16x1216xbf16, #tpu.memory_space<vmem>>, vector<16x400xbf16>,
    %c0_135 = arith.constant 0 : index
    %c800 = arith.constant 800 : index
    %257 = vector.load %arg18[%c0_135, %c800] : memref<32x1344xbf16, #tpu.memory_space<vmem>>, vector<32x399xbf16>
    %258 = vector.extract_strided_slice %257 {offsets = [0, 0], sizes = [32, 395], strides = [1, 1]} : vector<32x399xbf16> to vector<32x395xbf16>
    %259 = vector.extract_strided_slice %257 {offsets = [0, 2], sizes = [32, 395], strides = [1, 1]} : vector<32x399xbf16> to vector<32x395xbf16>
    %260 = vector.extract_strided_slice %257 {offsets = [0, 4], sizes = [32, 395], strides = [1, 1]} : vector<32x399xbf16> to vector<32x395xbf16>
    %261 = tpu.concatenate %258, %259, %260 in 0 : vector<32x395xbf16>, vector<32x395xbf16>, vector<32x395xbf16> -> vector<96x395xbf16>
    %c0_136 = arith.constant 0 : index
    %c0_137 = arith.constant 0 : index
    %c0_138 = arith.constant 0 : index
    %262 = vector.load %arg5[%c0_136, %c0_137, %c0_138] : memref<3x16x96xbf16, #tpu.memory_space<vmem>>, vector<1x16x96xbf16>
    %263 = vector.shape_cast %262 : vector<1x16x96xbf16> to vector<16x96xbf16>
    %cst_139 = arith.constant dense<0.000000e+00> : vector<16x395xf32>
    %264 = tpu.matmul %263, %261, %cst_139 {dimension_numbers = #tpu.dot_dimension_numbers<[1], [0], [0], [1], [0, 0, 1, 1], [], []>} : vector<16x96xbf16>, vector<96x395xbf16>, vector<16x395xf32> -> vector<16x395xf32>
    %c0_140 = arith.constant 0 : index
    %c860 = arith.constant 860 : index
    %265 = vector.load %arg18[%c0_140, %c860] : memref<32x1344xbf16, #tpu.memory_space<vmem>>, vector<32x399xbf16>
    %266 = vector.extract_strided_slice %265 {offsets = [0, 0], sizes = [32, 395], strides = [1, 1]} : vector<32x399xbf16> to vector<32x395xbf16>
    %267 = vector.extract_strided_slice %265 {offsets = [0, 2], sizes = [32, 395], strides = [1, 1]} : vector<32x399xbf16> to vector<32x395xbf16>
    %268 = vector.extract_strided_slice %265 {offsets = [0, 4], sizes = [32, 395], strides = [1, 1]} : vector<32x399xbf16> to vector<32x395xbf16>
    %269 = tpu.concatenate %266, %267, %268 in 0 : vector<32x395xbf16>, vector<32x395xbf16>, vector<32x395xbf16> -> vector<96x395xbf16>
    %c1_141 = arith.constant 1 : index
    %c0_142 = arith.constant 0 : index
    %c0_143 = arith.constant 0 : index
    %270 = vector.load %arg5[%c1_141, %c0_142, %c0_143] : memref<3x16x96xbf16, #tpu.memory_space<vmem>>, vector<1x16x96xbf16>
    %271 = vector.shape_cast %270 : vector<1x16x96xbf16> to vector<16x96xbf16>
    %cst_144 = arith.constant dense<0.000000e+00> : vector<16x395xf32>
    %272 = tpu.matmul %271, %269, %cst_144 {dimension_numbers = #tpu.dot_dimension_numbers<[1], [0], [0], [1], [0, 0, 1, 1], [], []>} : vector<16x96xbf16>, vector<96x395xbf16>, vector<16x395xf32> -> vector<16x395xf32>
    %273 = arith.addf %264, %272 : vector<16x395xf32>
    %c0_145 = arith.constant 0 : index
    %c920 = arith.constant 920 : index
    %274 = vector.load %arg18[%c0_145, %c920] : memref<32x1344xbf16, #tpu.memory_space<vmem>>, vector<32x399xbf16>
    %275 = vector.extract_strided_slice %274 {offsets = [0, 0], sizes = [32, 395], strides = [1, 1]} : vector<32x399xbf16> to vector<32x395xbf16>
    %276 = vector.extract_strided_slice %274 {offsets = [0, 2], sizes = [32, 395], strides = [1, 1]} : vector<32x399xbf16> to vector<32x395xbf16>
    %277 = vector.extract_strided_slice %274 {offsets = [0, 4], sizes = [32, 395], strides = [1, 1]} : vector<32x399xbf16> to vector<32x395xbf16>
    %278 = tpu.concatenate %275, %276, %277 in 0 : vector<32x395xbf16>, vector<32x395xbf16>, vector<32x395xbf16> -> vector<96x395xbf16>
    %c2_146 = arith.constant 2 : index
    %c0_147 = arith.constant 0 : index
    %c0_148 = arith.constant 0 : index
    %279 = vector.load %arg5[%c2_146, %c0_147, %c0_148] : memref<3x16x96xbf16, #tpu.memory_space<vmem>>, vector<1x16x96xbf16>
    %280 = vector.shape_cast %279 : vector<1x16x96xbf16> to vector<16x96xbf16>
    %cst_149 = arith.constant dense<0.000000e+00> : vector<16x395xf32>
    %281 = tpu.matmul %280, %278, %cst_149 {dimension_numbers = #tpu.dot_dimension_numbers<[1], [0], [0], [1], [0, 0, 1, 1], [], []>} : vector<16x96xbf16>, vector<96x395xbf16>, vector<16x395xf32> -> vector<16x395xf32>
    %282 = arith.addf %273, %281 : vector<16x395xf32>
    %283 = vector.broadcast %192 : vector<16x1xf32> to vector<16x395xf32>
    %284 = arith.addf %282, %283 : vector<16x395xf32>
    %cst_150 = arith.constant 0.000000e+00 : f32
    %285 = vector.broadcast %cst_150 : f32 to vector<16x395xf32>
    %286 = arith.maximumf %284, %285 : vector<16x395xf32>
    %287 = arith.truncf %286 : vector<16x395xf32> to vector<16x395xbf16>
    %c0_151 = arith.constant 0 : index
    %c800_152 = arith.constant 800 : index
    %288 = vector.load %arg19[%c0_151, %c800_152] : memref<16x1216xbf16, #tpu.memory_space<vmem>>, vector<16x395xbf16>
    tpu.vector_store %arg19[%c0_151, %c800_152], %287 {strides = array<i32>} : memref<16x1216xbf16, #tpu.memory_space<vmem>>, vector<16x395xbf16>,
    %c0_153 = arith.constant 0 : index
    %c0_154 = arith.constant 0 : index
    %289 = vector.load %arg19[%c0_153, %c0_154] : memref<16x1216xbf16, #tpu.memory_space<vmem>>, vector<16x58xbf16>
    %c0_155 = arith.constant 0 : index
    %c60_156 = arith.constant 60 : index
    %290 = vector.load %arg19[%c0_155, %c60_156] : memref<16x1216xbf16, #tpu.memory_space<vmem>>, vector<16x58xbf16>
    %291 = arith.maximumf %289, %290 : vector<16x58xbf16>
    %292 = vector.extract_strided_slice %291 {offsets = [0, 0], sizes = [16, 56], strides = [1, 1]} : vector<16x58xbf16> to vector<16x56xbf16>
    %293 = vector.extract_strided_slice %291 {offsets = [0, 2], sizes = [16, 56], strides = [1, 1]} : vector<16x58xbf16> to vector<16x56xbf16>
    %294 = arith.maximumf %292, %293 : vector<16x56xbf16>
    %c0_157 = arith.constant 0 : index
    %c0_158 = arith.constant 0 : index
    %295 = vector.load %arg20[%c0_157, %c0_158] : memref<16x576xbf16, #tpu.memory_space<vmem>>, vector<16x56xbf16>
    tpu.vector_store %arg20[%c0_157, %c0_158], %294 {strides = array<i32>} : memref<16x576xbf16, #tpu.memory_space<vmem>>, vector<16x56xbf16>,
    %c0_159 = arith.constant 0 : index
    %c120_160 = arith.constant 120 : index
    %296 = vector.load %arg19[%c0_159, %c120_160] : memref<16x1216xbf16, #tpu.memory_space<vmem>>, vector<16x58xbf16>
    %c0_161 = arith.constant 0 : index
    %c180_162 = arith.constant 180 : index
    %297 = vector.load %arg19[%c0_161, %c180_162] : memref<16x1216xbf16, #tpu.memory_space<vmem>>, vector<16x58xbf16>
    %298 = arith.maximumf %296, %297 : vector<16x58xbf16>
    %299 = vector.extract_strided_slice %298 {offsets = [0, 0], sizes = [16, 56], strides = [1, 1]} : vector<16x58xbf16> to vector<16x56xbf16>
    %300 = vector.extract_strided_slice %298 {offsets = [0, 2], sizes = [16, 56], strides = [1, 1]} : vector<16x58xbf16> to vector<16x56xbf16>
    %301 = arith.maximumf %299, %300 : vector<16x56xbf16>
    %c0_163 = arith.constant 0 : index
    %c56 = arith.constant 56 : index
    %302 = vector.load %arg20[%c0_163, %c56] : memref<16x576xbf16, #tpu.memory_space<vmem>>, vector<16x56xbf16>
    tpu.vector_store %arg20[%c0_163, %c56], %301 {strides = array<i32>} : memref<16x576xbf16, #tpu.memory_space<vmem>>, vector<16x56xbf16>,
    %c0_164 = arith.constant 0 : index
    %c240_165 = arith.constant 240 : index
    %303 = vector.load %arg19[%c0_164, %c240_165] : memref<16x1216xbf16, #tpu.memory_space<vmem>>, vector<16x58xbf16>
    %c0_166 = arith.constant 0 : index
    %c300_167 = arith.constant 300 : index
    %304 = vector.load %arg19[%c0_166, %c300_167] : memref<16x1216xbf16, #tpu.memory_space<vmem>>, vector<16x58xbf16>
    %305 = arith.maximumf %303, %304 : vector<16x58xbf16>
    %306 = vector.extract_strided_slice %305 {offsets = [0, 0], sizes = [16, 56], strides = [1, 1]} : vector<16x58xbf16> to vector<16x56xbf16>
    %307 = vector.extract_strided_slice %305 {offsets = [0, 2], sizes = [16, 56], strides = [1, 1]} : vector<16x58xbf16> to vector<16x56xbf16>
    %308 = arith.maximumf %306, %307 : vector<16x56xbf16>
    %c0_168 = arith.constant 0 : index
    %c112 = arith.constant 112 : index
    %309 = vector.load %arg20[%c0_168, %c112] : memref<16x576xbf16, #tpu.memory_space<vmem>>, vector<16x56xbf16>
    tpu.vector_store %arg20[%c0_168, %c112], %308 {strides = array<i32>} : memref<16x576xbf16, #tpu.memory_space<vmem>>, vector<16x56xbf16>,
    %c0_169 = arith.constant 0 : index
    %c360_170 = arith.constant 360 : index
    %310 = vector.load %arg19[%c0_169, %c360_170] : memref<16x1216xbf16, #tpu.memory_space<vmem>>, vector<16x58xbf16>
    %c0_171 = arith.constant 0 : index
    %c420_172 = arith.constant 420 : index
    %311 = vector.load %arg19[%c0_171, %c420_172] : memref<16x1216xbf16, #tpu.memory_space<vmem>>, vector<16x58xbf16>
    %312 = arith.maximumf %310, %311 : vector<16x58xbf16>
    %313 = vector.extract_strided_slice %312 {offsets = [0, 0], sizes = [16, 56], strides = [1, 1]} : vector<16x58xbf16> to vector<16x56xbf16>
    %314 = vector.extract_strided_slice %312 {offsets = [0, 2], sizes = [16, 56], strides = [1, 1]} : vector<16x58xbf16> to vector<16x56xbf16>
    %315 = arith.maximumf %313, %314 : vector<16x56xbf16>
    %c0_173 = arith.constant 0 : index
    %c168 = arith.constant 168 : index
    %316 = vector.load %arg20[%c0_173, %c168] : memref<16x576xbf16, #tpu.memory_space<vmem>>, vector<16x56xbf16>
    tpu.vector_store %arg20[%c0_173, %c168], %315 {strides = array<i32>} : memref<16x576xbf16, #tpu.memory_space<vmem>>, vector<16x56xbf16>,
    %c0_174 = arith.constant 0 : index
    %c480_175 = arith.constant 480 : index
    %317 = vector.load %arg19[%c0_174, %c480_175] : memref<16x1216xbf16, #tpu.memory_space<vmem>>, vector<16x58xbf16>
    %c0_176 = arith.constant 0 : index
    %c540_177 = arith.constant 540 : index
    %318 = vector.load %arg19[%c0_176, %c540_177] : memref<16x1216xbf16, #tpu.memory_space<vmem>>, vector<16x58xbf16>
    %319 = arith.maximumf %317, %318 : vector<16x58xbf16>
    %320 = vector.extract_strided_slice %319 {offsets = [0, 0], sizes = [16, 56], strides = [1, 1]} : vector<16x58xbf16> to vector<16x56xbf16>
    %321 = vector.extract_strided_slice %319 {offsets = [0, 2], sizes = [16, 56], strides = [1, 1]} : vector<16x58xbf16> to vector<16x56xbf16>
    %322 = arith.maximumf %320, %321 : vector<16x56xbf16>
    %c0_178 = arith.constant 0 : index
    %c224 = arith.constant 224 : index
    %323 = vector.load %arg20[%c0_178, %c224] : memref<16x576xbf16, #tpu.memory_space<vmem>>, vector<16x56xbf16>
    tpu.vector_store %arg20[%c0_178, %c224], %322 {strides = array<i32>} : memref<16x576xbf16, #tpu.memory_space<vmem>>, vector<16x56xbf16>,
    %c0_179 = arith.constant 0 : index
    %c600_180 = arith.constant 600 : index
    %324 = vector.load %arg19[%c0_179, %c600_180] : memref<16x1216xbf16, #tpu.memory_space<vmem>>, vector<16x58xbf16>
    %c0_181 = arith.constant 0 : index
    %c660_182 = arith.constant 660 : index
    %325 = vector.load %arg19[%c0_181, %c660_182] : memref<16x1216xbf16, #tpu.memory_space<vmem>>, vector<16x58xbf16>
    %326 = arith.maximumf %324, %325 : vector<16x58xbf16>
    %327 = vector.extract_strided_slice %326 {offsets = [0, 0], sizes = [16, 56], strides = [1, 1]} : vector<16x58xbf16> to vector<16x56xbf16>
    %328 = vector.extract_strided_slice %326 {offsets = [0, 2], sizes = [16, 56], strides = [1, 1]} : vector<16x58xbf16> to vector<16x56xbf16>
    %329 = arith.maximumf %327, %328 : vector<16x56xbf16>
    %c0_183 = arith.constant 0 : index
    %c280 = arith.constant 280 : index
    %330 = vector.load %arg20[%c0_183, %c280] : memref<16x576xbf16, #tpu.memory_space<vmem>>, vector<16x56xbf16>
    tpu.vector_store %arg20[%c0_183, %c280], %329 {strides = array<i32>} : memref<16x576xbf16, #tpu.memory_space<vmem>>, vector<16x56xbf16>,
    %c0_184 = arith.constant 0 : index
    %c720_185 = arith.constant 720 : index
    %331 = vector.load %arg19[%c0_184, %c720_185] : memref<16x1216xbf16, #tpu.memory_space<vmem>>, vector<16x58xbf16>
    %c0_186 = arith.constant 0 : index
    %c780_187 = arith.constant 780 : index
    %332 = vector.load %arg19[%c0_186, %c780_187] : memref<16x1216xbf16, #tpu.memory_space<vmem>>, vector<16x58xbf16>
    %333 = arith.maximumf %331, %332 : vector<16x58xbf16>
    %334 = vector.extract_strided_slice %333 {offsets = [0, 0], sizes = [16, 56], strides = [1, 1]} : vector<16x58xbf16> to vector<16x56xbf16>
    %335 = vector.extract_strided_slice %333 {offsets = [0, 2], sizes = [16, 56], strides = [1, 1]} : vector<16x58xbf16> to vector<16x56xbf16>
    %336 = arith.maximumf %334, %335 : vector<16x56xbf16>
    %c0_188 = arith.constant 0 : index
    %c336 = arith.constant 336 : index
    %337 = vector.load %arg20[%c0_188, %c336] : memref<16x576xbf16, #tpu.memory_space<vmem>>, vector<16x56xbf16>
    tpu.vector_store %arg20[%c0_188, %c336], %336 {strides = array<i32>} : memref<16x576xbf16, #tpu.memory_space<vmem>>, vector<16x56xbf16>,
    %c0_189 = arith.constant 0 : index
    %c840_190 = arith.constant 840 : index
    %338 = vector.load %arg19[%c0_189, %c840_190] : memref<16x1216xbf16, #tpu.memory_space<vmem>>, vector<16x58xbf16>
    %c0_191 = arith.constant 0 : index
    %c900_192 = arith.constant 900 : index
    %339 = vector.load %arg19[%c0_191, %c900_192] : memref<16x1216xbf16, #tpu.memory_space<vmem>>, vector<16x58xbf16>
    %340 = arith.maximumf %338, %339 : vector<16x58xbf16>
    %341 = vector.extract_strided_slice %340 {offsets = [0, 0], sizes = [16, 56], strides = [1, 1]} : vector<16x58xbf16> to vector<16x56xbf16>
    %342 = vector.extract_strided_slice %340 {offsets = [0, 2], sizes = [16, 56], strides = [1, 1]} : vector<16x58xbf16> to vector<16x56xbf16>
    %343 = arith.maximumf %341, %342 : vector<16x56xbf16>
    %c0_193 = arith.constant 0 : index
    %c392 = arith.constant 392 : index
    %344 = vector.load %arg20[%c0_193, %c392] : memref<16x576xbf16, #tpu.memory_space<vmem>>, vector<16x56xbf16>
    tpu.vector_store %arg20[%c0_193, %c392], %343 {strides = array<i32>} : memref<16x576xbf16, #tpu.memory_space<vmem>>, vector<16x56xbf16>,
    %c0_194 = arith.constant 0 : index
    %c960_195 = arith.constant 960 : index
    %345 = vector.load %arg19[%c0_194, %c960_195] : memref<16x1216xbf16, #tpu.memory_space<vmem>>, vector<16x58xbf16>
    %c0_196 = arith.constant 0 : index
    %c1020_197 = arith.constant 1020 : index
    %346 = vector.load %arg19[%c0_196, %c1020_197] : memref<16x1216xbf16, #tpu.memory_space<vmem>>, vector<16x58xbf16>
    %347 = arith.maximumf %345, %346 : vector<16x58xbf16>
    %348 = vector.extract_strided_slice %347 {offsets = [0, 0], sizes = [16, 56], strides = [1, 1]} : vector<16x58xbf16> to vector<16x56xbf16>
    %349 = vector.extract_strided_slice %347 {offsets = [0, 2], sizes = [16, 56], strides = [1, 1]} : vector<16x58xbf16> to vector<16x56xbf16>
    %350 = arith.maximumf %348, %349 : vector<16x56xbf16>
    %c0_198 = arith.constant 0 : index
    %c448 = arith.constant 448 : index
    %351 = vector.load %arg20[%c0_198, %c448] : memref<16x576xbf16, #tpu.memory_space<vmem>>, vector<16x56xbf16>
    tpu.vector_store %arg20[%c0_198, %c448], %350 {strides = array<i32>} : memref<16x576xbf16, #tpu.memory_space<vmem>>, vector<16x56xbf16>,
    %c0_199 = arith.constant 0 : index
    %c1080_200 = arith.constant 1080 : index
    %352 = vector.load %arg19[%c0_199, %c1080_200] : memref<16x1216xbf16, #tpu.memory_space<vmem>>, vector<16x58xbf16>
    %c0_201 = arith.constant 0 : index
    %c1140_202 = arith.constant 1140 : index
    %353 = vector.load %arg19[%c0_201, %c1140_202] : memref<16x1216xbf16, #tpu.memory_space<vmem>>, vector<16x58xbf16>
    %354 = arith.maximumf %352, %353 : vector<16x58xbf16>
    %355 = vector.extract_strided_slice %354 {offsets = [0, 0], sizes = [16, 56], strides = [1, 1]} : vector<16x58xbf16> to vector<16x56xbf16>
    %356 = vector.extract_strided_slice %354 {offsets = [0, 2], sizes = [16, 56], strides = [1, 1]} : vector<16x58xbf16> to vector<16x56xbf16>
    %357 = arith.maximumf %355, %356 : vector<16x56xbf16>
    %c0_203 = arith.constant 0 : index
    %c504_204 = arith.constant 504 : index
    %358 = vector.load %arg20[%c0_203, %c504_204] : memref<16x576xbf16, #tpu.memory_space<vmem>>, vector<16x56xbf16>
    tpu.vector_store %arg20[%c0_203, %c504_204], %357 {strides = array<i32>} : memref<16x576xbf16, #tpu.memory_space<vmem>>, vector<16x56xbf16>,
    %c0_205 = arith.constant 0 : index
    %c0_206 = arith.constant 0 : index
    %359 = vector.load %arg8[%c0_205, %c0_206] : memref<16x1xf32, #tpu.memory_space<vmem>>, vector<16x1xf32>
    %c0_207 = arith.constant 0 : index
    %c0_208 = arith.constant 0 : index
    %360 = vector.load %arg20[%c0_207, %c0_208] : memref<16x576xbf16, #tpu.memory_space<vmem>>, vector<16x445xbf16>
    %361 = vector.extract_strided_slice %360 {offsets = [0, 0], sizes = [16, 437], strides = [1, 1]} : vector<16x445xbf16> to vector<16x437xbf16>
    %362 = vector.extract_strided_slice %360 {offsets = [0, 4], sizes = [16, 437], strides = [1, 1]} : vector<16x445xbf16> to vector<16x437xbf16>
    %363 = vector.extract_strided_slice %360 {offsets = [0, 8], sizes = [16, 437], strides = [1, 1]} : vector<16x445xbf16> to vector<16x437xbf16>
    %364 = tpu.concatenate %361, %362, %363 in 0 : vector<16x437xbf16>, vector<16x437xbf16>, vector<16x437xbf16> -> vector<48x437xbf16>
    %c0_209 = arith.constant 0 : index
    %c0_210 = arith.constant 0 : index
    %c0_211 = arith.constant 0 : index
    %365 = vector.load %arg7[%c0_209, %c0_210, %c0_211] : memref<3x16x48xbf16, #tpu.memory_space<vmem>>, vector<1x16x48xbf16>
    %366 = vector.shape_cast %365 : vector<1x16x48xbf16> to vector<16x48xbf16>
    %cst_212 = arith.constant dense<0.000000e+00> : vector<16x437xf32>
    %367 = tpu.matmul %366, %364, %cst_212 {dimension_numbers = #tpu.dot_dimension_numbers<[1], [0], [0], [1], [0, 0, 1, 1], [], []>} : vector<16x48xbf16>, vector<48x437xbf16>, vector<16x437xf32> -> vector<16x437xf32>
    %c0_213 = arith.constant 0 : index
    %c56_214 = arith.constant 56 : index
    %368 = vector.load %arg20[%c0_213, %c56_214] : memref<16x576xbf16, #tpu.memory_space<vmem>>, vector<16x445xbf16>
    %369 = vector.extract_strided_slice %368 {offsets = [0, 0], sizes = [16, 437], strides = [1, 1]} : vector<16x445xbf16> to vector<16x437xbf16>
    %370 = vector.extract_strided_slice %368 {offsets = [0, 4], sizes = [16, 437], strides = [1, 1]} : vector<16x445xbf16> to vector<16x437xbf16>
    %371 = vector.extract_strided_slice %368 {offsets = [0, 8], sizes = [16, 437], strides = [1, 1]} : vector<16x445xbf16> to vector<16x437xbf16>
    %372 = tpu.concatenate %369, %370, %371 in 0 : vector<16x437xbf16>, vector<16x437xbf16>, vector<16x437xbf16> -> vector<48x437xbf16>
    %c1_215 = arith.constant 1 : index
    %c0_216 = arith.constant 0 : index
    %c0_217 = arith.constant 0 : index
    %373 = vector.load %arg7[%c1_215, %c0_216, %c0_217] : memref<3x16x48xbf16, #tpu.memory_space<vmem>>, vector<1x16x48xbf16>
    %374 = vector.shape_cast %373 : vector<1x16x48xbf16> to vector<16x48xbf16>
    %cst_218 = arith.constant dense<0.000000e+00> : vector<16x437xf32>
    %375 = tpu.matmul %374, %372, %cst_218 {dimension_numbers = #tpu.dot_dimension_numbers<[1], [0], [0], [1], [0, 0, 1, 1], [], []>} : vector<16x48xbf16>, vector<48x437xbf16>, vector<16x437xf32> -> vector<16x437xf32>
    %376 = arith.addf %367, %375 : vector<16x437xf32>
    %c0_219 = arith.constant 0 : index
    %c112_220 = arith.constant 112 : index
    %377 = vector.load %arg20[%c0_219, %c112_220] : memref<16x576xbf16, #tpu.memory_space<vmem>>, vector<16x445xbf16>
    %378 = vector.extract_strided_slice %377 {offsets = [0, 0], sizes = [16, 437], strides = [1, 1]} : vector<16x445xbf16> to vector<16x437xbf16>
    %379 = vector.extract_strided_slice %377 {offsets = [0, 4], sizes = [16, 437], strides = [1, 1]} : vector<16x445xbf16> to vector<16x437xbf16>
    %380 = vector.extract_strided_slice %377 {offsets = [0, 8], sizes = [16, 437], strides = [1, 1]} : vector<16x445xbf16> to vector<16x437xbf16>
    %381 = tpu.concatenate %378, %379, %380 in 0 : vector<16x437xbf16>, vector<16x437xbf16>, vector<16x437xbf16> -> vector<48x437xbf16>
    %c2_221 = arith.constant 2 : index
    %c0_222 = arith.constant 0 : index
    %c0_223 = arith.constant 0 : index
    %382 = vector.load %arg7[%c2_221, %c0_222, %c0_223] : memref<3x16x48xbf16, #tpu.memory_space<vmem>>, vector<1x16x48xbf16>
    %383 = vector.shape_cast %382 : vector<1x16x48xbf16> to vector<16x48xbf16>
    %cst_224 = arith.constant dense<0.000000e+00> : vector<16x437xf32>
    %384 = tpu.matmul %383, %381, %cst_224 {dimension_numbers = #tpu.dot_dimension_numbers<[1], [0], [0], [1], [0, 0, 1, 1], [], []>} : vector<16x48xbf16>, vector<48x437xbf16>, vector<16x437xf32> -> vector<16x437xf32>
    %385 = arith.addf %376, %384 : vector<16x437xf32>
    %386 = vector.broadcast %359 : vector<16x1xf32> to vector<16x437xf32>
    %387 = arith.addf %385, %386 : vector<16x437xf32>
    %cst_225 = arith.constant 0.000000e+00 : f32
    %388 = vector.broadcast %cst_225 : f32 to vector<16x437xf32>
    %389 = arith.maximumf %387, %388 : vector<16x437xf32>
    %390 = arith.truncf %389 : vector<16x437xf32> to vector<16x437xbf16>
    %c0_226 = arith.constant 0 : index
    %c0_227 = arith.constant 0 : index
    %391 = vector.load %arg21[%c0_226, %c0_227] : memref<16x448xbf16, #tpu.memory_space<vmem>>, vector<16x437xbf16>
    tpu.vector_store %arg21[%c0_226, %c0_227], %390 {strides = array<i32>} : memref<16x448xbf16, #tpu.memory_space<vmem>>, vector<16x437xbf16>,
    %c0_228 = arith.constant 0 : index
    %c0_229 = arith.constant 0 : index
    %392 = vector.load %arg21[%c0_228, %c0_229] : memref<16x448xbf16, #tpu.memory_space<vmem>>, vector<16x45xbf16>
    %c0_230 = arith.constant 0 : index
    %c56_231 = arith.constant 56 : index
    %393 = vector.load %arg21[%c0_230, %c56_231] : memref<16x448xbf16, #tpu.memory_space<vmem>>, vector<16x45xbf16>
    %394 = arith.maximumf %392, %393 : vector<16x45xbf16>
    %395 = vector.extract_strided_slice %394 {offsets = [0, 0], sizes = [16, 41], strides = [1, 1]} : vector<16x45xbf16> to vector<16x41xbf16>
    %396 = vector.extract_strided_slice %394 {offsets = [0, 4], sizes = [16, 41], strides = [1, 1]} : vector<16x45xbf16> to vector<16x41xbf16>
    %397 = arith.maximumf %395, %396 : vector<16x41xbf16>
    %398 = arith.extf %397 : vector<16x41xbf16> to vector<16x41xf32>
    %399 = vector.extract_strided_slice %398 {offsets = [0, 0], sizes = [16, 1], strides = [1, 1]} : vector<16x41xf32> to vector<16x1xf32>
    %c0_232 = arith.constant 0 : index
    %c0_233 = arith.constant 0 : index
    %400 = vector.load %arg22[%c0_232, %c0_233] : memref<16x24xf32, #tpu.memory_space<vmem>>, vector<16x1xf32>
    tpu.vector_store %arg22[%c0_232, %c0_233], %399 {strides = array<i32>} : memref<16x24xf32, #tpu.memory_space<vmem>>, vector<16x1xf32>,
    %401 = vector.extract_strided_slice %398 {offsets = [0, 8], sizes = [16, 1], strides = [1, 1]} : vector<16x41xf32> to vector<16x1xf32>
    %c0_234 = arith.constant 0 : index
    %c1_235 = arith.constant 1 : index
    %402 = vector.load %arg22[%c0_234, %c1_235] : memref<16x24xf32, #tpu.memory_space<vmem>>, vector<16x1xf32>
    tpu.vector_store %arg22[%c0_234, %c1_235], %401 {strides = array<i32>} : memref<16x24xf32, #tpu.memory_space<vmem>>, vector<16x1xf32>,
    %403 = vector.extract_strided_slice %398 {offsets = [0, 16], sizes = [16, 1], strides = [1, 1]} : vector<16x41xf32> to vector<16x1xf32>
    %c0_236 = arith.constant 0 : index
    %c2_237 = arith.constant 2 : index
    %404 = vector.load %arg22[%c0_236, %c2_237] : memref<16x24xf32, #tpu.memory_space<vmem>>, vector<16x1xf32>
    tpu.vector_store %arg22[%c0_236, %c2_237], %403 {strides = array<i32>} : memref<16x24xf32, #tpu.memory_space<vmem>>, vector<16x1xf32>,
    %405 = vector.extract_strided_slice %398 {offsets = [0, 24], sizes = [16, 1], strides = [1, 1]} : vector<16x41xf32> to vector<16x1xf32>
    %c0_238 = arith.constant 0 : index
    %c3 = arith.constant 3 : index
    %406 = vector.load %arg22[%c0_238, %c3] : memref<16x24xf32, #tpu.memory_space<vmem>>, vector<16x1xf32>
    tpu.vector_store %arg22[%c0_238, %c3], %405 {strides = array<i32>} : memref<16x24xf32, #tpu.memory_space<vmem>>, vector<16x1xf32>,
    %407 = vector.extract_strided_slice %398 {offsets = [0, 32], sizes = [16, 1], strides = [1, 1]} : vector<16x41xf32> to vector<16x1xf32>
    %c0_239 = arith.constant 0 : index
    %c4 = arith.constant 4 : index
    %408 = vector.load %arg22[%c0_239, %c4] : memref<16x24xf32, #tpu.memory_space<vmem>>, vector<16x1xf32>
    tpu.vector_store %arg22[%c0_239, %c4], %407 {strides = array<i32>} : memref<16x24xf32, #tpu.memory_space<vmem>>, vector<16x1xf32>,
    %409 = vector.extract_strided_slice %398 {offsets = [0, 40], sizes = [16, 1], strides = [1, 1]} : vector<16x41xf32> to vector<16x1xf32>
    %c0_240 = arith.constant 0 : index
    %c5 = arith.constant 5 : index
    %410 = vector.load %arg22[%c0_240, %c5] : memref<16x24xf32, #tpu.memory_space<vmem>>, vector<16x1xf32>
    tpu.vector_store %arg22[%c0_240, %c5], %409 {strides = array<i32>} : memref<16x24xf32, #tpu.memory_space<vmem>>, vector<16x1xf32>,
    %c0_241 = arith.constant 0 : index
    %c112_242 = arith.constant 112 : index
    %411 = vector.load %arg21[%c0_241, %c112_242] : memref<16x448xbf16, #tpu.memory_space<vmem>>, vector<16x45xbf16>
    %c0_243 = arith.constant 0 : index
    %c168_244 = arith.constant 168 : index
    %412 = vector.load %arg21[%c0_243, %c168_244] : memref<16x448xbf16, #tpu.memory_space<vmem>>, vector<16x45xbf16>
    %413 = arith.maximumf %411, %412 : vector<16x45xbf16>
    %414 = vector.extract_strided_slice %413 {offsets = [0, 0], sizes = [16, 41], strides = [1, 1]} : vector<16x45xbf16> to vector<16x41xbf16>
    %415 = vector.extract_strided_slice %413 {offsets = [0, 4], sizes = [16, 41], strides = [1, 1]} : vector<16x45xbf16> to vector<16x41xbf16>
    %416 = arith.maximumf %414, %415 : vector<16x41xbf16>
    %417 = arith.extf %416 : vector<16x41xbf16> to vector<16x41xf32>
    %418 = vector.extract_strided_slice %417 {offsets = [0, 0], sizes = [16, 1], strides = [1, 1]} : vector<16x41xf32> to vector<16x1xf32>
    %c0_245 = arith.constant 0 : index
    %c6 = arith.constant 6 : index
    %419 = vector.load %arg22[%c0_245, %c6] : memref<16x24xf32, #tpu.memory_space<vmem>>, vector<16x1xf32>
    tpu.vector_store %arg22[%c0_245, %c6], %418 {strides = array<i32>} : memref<16x24xf32, #tpu.memory_space<vmem>>, vector<16x1xf32>,
    %420 = vector.extract_strided_slice %417 {offsets = [0, 8], sizes = [16, 1], strides = [1, 1]} : vector<16x41xf32> to vector<16x1xf32>
    %c0_246 = arith.constant 0 : index
    %c7 = arith.constant 7 : index
    %421 = vector.load %arg22[%c0_246, %c7] : memref<16x24xf32, #tpu.memory_space<vmem>>, vector<16x1xf32>
    tpu.vector_store %arg22[%c0_246, %c7], %420 {strides = array<i32>} : memref<16x24xf32, #tpu.memory_space<vmem>>, vector<16x1xf32>,
    %422 = vector.extract_strided_slice %417 {offsets = [0, 16], sizes = [16, 1], strides = [1, 1]} : vector<16x41xf32> to vector<16x1xf32>
    %c0_247 = arith.constant 0 : index
    %c8 = arith.constant 8 : index
    %423 = vector.load %arg22[%c0_247, %c8] : memref<16x24xf32, #tpu.memory_space<vmem>>, vector<16x1xf32>
    tpu.vector_store %arg22[%c0_247, %c8], %422 {strides = array<i32>} : memref<16x24xf32, #tpu.memory_space<vmem>>, vector<16x1xf32>,
    %424 = vector.extract_strided_slice %417 {offsets = [0, 24], sizes = [16, 1], strides = [1, 1]} : vector<16x41xf32> to vector<16x1xf32>
    %c0_248 = arith.constant 0 : index
    %c9 = arith.constant 9 : index
    %425 = vector.load %arg22[%c0_248, %c9] : memref<16x24xf32, #tpu.memory_space<vmem>>, vector<16x1xf32>
    tpu.vector_store %arg22[%c0_248, %c9], %424 {strides = array<i32>} : memref<16x24xf32, #tpu.memory_space<vmem>>, vector<16x1xf32>,
    %426 = vector.extract_strided_slice %417 {offsets = [0, 32], sizes = [16, 1], strides = [1, 1]} : vector<16x41xf32> to vector<16x1xf32>
    %c0_249 = arith.constant 0 : index
    %c10 = arith.constant 10 : index
    %427 = vector.load %arg22[%c0_249, %c10] : memref<16x24xf32, #tpu.memory_space<vmem>>, vector<16x1xf32>
    tpu.vector_store %arg22[%c0_249, %c10], %426 {strides = array<i32>} : memref<16x24xf32, #tpu.memory_space<vmem>>, vector<16x1xf32>,
    %428 = vector.extract_strided_slice %417 {offsets = [0, 40], sizes = [16, 1], strides = [1, 1]} : vector<16x41xf32> to vector<16x1xf32>
    %c0_250 = arith.constant 0 : index
    %c11 = arith.constant 11 : index
    %429 = vector.load %arg22[%c0_250, %c11] : memref<16x24xf32, #tpu.memory_space<vmem>>, vector<16x1xf32>
    tpu.vector_store %arg22[%c0_250, %c11], %428 {strides = array<i32>} : memref<16x24xf32, #tpu.memory_space<vmem>>, vector<16x1xf32>,
    %c0_251 = arith.constant 0 : index
    %c224_252 = arith.constant 224 : index
    %430 = vector.load %arg21[%c0_251, %c224_252] : memref<16x448xbf16, #tpu.memory_space<vmem>>, vector<16x45xbf16>
    %c0_253 = arith.constant 0 : index
    %c280_254 = arith.constant 280 : index
    %431 = vector.load %arg21[%c0_253, %c280_254] : memref<16x448xbf16, #tpu.memory_space<vmem>>, vector<16x45xbf16>
    %432 = arith.maximumf %430, %431 : vector<16x45xbf16>
    %433 = vector.extract_strided_slice %432 {offsets = [0, 0], sizes = [16, 41], strides = [1, 1]} : vector<16x45xbf16> to vector<16x41xbf16>
    %434 = vector.extract_strided_slice %432 {offsets = [0, 4], sizes = [16, 41], strides = [1, 1]} : vector<16x45xbf16> to vector<16x41xbf16>
    %435 = arith.maximumf %433, %434 : vector<16x41xbf16>
    %436 = arith.extf %435 : vector<16x41xbf16> to vector<16x41xf32>
    %437 = vector.extract_strided_slice %436 {offsets = [0, 0], sizes = [16, 1], strides = [1, 1]} : vector<16x41xf32> to vector<16x1xf32>
    %c0_255 = arith.constant 0 : index
    %c12 = arith.constant 12 : index
    %438 = vector.load %arg22[%c0_255, %c12] : memref<16x24xf32, #tpu.memory_space<vmem>>, vector<16x1xf32>
    tpu.vector_store %arg22[%c0_255, %c12], %437 {strides = array<i32>} : memref<16x24xf32, #tpu.memory_space<vmem>>, vector<16x1xf32>,
    %439 = vector.extract_strided_slice %436 {offsets = [0, 8], sizes = [16, 1], strides = [1, 1]} : vector<16x41xf32> to vector<16x1xf32>
    %c0_256 = arith.constant 0 : index
    %c13 = arith.constant 13 : index
    %440 = vector.load %arg22[%c0_256, %c13] : memref<16x24xf32, #tpu.memory_space<vmem>>, vector<16x1xf32>
    tpu.vector_store %arg22[%c0_256, %c13], %439 {strides = array<i32>} : memref<16x24xf32, #tpu.memory_space<vmem>>, vector<16x1xf32>,
    %441 = vector.extract_strided_slice %436 {offsets = [0, 16], sizes = [16, 1], strides = [1, 1]} : vector<16x41xf32> to vector<16x1xf32>
    %c0_257 = arith.constant 0 : index
    %c14 = arith.constant 14 : index
    %442 = vector.load %arg22[%c0_257, %c14] : memref<16x24xf32, #tpu.memory_space<vmem>>, vector<16x1xf32>
    tpu.vector_store %arg22[%c0_257, %c14], %441 {strides = array<i32>} : memref<16x24xf32, #tpu.memory_space<vmem>>, vector<16x1xf32>,
    %443 = vector.extract_strided_slice %436 {offsets = [0, 24], sizes = [16, 1], strides = [1, 1]} : vector<16x41xf32> to vector<16x1xf32>
    %c0_258 = arith.constant 0 : index
    %c15 = arith.constant 15 : index
    %444 = vector.load %arg22[%c0_258, %c15] : memref<16x24xf32, #tpu.memory_space<vmem>>, vector<16x1xf32>
    tpu.vector_store %arg22[%c0_258, %c15], %443 {strides = array<i32>} : memref<16x24xf32, #tpu.memory_space<vmem>>, vector<16x1xf32>,
    %445 = vector.extract_strided_slice %436 {offsets = [0, 32], sizes = [16, 1], strides = [1, 1]} : vector<16x41xf32> to vector<16x1xf32>
    %c0_259 = arith.constant 0 : index
    %c16 = arith.constant 16 : index
    %446 = vector.load %arg22[%c0_259, %c16] : memref<16x24xf32, #tpu.memory_space<vmem>>, vector<16x1xf32>
    tpu.vector_store %arg22[%c0_259, %c16], %445 {strides = array<i32>} : memref<16x24xf32, #tpu.memory_space<vmem>>, vector<16x1xf32>,
    %447 = vector.extract_strided_slice %436 {offsets = [0, 40], sizes = [16, 1], strides = [1, 1]} : vector<16x41xf32> to vector<16x1xf32>
    %c0_260 = arith.constant 0 : index
    %c17 = arith.constant 17 : index
    %448 = vector.load %arg22[%c0_260, %c17] : memref<16x24xf32, #tpu.memory_space<vmem>>, vector<16x1xf32>
    tpu.vector_store %arg22[%c0_260, %c17], %447 {strides = array<i32>} : memref<16x24xf32, #tpu.memory_space<vmem>>, vector<16x1xf32>,
    %c0_261 = arith.constant 0 : index
    %c336_262 = arith.constant 336 : index
    %449 = vector.load %arg21[%c0_261, %c336_262] : memref<16x448xbf16, #tpu.memory_space<vmem>>, vector<16x45xbf16>
    %c0_263 = arith.constant 0 : index
    %c392_264 = arith.constant 392 : index
    %450 = vector.load %arg21[%c0_263, %c392_264] : memref<16x448xbf16, #tpu.memory_space<vmem>>, vector<16x45xbf16>
    %451 = arith.maximumf %449, %450 : vector<16x45xbf16>
    %452 = vector.extract_strided_slice %451 {offsets = [0, 0], sizes = [16, 41], strides = [1, 1]} : vector<16x45xbf16> to vector<16x41xbf16>
    %453 = vector.extract_strided_slice %451 {offsets = [0, 4], sizes = [16, 41], strides = [1, 1]} : vector<16x45xbf16> to vector<16x41xbf16>
    %454 = arith.maximumf %452, %453 : vector<16x41xbf16>
    %455 = arith.extf %454 : vector<16x41xbf16> to vector<16x41xf32>
    %456 = vector.extract_strided_slice %455 {offsets = [0, 0], sizes = [16, 1], strides = [1, 1]} : vector<16x41xf32> to vector<16x1xf32>
    %c0_265 = arith.constant 0 : index
    %c18 = arith.constant 18 : index
    %457 = vector.load %arg22[%c0_265, %c18] : memref<16x24xf32, #tpu.memory_space<vmem>>, vector<16x1xf32>
    tpu.vector_store %arg22[%c0_265, %c18], %456 {strides = array<i32>} : memref<16x24xf32, #tpu.memory_space<vmem>>, vector<16x1xf32>,
    %458 = vector.extract_strided_slice %455 {offsets = [0, 8], sizes = [16, 1], strides = [1, 1]} : vector<16x41xf32> to vector<16x1xf32>
    %c0_266 = arith.constant 0 : index
    %c19 = arith.constant 19 : index
    %459 = vector.load %arg22[%c0_266, %c19] : memref<16x24xf32, #tpu.memory_space<vmem>>, vector<16x1xf32>
    tpu.vector_store %arg22[%c0_266, %c19], %458 {strides = array<i32>} : memref<16x24xf32, #tpu.memory_space<vmem>>, vector<16x1xf32>,
    %460 = vector.extract_strided_slice %455 {offsets = [0, 16], sizes = [16, 1], strides = [1, 1]} : vector<16x41xf32> to vector<16x1xf32>
    %c0_267 = arith.constant 0 : index
    %c20 = arith.constant 20 : index
    %461 = vector.load %arg22[%c0_267, %c20] : memref<16x24xf32, #tpu.memory_space<vmem>>, vector<16x1xf32>
    tpu.vector_store %arg22[%c0_267, %c20], %460 {strides = array<i32>} : memref<16x24xf32, #tpu.memory_space<vmem>>, vector<16x1xf32>,
    %462 = vector.extract_strided_slice %455 {offsets = [0, 24], sizes = [16, 1], strides = [1, 1]} : vector<16x41xf32> to vector<16x1xf32>
    %c0_268 = arith.constant 0 : index
    %c21 = arith.constant 21 : index
    %463 = vector.load %arg22[%c0_268, %c21] : memref<16x24xf32, #tpu.memory_space<vmem>>, vector<16x1xf32>
    tpu.vector_store %arg22[%c0_268, %c21], %462 {strides = array<i32>} : memref<16x24xf32, #tpu.memory_space<vmem>>, vector<16x1xf32>,
    %464 = vector.extract_strided_slice %455 {offsets = [0, 32], sizes = [16, 1], strides = [1, 1]} : vector<16x41xf32> to vector<16x1xf32>
    %c0_269 = arith.constant 0 : index
    %c22 = arith.constant 22 : index
    %465 = vector.load %arg22[%c0_269, %c22] : memref<16x24xf32, #tpu.memory_space<vmem>>, vector<16x1xf32>
    tpu.vector_store %arg22[%c0_269, %c22], %464 {strides = array<i32>} : memref<16x24xf32, #tpu.memory_space<vmem>>, vector<16x1xf32>,
    %466 = vector.extract_strided_slice %455 {offsets = [0, 40], sizes = [16, 1], strides = [1, 1]} : vector<16x41xf32> to vector<16x1xf32>
    %c0_270 = arith.constant 0 : index
    %c23 = arith.constant 23 : index
    %467 = vector.load %arg22[%c0_270, %c23] : memref<16x24xf32, #tpu.memory_space<vmem>>, vector<16x1xf32>
    tpu.vector_store %arg22[%c0_270, %c23], %466 {strides = array<i32>} : memref<16x24xf32, #tpu.memory_space<vmem>>, vector<16x1xf32>,
    %cst_271 = arith.constant 0.000000e+00 : f32
    %468 = vector.broadcast %cst_271 : f32 to vector<8x384xf32>
    %c0_272 = arith.constant 0 : index
    %c0_273 = arith.constant 0 : index
    %469 = vector.load %arg23[%c0_272, %c0_273] : memref<8x384xf32, #tpu.memory_space<vmem>>, vector<8x384xf32>
    tpu.vector_store %arg23[%c0_272, %c0_273], %468 {strides = array<i32>} : memref<8x384xf32, #tpu.memory_space<vmem>>, vector<8x384xf32>,
    %c0_274 = arith.constant 0 : index
    %c0_275 = arith.constant 0 : index
    %470 = vector.load %arg22[%c0_274, %c0_275] : memref<16x24xf32, #tpu.memory_space<vmem>>, vector<1x24xf32>
    %c0_276 = arith.constant 0 : index
    %c0_277 = arith.constant 0 : index
    %471 = vector.load %arg23[%c0_276, %c0_277] : memref<8x384xf32, #tpu.memory_space<vmem>>, vector<1x24xf32>
    tpu.vector_store %arg23[%c0_276, %c0_277], %470 {strides = array<i32>} : memref<8x384xf32, #tpu.memory_space<vmem>>, vector<1x24xf32>,
    %c1_278 = arith.constant 1 : index
    %c0_279 = arith.constant 0 : index
    %472 = vector.load %arg22[%c1_278, %c0_279] : memref<16x24xf32, #tpu.memory_space<vmem>>, vector<1x24xf32>
    %c0_280 = arith.constant 0 : index
    %c24 = arith.constant 24 : index
    %473 = vector.load %arg23[%c0_280, %c24] : memref<8x384xf32, #tpu.memory_space<vmem>>, vector<1x24xf32>
    tpu.vector_store %arg23[%c0_280, %c24], %472 {strides = array<i32>} : memref<8x384xf32, #tpu.memory_space<vmem>>, vector<1x24xf32>,
    %c2_281 = arith.constant 2 : index
    %c0_282 = arith.constant 0 : index
    %474 = vector.load %arg22[%c2_281, %c0_282] : memref<16x24xf32, #tpu.memory_space<vmem>>, vector<1x24xf32>
    %c0_283 = arith.constant 0 : index
    %c48 = arith.constant 48 : index
    %475 = vector.load %arg23[%c0_283, %c48] : memref<8x384xf32, #tpu.memory_space<vmem>>, vector<1x24xf32>
    tpu.vector_store %arg23[%c0_283, %c48], %474 {strides = array<i32>} : memref<8x384xf32, #tpu.memory_space<vmem>>, vector<1x24xf32>,
    %c3_284 = arith.constant 3 : index
    %c0_285 = arith.constant 0 : index
    %476 = vector.load %arg22[%c3_284, %c0_285] : memref<16x24xf32, #tpu.memory_space<vmem>>, vector<1x24xf32>
    %c0_286 = arith.constant 0 : index
    %c72 = arith.constant 72 : index
    %477 = vector.load %arg23[%c0_286, %c72] : memref<8x384xf32, #tpu.memory_space<vmem>>, vector<1x24xf32>
    tpu.vector_store %arg23[%c0_286, %c72], %476 {strides = array<i32>} : memref<8x384xf32, #tpu.memory_space<vmem>>, vector<1x24xf32>,
    %c4_287 = arith.constant 4 : index
    %c0_288 = arith.constant 0 : index
    %478 = vector.load %arg22[%c4_287, %c0_288] : memref<16x24xf32, #tpu.memory_space<vmem>>, vector<1x24xf32>
    %c0_289 = arith.constant 0 : index
    %c96 = arith.constant 96 : index
    %479 = vector.load %arg23[%c0_289, %c96] : memref<8x384xf32, #tpu.memory_space<vmem>>, vector<1x24xf32>
    tpu.vector_store %arg23[%c0_289, %c96], %478 {strides = array<i32>} : memref<8x384xf32, #tpu.memory_space<vmem>>, vector<1x24xf32>,
    %c5_290 = arith.constant 5 : index
    %c0_291 = arith.constant 0 : index
    %480 = vector.load %arg22[%c5_290, %c0_291] : memref<16x24xf32, #tpu.memory_space<vmem>>, vector<1x24xf32>
    %c0_292 = arith.constant 0 : index
    %c120_293 = arith.constant 120 : index
    %481 = vector.load %arg23[%c0_292, %c120_293] : memref<8x384xf32, #tpu.memory_space<vmem>>, vector<1x24xf32>
    tpu.vector_store %arg23[%c0_292, %c120_293], %480 {strides = array<i32>} : memref<8x384xf32, #tpu.memory_space<vmem>>, vector<1x24xf32>,
    %c6_294 = arith.constant 6 : index
    %c0_295 = arith.constant 0 : index
    %482 = vector.load %arg22[%c6_294, %c0_295] : memref<16x24xf32, #tpu.memory_space<vmem>>, vector<1x24xf32>
    %c0_296 = arith.constant 0 : index
    %c144 = arith.constant 144 : index
    %483 = vector.load %arg23[%c0_296, %c144] : memref<8x384xf32, #tpu.memory_space<vmem>>, vector<1x24xf32>
    tpu.vector_store %arg23[%c0_296, %c144], %482 {strides = array<i32>} : memref<8x384xf32, #tpu.memory_space<vmem>>, vector<1x24xf32>,
    %c7_297 = arith.constant 7 : index
    %c0_298 = arith.constant 0 : index
    %484 = vector.load %arg22[%c7_297, %c0_298] : memref<16x24xf32, #tpu.memory_space<vmem>>, vector<1x24xf32>
    %c0_299 = arith.constant 0 : index
    %c168_300 = arith.constant 168 : index
    %485 = vector.load %arg23[%c0_299, %c168_300] : memref<8x384xf32, #tpu.memory_space<vmem>>, vector<1x24xf32>
    tpu.vector_store %arg23[%c0_299, %c168_300], %484 {strides = array<i32>} : memref<8x384xf32, #tpu.memory_space<vmem>>, vector<1x24xf32>,
    %c8_301 = arith.constant 8 : index
    %c0_302 = arith.constant 0 : index
    %486 = vector.load %arg22[%c8_301, %c0_302] : memref<16x24xf32, #tpu.memory_space<vmem>>, vector<1x24xf32>
    %c0_303 = arith.constant 0 : index
    %c192 = arith.constant 192 : index
    %487 = vector.load %arg23[%c0_303, %c192] : memref<8x384xf32, #tpu.memory_space<vmem>>, vector<1x24xf32>
    tpu.vector_store %arg23[%c0_303, %c192], %486 {strides = array<i32>} : memref<8x384xf32, #tpu.memory_space<vmem>>, vector<1x24xf32>,
    %c9_304 = arith.constant 9 : index
    %c0_305 = arith.constant 0 : index
    %488 = vector.load %arg22[%c9_304, %c0_305] : memref<16x24xf32, #tpu.memory_space<vmem>>, vector<1x24xf32>
    %c0_306 = arith.constant 0 : index
    %c216 = arith.constant 216 : index
    %489 = vector.load %arg23[%c0_306, %c216] : memref<8x384xf32, #tpu.memory_space<vmem>>, vector<1x24xf32>
    tpu.vector_store %arg23[%c0_306, %c216], %488 {strides = array<i32>} : memref<8x384xf32, #tpu.memory_space<vmem>>, vector<1x24xf32>,
    %c10_307 = arith.constant 10 : index
    %c0_308 = arith.constant 0 : index
    %490 = vector.load %arg22[%c10_307, %c0_308] : memref<16x24xf32, #tpu.memory_space<vmem>>, vector<1x24xf32>
    %c0_309 = arith.constant 0 : index
    %c240_310 = arith.constant 240 : index
    %491 = vector.load %arg23[%c0_309, %c240_310] : memref<8x384xf32, #tpu.memory_space<vmem>>, vector<1x24xf32>
    tpu.vector_store %arg23[%c0_309, %c240_310], %490 {strides = array<i32>} : memref<8x384xf32, #tpu.memory_space<vmem>>, vector<1x24xf32>,
    %c11_311 = arith.constant 11 : index
    %c0_312 = arith.constant 0 : index
    %492 = vector.load %arg22[%c11_311, %c0_312] : memref<16x24xf32, #tpu.memory_space<vmem>>, vector<1x24xf32>
    %c0_313 = arith.constant 0 : index
    %c264 = arith.constant 264 : index
    %493 = vector.load %arg23[%c0_313, %c264] : memref<8x384xf32, #tpu.memory_space<vmem>>, vector<1x24xf32>
    tpu.vector_store %arg23[%c0_313, %c264], %492 {strides = array<i32>} : memref<8x384xf32, #tpu.memory_space<vmem>>, vector<1x24xf32>,
    %c12_314 = arith.constant 12 : index
    %c0_315 = arith.constant 0 : index
    %494 = vector.load %arg22[%c12_314, %c0_315] : memref<16x24xf32, #tpu.memory_space<vmem>>, vector<1x24xf32>
    %c0_316 = arith.constant 0 : index
    %c288 = arith.constant 288 : index
    %495 = vector.load %arg23[%c0_316, %c288] : memref<8x384xf32, #tpu.memory_space<vmem>>, vector<1x24xf32>
    tpu.vector_store %arg23[%c0_316, %c288], %494 {strides = array<i32>} : memref<8x384xf32, #tpu.memory_space<vmem>>, vector<1x24xf32>,
    %c13_317 = arith.constant 13 : index
    %c0_318 = arith.constant 0 : index
    %496 = vector.load %arg22[%c13_317, %c0_318] : memref<16x24xf32, #tpu.memory_space<vmem>>, vector<1x24xf32>
    %c0_319 = arith.constant 0 : index
    %c312 = arith.constant 312 : index
    %497 = vector.load %arg23[%c0_319, %c312] : memref<8x384xf32, #tpu.memory_space<vmem>>, vector<1x24xf32>
    tpu.vector_store %arg23[%c0_319, %c312], %496 {strides = array<i32>} : memref<8x384xf32, #tpu.memory_space<vmem>>, vector<1x24xf32>,
    %c14_320 = arith.constant 14 : index
    %c0_321 = arith.constant 0 : index
    %498 = vector.load %arg22[%c14_320, %c0_321] : memref<16x24xf32, #tpu.memory_space<vmem>>, vector<1x24xf32>
    %c0_322 = arith.constant 0 : index
    %c336_323 = arith.constant 336 : index
    %499 = vector.load %arg23[%c0_322, %c336_323] : memref<8x384xf32, #tpu.memory_space<vmem>>, vector<1x24xf32>
    tpu.vector_store %arg23[%c0_322, %c336_323], %498 {strides = array<i32>} : memref<8x384xf32, #tpu.memory_space<vmem>>, vector<1x24xf32>,
    %c15_324 = arith.constant 15 : index
    %c0_325 = arith.constant 0 : index
    %500 = vector.load %arg22[%c15_324, %c0_325] : memref<16x24xf32, #tpu.memory_space<vmem>>, vector<1x24xf32>
    %c0_326 = arith.constant 0 : index
    %c360_327 = arith.constant 360 : index
    %501 = vector.load %arg23[%c0_326, %c360_327] : memref<8x384xf32, #tpu.memory_space<vmem>>, vector<1x24xf32>
    tpu.vector_store %arg23[%c0_326, %c360_327], %500 {strides = array<i32>} : memref<8x384xf32, #tpu.memory_space<vmem>>, vector<1x24xf32>,
    %c0_328 = arith.constant 0 : index
    %c0_329 = arith.constant 0 : index
    %502 = vector.load %arg23[%c0_328, %c0_329] : memref<8x384xf32, #tpu.memory_space<vmem>>, vector<8x384xf32>
    %503 = arith.index_cast %arg0 : i32 to index
    %504 = memref.load %arg2[%503] : memref<2xf32, #tpu.memory_space<smem>>
    %c0_330 = arith.constant 0 : index
    %c0_331 = arith.constant 0 : index
    %505 = vector.load %arg9[%c0_330, %c0_331] : memref<384x128xf32, #tpu.memory_space<vmem>>, vector<384x128xf32>
    %cst_332 = arith.constant dense<0.000000e+00> : vector<8x128xf32>
    %506 = tpu.matmul %502, %505, %cst_332 {dimension_numbers = #tpu.dot_dimension_numbers<[1], [0], [0], [1], [0, 0, 1, 1], [], []>} : vector<8x384xf32>, vector<384x128xf32>, vector<8x128xf32> -> vector<8x128xf32>
    %c0_333 = arith.constant 0 : index
    %c0_334 = arith.constant 0 : index
    %507 = vector.load %arg10[%c0_333, %c0_334] : memref<1x128xf32, #tpu.memory_space<vmem>>, vector<1x128xf32>
    %508 = vector.broadcast %504 : f32 to vector<1x128xf32>
    %509 = arith.mulf %508, %507 : vector<1x128xf32>
    %510 = vector.broadcast %509 : vector<1x128xf32> to vector<8x128xf32>
    %511 = arith.addf %506, %510 : vector<8x128xf32>
    %c0_335 = arith.constant 0 : index
    %c0_336 = arith.constant 0 : index
    %512 = vector.load %arg11[%c0_335, %c0_336] : memref<1x128xf32, #tpu.memory_space<vmem>>, vector<1x128xf32>
    %513 = vector.broadcast %512 : vector<1x128xf32> to vector<8x128xf32>
    %514 = arith.addf %511, %513 : vector<8x128xf32>
    %cst_337 = arith.constant 0.000000e+00 : f32
    %515 = vector.broadcast %cst_337 : f32 to vector<8x128xf32>
    %516 = arith.maximumf %514, %515 : vector<8x128xf32>
    %c0_338 = arith.constant 0 : index
    %c0_339 = arith.constant 0 : index
    %517 = vector.load %arg12[%c0_338, %c0_339] : memref<128x64xf32, #tpu.memory_space<vmem>>, vector<128x64xf32>
    %cst_340 = arith.constant dense<0.000000e+00> : vector<8x64xf32>
    %518 = tpu.matmul %516, %517, %cst_340 {dimension_numbers = #tpu.dot_dimension_numbers<[1], [0], [0], [1], [0, 0, 1, 1], [], []>} : vector<8x128xf32>, vector<128x64xf32>, vector<8x64xf32> -> vector<8x64xf32>
    %c0_341 = arith.constant 0 : index
    %c0_342 = arith.constant 0 : index
    %519 = vector.load %arg13[%c0_341, %c0_342] : memref<1x64xf32, #tpu.memory_space<vmem>>, vector<1x64xf32>
    %520 = vector.broadcast %519 : vector<1x64xf32> to vector<8x64xf32>
    %521 = arith.addf %518, %520 : vector<8x64xf32>
    %cst_343 = arith.constant 0.000000e+00 : f32
    %522 = vector.broadcast %cst_343 : f32 to vector<8x64xf32>
    %523 = arith.maximumf %521, %522 : vector<8x64xf32>
    %c0_344 = arith.constant 0 : index
    %c0_345 = arith.constant 0 : index
    %524 = vector.load %arg14[%c0_344, %c0_345] : memref<64x2xf32, #tpu.memory_space<vmem>>, vector<64x2xf32>
    %cst_346 = arith.constant dense<0.000000e+00> : vector<8x2xf32>
    %525 = tpu.matmul %523, %524, %cst_346 {dimension_numbers = #tpu.dot_dimension_numbers<[1], [0], [0], [1], [0, 0, 1, 1], [], []>} : vector<8x64xf32>, vector<64x2xf32>, vector<8x2xf32> -> vector<8x2xf32>
    %c0_347 = arith.constant 0 : index
    %c0_348 = arith.constant 0 : index
    %526 = vector.load %arg15[%c0_347, %c0_348] : memref<1x2xf32, #tpu.memory_space<vmem>>, vector<1x2xf32>
    %527 = vector.broadcast %526 : vector<1x2xf32> to vector<8x2xf32>
    %528 = arith.addf %525, %527 : vector<8x2xf32>
    %529 = vector.extract_strided_slice %528 {offsets = [0, 0], sizes = [1, 2], strides = [1, 1]} : vector<8x2xf32> to vector<1x2xf32>
    %c0_349 = arith.constant 0 : index
    %c0_350 = arith.constant 0 : index
    %c0_351 = arith.constant 0 : index
    %530 = vector.load %arg16[%c0_349, %c0_350, %c0_351] : memref<1x1x2xf32, #tpu.memory_space<vmem>>, vector<1x1x2xf32>
    %531 = vector.shape_cast %530 : vector<1x1x2xf32> to vector<1x2xf32>
    %532 = vector.shape_cast %529 : vector<1x2xf32> to vector<1x1x2xf32>
    tpu.vector_store %arg16[%c0_349, %c0_350, %c0_351], %532 {strides = array<i32>} : memref<1x1x2xf32, #tpu.memory_space<vmem>>, vector<1x1x2xf32>,
    return
  }
  func.func @transform_0(%arg0: i32) -> (i32, i32, i32) {
    %c0_i32 = arith.constant 0 : i32
    %c0_i32_0 = arith.constant 0 : i32
    %c0_i32_1 = arith.constant 0 : i32
    return %arg0, %c0_i32, %c0_i32_0 : i32, i32, i32
  }
  func.func @transform_1(%arg0: i32) -> i32 {
    %c0_i32 = arith.constant 0 : i32
    %c0_i32_0 = arith.constant 0 : i32
    return %c0_i32 : i32
  }
  func.func @transform_2(%arg0: i32) -> (i32, i32) {
    %c0_i32 = arith.constant 0 : i32
    %c0_i32_0 = arith.constant 0 : i32
    %c0_i32_1 = arith.constant 0 : i32
    return %c0_i32, %c0_i32_0 : i32, i32
  }
  func.func @transform_3(%arg0: i32) -> (i32, i32) {
    %c0_i32 = arith.constant 0 : i32
    %c0_i32_0 = arith.constant 0 : i32
    %c0_i32_1 = arith.constant 0 : i32
    return %c0_i32, %c0_i32_0 : i32, i32
  }
  func.func @transform_4(%arg0: i32) -> (i32, i32, i32) {
    %c0_i32 = arith.constant 0 : i32
    %c0_i32_0 = arith.constant 0 : i32
    %c0_i32_1 = arith.constant 0 : i32
    %c0_i32_2 = arith.constant 0 : i32
    return %c0_i32, %c0_i32_0, %c0_i32_1 : i32, i32, i32
  }
  func.func @transform_5(%arg0: i32) -> (i32, i32) {
    %c0_i32 = arith.constant 0 : i32
    %c0_i32_0 = arith.constant 0 : i32
    %c0_i32_1 = arith.constant 0 : i32
    return %c0_i32, %c0_i32_0 : i32, i32
  }
  func.func @transform_6(%arg0: i32) -> (i32, i32, i32) {
    %c0_i32 = arith.constant 0 : i32
    %c0_i32_0 = arith.constant 0 : i32
    %c0_i32_1 = arith.constant 0 : i32
    %c0_i32_2 = arith.constant 0 : i32
    return %c0_i32, %c0_i32_0, %c0_i32_1 : i32, i32, i32
  }
  func.func @transform_7(%arg0: i32) -> (i32, i32) {
    %c0_i32 = arith.constant 0 : i32
    %c0_i32_0 = arith.constant 0 : i32
    %c0_i32_1 = arith.constant 0 : i32
    return %c0_i32, %c0_i32_0 : i32, i32
  }
  func.func @transform_8(%arg0: i32) -> (i32, i32) {
    %c0_i32 = arith.constant 0 : i32
    %c0_i32_0 = arith.constant 0 : i32
    %c0_i32_1 = arith.constant 0 : i32
    return %c0_i32, %c0_i32_0 : i32, i32
  }
  func.func @transform_9(%arg0: i32) -> (i32, i32) {
    %c0_i32 = arith.constant 0 : i32
    %c0_i32_0 = arith.constant 0 : i32
    %c0_i32_1 = arith.constant 0 : i32
    return %c0_i32, %c0_i32_0 : i32, i32
  }
  func.func @transform_10(%arg0: i32) -> (i32, i32) {
    %c0_i32 = arith.constant 0 : i32
    %c0_i32_0 = arith.constant 0 : i32
    %c0_i32_1 = arith.constant 0 : i32
    return %c0_i32, %c0_i32_0 : i32, i32
  }
  func.func @transform_11(%arg0: i32) -> (i32, i32) {
    %c0_i32 = arith.constant 0 : i32
    %c0_i32_0 = arith.constant 0 : i32
    %c0_i32_1 = arith.constant 0 : i32
    return %c0_i32, %c0_i32_0 : i32, i32
  }
  func.func @transform_12(%arg0: i32) -> (i32, i32) {
    %c0_i32 = arith.constant 0 : i32
    %c0_i32_0 = arith.constant 0 : i32
    %c0_i32_1 = arith.constant 0 : i32
    return %c0_i32, %c0_i32_0 : i32, i32
  }
  func.func @transform_13(%arg0: i32) -> (i32, i32) {
    %c0_i32 = arith.constant 0 : i32
    %c0_i32_0 = arith.constant 0 : i32
    %c0_i32_1 = arith.constant 0 : i32
    return %c0_i32, %c0_i32_0 : i32, i32
  }
  func.func @transform_14(%arg0: i32) -> (i32, i32) {
    %c0_i32 = arith.constant 0 : i32
    %c0_i32_0 = arith.constant 0 : i32
    %c0_i32_1 = arith.constant 0 : i32
    return %c0_i32, %c0_i32_0 : i32, i32
  }
  func.func @transform_15(%arg0: i32) -> (i32, i32, i32) {
    %c0_i32 = arith.constant 0 : i32
    %c0_i32_0 = arith.constant 0 : i32
    %c0_i32_1 = arith.constant 0 : i32
    return %arg0, %c0_i32, %c0_i32_0 : i32, i32, i32
  }
}

</mosaic_0001>

<llo_original>
// kernel: cnn_forward.1
$region0: #{cnn_forward.1}
  #allocation0 [shape = 'u32[]', space=smem, size = 0x4, offset = 0x4, fixed_abs, tag = 'smem constant byte address 0x4 - core index']
  #allocation1 [shape = 'u32[72,128]{1,0:T(1,128)}', space=vmem, size = 0x9000, scoped, tag = 'internal scratch']
  #allocation2 [shape = 'bf16[32,2816]{1,0:T(8,128)(2,1)}', space=vmem, size = 0x2c000, scoped, tag = 'scratch operand']
  #allocation3 [shape = 'bf16[32,1344]{1,0:T(8,128)(2,1)}', space=vmem, size = 0x16000, scoped, tag = 'scratch operand']
  #allocation4 [shape = 'bf16[16,1216]{1,0:T(8,128)(2,1)}', space=vmem, size = 0xa000, scoped, tag = 'scratch operand']
  #allocation5 [shape = 'bf16[16,576]{1,0:T(8,128)(2,1)}', space=vmem, size = 0x5000, scoped, tag = 'scratch operand']
  #allocation6 [shape = 'bf16[16,448]{1,0:T(8,128)(2,1)}', space=vmem, size = 0x4000, scoped, tag = 'scratch operand']
  #allocation7 [shape = 'f32[16,24]{1,0:T(8,128)}', space=vmem, size = 0x2000, scoped, tag = 'scratch operand']
  #allocation8 [shape = 'f32[8,384]{1,0:T(8,128)}', space=vmem, size = 0x3000, scoped, tag = 'scratch operand']
  %s0 = inlined_call_operand.vmem [shape: bf16[2,16,2772], index: 0, kind: input, shape index: {}]
  %s1 = inlined_call_operand.vmem [shape: f32[2], index: 1, kind: input, shape index: {}]
  %s2 = inlined_call_operand.vmem [shape: bf16[32,16], index: 2, kind: input, shape index: {}]
  %s3 = inlined_call_operand.vmem [shape: f32[32,1], index: 3, kind: input, shape index: {}]
  %s4 = inlined_call_operand.vmem [shape: bf16[3,16,96], index: 4, kind: input, shape index: {}]
  %s5 = inlined_call_operand.vmem [shape: f32[16,1], index: 5, kind: input, shape index: {}]
  %s6 = inlined_call_operand.vmem [shape: bf16[3,16,48], index: 6, kind: input, shape index: {}]
  %s7 = inlined_call_operand.vmem [shape: f32[16,1], index: 7, kind: input, shape index: {}]
  %s8 = inlined_call_operand.vmem [shape: f32[384,128], index: 8, kind: input, shape index: {}]
  %s9 = inlined_call_operand.vmem [shape: f32[1,128], index: 9, kind: input, shape index: {}]
  %s10 = inlined_call_operand.vmem [shape: f32[1,128], index: 10, kind: input, shape index: {}]
  %s11 = inlined_call_operand.vmem [shape: f32[128,64], index: 11, kind: input, shape index: {}]
  %s12 = inlined_call_operand.vmem [shape: f32[1,64], index: 12, kind: input, shape index: {}]
  %s13 = inlined_call_operand.vmem [shape: f32[64,2], index: 13, kind: input, shape index: {}]
  %s14 = inlined_call_operand.vmem [shape: f32[1,2], index: 14, kind: input, shape index: {}]
  %s15 = inlined_call_operand.hbm [shape: f32[2,1,2], index: 15, kind: output, shape index: {}]
  %s16 = sld [smem:[#allocation0]]
  $region97: #{cnn_forward.1} parent=0
    _
  %s18 = ssub.s32 1, %s16
  %s19 = scalar_select 0, %s18, %s16
  $region1: #{cnn_forward.1} parent=0
    #allocation9 [shape = 'u8[512]{0}', space=smem, size = 0x200, scoped, tag = 'input window, operand 1, single buffered']
    #allocation10 [shape = 's32[2]{0}', space=sflag, size = 0x8, scoped, tag = 'scoped memory for cnn_forward.1']
    #allocation11 [shape = 's32[2]{0}', space=sflag, size = 0x8, scoped, tag = 'scoped memory for cnn_forward.1']
    #allocation12 [shape = 'u8[1024]{0}', space=vmem, size = 0x400, scoped, tag = 'output window, operand 0']
    %20 = vsyncpa [#allocation11], 0
    %21 = vsyncpa [#allocation10], 0
    %s22 = scalar_lea.sflag [#allocation10], 1
    %23 = vsyncpa %s22, 0
    loop: start=0, step=1, limit=4
    $region2: #{cnn_forward.1} parent=1 // loop_pre_header
      _
    $region3: #{cnn_forward.1} parent=1 // loop_header
      %s25 = sphi 0, %s29
      %p26 = scmp.ge.s32.totalorder %s25, 4
      %s35 = sphi 0, %s37
      %s38 = sphi 0, %s35
      %s39 = sphi 0, %s38
      %s55 = sphi 0, %s39
      %s59 = sphi 0, %s59
      %s61 = sphi 0, %s59
      %s62 = sphi 0, %s61
      %s76 = sphi 0, %s62
      %s80 = sphi 0, %s80
      %s82 = sphi 0, %s80
      %s83 = sphi 0, %s82
      %s97 = sphi 0, %s83
      %s101 = sphi 0, %s101
      %s103 = sphi 0, %s101
      %s104 = sphi 0, %s103
      %s118 = sphi 0, %s104
      %s122 = sphi 0, %s122
      %s124 = sphi 0, %s122
      %s125 = sphi 0, %s124
      %s139 = sphi 0, %s125
      %s143 = sphi 0, %s143
      %s145 = sphi 0, %s143
      %s146 = sphi 0, %s145
      %s160 = sphi 0, %s146
      %s164 = sphi 0, %s164
      %s166 = sphi 0, %s164
      %s167 = sphi 0, %s166
      %s181 = sphi 0, %s167
      %s185 = sphi 0, %s185
      %s187 = sphi 0, %s185
      %s188 = sphi 0, %s187
      %s202 = sphi 0, %s188
      %s206 = sphi 0, %s206
      %s208 = sphi 0, %s206
      %s209 = sphi 0, %s208
      %s223 = sphi 0, %s209
      %s227 = sphi 0, %s227
      %s229 = sphi 0, %s227
      %s230 = sphi 0, %s229
      %s244 = sphi 0, %s230
      %s248 = sphi 0, %s248
      %s250 = sphi 0, %s248
      %s251 = sphi 0, %s250
      %s265 = sphi 0, %s251
      %s269 = sphi 0, %s269
      %s271 = sphi 0, %s269
      %s272 = sphi 0, %s271
      %s286 = sphi 0, %s272
      %s290 = sphi 0, %s290
      %s292 = sphi 0, %s290
      %s293 = sphi 0, %s292
      %s307 = sphi 0, %s293
      %s311 = sphi 0, %s311
      %s313 = sphi 0, %s311
      %s314 = sphi 0, %s313
      %s328 = sphi 0, %s314
      %s332 = sphi 0, %s332
      %s334 = sphi 0, %s332
      %s335 = sphi 0, %s334
      %s349 = sphi 0, %s335
      %s355 = sphi 0, %s357
      %s358 = sphi 0, %s355
      %s359 = sphi 0, %s358
      %s375 = sphi 0, %s359
    $region4: #{cnn_forward.1} parent=1 // loop_header_branch
      %28 = sbr.rel (%p26) target = $region8
    $region5: #{cnn_forward.1} parent=1 // loop_body
      %s30 = ssub.s32 %s25, 1
      %s31 = ssub.s32 %s25, 2
      %s32 = sadd.s32 %s25, 1
      %s33 = ssub.s32 %s25, %s32
      %p34 = scmp.eq.s32.totalorder %s33, 0
      %s36 = sadd.s32 %s35, 1
      %s37 = scalar_select %p34, %s35, %s36
      %p40 = pneg %p34
      %p41 = scmp.eq.s32.totalorder %s25, 1
      %p42 = por %p40, %p41
      %p43 = scmp.ne.s32.totalorder %s35, %s38
      %p44 = scmp.eq.s32.totalorder %s25, 0
      %p45 = por %p43, %p44
      %p46 = scmp.ne.s32.totalorder %s35, %s38
      %p47 = scmp.eq.s32.totalorder %s30, 1
      %p48 = por %p46, %p47
      %p49 = scmp.ne.s32.totalorder %s38, %s39
      %p50 = scmp.eq.s32.totalorder %s30, 0
      %p51 = por %p49, %p50
      %p52 = scmp.ne.s32.totalorder %s38, %s39
      %p53 = scmp.eq.s32.totalorder %s31, 1
      %p54 = por %p52, %p53
      %p56 = scmp.ne.s32.totalorder %s39, %s55
      %p57 = scmp.eq.s32.totalorder %s31, 0
      %p58 = por %p56, %p57
      %s60 = sadd.s32 %s59, 1
      %p63 = scmp.eq.s32.totalorder %s25, 1
      %p64 = scmp.ne.s32.totalorder %s59, %s61
      %p65 = scmp.eq.s32.totalorder %s25, 0
      %p66 = por %p64, %p65
      %p67 = scmp.ne.s32.totalorder %s59, %s61
      %p68 = scmp.eq.s32.totalorder %s30, 1
      %p69 = por %p67, %p68
      %p70 = scmp.ne.s32.totalorder %s61, %s62
      %p71 = scmp.eq.s32.totalorder %s30, 0
      %p72 = por %p70, %p71
      %p73 = scmp.ne.s32.totalorder %s61, %s62
      %p74 = scmp.eq.s32.totalorder %s31, 1
      %p75 = por %p73, %p74
      %p77 = scmp.ne.s32.totalorder %s62, %s76
      %p78 = scmp.eq.s32.totalorder %s31, 0
      %p79 = por %p77, %p78
      %s81 = sadd.s32 %s80, 1
      %p84 = scmp.eq.s32.totalorder %s25, 1
      %p85 = scmp.ne.s32.totalorder %s80, %s82
      %p86 = scmp.eq.s32.totalorder %s25, 0
      %p87 = por %p85, %p86
      %p88 = scmp.ne.s32.totalorder %s80, %s82
      %p89 = scmp.eq.s32.totalorder %s30, 1
      %p90 = por %p88, %p89
      %p91 = scmp.ne.s32.totalorder %s82, %s83
      %p92 = scmp.eq.s32.totalorder %s30, 0
      %p93 = por %p91, %p92
      %p94 = scmp.ne.s32.totalorder %s82, %s83
      %p95 = scmp.eq.s32.totalorder %s31, 1
      %p96 = por %p94, %p95
      %p98 = scmp.ne.s32.totalorder %s83, %s97
      %p99 = scmp.eq.s32.totalorder %s31, 0
      %p100 = por %p98, %p99
      %s102 = sadd.s32 %s101, 1
      %p105 = scmp.eq.s32.totalorder %s25, 1
      %p106 = scmp.ne.s32.totalorder %s101, %s103
      %p107 = scmp.eq.s32.totalorder %s25, 0
      %p108 = por %p106, %p107
      %p109 = scmp.ne.s32.totalorder %s101, %s103
      %p110 = scmp.eq.s32.totalorder %s30, 1
      %p111 = por %p109, %p110
      %p112 = scmp.ne.s32.totalorder %s103, %s104
      %p113 = scmp.eq.s32.totalorder %s30, 0
      %p114 = por %p112, %p113
      %p115 = scmp.ne.s32.totalorder %s103, %s104
      %p116 = scmp.eq.s32.totalorder %s31, 1
      %p117 = por %p115, %p116
      %p119 = scmp.ne.s32.totalorder %s104, %s118
      %p120 = scmp.eq.s32.totalorder %s31, 0
      %p121 = por %p119, %p120
      %s123 = sadd.s32 %s122, 1
      %p126 = scmp.eq.s32.totalorder %s25, 1
      %p127 = scmp.ne.s32.totalorder %s122, %s124
      %p128 = scmp.eq.s32.totalorder %s25, 0
      %p129 = por %p127, %p128
      %p130 = scmp.ne.s32.totalorder %s122, %s124
      %p131 = scmp.eq.s32.totalorder %s30, 1
      %p132 = por %p130, %p131
      %p133 = scmp.ne.s32.totalorder %s124, %s125
      %p134 = scmp.eq.s32.totalorder %s30, 0
      %p135 = por %p133, %p134
      %p136 = scmp.ne.s32.totalorder %s124, %s125
      %p137 = scmp.eq.s32.totalorder %s31, 1
      %p138 = por %p136, %p137
      %p140 = scmp.ne.s32.totalorder %s125, %s139
      %p141 = scmp.eq.s32.totalorder %s31, 0
      %p142 = por %p140, %p141
      %s144 = sadd.s32 %s143, 1
      %p147 = scmp.eq.s32.totalorder %s25, 1
      %p148 = scmp.ne.s32.totalorder %s143, %s145
      %p149 = scmp.eq.s32.totalorder %s25, 0
      %p150 = por %p148, %p149
      %p151 = scmp.ne.s32.totalorder %s143, %s145
      %p152 = scmp.eq.s32.totalorder %s30, 1
      %p153 = por %p151, %p152
      %p154 = scmp.ne.s32.totalorder %s145, %s146
      %p155 = scmp.eq.s32.totalorder %s30, 0
      %p156 = por %p154, %p155
      %p157 = scmp.ne.s32.totalorder %s145, %s146
      %p158 = scmp.eq.s32.totalorder %s31, 1
      %p159 = por %p157, %p158
      %p161 = scmp.ne.s32.totalorder %s146, %s160
      %p162 = scmp.eq.s32.totalorder %s31, 0
      %p163 = por %p161, %p162
      %s165 = sadd.s32 %s164, 1
      %p168 = scmp.eq.s32.totalorder %s25, 1
      %p169 = scmp.ne.s32.totalorder %s164, %s166
      %p170 = scmp.eq.s32.totalorder %s25, 0
      %p171 = por %p169, %p170
      %p172 = scmp.ne.s32.totalorder %s164, %s166
      %p173 = scmp.eq.s32.totalorder %s30, 1
      %p174 = por %p172, %p173
      %p175 = scmp.ne.s32.totalorder %s166, %s167
      %p176 = scmp.eq.s32.totalorder %s30, 0
      %p177 = por %p175, %p176
      %p178 = scmp.ne.s32.totalorder %s166, %s167
      %p179 = scmp.eq.s32.totalorder %s31, 1
      %p180 = por %p178, %p179
      %p182 = scmp.ne.s32.totalorder %s167, %s181
      %p183 = scmp.eq.s32.totalorder %s31, 0
      %p184 = por %p182, %p183
      %s186 = sadd.s32 %s185, 1
      %p189 = scmp.eq.s32.totalorder %s25, 1
      %p190 = scmp.ne.s32.totalorder %s185, %s187
      %p191 = scmp.eq.s32.totalorder %s25, 0
      %p192 = por %p190, %p191
      %p193 = scmp.ne.s32.totalorder %s185, %s187
      %p194 = scmp.eq.s32.totalorder %s30, 1
      %p195 = por %p193, %p194
      %p196 = scmp.ne.s32.totalorder %s187, %s188
      %p197 = scmp.eq.s32.totalorder %s30, 0
      %p198 = por %p196, %p197
      %p199 = scmp.ne.s32.totalorder %s187, %s188
      %p200 = scmp.eq.s32.totalorder %s31, 1
      %p201 = por %p199, %p200
      %p203 = scmp.ne.s32.totalorder %s188, %s202
      %p204 = scmp.eq.s32.totalorder %s31, 0
      %p205 = por %p203, %p204
      %s207 = sadd.s32 %s206, 1
      %p210 = scmp.eq.s32.totalorder %s25, 1
      %p211 = scmp.ne.s32.totalorder %s206, %s208
      %p212 = scmp.eq.s32.totalorder %s25, 0
      %p213 = por %p211, %p212
      %p214 = scmp.ne.s32.totalorder %s206, %s208
      %p215 = scmp.eq.s32.totalorder %s30, 1
      %p216 = por %p214, %p215
      %p217 = scmp.ne.s32.totalorder %s208, %s209
      %p218 = scmp.eq.s32.totalorder %s30, 0
      %p219 = por %p217, %p218
      %p220 = scmp.ne.s32.totalorder %s208, %s209
      %p221 = scmp.eq.s32.totalorder %s31, 1
      %p222 = por %p220, %p221
      %p224 = scmp.ne.s32.totalorder %s209, %s223
      %p225 = scmp.eq.s32.totalorder %s31, 0
      %p226 = por %p224, %p225
      %s228 = sadd.s32 %s227, 1
      %p231 = scmp.eq.s32.totalorder %s25, 1
      %p232 = scmp.ne.s32.totalorder %s227, %s229
      %p233 = scmp.eq.s32.totalorder %s25, 0
      %p234 = por %p232, %p233
      %p235 = scmp.ne.s32.totalorder %s227, %s229
      %p236 = scmp.eq.s32.totalorder %s30, 1
      %p237 = por %p235, %p236
      %p238 = scmp.ne.s32.totalorder %s229, %s230
      %p239 = scmp.eq.s32.totalorder %s30, 0
      %p240 = por %p238, %p239
      %p241 = scmp.ne.s32.totalorder %s229, %s230
      %p242 = scmp.eq.s32.totalorder %s31, 1
      %p243 = por %p241, %p242
      %p245 = scmp.ne.s32.totalorder %s230, %s244
      %p246 = scmp.eq.s32.totalorder %s31, 0
      %p247 = por %p245, %p246
      %s249 = sadd.s32 %s248, 1
      %p252 = scmp.eq.s32.totalorder %s25, 1
      %p253 = scmp.ne.s32.totalorder %s248, %s250
      %p254 = scmp.eq.s32.totalorder %s25, 0
      %p255 = por %p253, %p254
      %p256 = scmp.ne.s32.totalorder %s248, %s250
      %p257 = scmp.eq.s32.totalorder %s30, 1
      %p258 = por %p256, %p257
      %p259 = scmp.ne.s32.totalorder %s250, %s251
      %p260 = scmp.eq.s32.totalorder %s30, 0
      %p261 = por %p259, %p260
      %p262 = scmp.ne.s32.totalorder %s250, %s251
      %p263 = scmp.eq.s32.totalorder %s31, 1
      %p264 = por %p262, %p263
      %p266 = scmp.ne.s32.totalorder %s251, %s265
      %p267 = scmp.eq.s32.totalorder %s31, 0
      %p268 = por %p266, %p267
      %s270 = sadd.s32 %s269, 1
      %p273 = scmp.eq.s32.totalorder %s25, 1
      %p274 = scmp.ne.s32.totalorder %s269, %s271
      %p275 = scmp.eq.s32.totalorder %s25, 0
      %p276 = por %p274, %p275
      %p277 = scmp.ne.s32.totalorder %s269, %s271
      %p278 = scmp.eq.s32.totalorder %s30, 1
      %p279 = por %p277, %p278
      %p280 = scmp.ne.s32.totalorder %s271, %s272
      %p281 = scmp.eq.s32.totalorder %s30, 0
      %p282 = por %p280, %p281
      %p283 = scmp.ne.s32.totalorder %s271, %s272
      %p284 = scmp.eq.s32.totalorder %s31, 1
      %p285 = por %p283, %p284
      %p287 = scmp.ne.s32.totalorder %s272, %s286
      %p288 = scmp.eq.s32.totalorder %s31, 0
      %p289 = por %p287, %p288
      %s291 = sadd.s32 %s290, 1
      %p294 = scmp.eq.s32.totalorder %s25, 1
      %p295 = scmp.ne.s32.totalorder %s290, %s292
      %p296 = scmp.eq.s32.totalorder %s25, 0
      %p297 = por %p295, %p296
      %p298 = scmp.ne.s32.totalorder %s290, %s292
      %p299 = scmp.eq.s32.totalorder %s30, 1
      %p300 = por %p298, %p299
      %p301 = scmp.ne.s32.totalorder %s292, %s293
      %p302 = scmp.eq.s32.totalorder %s30, 0
      %p303 = por %p301, %p302
      %p304 = scmp.ne.s32.totalorder %s292, %s293
      %p305 = scmp.eq.s32.totalorder %s31, 1
      %p306 = por %p304, %p305
      %p308 = scmp.ne.s32.totalorder %s293, %s307
      %p309 = scmp.eq.s32.totalorder %s31, 0
      %p310 = por %p308, %p309
      %s312 = sadd.s32 %s311, 1
      %p315 = scmp.eq.s32.totalorder %s25, 1
      %p316 = scmp.ne.s32.totalorder %s311, %s313
      %p317 = scmp.eq.s32.totalorder %s25, 0
      %p318 = por %p316, %p317
      %p319 = scmp.ne.s32.totalorder %s311, %s313
      %p320 = scmp.eq.s32.totalorder %s30, 1
      %p321 = por %p319, %p320
      %p322 = scmp.ne.s32.totalorder %s313, %s314
      %p323 = scmp.eq.s32.totalorder %s30, 0
      %p324 = por %p322, %p323
      %p325 = scmp.ne.s32.totalorder %s313, %s314
      %p326 = scmp.eq.s32.totalorder %s31, 1
      %p327 = por %p325, %p326
      %p329 = scmp.ne.s32.totalorder %s314, %s328
      %p330 = scmp.eq.s32.totalorder %s31, 0
      %p331 = por %p329, %p330
      %s333 = sadd.s32 %s332, 1
      %p336 = scmp.eq.s32.totalorder %s25, 1
      %p337 = scmp.ne.s32.totalorder %s332, %s334
      %p338 = scmp.eq.s32.totalorder %s25, 0
      %p339 = por %p337, %p338
      %p340 = scmp.ne.s32.totalorder %s332, %s334
      %p341 = scmp.eq.s32.totalorder %s30, 1
      %p342 = por %p340, %p341
      %p343 = scmp.ne.s32.totalorder %s334, %s335
      %p344 = scmp.eq.s32.totalorder %s30, 0
      %p345 = por %p343, %p344
      %p346 = scmp.ne.s32.totalorder %s334, %s335
      %p347 = scmp.eq.s32.totalorder %s31, 1
      %p348 = por %p346, %p347
      %p350 = scmp.ne.s32.totalorder %s335, %s349
      %p351 = scmp.eq.s32.totalorder %s31, 0
      %p352 = por %p350, %p351
      %s353 = ssub.s32 %s25, %s32
      %p354 = scmp.eq.s32.totalorder %s353, 0
      %s356 = sadd.s32 %s355, 1
      %s357 = scalar_select %p354, %s355, %s356
      %p360 = pneg %p354
      %p361 = scmp.eq.s32.totalorder %s25, 1
      %p362 = por %p360, %p361
      %p363 = scmp.ne.s32.totalorder %s355, %s358
      %p364 = scmp.eq.s32.totalorder %s25, 0
      %p365 = por %p363, %p364
      %p366 = scmp.ne.s32.totalorder %s355, %s358
      %p367 = scmp.eq.s32.totalorder %s30, 1
      %p368 = por %p366, %p367
      %p369 = scmp.ne.s32.totalorder %s358, %s359
      %p370 = scmp.eq.s32.totalorder %s30, 0
      %p371 = por %p369, %p370
      %p372 = scmp.ne.s32.totalorder %s358, %s359
      %p373 = scmp.eq.s32.totalorder %s31, 1
      %p374 = por %p372, %p373
      %p376 = scmp.ne.s32.totalorder %s359, %s375
      %p377 = scmp.eq.s32.totalorder %s31, 0
      %p378 = por %p376, %p377
      %p379 = scmp.le.s32.totalorder 1, %s25
      %p380 = scmp.lt.s32.totalorder %s25, 3
      %p381 = pnand %p379, %p380
      %p382 = pneg %p381
      // Predicated region
      $region9: #{cnn_forward.1} parent=5 // pred_check
        _
      $region10: #{cnn_forward.1} parent=5 // pred_check_branch
        %384 = sbr.rel (%p381) target = $region12
      $region11: #{cnn_forward.1} parent=5 // pred_region
        %s385 = ssub.s32 %s25, 1
        // Predicated region
        $region13: #{cnn_forward.1} parent=11 // pred_check
          %p386 = pneg %p72
        $region14: #{cnn_forward.1} parent=11 // pred_check_branch
          %388 = sbr.rel (%p386) target = $region16
        $region15: #{cnn_forward.1} parent=11 // pred_region
          %390 = vsyncadd [#allocation11], 0
          %s392 = sshll.u32 %s1, 4
          %s393 = int_to_ptr.vmem [resolvable:$true] %s392
          %395 = dma.vmem_to_smem %s393, 16, [#allocation9], [#allocation11]
        $region16: #{cnn_forward.1} parent=11 // pred_fallthru
          _
        // Predicated region
        $region17: #{cnn_forward.1} parent=11 // pred_check
          %p396 = pneg %p93
        $region18: #{cnn_forward.1} parent=11 // pred_check_branch
          %398 = sbr.rel (%p396) target = $region20
        $region19: #{cnn_forward.1} parent=11 // pred_region
          _
        $region20: #{cnn_forward.1} parent=11 // pred_fallthru
          _
        // Predicated region
        $region21: #{cnn_forward.1} parent=11 // pred_check
          %p399 = pneg %p114
        $region22: #{cnn_forward.1} parent=11 // pred_check_branch
          %401 = sbr.rel (%p399) target = $region24
        $region23: #{cnn_forward.1} parent=11 // pred_region
          _
        $region24: #{cnn_forward.1} parent=11 // pred_fallthru
          _
        // Predicated region
        $region25: #{cnn_forward.1} parent=11 // pred_check
          %p402 = pneg %p135
        $region26: #{cnn_forward.1} parent=11 // pred_check_branch
          %404 = sbr.rel (%p402) target = $region28
        $region27: #{cnn_forward.1} parent=11 // pred_region
          _
        $region28: #{cnn_forward.1} parent=11 // pred_fallthru
          _
        // Predicated region
        $region29: #{cnn_forward.1} parent=11 // pred_check
          %p405 = pneg %p156
        $region30: #{cnn_forward.1} parent=11 // pred_check_branch
          %407 = sbr.rel (%p405) target = $region32
        $region31: #{cnn_forward.1} parent=11 // pred_region
          _
        $region32: #{cnn_forward.1} parent=11 // pred_fallthru
          _
        // Predicated region
        $region33: #{cnn_forward.1} parent=11 // pred_check
          %p408 = pneg %p177
        $region34: #{cnn_forward.1} parent=11 // pred_check_branch
          %410 = sbr.rel (%p408) target = $region36
        $region35: #{cnn_forward.1} parent=11 // pred_region
          _
        $region36: #{cnn_forward.1} parent=11 // pred_fallthru
          _
        // Predicated region
        $region37: #{cnn_forward.1} parent=11 // pred_check
          %p411 = pneg %p198
        $region38: #{cnn_forward.1} parent=11 // pred_check_branch
          %413 = sbr.rel (%p411) target = $region40
        $region39: #{cnn_forward.1} parent=11 // pred_region
          _
        $region40: #{cnn_forward.1} parent=11 // pred_fallthru
          _
        // Predicated region
        $region41: #{cnn_forward.1} parent=11 // pred_check
          %p414 = pneg %p219
        $region42: #{cnn_forward.1} parent=11 // pred_check_branch
          %416 = sbr.rel (%p414) target = $region44
        $region43: #{cnn_forward.1} parent=11 // pred_region
          _
        $region44: #{cnn_forward.1} parent=11 // pred_fallthru
          _
        // Predicated region
        $region45: #{cnn_forward.1} parent=11 // pred_check
          %p417 = pneg %p240
        $region46: #{cnn_forward.1} parent=11 // pred_check_branch
          %419 = sbr.rel (%p417) target = $region48
        $region47: #{cnn_forward.1} parent=11 // pred_region
          _
        $region48: #{cnn_forward.1} parent=11 // pred_fallthru
          _
        // Predicated region
        $region49: #{cnn_forward.1} parent=11 // pred_check
          %p420 = pneg %p261
        $region50: #{cnn_forward.1} parent=11 // pred_check_branch
          %422 = sbr.rel (%p420) target = $region52
        $region51: #{cnn_forward.1} parent=11 // pred_region
          _
        $region52: #{cnn_forward.1} parent=11 // pred_fallthru
          _
        // Predicated region
        $region53: #{cnn_forward.1} parent=11 // pred_check
          %p423 = pneg %p282
        $region54: #{cnn_forward.1} parent=11 // pred_check_branch
          %425 = sbr.rel (%p423) target = $region56
        $region55: #{cnn_forward.1} parent=11 // pred_region
          _
        $region56: #{cnn_forward.1} parent=11 // pred_fallthru
          _
        // Predicated region
        $region57: #{cnn_forward.1} parent=11 // pred_check
          %p426 = pneg %p303
        $region58: #{cnn_forward.1} parent=11 // pred_check_branch
          %428 = sbr.rel (%p426) target = $region60
        $region59: #{cnn_forward.1} parent=11 // pred_region
          _
        $region60: #{cnn_forward.1} parent=11 // pred_fallthru
          _
        // Predicated region
        $region61: #{cnn_forward.1} parent=11 // pred_check
          %p429 = pneg %p324
        $region62: #{cnn_forward.1} parent=11 // pred_check_branch
          %431 = sbr.rel (%p429) target = $region64
        $region63: #{cnn_forward.1} parent=11 // pred_region
          _
        $region64: #{cnn_forward.1} parent=11 // pred_fallthru
          _
        // Predicated region
        $region65: #{cnn_forward.1} parent=11 // pred_check
          %p432 = pneg %p345
        $region66: #{cnn_forward.1} parent=11 // pred_check_branch
          %434 = sbr.rel (%p432) target = $region68
        $region67: #{cnn_forward.1} parent=11 // pred_region
          _
        $region68: #{cnn_forward.1} parent=11 // pred_fallthru
          _
      $region12: #{cnn_forward.1} parent=5 // pred_fallthru
        _
      %p435 = scmp.lt.s32.totalorder %s25, 2
      // Predicated region
      $region69: #{cnn_forward.1} parent=5 // pred_check
        %p436 = pneg %p435
      $region70: #{cnn_forward.1} parent=5 // pred_check_branch
        %438 = sbr.rel (%p436) target = $region72
      $region71: #{cnn_forward.1} parent=5 // pred_region
        // Predicated region
        $region73: #{cnn_forward.1} parent=71 // pred_check
          %p439 = pneg %p45
        $region74: #{cnn_forward.1} parent=71 // pred_check_branch
          %441 = sbr.rel (%p439) target = $region76
        $region75: #{cnn_forward.1} parent=71 // pred_region
          %p442 = scmp.lt.s32.totalorder %s25, 1
          %s443 = scalar_select %p442, %s25, 1
          %s444 = smul.addr %s443, 44
          %s445 = smul.addr %s444, 4
          %s446 = scalar_lea.vmem %s0, %s445
        $region76: #{cnn_forward.1} parent=71 // pred_fallthru
          _
      $region72: #{cnn_forward.1} parent=5 // pred_fallthru
        _
      %p447 = scmp.le.s32.totalorder 1, %s25
      %p448 = scmp.lt.s32.totalorder %s25, 3
      %p449 = pnand %p447, %p448
      %p450 = pneg %p449
      // Predicated region
      $region77: #{cnn_forward.1} parent=5 // pred_check
        _
      $region78: #{cnn_forward.1} parent=5 // pred_check_branch
        %452 = sbr.rel (%p449) target = $region80
      $region79: #{cnn_forward.1} parent=5 // pred_region
        %s453 = ssub.s32 %s25, 1
        // Predicated region
        $region81: #{cnn_forward.1} parent=79 // pred_check
          %p454 = pneg %p72
        $region82: #{cnn_forward.1} parent=79 // pred_check_branch
          %456 = sbr.rel (%p454) target = $region84
        $region83: #{cnn_forward.1} parent=79 // pred_region
          %458 = dma.done [#allocation11], 16
        $region84: #{cnn_forward.1} parent=79 // pred_fallthru
          _
        %459 = sfence
        %p460 = scmp.lt.s32.totalorder %s30, 1
        %s461 = scalar_select %p460, %s30, 1
        %s462 = smul.addr %s461, 44
        %s463 = smul.addr %s462, 4
        %s464 = scalar_lea.vmem %s0, %s463
        %p465 = pneg %p51
        %p466 = pneg %p48
        %p467 = pneg %p72
        %p468 = pneg %p69
        %p469 = pneg %p93
        %p470 = pneg %p90
        %p471 = pneg %p114
        %p472 = pneg %p111
        %p473 = pneg %p135
        %p474 = pneg %p132
        %p475 = pneg %p156
        %p476 = pneg %p153
        %p477 = pneg %p177
        %p478 = pneg %p174
        %p479 = pneg %p198
        %p480 = pneg %p195
        %p481 = pneg %p219
        %p482 = pneg %p216
        %p483 = pneg %p240
        %p484 = pneg %p237
        %p485 = pneg %p261
        %p486 = pneg %p258
        %p487 = pneg %p282
        %p488 = pneg %p279
        %p489 = pneg %p303
        %p490 = pneg %p300
        %p491 = pneg %p324
        %p492 = pneg %p321
        %p493 = pneg %p345
        %p494 = pneg %p342
        %p495 = pneg %p371
        %p496 = pneg %p368
        %s497 = sand.u32 %s358, 1
        %s498 = scalar_lea.sflag [#allocation10], %s497
        %s499 = sand.u32 %s358, 1
        %s500 = scalar_lea.vmem [#allocation12], %s499
        %p501 = scmp.lt.s32.totalorder %s30, 1
        %s502 = scalar_select %p501, %s30, 1
        %s503 = smul.addr %s502, 44
        %s504 = smul.addr %s503, 4
        %s505 = scalar_lea.vmem %s0, %s504
        %v507 = vld [vmem:[%s2] sm:$0xf]
        %v508 = vld [vmem:[%s2 + $0x4] sm:$0xf]
        %v509 = vld [vmem:[%s2 + $0x8] sm:$0xf]
        %v510 = vld [vmem:[%s2 + $0xc] sm:$0xf]
        %v511 = vld [vmem:[%s3] sm:$0xff]
        %v512 = vld [vmem:[%s3 + $0x8] sm:$0xff]
        %v513 = vld [vmem:[%s3 + $0x10] sm:$0xff]
        %v514 = vld [vmem:[%s3 + $0x18] sm:$0xff]
        %v515 = vld [vmem:[%s505] sm:$0xff]
        %v516 = vld [vmem:[%s505 + $0x8] sm:$0xff]
        %v517 = vld [vmem:[%s505 + $0x10] sm:$0xff]
        %v518 = vld [vmem:[%s505 + $0x58] sm:$0xff]
        %v519 = vld [vmem:[%s505 + $0x60] sm:$0xff]
        %v520 = vld [vmem:[%s505 + $0x68] sm:$0xff]
        %522 = vset.pattern.permute.xlu0 0
        %523 = vperm.xlu0 %522, %v511
        %v524 = vpop.permute.xlu0 %523
        %527 = vset.pattern.permute.xlu0 0
        %528 = vperm.xlu0 %527, %v512
        %v529 = vpop.permute.xlu0 %528
        %532 = vset.pattern.permute.xlu0 0
        %533 = vperm.xlu0 %532, %v513
        %v534 = vpop.permute.xlu0 %533
        %537 = vset.pattern.permute.xlu0 0
        %538 = vperm.xlu0 %537, %v514
        %v539 = vpop.permute.xlu0 %538
        %v545 = vunpack.c.l.b16 %v507
        %v546 = vunpack.c.l.b16 %v508
        %v547 = vunpack.c.l.b16 %v509
        %v548 = vunpack.c.l.b16 %v510
        %v549 = vpack.c.b16 %v546, %v545
        %v550 = vpack.c.b16 %v548, %v547
        %v557 = vunpack.c.l.b16 %v515
        %v558 = vunpack.c.h.b16 %v515
        %v559 = vunpack.c.l.b16 %v516
        %v560 = vunpack.c.h.b16 %v516
        %v561 = vunpack.c.l.b16 %v517
        %v562 = vunpack.c.h.b16 %v517
        %v563 = vunpack.c.l.b16 %v518
        %v564 = vunpack.c.h.b16 %v518
        %v565 = vunpack.c.l.b16 %v519
        %v566 = vunpack.c.h.b16 %v519
        %v567 = vunpack.c.l.b16 %v520
        %v568 = vunpack.c.h.b16 %v520
        %v569 = vpack.c.b16 %v563, %v557
        %v570 = vpack.c.b16 %v564, %v558
        %v571 = vpack.c.b16 %v565, %v559
        %v572 = vpack.c.b16 %v566, %v560
        %v573 = vpack.c.b16 %v567, %v561
        %v574 = vpack.c.b16 %v568, %v562
        %vm581 = vcmask 130048
        %v583 = vsel %vm581, %v549, 0
        %v586 = vsel %vm581, %v550, 0
        %588 = vmatpush.bf16.msra.mxu0 0
        %589 = vmatpush.bf16.msra.mxu0 0
        %590 = vmatpush.bf16.msra.mxu0 0
        %591 = vmatpush.bf16.msra.mxu0 0
        %592 = vmatpush.bf16.msra.mxu0 0
        %593 = vmatpush.bf16.msra.mxu0 0
        %594 = vmatpush.bf16.msra.mxu0 0
        %595 = vmatpush.bf16.msra.mxu0 %v569
        %596 = vmatmul.bf16.gmra.mxu0 %v583
        %v597 = vpop.f32.mrf.mxu0
        %v598 = vadd.f32 %v524, %v597
        %v599 = vpop.f32.mrf.mxu0
        %v600 = vadd.f32 %v529, %v599
        %601 = vmatmul.bf16.gmra.mxu0 %v586
        %v602 = vpop.f32.mrf.mxu0
        %v603 = vadd.f32 %v534, %v602
        %v604 = vpop.f32.mrf.mxu0
        %v605 = vadd.f32 %v539, %v604
        %606 = vdwg.mxu0
        %607 = vmatpush.bf16.msra.mxu0 0
        %608 = vmatpush.bf16.msra.mxu0 0
        %609 = vmatpush.bf16.msra.mxu0 0
        %610 = vmatpush.bf16.msra.mxu0 0
        %611 = vmatpush.bf16.msra.mxu0 0
        %612 = vmatpush.bf16.msra.mxu0 0
        %613 = vmatpush.bf16.msra.mxu0 0
        %614 = vmatpush.bf16.msra.mxu0 %v570
        %615 = vmatmul.bf16.gmra.mxu0 %v583
        %v616 = vpop.f32.mrf.mxu0
        %v617 = vadd.f32 %v524, %v616
        %v618 = vpop.f32.mrf.mxu0
        %v619 = vadd.f32 %v529, %v618
        %620 = vmatmul.bf16.gmra.mxu0 %v586
        %v621 = vpop.f32.mrf.mxu0
        %v622 = vadd.f32 %v534, %v621
        %v623 = vpop.f32.mrf.mxu0
        %v624 = vadd.f32 %v539, %v623
        %625 = vdwg.mxu0
        %626 = vmatpush.bf16.msra.mxu0 0
        %627 = vmatpush.bf16.msra.mxu0 0
        %628 = vmatpush.bf16.msra.mxu0 0
        %629 = vmatpush.bf16.msra.mxu0 0
        %630 = vmatpush.bf16.msra.mxu0 0
        %631 = vmatpush.bf16.msra.mxu0 0
        %632 = vmatpush.bf16.msra.mxu0 0
        %633 = vmatpush.bf16.msra.mxu0 %v571
        %634 = vmatmul.bf16.gmra.mxu0 %v583
        %v635 = vpop.f32.mrf.mxu0
        %v636 = vadd.f32 %v524, %v635
        %v637 = vpop.f32.mrf.mxu0
        %v638 = vadd.f32 %v529, %v637
        %639 = vmatmul.bf16.gmra.mxu0 %v586
        %v640 = vpop.f32.mrf.mxu0
        %v641 = vadd.f32 %v534, %v640
        %v642 = vpop.f32.mrf.mxu0
        %v643 = vadd.f32 %v539, %v642
        %644 = vdwg.mxu0
        %645 = vmatpush.bf16.msra.mxu0 0
        %646 = vmatpush.bf16.msra.mxu0 0
        %647 = vmatpush.bf16.msra.mxu0 0
        %648 = vmatpush.bf16.msra.mxu0 0
        %649 = vmatpush.bf16.msra.mxu0 0
        %650 = vmatpush.bf16.msra.mxu0 0
        %651 = vmatpush.bf16.msra.mxu0 0
        %652 = vmatpush.bf16.msra.mxu0 %v572
        %653 = vmatmul.bf16.gmra.mxu0 %v583
        %v654 = vpop.f32.mrf.mxu0
        %v655 = vadd.f32 %v524, %v654
        %v656 = vpop.f32.mrf.mxu0
        %v657 = vadd.f32 %v529, %v656
        %658 = vmatmul.bf16.gmra.mxu0 %v586
        %v659 = vpop.f32.mrf.mxu0
        %v660 = vadd.f32 %v534, %v659
        %v661 = vpop.f32.mrf.mxu0
        %v662 = vadd.f32 %v539, %v661
        %663 = vdwg.mxu0
        %664 = vmatpush.bf16.msra.mxu0 0
        %665 = vmatpush.bf16.msra.mxu0 0
        %666 = vmatpush.bf16.msra.mxu0 0
        %667 = vmatpush.bf16.msra.mxu0 0
        %668 = vmatpush.bf16.msra.mxu0 0
        %669 = vmatpush.bf16.msra.mxu0 0
        %670 = vmatpush.bf16.msra.mxu0 0
        %671 = vmatpush.bf16.msra.mxu0 %v573
        %672 = vmatmul.bf16.gmra.mxu0 %v583
        %v673 = vpop.f32.mrf.mxu0
        %v674 = vadd.f32 %v524, %v673
        %v675 = vpop.f32.mrf.mxu0
        %v676 = vadd.f32 %v529, %v675
        %677 = vmatmul.bf16.gmra.mxu0 %v586
        %v678 = vpop.f32.mrf.mxu0
        %v679 = vadd.f32 %v534, %v678
        %v680 = vpop.f32.mrf.mxu0
        %v681 = vadd.f32 %v539, %v680
        %682 = vdwg.mxu0
        %683 = vmatpush.bf16.msra.mxu0 0
        %684 = vmatpush.bf16.msra.mxu0 0
        %685 = vmatpush.bf16.msra.mxu0 0
        %686 = vmatpush.bf16.msra.mxu0 0
        %687 = vmatpush.bf16.msra.mxu0 0
        %688 = vmatpush.bf16.msra.mxu0 0
        %689 = vmatpush.bf16.msra.mxu0 0
        %690 = vmatpush.bf16.msra.mxu0 %v574
        %691 = vmatmul.bf16.gmra.mxu0 %v583
        %v692 = vpop.f32.mrf.mxu0
        %v693 = vadd.f32 %v524, %v692
        %v694 = vpop.f32.mrf.mxu0
        %v695 = vadd.f32 %v529, %v694
        %696 = vmatmul.bf16.gmra.mxu0 %v586
        %v697 = vpop.f32.mrf.mxu0
        %v698 = vadd.f32 %v534, %v697
        %v699 = vpop.f32.mrf.mxu0
        %v700 = vadd.f32 %v539, %v699
        %701 = vdwg.mxu0
        %v702 = vmax.f32 %v598, 0.0
        %v703 = vmax.f32 %v617, 0.0
        %v704 = vmax.f32 %v636, 0.0
        %v705 = vmax.f32 %v655, 0.0
        %v706 = vmax.f32 %v674, 0.0
        %v707 = vmax.f32 %v693, 0.0
        %v708 = vmax.f32 %v600, 0.0
        %v709 = vmax.f32 %v619, 0.0
        %v710 = vmax.f32 %v638, 0.0
        %v711 = vmax.f32 %v657, 0.0
        %v712 = vmax.f32 %v676, 0.0
        %v713 = vmax.f32 %v695, 0.0
        %v714 = vmax.f32 %v603, 0.0
        %v715 = vmax.f32 %v622, 0.0
        %v716 = vmax.f32 %v641, 0.0
        %v717 = vmax.f32 %v660, 0.0
        %v718 = vmax.f32 %v679, 0.0
        %v719 = vmax.f32 %v698, 0.0
        %v720 = vmax.f32 %v605, 0.0
        %v721 = vmax.f32 %v624, 0.0
        %v722 = vmax.f32 %v643, 0.0
        %v723 = vmax.f32 %v662, 0.0
        %v724 = vmax.f32 %v681, 0.0
        %v725 = vmax.f32 %v700, 0.0
        %v726 = vpack.c.bf16 %v703, %v702
        %v727 = vpack.c.bf16 %v705, %v704
        %v728 = vpack.c.bf16 %v707, %v706
        %v729 = vpack.c.bf16 %v709, %v708
        %v730 = vpack.c.bf16 %v711, %v710
        %v731 = vpack.c.bf16 %v713, %v712
        %v732 = vpack.c.bf16 %v715, %v714
        %v733 = vpack.c.bf16 %v717, %v716
        %v734 = vpack.c.bf16 %v719, %v718
        %v735 = vpack.c.bf16 %v721, %v720
        %v736 = vpack.c.bf16 %v723, %v722
        %v737 = vpack.c.bf16 %v725, %v724
        %738 = vst [vmem:[#allocation2] sm:$0xff] %v726
        %739 = vst [vmem:[#allocation2 + $0x8] sm:$0xff] %v727
        %740 = vst [vmem:[#allocation2 + $0x10] sm:$0xff] %v728
        %741 = vst [vmem:[#allocation2 + $0x58] sm:$0xff] %v729
        %742 = vst [vmem:[#allocation2 + $0x60] sm:$0xff] %v730
        %743 = vst [vmem:[#allocation2 + $0x68] sm:$0xff] %v731
        %744 = vst [vmem:[#allocation2 + $0xb0] sm:$0xff] %v732
        %745 = vst [vmem:[#allocation2 + $0xb8] sm:$0xff] %v733
        %746 = vst [vmem:[#allocation2 + $0xc0] sm:$0xff] %v734
        %747 = vst [vmem:[#allocation2 + $0x108] sm:$0xff] %v735
        %748 = vst [vmem:[#allocation2 + $0x110] sm:$0xff] %v736
        %749 = vst [vmem:[#allocation2 + $0x118] sm:$0xff] %v737
        %v750 = vld [vmem:[%s505 + $0x18] sm:$0xff]
        %v751 = vld [vmem:[%s505 + $0x20] sm:$0xff]
        %v752 = vld [vmem:[%s505 + $0x28] sm:$0xff]
        %v753 = vld [vmem:[%s505 + $0x70] sm:$0xff]
        %v754 = vld [vmem:[%s505 + $0x78] sm:$0xff]
        %v755 = vld [vmem:[%s505 + $0x80] sm:$0xff]
        %v762 = vunpack.c.l.b16 %v750
        %v763 = vunpack.c.h.b16 %v750
        %v764 = vunpack.c.l.b16 %v751
        %v765 = vunpack.c.h.b16 %v751
        %v766 = vunpack.c.l.b16 %v752
        %v767 = vunpack.c.h.b16 %v752
        %v768 = vunpack.c.l.b16 %v753
        %v769 = vunpack.c.h.b16 %v753
        %v770 = vunpack.c.l.b16 %v754
        %v771 = vunpack.c.h.b16 %v754
        %v772 = vunpack.c.l.b16 %v755
        %v773 = vunpack.c.h.b16 %v755
        %v774 = vpack.c.b16 %v768, %v762
        %v775 = vpack.c.b16 %v769, %v763
        %v776 = vpack.c.b16 %v770, %v764
        %v777 = vpack.c.b16 %v771, %v765
        %v778 = vpack.c.b16 %v772, %v766
        %v779 = vpack.c.b16 %v773, %v767
        %786 = vmatpush.bf16.msra.mxu0 0
        %787 = vmatpush.bf16.msra.mxu0 0
        %788 = vmatpush.bf16.msra.mxu0 0
        %789 = vmatpush.bf16.msra.mxu0 0
        %790 = vmatpush.bf16.msra.mxu0 0
        %791 = vmatpush.bf16.msra.mxu0 0
        %792 = vmatpush.bf16.msra.mxu0 0
        %793 = vmatpush.bf16.msra.mxu0 %v774
        %794 = vmatmul.bf16.gmra.mxu0 %v583
        %v795 = vpop.f32.mrf.mxu0
        %v796 = vadd.f32 %v524, %v795
        %v797 = vpop.f32.mrf.mxu0
        %v798 = vadd.f32 %v529, %v797
        %799 = vmatmul.bf16.gmra.mxu0 %v586
        %v800 = vpop.f32.mrf.mxu0
        %v801 = vadd.f32 %v534, %v800
        %v802 = vpop.f32.mrf.mxu0
        %v803 = vadd.f32 %v539, %v802
        %804 = vdwg.mxu0
        %805 = vmatpush.bf16.msra.mxu0 0
        %806 = vmatpush.bf16.msra.mxu0 0
        %807 = vmatpush.bf16.msra.mxu0 0
        %808 = vmatpush.bf16.msra.mxu0 0
        %809 = vmatpush.bf16.msra.mxu0 0
        %810 = vmatpush.bf16.msra.mxu0 0
        %811 = vmatpush.bf16.msra.mxu0 0
        %812 = vmatpush.bf16.msra.mxu0 %v775
        %813 = vmatmul.bf16.gmra.mxu0 %v583
        %v814 = vpop.f32.mrf.mxu0
        %v815 = vadd.f32 %v524, %v814
        %v816 = vpop.f32.mrf.mxu0
        %v817 = vadd.f32 %v529, %v816
        %818 = vmatmul.bf16.gmra.mxu0 %v586
        %v819 = vpop.f32.mrf.mxu0
        %v820 = vadd.f32 %v534, %v819
        %v821 = vpop.f32.mrf.mxu0
        %v822 = vadd.f32 %v539, %v821
        %823 = vdwg.mxu0
        %824 = vmatpush.bf16.msra.mxu0 0
        %825 = vmatpush.bf16.msra.mxu0 0
        %826 = vmatpush.bf16.msra.mxu0 0
        %827 = vmatpush.bf16.msra.mxu0 0
        %828 = vmatpush.bf16.msra.mxu0 0
        %829 = vmatpush.bf16.msra.mxu0 0
        %830 = vmatpush.bf16.msra.mxu0 0
        %831 = vmatpush.bf16.msra.mxu0 %v776
        %832 = vmatmul.bf16.gmra.mxu0 %v583
        %v833 = vpop.f32.mrf.mxu0
        %v834 = vadd.f32 %v524, %v833
        %v835 = vpop.f32.mrf.mxu0
        %v836 = vadd.f32 %v529, %v835
        %837 = vmatmul.bf16.gmra.mxu0 %v586
        %v838 = vpop.f32.mrf.mxu0
        %v839 = vadd.f32 %v534, %v838
        %v840 = vpop.f32.mrf.mxu0
        %v841 = vadd.f32 %v539, %v840
        %842 = vdwg.mxu0
        %843 = vmatpush.bf16.msra.mxu0 0
        %844 = vmatpush.bf16.msra.mxu0 0
        %845 = vmatpush.bf16.msra.mxu0 0
        %846 = vmatpush.bf16.msra.mxu0 0
        %847 = vmatpush.bf16.msra.mxu0 0
        %848 = vmatpush.bf16.msra.mxu0 0
        %849 = vmatpush.bf16.msra.mxu0 0
        %850 = vmatpush.bf16.msra.mxu0 %v777
        %851 = vmatmul.bf16.gmra.mxu0 %v583
        %v852 = vpop.f32.mrf.mxu0
        %v853 = vadd.f32 %v524, %v852
        %v854 = vpop.f32.mrf.mxu0
        %v855 = vadd.f32 %v529, %v854
        %856 = vmatmul.bf16.gmra.mxu0 %v586
        %v857 = vpop.f32.mrf.mxu0
        %v858 = vadd.f32 %v534, %v857
        %v859 = vpop.f32.mrf.mxu0
        %v860 = vadd.f32 %v539, %v859
        %861 = vdwg.mxu0
        %862 = vmatpush.bf16.msra.mxu0 0
        %863 = vmatpush.bf16.msra.mxu0 0
        %864 = vmatpush.bf16.msra.mxu0 0
        %865 = vmatpush.bf16.msra.mxu0 0
        %866 = vmatpush.bf16.msra.mxu0 0
        %867 = vmatpush.bf16.msra.mxu0 0
        %868 = vmatpush.bf16.msra.mxu0 0
        %869 = vmatpush.bf16.msra.mxu0 %v778
        %870 = vmatmul.bf16.gmra.mxu0 %v583
        %v871 = vpop.f32.mrf.mxu0
        %v872 = vadd.f32 %v524, %v871
        %v873 = vpop.f32.mrf.mxu0
        %v874 = vadd.f32 %v529, %v873
        %875 = vmatmul.bf16.gmra.mxu0 %v586
        %v876 = vpop.f32.mrf.mxu0
        %v877 = vadd.f32 %v534, %v876
        %v878 = vpop.f32.mrf.mxu0
        %v879 = vadd.f32 %v539, %v878
        %880 = vdwg.mxu0
        %881 = vmatpush.bf16.msra.mxu0 0
        %882 = vmatpush.bf16.msra.mxu0 0
        %883 = vmatpush.bf16.msra.mxu0 0
        %884 = vmatpush.bf16.msra.mxu0 0
        %885 = vmatpush.bf16.msra.mxu0 0
        %886 = vmatpush.bf16.msra.mxu0 0
        %887 = vmatpush.bf16.msra.mxu0 0
        %888 = vmatpush.bf16.msra.mxu0 %v779
        %889 = vmatmul.bf16.gmra.mxu0 %v583
        %v890 = vpop.f32.mrf.mxu0
        %v891 = vadd.f32 %v524, %v890
        %v892 = vpop.f32.mrf.mxu0
        %v893 = vadd.f32 %v529, %v892
        %894 = vmatmul.bf16.gmra.mxu0 %v586
        %v895 = vpop.f32.mrf.mxu0
        %v896 = vadd.f32 %v534, %v895
        %v897 = vpop.f32.mrf.mxu0
        %v898 = vadd.f32 %v539, %v897
        %899 = vdwg.mxu0
        %v900 = vmax.f32 %v796, 0.0
        %v901 = vmax.f32 %v815, 0.0
        %v902 = vmax.f32 %v834, 0.0
        %v903 = vmax.f32 %v853, 0.0
        %v904 = vmax.f32 %v872, 0.0
        %v905 = vmax.f32 %v891, 0.0
        %v906 = vmax.f32 %v798, 0.0
        %v907 = vmax.f32 %v817, 0.0
        %v908 = vmax.f32 %v836, 0.0
        %v909 = vmax.f32 %v855, 0.0
        %v910 = vmax.f32 %v874, 0.0
        %v911 = vmax.f32 %v893, 0.0
        %v912 = vmax.f32 %v801, 0.0
        %v913 = vmax.f32 %v820, 0.0
        %v914 = vmax.f32 %v839, 0.0
        %v915 = vmax.f32 %v858, 0.0
        %v916 = vmax.f32 %v877, 0.0
        %v917 = vmax.f32 %v896, 0.0
        %v918 = vmax.f32 %v803, 0.0
        %v919 = vmax.f32 %v822, 0.0
        %v920 = vmax.f32 %v841, 0.0
        %v921 = vmax.f32 %v860, 0.0
        %v922 = vmax.f32 %v879, 0.0
        %v923 = vmax.f32 %v898, 0.0
        %v924 = vpack.c.bf16 %v901, %v900
        %v925 = vpack.c.bf16 %v903, %v902
        %v926 = vpack.c.bf16 %v905, %v904
        %v927 = vpack.c.bf16 %v907, %v906
        %v928 = vpack.c.bf16 %v909, %v908
        %v929 = vpack.c.bf16 %v911, %v910
        %v930 = vpack.c.bf16 %v913, %v912
        %v931 = vpack.c.bf16 %v915, %v914
        %v932 = vpack.c.bf16 %v917, %v916
        %v933 = vpack.c.bf16 %v919, %v918
        %v934 = vpack.c.bf16 %v921, %v920
        %v935 = vpack.c.bf16 %v923, %v922
        %936 = vst [vmem:[#allocation2 + $0x18] sm:$0xff] %v924
        %937 = vst [vmem:[#allocation2 + $0x20] sm:$0xff] %v925
        %938 = vst [vmem:[#allocation2 + $0x28] sm:$0xff] %v926
        %939 = vst [vmem:[#allocation2 + $0x70] sm:$0xff] %v927
        %940 = vst [vmem:[#allocation2 + $0x78] sm:$0xff] %v928
        %941 = vst [vmem:[#allocation2 + $0x80] sm:$0xff] %v929
        %942 = vst [vmem:[#allocation2 + $0xc8] sm:$0xff] %v930
        %943 = vst [vmem:[#allocation2 + $0xd0] sm:$0xff] %v931
        %944 = vst [vmem:[#allocation2 + $0xd8] sm:$0xff] %v932
        %945 = vst [vmem:[#allocation2 + $0x120] sm:$0xff] %v933
        %946 = vst [vmem:[#allocation2 + $0x128] sm:$0xff] %v934
        %947 = vst [vmem:[#allocation2 + $0x130] sm:$0xff] %v935
        %v948 = vld [vmem:[%s505 + $0x30] sm:$0xff]
        %v949 = vld [vmem:[%s505 + $0x38] sm:$0xff]
        %v950 = vld [vmem:[%s505 + $0x40] sm:$0xff]
        %v951 = vld [vmem:[%s505 + $0x88] sm:$0xff]
        %v952 = vld [vmem:[%s505 + $0x90] sm:$0xff]
        %v953 = vld [vmem:[%s505 + $0x98] sm:$0xff]
        %v960 = vunpack.c.l.b16 %v948
        %v961 = vunpack.c.h.b16 %v948
        %v962 = vunpack.c.l.b16 %v949
        %v963 = vunpack.c.h.b16 %v949
        %v964 = vunpack.c.l.b16 %v950
        %v965 = vunpack.c.h.b16 %v950
        %v966 = vunpack.c.l.b16 %v951
        %v967 = vunpack.c.h.b16 %v951
        %v968 = vunpack.c.l.b16 %v952
        %v969 = vunpack.c.h.b16 %v952
        %v970 = vunpack.c.l.b16 %v953
        %v971 = vunpack.c.h.b16 %v953
        %v972 = vpack.c.b16 %v966, %v960
        %v973 = vpack.c.b16 %v967, %v961
        %v974 = vpack.c.b16 %v968, %v962
        %v975 = vpack.c.b16 %v969, %v963
        %v976 = vpack.c.b16 %v970, %v964
        %v977 = vpack.c.b16 %v971, %v965
        %984 = vmatpush.bf16.msra.mxu0 0
        %985 = vmatpush.bf16.msra.mxu0 0
        %986 = vmatpush.bf16.msra.mxu0 0
        %987 = vmatpush.bf16.msra.mxu0 0
        %988 = vmatpush.bf16.msra.mxu0 0
        %989 = vmatpush.bf16.msra.mxu0 0
        %990 = vmatpush.bf16.msra.mxu0 0
        %991 = vmatpush.bf16.msra.mxu0 %v972
        %992 = vmatmul.bf16.gmra.mxu0 %v583
        %v993 = vpop.f32.mrf.mxu0
        %v994 = vadd.f32 %v524, %v993
        %v995 = vpop.f32.mrf.mxu0
        %v996 = vadd.f32 %v529, %v995
        %997 = vmatmul.bf16.gmra.mxu0 %v586
        %v998 = vpop.f32.mrf.mxu0
        %v999 = vadd.f32 %v534, %v998
        %v1000 = vpop.f32.mrf.mxu0
        %v1001 = vadd.f32 %v539, %v1000
        %1002 = vdwg.mxu0
        %1003 = vmatpush.bf16.msra.mxu0 0
        %1004 = vmatpush.bf16.msra.mxu0 0
        %1005 = vmatpush.bf16.msra.mxu0 0
        %1006 = vmatpush.bf16.msra.mxu0 0
        %1007 = vmatpush.bf16.msra.mxu0 0
        %1008 = vmatpush.bf16.msra.mxu0 0
        %1009 = vmatpush.bf16.msra.mxu0 0
        %1010 = vmatpush.bf16.msra.mxu0 %v973
        %1011 = vmatmul.bf16.gmra.mxu0 %v583
        %v1012 = vpop.f32.mrf.mxu0
        %v1013 = vadd.f32 %v524, %v1012
        %v1014 = vpop.f32.mrf.mxu0
        %v1015 = vadd.f32 %v529, %v1014
        %1016 = vmatmul.bf16.gmra.mxu0 %v586
        %v1017 = vpop.f32.mrf.mxu0
        %v1018 = vadd.f32 %v534, %v1017
        %v1019 = vpop.f32.mrf.mxu0
        %v1020 = vadd.f32 %v539, %v1019
        %1021 = vdwg.mxu0
        %1022 = vmatpush.bf16.msra.mxu0 0
        %1023 = vmatpush.bf16.msra.mxu0 0
        %1024 = vmatpush.bf16.msra.mxu0 0
        %1025 = vmatpush.bf16.msra.mxu0 0
        %1026 = vmatpush.bf16.msra.mxu0 0
        %1027 = vmatpush.bf16.msra.mxu0 0
        %1028 = vmatpush.bf16.msra.mxu0 0
        %1029 = vmatpush.bf16.msra.mxu0 %v974
        %1030 = vmatmul.bf16.gmra.mxu0 %v583
        %v1031 = vpop.f32.mrf.mxu0
        %v1032 = vadd.f32 %v524, %v1031
        %v1033 = vpop.f32.mrf.mxu0
        %v1034 = vadd.f32 %v529, %v1033
        %1035 = vmatmul.bf16.gmra.mxu0 %v586
        %v1036 = vpop.f32.mrf.mxu0
        %v1037 = vadd.f32 %v534, %v1036
        %v1038 = vpop.f32.mrf.mxu0
        %v1039 = vadd.f32 %v539, %v1038
        %1040 = vdwg.mxu0
        %1041 = vmatpush.bf16.msra.mxu0 0
        %1042 = vmatpush.bf16.msra.mxu0 0
        %1043 = vmatpush.bf16.msra.mxu0 0
        %1044 = vmatpush.bf16.msra.mxu0 0
        %1045 = vmatpush.bf16.msra.mxu0 0
        %1046 = vmatpush.bf16.msra.mxu0 0
        %1047 = vmatpush.bf16.msra.mxu0 0
        %1048 = vmatpush.bf16.msra.mxu0 %v975
        %1049 = vmatmul.bf16.gmra.mxu0 %v583
        %v1050 = vpop.f32.mrf.mxu0
        %v1051 = vadd.f32 %v524, %v1050
        %v1052 = vpop.f32.mrf.mxu0
        %v1053 = vadd.f32 %v529, %v1052
        %1054 = vmatmul.bf16.gmra.mxu0 %v586
        %v1055 = vpop.f32.mrf.mxu0
        %v1056 = vadd.f32 %v534, %v1055
        %v1057 = vpop.f32.mrf.mxu0
        %v1058 = vadd.f32 %v539, %v1057
        %1059 = vdwg.mxu0
        %1060 = vmatpush.bf16.msra.mxu0 0
        %1061 = vmatpush.bf16.msra.mxu0 0
        %1062 = vmatpush.bf16.msra.mxu0 0
        %1063 = vmatpush.bf16.msra.mxu0 0
        %1064 = vmatpush.bf16.msra.mxu0 0
        %1065 = vmatpush.bf16.msra.mxu0 0
        %1066 = vmatpush.bf16.msra.mxu0 0
        %1067 = vmatpush.bf16.msra.mxu0 %v976
        %1068 = vmatmul.bf16.gmra.mxu0 %v583
        %v1069 = vpop.f32.mrf.mxu0
        %v1070 = vadd.f32 %v524, %v1069
        %v1071 = vpop.f32.mrf.mxu0
        %v1072 = vadd.f32 %v529, %v1071
        %1073 = vmatmul.bf16.gmra.mxu0 %v586
        %v1074 = vpop.f32.mrf.mxu0
        %v1075 = vadd.f32 %v534, %v1074
        %v1076 = vpop.f32.mrf.mxu0
        %v1077 = vadd.f32 %v539, %v1076
        %1078 = vdwg.mxu0
        %1079 = vmatpush.bf16.msra.mxu0 0
        %1080 = vmatpush.bf16.msra.mxu0 0
        %1081 = vmatpush.bf16.msra.mxu0 0
        %1082 = vmatpush.bf16.msra.mxu0 0
        %1083 = vmatpush.bf16.msra.mxu0 0
        %1084 = vmatpush.bf16.msra.mxu0 0
        %1085 = vmatpush.bf16.msra.mxu0 0
        %1086 = vmatpush.bf16.msra.mxu0 %v977
        %1087 = vmatmul.bf16.gmra.mxu0 %v583
        %v1088 = vpop.f32.mrf.mxu0
        %v1089 = vadd.f32 %v524, %v1088
        %v1090 = vpop.f32.mrf.mxu0
        %v1091 = vadd.f32 %v529, %v1090
        %1092 = vmatmul.bf16.gmra.mxu0 %v586
        %v1093 = vpop.f32.mrf.mxu0
        %v1094 = vadd.f32 %v534, %v1093
        %v1095 = vpop.f32.mrf.mxu0
        %v1096 = vadd.f32 %v539, %v1095
        %1097 = vdwg.mxu0
        %v1098 = vmax.f32 %v994, 0.0
        %v1099 = vmax.f32 %v1013, 0.0
        %v1100 = vmax.f32 %v1032, 0.0
        %v1101 = vmax.f32 %v1051, 0.0
        %v1102 = vmax.f32 %v1070, 0.0
        %v1103 = vmax.f32 %v1089, 0.0
        %v1104 = vmax.f32 %v996, 0.0
        %v1105 = vmax.f32 %v1015, 0.0
        %v1106 = vmax.f32 %v1034, 0.0
        %v1107 = vmax.f32 %v1053, 0.0
        %v1108 = vmax.f32 %v1072, 0.0
        %v1109 = vmax.f32 %v1091, 0.0
        %v1110 = vmax.f32 %v999, 0.0
        %v1111 = vmax.f32 %v1018, 0.0
        %v1112 = vmax.f32 %v1037, 0.0
        %v1113 = vmax.f32 %v1056, 0.0
        %v1114 = vmax.f32 %v1075, 0.0
        %v1115 = vmax.f32 %v1094, 0.0
        %v1116 = vmax.f32 %v1001, 0.0
        %v1117 = vmax.f32 %v1020, 0.0
        %v1118 = vmax.f32 %v1039, 0.0
        %v1119 = vmax.f32 %v1058, 0.0
        %v1120 = vmax.f32 %v1077, 0.0
        %v1121 = vmax.f32 %v1096, 0.0
        %v1122 = vpack.c.bf16 %v1099, %v1098
        %v1123 = vpack.c.bf16 %v1101, %v1100
        %v1124 = vpack.c.bf16 %v1103, %v1102
        %v1125 = vpack.c.bf16 %v1105, %v1104
        %v1126 = vpack.c.bf16 %v1107, %v1106
        %v1127 = vpack.c.bf16 %v1109, %v1108
        %v1128 = vpack.c.bf16 %v1111, %v1110
        %v1129 = vpack.c.bf16 %v1113, %v1112
        %v1130 = vpack.c.bf16 %v1115, %v1114
        %v1131 = vpack.c.bf16 %v1117, %v1116
        %v1132 = vpack.c.bf16 %v1119, %v1118
        %v1133 = vpack.c.bf16 %v1121, %v1120
        %1134 = vst [vmem:[#allocation2 + $0x30] sm:$0xff] %v1122
        %1135 = vst [vmem:[#allocation2 + $0x38] sm:$0xff] %v1123
        %1136 = vst [vmem:[#allocation2 + $0x40] sm:$0xff] %v1124
        %1137 = vst [vmem:[#allocation2 + $0x88] sm:$0xff] %v1125
        %1138 = vst [vmem:[#allocation2 + $0x90] sm:$0xff] %v1126
        %1139 = vst [vmem:[#allocation2 + $0x98] sm:$0xff] %v1127
        %1140 = vst [vmem:[#allocation2 + $0xe0] sm:$0xff] %v1128
        %1141 = vst [vmem:[#allocation2 + $0xe8] sm:$0xff] %v1129
        %1142 = vst [vmem:[#allocation2 + $0xf0] sm:$0xff] %v1130
        %1143 = vst [vmem:[#allocation2 + $0x138] sm:$0xff] %v1131
        %1144 = vst [vmem:[#allocation2 + $0x140] sm:$0xff] %v1132
        %1145 = vst [vmem:[#allocation2 + $0x148] sm:$0xff] %v1133
        %v1146 = vld [vmem:[%s505 + $0x48] sm:$0xff]
        %v1147 = vld [vmem:[%s505 + $0x50] sm:$0xff]
        %v1148 = vld [vmem:[%s505 + $0xa0] sm:$0xff]
        %v1149 = vld [vmem:[%s505 + $0xa8] sm:$0xff]
        %v1154 = vunpack.c.l.b16 %v1146
        %v1155 = vunpack.c.h.b16 %v1146
        %v1156 = vunpack.c.l.b16 %v1147
        %v1157 = vunpack.c.h.b16 %v1147
        %v1158 = vunpack.c.l.b16 %v1148
        %v1159 = vunpack.c.h.b16 %v1148
        %v1160 = vunpack.c.l.b16 %v1149
        %v1161 = vunpack.c.h.b16 %v1149
        %v1162 = vpack.c.b16 %v1158, %v1154
        %v1163 = vpack.c.b16 %v1159, %v1155
        %v1164 = vpack.c.b16 %v1160, %v1156
        %v1165 = vpack.c.b16 %v1161, %v1157
        %1170 = vmatpush.bf16.msra.mxu0 0
        %1171 = vmatpush.bf16.msra.mxu0 0
        %1172 = vmatpush.bf16.msra.mxu0 0
        %1173 = vmatpush.bf16.msra.mxu0 0
        %1174 = vmatpush.bf16.msra.mxu0 0
        %1175 = vmatpush.bf16.msra.mxu0 0
        %1176 = vmatpush.bf16.msra.mxu0 0
        %1177 = vmatpush.bf16.msra.mxu0 %v1162
        %1178 = vmatmul.bf16.gmra.mxu0 %v583
        %v1179 = vpop.f32.mrf.mxu0
        %v1180 = vadd.f32 %v524, %v1179
        %v1181 = vpop.f32.mrf.mxu0
        %v1182 = vadd.f32 %v529, %v1181
        %1183 = vmatmul.bf16.gmra.mxu0 %v586
        %v1184 = vpop.f32.mrf.mxu0
        %v1185 = vadd.f32 %v534, %v1184
        %v1186 = vpop.f32.mrf.mxu0
        %v1187 = vadd.f32 %v539, %v1186
        %1188 = vdwg.mxu0
        %1189 = vmatpush.bf16.msra.mxu0 0
        %1190 = vmatpush.bf16.msra.mxu0 0
        %1191 = vmatpush.bf16.msra.mxu0 0
        %1192 = vmatpush.bf16.msra.mxu0 0
        %1193 = vmatpush.bf16.msra.mxu0 0
        %1194 = vmatpush.bf16.msra.mxu0 0
        %1195 = vmatpush.bf16.msra.mxu0 0
        %1196 = vmatpush.bf16.msra.mxu0 %v1163
        %1197 = vmatmul.bf16.gmra.mxu0 %v583
        %v1198 = vpop.f32.mrf.mxu0
        %v1199 = vadd.f32 %v524, %v1198
        %v1200 = vpop.f32.mrf.mxu0
        %v1201 = vadd.f32 %v529, %v1200
        %1202 = vmatmul.bf16.gmra.mxu0 %v586
        %v1203 = vpop.f32.mrf.mxu0
        %v1204 = vadd.f32 %v534, %v1203
        %v1205 = vpop.f32.mrf.mxu0
        %v1206 = vadd.f32 %v539, %v1205
        %1207 = vdwg.mxu0
        %1208 = vmatpush.bf16.msra.mxu0 0
        %1209 = vmatpush.bf16.msra.mxu0 0
        %1210 = vmatpush.bf16.msra.mxu0 0
        %1211 = vmatpush.bf16.msra.mxu0 0
        %1212 = vmatpush.bf16.msra.mxu0 0
        %1213 = vmatpush.bf16.msra.mxu0 0
        %1214 = vmatpush.bf16.msra.mxu0 0
        %1215 = vmatpush.bf16.msra.mxu0 %v1164
        %1216 = vmatmul.bf16.gmra.mxu0 %v583
        %v1217 = vpop.f32.mrf.mxu0
        %v1218 = vadd.f32 %v524, %v1217
        %v1219 = vpop.f32.mrf.mxu0
        %v1220 = vadd.f32 %v529, %v1219
        %1221 = vmatmul.bf16.gmra.mxu0 %v586
        %v1222 = vpop.f32.mrf.mxu0
        %v1223 = vadd.f32 %v534, %v1222
        %v1224 = vpop.f32.mrf.mxu0
        %v1225 = vadd.f32 %v539, %v1224
        %1226 = vdwg.mxu0
        %1227 = vmatpush.bf16.msra.mxu0 0
        %1228 = vmatpush.bf16.msra.mxu0 0
        %1229 = vmatpush.bf16.msra.mxu0 0
        %1230 = vmatpush.bf16.msra.mxu0 0
        %1231 = vmatpush.bf16.msra.mxu0 0
        %1232 = vmatpush.bf16.msra.mxu0 0
        %1233 = vmatpush.bf16.msra.mxu0 0
        %1234 = vmatpush.bf16.msra.mxu0 %v1165
        %1235 = vmatmul.bf16.gmra.mxu0 %v583
        %v1236 = vpop.f32.mrf.mxu0
        %v1237 = vadd.f32 %v524, %v1236
        %v1238 = vpop.f32.mrf.mxu0
        %v1239 = vadd.f32 %v529, %v1238
        %1240 = vmatmul.bf16.gmra.mxu0 %v586
        %v1241 = vpop.f32.mrf.mxu0
        %v1242 = vadd.f32 %v534, %v1241
        %v1243 = vpop.f32.mrf.mxu0
        %v1244 = vadd.f32 %v539, %v1243
        %1245 = vdwg.mxu0
        %v1246 = vmax.f32 %v1180, 0.0
        %v1247 = vmax.f32 %v1199, 0.0
        %v1248 = vmax.f32 %v1218, 0.0
        %v1249 = vmax.f32 %v1237, 0.0
        %v1250 = vmax.f32 %v1182, 0.0
        %v1251 = vmax.f32 %v1201, 0.0
        %v1252 = vmax.f32 %v1220, 0.0
        %v1253 = vmax.f32 %v1239, 0.0
        %v1254 = vmax.f32 %v1185, 0.0
        %v1255 = vmax.f32 %v1204, 0.0
        %v1256 = vmax.f32 %v1223, 0.0
        %v1257 = vmax.f32 %v1242, 0.0
        %v1258 = vmax.f32 %v1187, 0.0
        %v1259 = vmax.f32 %v1206, 0.0
        %v1260 = vmax.f32 %v1225, 0.0
        %v1261 = vmax.f32 %v1244, 0.0
        %v1262 = vpack.c.bf16 %v1247, %v1246
        %v1263 = vpack.c.bf16 %v1249, %v1248
        %v1264 = vpack.c.bf16 %v1251, %v1250
        %v1265 = vpack.c.bf16 %v1253, %v1252
        %v1266 = vpack.c.bf16 %v1255, %v1254
        %v1267 = vpack.c.bf16 %v1257, %v1256
        %v1268 = vpack.c.bf16 %v1259, %v1258
        %v1269 = vpack.c.bf16 %v1261, %v1260
        %1270 = vst [vmem:[#allocation2 + $0x48] sm:$0xff] %v1262
        %vm1271 = vcmask 1043456
        %vm1272 = vcmask 687108
        %vm1273 = vmor %vm1272, %vm1271
        %1274 = vst.msk [vmem:[#allocation2 + $0x50] sm:$0xff] %vm1273, %v1263
        %1275 = vst [vmem:[#allocation2 + $0xa0] sm:$0xff] %v1264
        %1276 = vst.msk [vmem:[#allocation2 + $0xa8] sm:$0xff] %vm1273, %v1265
        %1277 = vst [vmem:[#allocation2 + $0xf8] sm:$0xff] %v1266
        %1278 = vst.msk [vmem:[#allocation2 + $0x100] sm:$0xff] %vm1273, %v1267
        %1279 = vst [vmem:[#allocation2 + $0x150] sm:$0xff] %v1268
        %1280 = vst.msk [vmem:[#allocation2 + $0x158] sm:$0xff] %vm1273, %v1269
        %v1281 = vld [vmem:[#allocation2] sm:$0xf]
        %v1282 = vld [vmem:[#allocation2 + $0x58] sm:$0xf]
        %v1283 = vld [vmem:[#allocation2 + $0xb0] sm:$0xf]
        %v1284 = vld [vmem:[#allocation2 + $0x108] sm:$0xf]
        %v1285 = vunpack.c.l.bf16 %v1281
        %v1286 = vunpack.c.l.bf16 %v1282
        %v1287 = vunpack.c.l.bf16 %v1283
        %v1288 = vunpack.c.l.bf16 %v1284
        %1293 = vrot.lane.b32.xlu0 %v1285, 65
        %v1294 = vpop.permute.xlu0 %1293
        %1295 = vrot.lane.b32.xlu0 %v1286, 65
        %v1296 = vpop.permute.xlu0 %1295
        %1297 = vrot.lane.b32.xlu0 %v1287, 65
        %v1298 = vpop.permute.xlu0 %1297
        %1299 = vrot.lane.b32.xlu0 %v1288, 65
        %v1300 = vpop.permute.xlu0 %1299
        %v1305 = vmax.f32 %v1285, %v1294
        %v1306 = vmax.f32 %v1286, %v1296
        %v1307 = vmax.f32 %v1287, %v1298
        %v1308 = vmax.f32 %v1288, %v1300
        %v1309 = vpack.c.bf16 %v1305, %v1305
        %v1310 = vpack.c.bf16 %v1306, %v1306
        %v1311 = vpack.c.bf16 %v1307, %v1307
        %v1312 = vpack.c.bf16 %v1308, %v1308
        %v1313 = vunpack.c.l.bf16 %v1309
        %v1314 = vunpack.c.l.bf16 %v1310
        %v1315 = vunpack.c.l.bf16 %v1311
        %v1316 = vunpack.c.l.bf16 %v1312
        %1321 = vrot.lane.b32.xlu0 %v1313, 127
        %v1322 = vpop.permute.xlu0 %1321
        %1323 = vrot.lane.b32.xlu0 %v1314, 127
        %v1324 = vpop.permute.xlu0 %1323
        %1325 = vrot.lane.b32.xlu0 %v1315, 127
        %v1326 = vpop.permute.xlu0 %1325
        %1327 = vrot.lane.b32.xlu0 %v1316, 127
        %v1328 = vpop.permute.xlu0 %1327
        %v1333 = vmax.f32 %v1313, %v1322
        %v1334 = vmax.f32 %v1314, %v1324
        %v1335 = vmax.f32 %v1315, %v1326
        %v1336 = vmax.f32 %v1316, %v1328
        %v1337 = vpack.c.bf16 %v1333, %v1333
        %v1338 = vpack.c.bf16 %v1334, %v1334
        %v1339 = vpack.c.bf16 %v1335, %v1335
        %v1340 = vpack.c.bf16 %v1336, %v1336
        %vm1341 = vcmask 486400
        %1342 = vst.msk [vmem:[#allocation3] sm:$0xf] %vm1341, %v1337
        %1343 = vst.msk [vmem:[#allocation3 + $0x2c] sm:$0xf] %vm1341, %v1338
        %1344 = vst.msk [vmem:[#allocation3 + $0x58] sm:$0xf] %vm1341, %v1339
        %1345 = vst.msk [vmem:[#allocation3 + $0x84] sm:$0xf] %vm1341, %v1340
        %v1346 = vld [vmem:[#allocation2] sm:$0xff]
        %v1347 = vld [vmem:[#allocation2 + $0x58] sm:$0xff]
        %v1348 = vld [vmem:[#allocation2 + $0xb0] sm:$0xff]
        %v1349 = vld [vmem:[#allocation2 + $0x108] sm:$0xff]
        %v1350 = vld [vmem:[#allocation2 + $0x4] sm:$0xf]
        %v1351 = vld [vmem:[#allocation2 + $0x5c] sm:$0xf]
        %v1352 = vld [vmem:[#allocation2 + $0xb4] sm:$0xf]
        %v1353 = vld [vmem:[#allocation2 + $0x10c] sm:$0xf]
        %v1354 = vunpack.c.l.bf16 %v1346
        %v1355 = vunpack.c.h.bf16 %v1346
        %v1356 = vunpack.c.l.bf16 %v1347
        %v1357 = vunpack.c.h.bf16 %v1347
        %v1358 = vunpack.c.l.bf16 %v1348
        %v1359 = vunpack.c.h.bf16 %v1348
        %v1360 = vunpack.c.l.bf16 %v1349
        %v1361 = vunpack.c.h.bf16 %v1349
        %v1362 = vunpack.c.l.bf16 %v1350
        %v1363 = vunpack.c.l.bf16 %v1351
        %v1364 = vunpack.c.l.bf16 %v1352
        %v1365 = vunpack.c.l.bf16 %v1353
        %1370 = vrot.lane.b32.xlu0 %v1362, 65
        %v1371 = vpop.permute.xlu0 %1370
        %1372 = vrot.lane.b32.xlu0 %v1363, 65
        %v1373 = vpop.permute.xlu0 %1372
        %1374 = vrot.lane.b32.xlu0 %v1364, 65
        %v1375 = vpop.permute.xlu0 %1374
        %1376 = vrot.lane.b32.xlu0 %v1365, 65
        %v1377 = vpop.permute.xlu0 %1376
        %v1382 = vmax.f32 %v1354, %v1371
        %v1383 = vmax.f32 %v1355, %v1371
        %v1384 = vmax.f32 %v1356, %v1373
        %v1385 = vmax.f32 %v1357, %v1373
        %v1386 = vmax.f32 %v1358, %v1375
        %v1387 = vmax.f32 %v1359, %v1375
        %v1388 = vmax.f32 %v1360, %v1377
        %v1389 = vmax.f32 %v1361, %v1377
        %v1390 = vpack.c.bf16 %v1383, %v1382
        %v1391 = vpack.c.bf16 %v1385, %v1384
        %v1392 = vpack.c.bf16 %v1387, %v1386
        %v1393 = vpack.c.bf16 %v1389, %v1388
        %v1394 = vunpack.c.l.bf16 %v1390
        %v1395 = vunpack.c.h.bf16 %v1390
        %v1396 = vunpack.c.l.bf16 %v1391
        %v1397 = vunpack.c.h.bf16 %v1391
        %v1398 = vunpack.c.l.bf16 %v1392
        %v1399 = vunpack.c.h.bf16 %v1392
        %v1400 = vunpack.c.l.bf16 %v1393
        %v1401 = vunpack.c.h.bf16 %v1393
        %1410 = vrot.lane.b32.xlu0 %v1394, 127
        %v1411 = vpop.permute.xlu0 %1410
        %1412 = vrot.lane.b32.xlu0 %v1395, 127
        %v1413 = vpop.permute.xlu0 %1412
        %1414 = vrot.lane.b32.xlu0 %v1396, 127
        %v1415 = vpop.permute.xlu0 %1414
        %1416 = vrot.lane.b32.xlu0 %v1397, 127
        %v1417 = vpop.permute.xlu0 %1416
        %1418 = vrot.lane.b32.xlu0 %v1398, 127
        %v1419 = vpop.permute.xlu0 %1418
        %1420 = vrot.lane.b32.xlu0 %v1399, 127
        %v1421 = vpop.permute.xlu0 %1420
        %1422 = vrot.lane.b32.xlu0 %v1400, 127
        %v1423 = vpop.permute.xlu0 %1422
        %1424 = vrot.lane.b32.xlu0 %v1401, 127
        %v1425 = vpop.permute.xlu0 %1424
        %vm1426 = vcmask 1039360
        %v1427 = vsel %vm1426, %v1411, %v1413
        %v1428 = vsel %vm1426, %v1415, %v1417
        %v1429 = vsel %vm1426, %v1419, %v1421
        %v1430 = vsel %vm1426, %v1423, %v1425
        %v1439 = vmax.f32 %v1394, %v1427
        %v1440 = vmax.f32 %v1395, %v1413
        %v1441 = vmax.f32 %v1396, %v1428
        %v1442 = vmax.f32 %v1397, %v1417
        %v1443 = vmax.f32 %v1398, %v1429
        %v1444 = vmax.f32 %v1399, %v1421
        %v1445 = vmax.f32 %v1400, %v1430
        %v1446 = vmax.f32 %v1401, %v1425
        %v1447 = vpack.c.bf16 %v1440, %v1439
        %v1448 = vpack.c.bf16 %v1442, %v1441
        %v1449 = vpack.c.bf16 %v1444, %v1443
        %v1450 = vpack.c.bf16 %v1446, %v1445
        %1455 = vrot.lane.b32.xlu0 %v1447, 62
        %v1456 = vpop.permute.xlu0 %1455
        %1457 = vrot.lane.b32.xlu0 %v1448, 62
        %v1458 = vpop.permute.xlu0 %1457
        %1459 = vrot.lane.b32.xlu0 %v1449, 62
        %v1460 = vpop.permute.xlu0 %1459
        %1461 = vrot.lane.b32.xlu0 %v1450, 62
        %v1462 = vpop.permute.xlu0 %1461
        %v1463 = vrot.slane %v1456, 4
        %v1464 = vrot.slane %v1458, 4
        %v1465 = vrot.slane %v1460, 4
        %v1466 = vrot.slane %v1462, 4
        %vm1467 = vcmask 506880
        %v1468 = vsel %vm1467, %v1456, %v1463
        %v1469 = vsel %vm1467, %v1458, %v1464
        %v1470 = vsel %vm1467, %v1460, %v1465
        %v1471 = vsel %vm1467, %v1462, %v1466
        %vm1476 = vcmask 978400
        %1477 = vst.msk [vmem:[#allocation3] sm:$0xf] %vm1476, %v1468
        %1478 = vst.msk [vmem:[#allocation3 + $0x2c] sm:$0xf] %vm1476, %v1469
        %1479 = vst.msk [vmem:[#allocation3 + $0x58] sm:$0xf] %vm1476, %v1470
        %1480 = vst.msk [vmem:[#allocation3 + $0x84] sm:$0xf] %vm1476, %v1471
        %v1481 = vld [vmem:[#allocation2 + $0x4] sm:$0xff]
        %v1482 = vld [vmem:[#allocation2 + $0x5c] sm:$0xff]
        %v1483 = vld [vmem:[#allocation2 + $0xb4] sm:$0xff]
        %v1484 = vld [vmem:[#allocation2 + $0x10c] sm:$0xff]
        %v1485 = vld [vmem:[#allocation2 + $0x8] sm:$0xf]
        %v1486 = vld [vmem:[#allocation2 + $0x60] sm:$0xf]
        %v1487 = vld [vmem:[#allocation2 + $0xb8] sm:$0xf]
        %v1488 = vld [vmem:[#allocation2 + $0x110] sm:$0xf]
        %v1489 = vunpack.c.l.bf16 %v1481
        %v1490 = vunpack.c.h.bf16 %v1481
        %v1491 = vunpack.c.l.bf16 %v1482
        %v1492 = vunpack.c.h.bf16 %v1482
        %v1493 = vunpack.c.l.bf16 %v1483
        %v1494 = vunpack.c.h.bf16 %v1483
        %v1495 = vunpack.c.l.bf16 %v1484
        %v1496 = vunpack.c.h.bf16 %v1484
        %v1497 = vunpack.c.l.bf16 %v1485
        %v1498 = vunpack.c.l.bf16 %v1486
        %v1499 = vunpack.c.l.bf16 %v1487
        %v1500 = vunpack.c.l.bf16 %v1488
        %1505 = vrot.lane.b32.xlu0 %v1497, 65
        %v1506 = vpop.permute.xlu0 %1505
        %1507 = vrot.lane.b32.xlu0 %v1498, 65
        %v1508 = vpop.permute.xlu0 %1507
        %1509 = vrot.lane.b32.xlu0 %v1499, 65
        %v1510 = vpop.permute.xlu0 %1509
        %1511 = vrot.lane.b32.xlu0 %v1500, 65
        %v1512 = vpop.permute.xlu0 %1511
        %v1517 = vmax.f32 %v1489, %v1506
        %v1518 = vmax.f32 %v1490, %v1506
        %v1519 = vmax.f32 %v1491, %v1508
        %v1520 = vmax.f32 %v1492, %v1508
        %v1521 = vmax.f32 %v1493, %v1510
        %v1522 = vmax.f32 %v1494, %v1510
        %v1523 = vmax.f32 %v1495, %v1512
        %v1524 = vmax.f32 %v1496, %v1512
        %v1525 = vpack.c.bf16 %v1518, %v1517
        %v1526 = vpack.c.bf16 %v1520, %v1519
        %v1527 = vpack.c.bf16 %v1522, %v1521
        %v1528 = vpack.c.bf16 %v1524, %v1523
        %v1529 = vunpack.c.l.bf16 %v1525
        %v1530 = vunpack.c.h.bf16 %v1525
        %v1531 = vunpack.c.l.bf16 %v1526
        %v1532 = vunpack.c.h.bf16 %v1526
        %v1533 = vunpack.c.l.bf16 %v1527
        %v1534 = vunpack.c.h.bf16 %v1527
        %v1535 = vunpack.c.l.bf16 %v1528
        %v1536 = vunpack.c.h.bf16 %v1528
        %1545 = vrot.lane.b32.xlu0 %v1529, 127
        %v1546 = vpop.permute.xlu0 %1545
        %1547 = vrot.lane.b32.xlu0 %v1530, 127
        %v1548 = vpop.permute.xlu0 %1547
        %1549 = vrot.lane.b32.xlu0 %v1531, 127
        %v1550 = vpop.permute.xlu0 %1549
        %1551 = vrot.lane.b32.xlu0 %v1532, 127
        %v1552 = vpop.permute.xlu0 %1551
        %1553 = vrot.lane.b32.xlu0 %v1533, 127
        %v1554 = vpop.permute.xlu0 %1553
        %1555 = vrot.lane.b32.xlu0 %v1534, 127
        %v1556 = vpop.permute.xlu0 %1555
        %1557 = vrot.lane.b32.xlu0 %v1535, 127
        %v1558 = vpop.permute.xlu0 %1557
        %1559 = vrot.lane.b32.xlu0 %v1536, 127
        %v1560 = vpop.permute.xlu0 %1559
        %v1561 = vsel %vm1426, %v1546, %v1548
        %v1562 = vsel %vm1426, %v1550, %v1552
        %v1563 = vsel %vm1426, %v1554, %v1556
        %v1564 = vsel %vm1426, %v1558, %v1560
        %v1573 = vmax.f32 %v1529, %v1561
        %v1574 = vmax.f32 %v1530, %v1548
        %v1575 = vmax.f32 %v1531, %v1562
        %v1576 = vmax.f32 %v1532, %v1552
        %v1577 = vmax.f32 %v1533, %v1563
        %v1578 = vmax.f32 %v1534, %v1556
        %v1579 = vmax.f32 %v1535, %v1564
        %v1580 = vmax.f32 %v1536, %v1560
        %v1581 = vpack.c.bf16 %v1574, %v1573
        %v1582 = vpack.c.bf16 %v1576, %v1575
        %v1583 = vpack.c.bf16 %v1578, %v1577
        %v1584 = vpack.c.bf16 %v1580, %v1579
        %1589 = vrot.lane.b32.xlu0 %v1581, 124
        %v1590 = vpop.permute.xlu0 %1589
        %1591 = vrot.lane.b32.xlu0 %v1582, 124
        %v1592 = vpop.permute.xlu0 %1591
        %1593 = vrot.lane.b32.xlu0 %v1583, 124
        %v1594 = vpop.permute.xlu0 %1593
        %1595 = vrot.lane.b32.xlu0 %v1584, 124
        %v1596 = vpop.permute.xlu0 %1595
        %v1597 = vrot.slane %v1590, 4
        %v1598 = vrot.slane %v1592, 4
        %v1599 = vrot.slane %v1594, 4
        %v1600 = vrot.slane %v1596, 4
        %vm1601 = vcmask 1014784
        %v1602 = vsel %vm1601, %v1590, %v1597
        %v1603 = vsel %vm1601, %v1592, %v1598
        %v1604 = vsel %vm1601, %v1594, %v1599
        %v1605 = vsel %vm1601, %v1596, %v1600
        %vm1610 = vcmask 1044416
        %vm1611 = vcmask 424964
        %vm1612 = vmor %vm1611, %vm1610
        %1613 = vst.msk [vmem:[#allocation3] sm:$0xff] %vm1612, %v1602
        %1614 = vst.msk [vmem:[#allocation3 + $0x2c] sm:$0xff] %vm1612, %v1603
        %1615 = vst.msk [vmem:[#allocation3 + $0x58] sm:$0xff] %vm1612, %v1604
        %1616 = vst.msk [vmem:[#allocation3 + $0x84] sm:$0xff] %vm1612, %v1605
        %v1617 = vld [vmem:[#allocation2 + $0x8] sm:$0xff]
        %v1618 = vld [vmem:[#allocation2 + $0x60] sm:$0xff]
        %v1619 = vld [vmem:[#allocation2 + $0xb8] sm:$0xff]
        %v1620 = vld [vmem:[#allocation2 + $0x110] sm:$0xff]
        %v1621 = vld [vmem:[#allocation2 + $0xc] sm:$0xf]
        %v1622 = vld [vmem:[#allocation2 + $0x64] sm:$0xf]
        %v1623 = vld [vmem:[#allocation2 + $0xbc] sm:$0xf]
        %v1624 = vld [vmem:[#allocation2 + $0x114] sm:$0xf]
        %v1625 = vunpack.c.l.bf16 %v1617
        %v1626 = vunpack.c.h.bf16 %v1617
        %v1627 = vunpack.c.l.bf16 %v1618
        %v1628 = vunpack.c.h.bf16 %v1618
        %v1629 = vunpack.c.l.bf16 %v1619
        %v1630 = vunpack.c.h.bf16 %v1619
        %v1631 = vunpack.c.l.bf16 %v1620
        %v1632 = vunpack.c.h.bf16 %v1620
        %v1633 = vunpack.c.l.bf16 %v1621
        %v1634 = vunpack.c.l.bf16 %v1622
        %v1635 = vunpack.c.l.bf16 %v1623
        %v1636 = vunpack.c.l.bf16 %v1624
        %1641 = vrot.lane.b32.xlu0 %v1633, 65
        %v1642 = vpop.permute.xlu0 %1641
        %1643 = vrot.lane.b32.xlu0 %v1634, 65
        %v1644 = vpop.permute.xlu0 %1643
        %1645 = vrot.lane.b32.xlu0 %v1635, 65
        %v1646 = vpop.permute.xlu0 %1645
        %1647 = vrot.lane.b32.xlu0 %v1636, 65
        %v1648 = vpop.permute.xlu0 %1647
        %v1653 = vmax.f32 %v1625, %v1642
        %v1654 = vmax.f32 %v1626, %v1642
        %v1655 = vmax.f32 %v1627, %v1644
        %v1656 = vmax.f32 %v1628, %v1644
        %v1657 = vmax.f32 %v1629, %v1646
        %v1658 = vmax.f32 %v1630, %v1646
        %v1659 = vmax.f32 %v1631, %v1648
        %v1660 = vmax.f32 %v1632, %v1648
        %v1661 = vpack.c.bf16 %v1654, %v1653
        %v1662 = vpack.c.bf16 %v1656, %v1655
        %v1663 = vpack.c.bf16 %v1658, %v1657
        %v1664 = vpack.c.bf16 %v1660, %v1659
        %v1665 = vunpack.c.l.bf16 %v1661
        %v1666 = vunpack.c.h.bf16 %v1661
        %v1667 = vunpack.c.l.bf16 %v1662
        %v1668 = vunpack.c.h.bf16 %v1662
        %v1669 = vunpack.c.l.bf16 %v1663
        %v1670 = vunpack.c.h.bf16 %v1663
        %v1671 = vunpack.c.l.bf16 %v1664
        %v1672 = vunpack.c.h.bf16 %v1664
        %1681 = vrot.lane.b32.xlu0 %v1665, 127
        %v1682 = vpop.permute.xlu0 %1681
        %1683 = vrot.lane.b32.xlu0 %v1666, 127
        %v1684 = vpop.permute.xlu0 %1683
        %1685 = vrot.lane.b32.xlu0 %v1667, 127
        %v1686 = vpop.permute.xlu0 %1685
        %1687 = vrot.lane.b32.xlu0 %v1668, 127
        %v1688 = vpop.permute.xlu0 %1687
        %1689 = vrot.lane.b32.xlu0 %v1669, 127
        %v1690 = vpop.permute.xlu0 %1689
        %1691 = vrot.lane.b32.xlu0 %v1670, 127
        %v1692 = vpop.permute.xlu0 %1691
        %1693 = vrot.lane.b32.xlu0 %v1671, 127
        %v1694 = vpop.permute.xlu0 %1693
        %1695 = vrot.lane.b32.xlu0 %v1672, 127
        %v1696 = vpop.permute.xlu0 %1695
        %v1697 = vsel %vm1426, %v1682, %v1684
        %v1698 = vsel %vm1426, %v1686, %v1688
        %v1699 = vsel %vm1426, %v1690, %v1692
        %v1700 = vsel %vm1426, %v1694, %v1696
        %v1709 = vmax.f32 %v1665, %v1697
        %v1710 = vmax.f32 %v1666, %v1684
        %v1711 = vmax.f32 %v1667, %v1698
        %v1712 = vmax.f32 %v1668, %v1688
        %v1713 = vmax.f32 %v1669, %v1699
        %v1714 = vmax.f32 %v1670, %v1692
        %v1715 = vmax.f32 %v1671, %v1700
        %v1716 = vmax.f32 %v1672, %v1696
        %v1717 = vpack.c.bf16 %v1710, %v1709
        %v1718 = vpack.c.bf16 %v1712, %v1711
        %v1719 = vpack.c.bf16 %v1714, %v1713
        %v1720 = vpack.c.bf16 %v1716, %v1715
        %1725 = vrot.lane.b32.xlu0 %v1717, 58
        %v1726 = vpop.permute.xlu0 %1725
        %1727 = vrot.lane.b32.xlu0 %v1718, 58
        %v1728 = vpop.permute.xlu0 %1727
        %1729 = vrot.lane.b32.xlu0 %v1719, 58
        %v1730 = vpop.permute.xlu0 %1729
        %1731 = vrot.lane.b32.xlu0 %v1720, 58
        %v1732 = vpop.permute.xlu0 %1731
        %v1733 = vrot.slane %v1726, 4
        %v1734 = vrot.slane %v1728, 4
        %v1735 = vrot.slane %v1730, 4
        %v1736 = vrot.slane %v1732, 4
        %vm1737 = vcmask 474112
        %v1738 = vsel %vm1737, %v1726, %v1733
        %v1739 = vsel %vm1737, %v1728, %v1734
        %v1740 = vsel %vm1737, %v1730, %v1735
        %v1741 = vsel %vm1737, %v1732, %v1736
        %vm1746 = vcmask 912800
        %1747 = vst.msk [vmem:[#allocation3 + $0x4] sm:$0xf] %vm1746, %v1738
        %1748 = vst.msk [vmem:[#allocation3 + $0x30] sm:$0xf] %vm1746, %v1739
        %1749 = vst.msk [vmem:[#allocation3 + $0x5c] sm:$0xf] %vm1746, %v1740
        %1750 = vst.msk [vmem:[#allocation3 + $0x88] sm:$0xf] %vm1746, %v1741
        %v1751 = vld [vmem:[#allocation2 + $0xc] sm:$0xff]
        %v1752 = vld [vmem:[#allocation2 + $0x64] sm:$0xff]
        %v1753 = vld [vmem:[#allocation2 + $0xbc] sm:$0xff]
        %v1754 = vld [vmem:[#allocation2 + $0x114] sm:$0xff]
        %v1755 = vld [vmem:[#allocation2 + $0x10] sm:$0xf]
        %v1756 = vld [vmem:[#allocation2 + $0x68] sm:$0xf]
        %v1757 = vld [vmem:[#allocation2 + $0xc0] sm:$0xf]
        %v1758 = vld [vmem:[#allocation2 + $0x118] sm:$0xf]
        %v1759 = vunpack.c.l.bf16 %v1751
        %v1760 = vunpack.c.h.bf16 %v1751
        %v1761 = vunpack.c.l.bf16 %v1752
        %v1762 = vunpack.c.h.bf16 %v1752
        %v1763 = vunpack.c.l.bf16 %v1753
        %v1764 = vunpack.c.h.bf16 %v1753
        %v1765 = vunpack.c.l.bf16 %v1754
        %v1766 = vunpack.c.h.bf16 %v1754
        %v1767 = vunpack.c.l.bf16 %v1755
        %v1768 = vunpack.c.l.bf16 %v1756
        %v1769 = vunpack.c.l.bf16 %v1757
        %v1770 = vunpack.c.l.bf16 %v1758
        %1775 = vrot.lane.b32.xlu0 %v1767, 65
        %v1776 = vpop.permute.xlu0 %1775
        %1777 = vrot.lane.b32.xlu0 %v1768, 65
        %v1778 = vpop.permute.xlu0 %1777
        %1779 = vrot.lane.b32.xlu0 %v1769, 65
        %v1780 = vpop.permute.xlu0 %1779
        %1781 = vrot.lane.b32.xlu0 %v1770, 65
        %v1782 = vpop.permute.xlu0 %1781
        %v1787 = vmax.f32 %v1759, %v1776
        %v1788 = vmax.f32 %v1760, %v1776
        %v1789 = vmax.f32 %v1761, %v1778
        %v1790 = vmax.f32 %v1762, %v1778
        %v1791 = vmax.f32 %v1763, %v1780
        %v1792 = vmax.f32 %v1764, %v1780
        %v1793 = vmax.f32 %v1765, %v1782
        %v1794 = vmax.f32 %v1766, %v1782
        %v1795 = vpack.c.bf16 %v1788, %v1787
        %v1796 = vpack.c.bf16 %v1790, %v1789
        %v1797 = vpack.c.bf16 %v1792, %v1791
        %v1798 = vpack.c.bf16 %v1794, %v1793
        %v1799 = vunpack.c.l.bf16 %v1795
        %v1800 = vunpack.c.h.bf16 %v1795
        %v1801 = vunpack.c.l.bf16 %v1796
        %v1802 = vunpack.c.h.bf16 %v1796
        %v1803 = vunpack.c.l.bf16 %v1797
        %v1804 = vunpack.c.h.bf16 %v1797
        %v1805 = vunpack.c.l.bf16 %v1798
        %v1806 = vunpack.c.h.bf16 %v1798
        %1815 = vrot.lane.b32.xlu0 %v1799, 127
        %v1816 = vpop.permute.xlu0 %1815
        %1817 = vrot.lane.b32.xlu0 %v1800, 127
        %v1818 = vpop.permute.xlu0 %1817
        %1819 = vrot.lane.b32.xlu0 %v1801, 127
        %v1820 = vpop.permute.xlu0 %1819
        %1821 = vrot.lane.b32.xlu0 %v1802, 127
        %v1822 = vpop.permute.xlu0 %1821
        %1823 = vrot.lane.b32.xlu0 %v1803, 127
        %v1824 = vpop.permute.xlu0 %1823
        %1825 = vrot.lane.b32.xlu0 %v1804, 127
        %v1826 = vpop.permute.xlu0 %1825
        %1827 = vrot.lane.b32.xlu0 %v1805, 127
        %v1828 = vpop.permute.xlu0 %1827
        %1829 = vrot.lane.b32.xlu0 %v1806, 127
        %v1830 = vpop.permute.xlu0 %1829
        %v1831 = vsel %vm1426, %v1816, %v1818
        %v1832 = vsel %vm1426, %v1820, %v1822
        %v1833 = vsel %vm1426, %v1824, %v1826
        %v1834 = vsel %vm1426, %v1828, %v1830
        %v1843 = vmax.f32 %v1799, %v1831
        %v1844 = vmax.f32 %v1800, %v1818
        %v1845 = vmax.f32 %v1801, %v1832
        %v1846 = vmax.f32 %v1802, %v1822
        %v1847 = vmax.f32 %v1803, %v1833
        %v1848 = vmax.f32 %v1804, %v1826
        %v1849 = vmax.f32 %v1805, %v1834
        %v1850 = vmax.f32 %v1806, %v1830
        %v1851 = vpack.c.bf16 %v1844, %v1843
        %v1852 = vpack.c.bf16 %v1846, %v1845
        %v1853 = vpack.c.bf16 %v1848, %v1847
        %v1854 = vpack.c.bf16 %v1850, %v1849
        %1859 = vrot.lane.b32.xlu0 %v1851, 120
        %v1860 = vpop.permute.xlu0 %1859
        %1861 = vrot.lane.b32.xlu0 %v1852, 120
        %v1862 = vpop.permute.xlu0 %1861
        %1863 = vrot.lane.b32.xlu0 %v1853, 120
        %v1864 = vpop.permute.xlu0 %1863
        %1865 = vrot.lane.b32.xlu0 %v1854, 120
        %v1866 = vpop.permute.xlu0 %1865
        %v1867 = vrot.slane %v1860, 4
        %v1868 = vrot.slane %v1862, 4
        %v1869 = vrot.slane %v1864, 4
        %v1870 = vrot.slane %v1866, 4
        %vm1871 = vcmask 982016
        %v1872 = vsel %vm1871, %v1860, %v1867
        %v1873 = vsel %vm1871, %v1862, %v1868
        %v1874 = vsel %vm1871, %v1864, %v1869
        %v1875 = vsel %vm1871, %v1866, %v1870
        %vm1880 = vcmask 1044352
        %vm1881 = vcmask 359428
        %vm1882 = vmor %vm1881, %vm1880
        %1883 = vst.msk [vmem:[#allocation3 + $0x4] sm:$0xff] %vm1882, %v1872
        %1884 = vst.msk [vmem:[#allocation3 + $0x30] sm:$0xff] %vm1882, %v1873
        %1885 = vst.msk [vmem:[#allocation3 + $0x5c] sm:$0xff] %vm1882, %v1874
        %1886 = vst.msk [vmem:[#allocation3 + $0x88] sm:$0xff] %vm1882, %v1875
        %v1887 = vld [vmem:[#allocation2 + $0x10] sm:$0xff]
        %v1888 = vld [vmem:[#allocation2 + $0x68] sm:$0xff]
        %v1889 = vld [vmem:[#allocation2 + $0xc0] sm:$0xff]
        %v1890 = vld [vmem:[#allocation2 + $0x118] sm:$0xff]
        %v1891 = vld [vmem:[#allocation2 + $0x14] sm:$0xf]
        %v1892 = vld [vmem:[#allocation2 + $0x6c] sm:$0xf]
        %v1893 = vld [vmem:[#allocation2 + $0xc4] sm:$0xf]
        %v1894 = vld [vmem:[#allocation2 + $0x11c] sm:$0xf]
        %v1895 = vunpack.c.l.bf16 %v1887
        %v1896 = vunpack.c.h.bf16 %v1887
        %v1897 = vunpack.c.l.bf16 %v1888
        %v1898 = vunpack.c.h.bf16 %v1888
        %v1899 = vunpack.c.l.bf16 %v1889
        %v1900 = vunpack.c.h.bf16 %v1889
        %v1901 = vunpack.c.l.bf16 %v1890
        %v1902 = vunpack.c.h.bf16 %v1890
        %v1903 = vunpack.c.l.bf16 %v1891
        %v1904 = vunpack.c.l.bf16 %v1892
        %v1905 = vunpack.c.l.bf16 %v1893
        %v1906 = vunpack.c.l.bf16 %v1894
        %1911 = vrot.lane.b32.xlu0 %v1903, 65
        %v1912 = vpop.permute.xlu0 %1911
        %1913 = vrot.lane.b32.xlu0 %v1904, 65
        %v1914 = vpop.permute.xlu0 %1913
        %1915 = vrot.lane.b32.xlu0 %v1905, 65
        %v1916 = vpop.permute.xlu0 %1915
        %1917 = vrot.lane.b32.xlu0 %v1906, 65
        %v1918 = vpop.permute.xlu0 %1917
        %v1923 = vmax.f32 %v1895, %v1912
        %v1924 = vmax.f32 %v1896, %v1912
        %v1925 = vmax.f32 %v1897, %v1914
        %v1926 = vmax.f32 %v1898, %v1914
        %v1927 = vmax.f32 %v1899, %v1916
        %v1928 = vmax.f32 %v1900, %v1916
        %v1929 = vmax.f32 %v1901, %v1918
        %v1930 = vmax.f32 %v1902, %v1918
        %v1931 = vpack.c.bf16 %v1924, %v1923
        %v1932 = vpack.c.bf16 %v1926, %v1925
        %v1933 = vpack.c.bf16 %v1928, %v1927
        %v1934 = vpack.c.bf16 %v1930, %v1929
        %v1935 = vunpack.c.l.bf16 %v1931
        %v1936 = vunpack.c.h.bf16 %v1931
        %v1937 = vunpack.c.l.bf16 %v1932
        %v1938 = vunpack.c.h.bf16 %v1932
        %v1939 = vunpack.c.l.bf16 %v1933
        %v1940 = vunpack.c.h.bf16 %v1933
        %v1941 = vunpack.c.l.bf16 %v1934
        %v1942 = vunpack.c.h.bf16 %v1934
        %1951 = vrot.lane.b32.xlu0 %v1935, 127
        %v1952 = vpop.permute.xlu0 %1951
        %1953 = vrot.lane.b32.xlu0 %v1936, 127
        %v1954 = vpop.permute.xlu0 %1953
        %1955 = vrot.lane.b32.xlu0 %v1937, 127
        %v1956 = vpop.permute.xlu0 %1955
        %1957 = vrot.lane.b32.xlu0 %v1938, 127
        %v1958 = vpop.permute.xlu0 %1957
        %1959 = vrot.lane.b32.xlu0 %v1939, 127
        %v1960 = vpop.permute.xlu0 %1959
        %1961 = vrot.lane.b32.xlu0 %v1940, 127
        %v1962 = vpop.permute.xlu0 %1961
        %1963 = vrot.lane.b32.xlu0 %v1941, 127
        %v1964 = vpop.permute.xlu0 %1963
        %1965 = vrot.lane.b32.xlu0 %v1942, 127
        %v1966 = vpop.permute.xlu0 %1965
        %v1967 = vsel %vm1426, %v1952, %v1954
        %v1968 = vsel %vm1426, %v1956, %v1958
        %v1969 = vsel %vm1426, %v1960, %v1962
        %v1970 = vsel %vm1426, %v1964, %v1966
        %v1979 = vmax.f32 %v1935, %v1967
        %v1980 = vmax.f32 %v1936, %v1954
        %v1981 = vmax.f32 %v1937, %v1968
        %v1982 = vmax.f32 %v1938, %v1958
        %v1983 = vmax.f32 %v1939, %v1969
        %v1984 = vmax.f32 %v1940, %v1962
        %v1985 = vmax.f32 %v1941, %v1970
        %v1986 = vmax.f32 %v1942, %v1966
        %v1987 = vpack.c.bf16 %v1980, %v1979
        %v1988 = vpack.c.bf16 %v1982, %v1981
        %v1989 = vpack.c.bf16 %v1984, %v1983
        %v1990 = vpack.c.bf16 %v1986, %v1985
        %1995 = vrot.lane.b32.xlu0 %v1987, 54
        %v1996 = vpop.permute.xlu0 %1995
        %1997 = vrot.lane.b32.xlu0 %v1988, 54
        %v1998 = vpop.permute.xlu0 %1997
        %1999 = vrot.lane.b32.xlu0 %v1989, 54
        %v2000 = vpop.permute.xlu0 %1999
        %2001 = vrot.lane.b32.xlu0 %v1990, 54
        %v2002 = vpop.permute.xlu0 %2001
        %v2003 = vrot.slane %v1996, 4
        %v2004 = vrot.slane %v1998, 4
        %v2005 = vrot.slane %v2000, 4
        %v2006 = vrot.slane %v2002, 4
        %vm2007 = vcmask 441344
        %v2008 = vsel %vm2007, %v1996, %v2003
        %v2009 = vsel %vm2007, %v1998, %v2004
        %v2010 = vsel %vm2007, %v2000, %v2005
        %v2011 = vsel %vm2007, %v2002, %v2006
        %vm2016 = vcmask 847200
        %2017 = vst.msk [vmem:[#allocation3 + $0x8] sm:$0xf] %vm2016, %v2008
        %2018 = vst.msk [vmem:[#allocation3 + $0x34] sm:$0xf] %vm2016, %v2009
        %2019 = vst.msk [vmem:[#allocation3 + $0x60] sm:$0xf] %vm2016, %v2010
        %2020 = vst.msk [vmem:[#allocation3 + $0x8c] sm:$0xf] %vm2016, %v2011
        %v2021 = vld [vmem:[#allocation2 + $0x14] sm:$0xff]
        %v2022 = vld [vmem:[#allocation2 + $0x6c] sm:$0xff]
        %v2023 = vld [vmem:[#allocation2 + $0xc4] sm:$0xff]
        %v2024 = vld [vmem:[#allocation2 + $0x11c] sm:$0xff]
        %v2025 = vld [vmem:[#allocation2 + $0x18] sm:$0xf]
        %v2026 = vld [vmem:[#allocation2 + $0x70] sm:$0xf]
        %v2027 = vld [vmem:[#allocation2 + $0xc8] sm:$0xf]
        %v2028 = vld [vmem:[#allocation2 + $0x120] sm:$0xf]
        %v2029 = vunpack.c.l.bf16 %v2021
        %v2030 = vunpack.c.h.bf16 %v2021
        %v2031 = vunpack.c.l.bf16 %v2022
        %v2032 = vunpack.c.h.bf16 %v2022
        %v2033 = vunpack.c.l.bf16 %v2023
        %v2034 = vunpack.c.h.bf16 %v2023
        %v2035 = vunpack.c.l.bf16 %v2024
        %v2036 = vunpack.c.h.bf16 %v2024
        %v2037 = vunpack.c.l.bf16 %v2025
        %v2038 = vunpack.c.l.bf16 %v2026
        %v2039 = vunpack.c.l.bf16 %v2027
        %v2040 = vunpack.c.l.bf16 %v2028
        %2045 = vrot.lane.b32.xlu0 %v2037, 65
        %v2046 = vpop.permute.xlu0 %2045
        %2047 = vrot.lane.b32.xlu0 %v2038, 65
        %v2048 = vpop.permute.xlu0 %2047
        %2049 = vrot.lane.b32.xlu0 %v2039, 65
        %v2050 = vpop.permute.xlu0 %2049
        %2051 = vrot.lane.b32.xlu0 %v2040, 65
        %v2052 = vpop.permute.xlu0 %2051
        %v2057 = vmax.f32 %v2029, %v2046
        %v2058 = vmax.f32 %v2030, %v2046
        %v2059 = vmax.f32 %v2031, %v2048
        %v2060 = vmax.f32 %v2032, %v2048
        %v2061 = vmax.f32 %v2033, %v2050
        %v2062 = vmax.f32 %v2034, %v2050
        %v2063 = vmax.f32 %v2035, %v2052
        %v2064 = vmax.f32 %v2036, %v2052
        %v2065 = vpack.c.bf16 %v2058, %v2057
        %v2066 = vpack.c.bf16 %v2060, %v2059
        %v2067 = vpack.c.bf16 %v2062, %v2061
        %v2068 = vpack.c.bf16 %v2064, %v2063
        %v2069 = vunpack.c.l.bf16 %v2065
        %v2070 = vunpack.c.h.bf16 %v2065
        %v2071 = vunpack.c.l.bf16 %v2066
        %v2072 = vunpack.c.h.bf16 %v2066
        %v2073 = vunpack.c.l.bf16 %v2067
        %v2074 = vunpack.c.h.bf16 %v2067
        %v2075 = vunpack.c.l.bf16 %v2068
        %v2076 = vunpack.c.h.bf16 %v2068
        %2085 = vrot.lane.b32.xlu0 %v2069, 127
        %v2086 = vpop.permute.xlu0 %2085
        %2087 = vrot.lane.b32.xlu0 %v2070, 127
        %v2088 = vpop.permute.xlu0 %2087
        %2089 = vrot.lane.b32.xlu0 %v2071, 127
        %v2090 = vpop.permute.xlu0 %2089
        %2091 = vrot.lane.b32.xlu0 %v2072, 127
        %v2092 = vpop.permute.xlu0 %2091
        %2093 = vrot.lane.b32.xlu0 %v2073, 127
        %v2094 = vpop.permute.xlu0 %2093
        %2095 = vrot.lane.b32.xlu0 %v2074, 127
        %v2096 = vpop.permute.xlu0 %2095
        %2097 = vrot.lane.b32.xlu0 %v2075, 127
        %v2098 = vpop.permute.xlu0 %2097
        %2099 = vrot.lane.b32.xlu0 %v2076, 127
        %v2100 = vpop.permute.xlu0 %2099
        %v2101 = vsel %vm1426, %v2086, %v2088
        %v2102 = vsel %vm1426, %v2090, %v2092
        %v2103 = vsel %vm1426, %v2094, %v2096
        %v2104 = vsel %vm1426, %v2098, %v2100
        %v2113 = vmax.f32 %v2069, %v2101
        %v2114 = vmax.f32 %v2070, %v2088
        %v2115 = vmax.f32 %v2071, %v2102
        %v2116 = vmax.f32 %v2072, %v2092
        %v2117 = vmax.f32 %v2073, %v2103
        %v2118 = vmax.f32 %v2074, %v2096
        %v2119 = vmax.f32 %v2075, %v2104
        %v2120 = vmax.f32 %v2076, %v2100
        %v2121 = vpack.c.bf16 %v2114, %v2113
        %v2122 = vpack.c.bf16 %v2116, %v2115
        %v2123 = vpack.c.bf16 %v2118, %v2117
        %v2124 = vpack.c.bf16 %v2120, %v2119
        %2129 = vrot.lane.b32.xlu0 %v2121, 116
        %v2130 = vpop.permute.xlu0 %2129
        %2131 = vrot.lane.b32.xlu0 %v2122, 116
        %v2132 = vpop.permute.xlu0 %2131
        %2133 = vrot.lane.b32.xlu0 %v2123, 116
        %v2134 = vpop.permute.xlu0 %2133
        %2135 = vrot.lane.b32.xlu0 %v2124, 116
        %v2136 = vpop.permute.xlu0 %2135
        %v2137 = vrot.slane %v2130, 4
        %v2138 = vrot.slane %v2132, 4
        %v2139 = vrot.slane %v2134, 4
        %v2140 = vrot.slane %v2136, 4
        %vm2141 = vcmask 949248
        %v2142 = vsel %vm2141, %v2130, %v2137
        %v2143 = vsel %vm2141, %v2132, %v2138
        %v2144 = vsel %vm2141, %v2134, %v2139
        %v2145 = vsel %vm2141, %v2136, %v2140
        %vm2150 = vcmask 1044288
        %vm2151 = vcmask 293892
        %vm2152 = vmor %vm2151, %vm2150
        %2153 = vst.msk [vmem:[#allocation3 + $0x8] sm:$0xff] %vm2152, %v2142
        %2154 = vst.msk [vmem:[#allocation3 + $0x34] sm:$0xff] %vm2152, %v2143
        %2155 = vst.msk [vmem:[#allocation3 + $0x60] sm:$0xff] %vm2152, %v2144
        %2156 = vst.msk [vmem:[#allocation3 + $0x8c] sm:$0xff] %vm2152, %v2145
        %v2157 = vld [vmem:[#allocation2 + $0x18] sm:$0xff]
        %v2158 = vld [vmem:[#allocation2 + $0x70] sm:$0xff]
        %v2159 = vld [vmem:[#allocation2 + $0xc8] sm:$0xff]
        %v2160 = vld [vmem:[#allocation2 + $0x120] sm:$0xff]
        %v2161 = vld [vmem:[#allocation2 + $0x1c] sm:$0xf]
        %v2162 = vld [vmem:[#allocation2 + $0x74] sm:$0xf]
        %v2163 = vld [vmem:[#allocation2 + $0xcc] sm:$0xf]
        %v2164 = vld [vmem:[#allocation2 + $0x124] sm:$0xf]
        %v2165 = vunpack.c.l.bf16 %v2157
        %v2166 = vunpack.c.h.bf16 %v2157
        %v2167 = vunpack.c.l.bf16 %v2158
        %v2168 = vunpack.c.h.bf16 %v2158
        %v2169 = vunpack.c.l.bf16 %v2159
        %v2170 = vunpack.c.h.bf16 %v2159
        %v2171 = vunpack.c.l.bf16 %v2160
        %v2172 = vunpack.c.h.bf16 %v2160
        %v2173 = vunpack.c.l.bf16 %v2161
        %v2174 = vunpack.c.l.bf16 %v2162
        %v2175 = vunpack.c.l.bf16 %v2163
        %v2176 = vunpack.c.l.bf16 %v2164
        %2181 = vrot.lane.b32.xlu0 %v2173, 65
        %v2182 = vpop.permute.xlu0 %2181
        %2183 = vrot.lane.b32.xlu0 %v2174, 65
        %v2184 = vpop.permute.xlu0 %2183
        %2185 = vrot.lane.b32.xlu0 %v2175, 65
        %v2186 = vpop.permute.xlu0 %2185
        %2187 = vrot.lane.b32.xlu0 %v2176, 65
        %v2188 = vpop.permute.xlu0 %2187
        %v2193 = vmax.f32 %v2165, %v2182
        %v2194 = vmax.f32 %v2166, %v2182
        %v2195 = vmax.f32 %v2167, %v2184
        %v2196 = vmax.f32 %v2168, %v2184
        %v2197 = vmax.f32 %v2169, %v2186
        %v2198 = vmax.f32 %v2170, %v2186
        %v2199 = vmax.f32 %v2171, %v2188
        %v2200 = vmax.f32 %v2172, %v2188
        %v2201 = vpack.c.bf16 %v2194, %v2193
        %v2202 = vpack.c.bf16 %v2196, %v2195
        %v2203 = vpack.c.bf16 %v2198, %v2197
        %v2204 = vpack.c.bf16 %v2200, %v2199
        %v2205 = vunpack.c.l.bf16 %v2201
        %v2206 = vunpack.c.h.bf16 %v2201
        %v2207 = vunpack.c.l.bf16 %v2202
        %v2208 = vunpack.c.h.bf16 %v2202
        %v2209 = vunpack.c.l.bf16 %v2203
        %v2210 = vunpack.c.h.bf16 %v2203
        %v2211 = vunpack.c.l.bf16 %v2204
        %v2212 = vunpack.c.h.bf16 %v2204
        %2221 = vrot.lane.b32.xlu0 %v2205, 127
        %v2222 = vpop.permute.xlu0 %2221
        %2223 = vrot.lane.b32.xlu0 %v2206, 127
        %v2224 = vpop.permute.xlu0 %2223
        %2225 = vrot.lane.b32.xlu0 %v2207, 127
        %v2226 = vpop.permute.xlu0 %2225
        %2227 = vrot.lane.b32.xlu0 %v2208, 127
        %v2228 = vpop.permute.xlu0 %2227
        %2229 = vrot.lane.b32.xlu0 %v2209, 127
        %v2230 = vpop.permute.xlu0 %2229
        %2231 = vrot.lane.b32.xlu0 %v2210, 127
        %v2232 = vpop.permute.xlu0 %2231
        %2233 = vrot.lane.b32.xlu0 %v2211, 127
        %v2234 = vpop.permute.xlu0 %2233
        %2235 = vrot.lane.b32.xlu0 %v2212, 127
        %v2236 = vpop.permute.xlu0 %2235
        %v2237 = vsel %vm1426, %v2222, %v2224
        %v2238 = vsel %vm1426, %v2226, %v2228
        %v2239 = vsel %vm1426, %v2230, %v2232
        %v2240 = vsel %vm1426, %v2234, %v2236
        %v2249 = vmax.f32 %v2205, %v2237
        %v2250 = vmax.f32 %v2206, %v2224
        %v2251 = vmax.f32 %v2207, %v2238
        %v2252 = vmax.f32 %v2208, %v2228
        %v2253 = vmax.f32 %v2209, %v2239
        %v2254 = vmax.f32 %v2210, %v2232
        %v2255 = vmax.f32 %v2211, %v2240
        %v2256 = vmax.f32 %v2212, %v2236
        %v2257 = vpack.c.bf16 %v2250, %v2249
        %v2258 = vpack.c.bf16 %v2252, %v2251
        %v2259 = vpack.c.bf16 %v2254, %v2253
        %v2260 = vpack.c.bf16 %v2256, %v2255
        %2265 = vrot.lane.b32.xlu0 %v2257, 50
        %v2266 = vpop.permute.xlu0 %2265
        %2267 = vrot.lane.b32.xlu0 %v2258, 50
        %v2268 = vpop.permute.xlu0 %2267
        %2269 = vrot.lane.b32.xlu0 %v2259, 50
        %v2270 = vpop.permute.xlu0 %2269
        %2271 = vrot.lane.b32.xlu0 %v2260, 50
        %v2272 = vpop.permute.xlu0 %2271
        %v2273 = vrot.slane %v2266, 4
        %v2274 = vrot.slane %v2268, 4
        %v2275 = vrot.slane %v2270, 4
        %v2276 = vrot.slane %v2272, 4
        %vm2277 = vcmask 408576
        %v2278 = vsel %vm2277, %v2266, %v2273
        %v2279 = vsel %vm2277, %v2268, %v2274
        %v2280 = vsel %vm2277, %v2270, %v2275
        %v2281 = vsel %vm2277, %v2272, %v2276
        %vm2286 = vcmask 781600
        %2287 = vst.msk [vmem:[#allocation3 + $0xc] sm:$0xf] %vm2286, %v2278
        %2288 = vst.msk [vmem:[#allocation3 + $0x38] sm:$0xf] %vm2286, %v2279
        %2289 = vst.msk [vmem:[#allocation3 + $0x64] sm:$0xf] %vm2286, %v2280
        %2290 = vst.msk [vmem:[#allocation3 + $0x90] sm:$0xf] %vm2286, %v2281
        %v2291 = vld [vmem:[#allocation2 + $0x1c] sm:$0xff]
        %v2292 = vld [vmem:[#allocation2 + $0x74] sm:$0xff]
        %v2293 = vld [vmem:[#allocation2 + $0xcc] sm:$0xff]
        %v2294 = vld [vmem:[#allocation2 + $0x124] sm:$0xff]
        %v2295 = vld [vmem:[#allocation2 + $0x20] sm:$0xf]
        %v2296 = vld [vmem:[#allocation2 + $0x78] sm:$0xf]
        %v2297 = vld [vmem:[#allocation2 + $0xd0] sm:$0xf]
        %v2298 = vld [vmem:[#allocation2 + $0x128] sm:$0xf]
        %v2299 = vunpack.c.l.bf16 %v2291
        %v2300 = vunpack.c.h.bf16 %v2291
        %v2301 = vunpack.c.l.bf16 %v2292
        %v2302 = vunpack.c.h.bf16 %v2292
        %v2303 = vunpack.c.l.bf16 %v2293
        %v2304 = vunpack.c.h.bf16 %v2293
        %v2305 = vunpack.c.l.bf16 %v2294
        %v2306 = vunpack.c.h.bf16 %v2294
        %v2307 = vunpack.c.l.bf16 %v2295
        %v2308 = vunpack.c.l.bf16 %v2296
        %v2309 = vunpack.c.l.bf16 %v2297
        %v2310 = vunpack.c.l.bf16 %v2298
        %2315 = vrot.lane.b32.xlu0 %v2307, 65
        %v2316 = vpop.permute.xlu0 %2315
        %2317 = vrot.lane.b32.xlu0 %v2308, 65
        %v2318 = vpop.permute.xlu0 %2317
        %2319 = vrot.lane.b32.xlu0 %v2309, 65
        %v2320 = vpop.permute.xlu0 %2319
        %2321 = vrot.lane.b32.xlu0 %v2310, 65
        %v2322 = vpop.permute.xlu0 %2321
        %v2327 = vmax.f32 %v2299, %v2316
        %v2328 = vmax.f32 %v2300, %v2316
        %v2329 = vmax.f32 %v2301, %v2318
        %v2330 = vmax.f32 %v2302, %v2318
        %v2331 = vmax.f32 %v2303, %v2320
        %v2332 = vmax.f32 %v2304, %v2320
        %v2333 = vmax.f32 %v2305, %v2322
        %v2334 = vmax.f32 %v2306, %v2322
        %v2335 = vpack.c.bf16 %v2328, %v2327
        %v2336 = vpack.c.bf16 %v2330, %v2329
        %v2337 = vpack.c.bf16 %v2332, %v2331
        %v2338 = vpack.c.bf16 %v2334, %v2333
        %v2339 = vunpack.c.l.bf16 %v2335
        %v2340 = vunpack.c.h.bf16 %v2335
        %v2341 = vunpack.c.l.bf16 %v2336
        %v2342 = vunpack.c.h.bf16 %v2336
        %v2343 = vunpack.c.l.bf16 %v2337
        %v2344 = vunpack.c.h.bf16 %v2337
        %v2345 = vunpack.c.l.bf16 %v2338
        %v2346 = vunpack.c.h.bf16 %v2338
        %2355 = vrot.lane.b32.xlu0 %v2339, 127
        %v2356 = vpop.permute.xlu0 %2355
        %2357 = vrot.lane.b32.xlu0 %v2340, 127
        %v2358 = vpop.permute.xlu0 %2357
        %2359 = vrot.lane.b32.xlu0 %v2341, 127
        %v2360 = vpop.permute.xlu0 %2359
        %2361 = vrot.lane.b32.xlu0 %v2342, 127
        %v2362 = vpop.permute.xlu0 %2361
        %2363 = vrot.lane.b32.xlu0 %v2343, 127
        %v2364 = vpop.permute.xlu0 %2363
        %2365 = vrot.lane.b32.xlu0 %v2344, 127
        %v2366 = vpop.permute.xlu0 %2365
        %2367 = vrot.lane.b32.xlu0 %v2345, 127
        %v2368 = vpop.permute.xlu0 %2367
        %2369 = vrot.lane.b32.xlu0 %v2346, 127
        %v2370 = vpop.permute.xlu0 %2369
        %v2371 = vsel %vm1426, %v2356, %v2358
        %v2372 = vsel %vm1426, %v2360, %v2362
        %v2373 = vsel %vm1426, %v2364, %v2366
        %v2374 = vsel %vm1426, %v2368, %v2370
        %v2383 = vmax.f32 %v2339, %v2371
        %v2384 = vmax.f32 %v2340, %v2358
        %v2385 = vmax.f32 %v2341, %v2372
        %v2386 = vmax.f32 %v2342, %v2362
        %v2387 = vmax.f32 %v2343, %v2373
        %v2388 = vmax.f32 %v2344, %v2366
        %v2389 = vmax.f32 %v2345, %v2374
        %v2390 = vmax.f32 %v2346, %v2370
        %v2391 = vpack.c.bf16 %v2384, %v2383
        %v2392 = vpack.c.bf16 %v2386, %v2385
        %v2393 = vpack.c.bf16 %v2388, %v2387
        %v2394 = vpack.c.bf16 %v2390, %v2389
        %2399 = vrot.lane.b32.xlu0 %v2391, 112
        %v2400 = vpop.permute.xlu0 %2399
        %2401 = vrot.lane.b32.xlu0 %v2392, 112
        %v2402 = vpop.permute.xlu0 %2401
        %2403 = vrot.lane.b32.xlu0 %v2393, 112
        %v2404 = vpop.permute.xlu0 %2403
        %2405 = vrot.lane.b32.xlu0 %v2394, 112
        %v2406 = vpop.permute.xlu0 %2405
        %v2407 = vrot.slane %v2400, 4
        %v2408 = vrot.slane %v2402, 4
        %v2409 = vrot.slane %v2404, 4
        %v2410 = vrot.slane %v2406, 4
        %vm2411 = vcmask 916480
        %v2412 = vsel %vm2411, %v2400, %v2407
        %v2413 = vsel %vm2411, %v2402, %v2408
        %v2414 = vsel %vm2411, %v2404, %v2409
        %v2415 = vsel %vm2411, %v2406, %v2410
        %vm2420 = vcmask 1044224
        %vm2421 = vcmask 228356
        %vm2422 = vmor %vm2421, %vm2420
        %2423 = vst.msk [vmem:[#allocation3 + $0xc] sm:$0xff] %vm2422, %v2412
        %2424 = vst.msk [vmem:[#allocation3 + $0x38] sm:$0xff] %vm2422, %v2413
        %2425 = vst.msk [vmem:[#allocation3 + $0x64] sm:$0xff] %vm2422, %v2414
        %2426 = vst.msk [vmem:[#allocation3 + $0x90] sm:$0xff] %vm2422, %v2415
        %v2427 = vld [vmem:[#allocation2 + $0x20] sm:$0xff]
        %v2428 = vld [vmem:[#allocation2 + $0x78] sm:$0xff]
        %v2429 = vld [vmem:[#allocation2 + $0xd0] sm:$0xff]
        %v2430 = vld [vmem:[#allocation2 + $0x128] sm:$0xff]
        %v2431 = vld [vmem:[#allocation2 + $0x24] sm:$0xf]
        %v2432 = vld [vmem:[#allocation2 + $0x7c] sm:$0xf]
        %v2433 = vld [vmem:[#allocation2 + $0xd4] sm:$0xf]
        %v2434 = vld [vmem:[#allocation2 + $0x12c] sm:$0xf]
        %v2435 = vunpack.c.l.bf16 %v2427
        %v2436 = vunpack.c.h.bf16 %v2427
        %v2437 = vunpack.c.l.bf16 %v2428
        %v2438 = vunpack.c.h.bf16 %v2428
        %v2439 = vunpack.c.l.bf16 %v2429
        %v2440 = vunpack.c.h.bf16 %v2429
        %v2441 = vunpack.c.l.bf16 %v2430
        %v2442 = vunpack.c.h.bf16 %v2430
        %v2443 = vunpack.c.l.bf16 %v2431
        %v2444 = vunpack.c.l.bf16 %v2432
        %v2445 = vunpack.c.l.bf16 %v2433
        %v2446 = vunpack.c.l.bf16 %v2434
        %2451 = vrot.lane.b32.xlu0 %v2443, 65
        %v2452 = vpop.permute.xlu0 %2451
        %2453 = vrot.lane.b32.xlu0 %v2444, 65
        %v2454 = vpop.permute.xlu0 %2453
        %2455 = vrot.lane.b32.xlu0 %v2445, 65
        %v2456 = vpop.permute.xlu0 %2455
        %2457 = vrot.lane.b32.xlu0 %v2446, 65
        %v2458 = vpop.permute.xlu0 %2457
        %v2463 = vmax.f32 %v2435, %v2452
        %v2464 = vmax.f32 %v2436, %v2452
        %v2465 = vmax.f32 %v2437, %v2454
        %v2466 = vmax.f32 %v2438, %v2454
        %v2467 = vmax.f32 %v2439, %v2456
        %v2468 = vmax.f32 %v2440, %v2456
        %v2469 = vmax.f32 %v2441, %v2458
        %v2470 = vmax.f32 %v2442, %v2458
        %v2471 = vpack.c.bf16 %v2464, %v2463
        %v2472 = vpack.c.bf16 %v2466, %v2465
        %v2473 = vpack.c.bf16 %v2468, %v2467
        %v2474 = vpack.c.bf16 %v2470, %v2469
        %v2475 = vunpack.c.l.bf16 %v2471
        %v2476 = vunpack.c.h.bf16 %v2471
        %v2477 = vunpack.c.l.bf16 %v2472
        %v2478 = vunpack.c.h.bf16 %v2472
        %v2479 = vunpack.c.l.bf16 %v2473
        %v2480 = vunpack.c.h.bf16 %v2473
        %v2481 = vunpack.c.l.bf16 %v2474
        %v2482 = vunpack.c.h.bf16 %v2474
        %2491 = vrot.lane.b32.xlu0 %v2475, 127
        %v2492 = vpop.permute.xlu0 %2491
        %2493 = vrot.lane.b32.xlu0 %v2476, 127
        %v2494 = vpop.permute.xlu0 %2493
        %2495 = vrot.lane.b32.xlu0 %v2477, 127
        %v2496 = vpop.permute.xlu0 %2495
        %2497 = vrot.lane.b32.xlu0 %v2478, 127
        %v2498 = vpop.permute.xlu0 %2497
        %2499 = vrot.lane.b32.xlu0 %v2479, 127
        %v2500 = vpop.permute.xlu0 %2499
        %2501 = vrot.lane.b32.xlu0 %v2480, 127
        %v2502 = vpop.permute.xlu0 %2501
        %2503 = vrot.lane.b32.xlu0 %v2481, 127
        %v2504 = vpop.permute.xlu0 %2503
        %2505 = vrot.lane.b32.xlu0 %v2482, 127
        %v2506 = vpop.permute.xlu0 %2505
        %v2507 = vsel %vm1426, %v2492, %v2494
        %v2508 = vsel %vm1426, %v2496, %v2498
        %v2509 = vsel %vm1426, %v2500, %v2502
        %v2510 = vsel %vm1426, %v2504, %v2506
        %v2519 = vmax.f32 %v2475, %v2507
        %v2520 = vmax.f32 %v2476, %v2494
        %v2521 = vmax.f32 %v2477, %v2508
        %v2522 = vmax.f32 %v2478, %v2498
        %v2523 = vmax.f32 %v2479, %v2509
        %v2524 = vmax.f32 %v2480, %v2502
        %v2525 = vmax.f32 %v2481, %v2510
        %v2526 = vmax.f32 %v2482, %v2506
        %v2527 = vpack.c.bf16 %v2520, %v2519
        %v2528 = vpack.c.bf16 %v2522, %v2521
        %v2529 = vpack.c.bf16 %v2524, %v2523
        %v2530 = vpack.c.bf16 %v2526, %v2525
        %2535 = vrot.lane.b32.xlu0 %v2527, 46
        %v2536 = vpop.permute.xlu0 %2535
        %2537 = vrot.lane.b32.xlu0 %v2528, 46
        %v2538 = vpop.permute.xlu0 %2537
        %2539 = vrot.lane.b32.xlu0 %v2529, 46
        %v2540 = vpop.permute.xlu0 %2539
        %2541 = vrot.lane.b32.xlu0 %v2530, 46
        %v2542 = vpop.permute.xlu0 %2541
        %v2543 = vrot.slane %v2536, 4
        %v2544 = vrot.slane %v2538, 4
        %v2545 = vrot.slane %v2540, 4
        %v2546 = vrot.slane %v2542, 4
        %vm2547 = vcmask 375808
        %v2548 = vsel %vm2547, %v2536, %v2543
        %v2549 = vsel %vm2547, %v2538, %v2544
        %v2550 = vsel %vm2547, %v2540, %v2545
        %v2551 = vsel %vm2547, %v2542, %v2546
        %vm2556 = vcmask 716000
        %2557 = vst.msk [vmem:[#allocation3 + $0x10] sm:$0xf] %vm2556, %v2548
        %2558 = vst.msk [vmem:[#allocation3 + $0x3c] sm:$0xf] %vm2556, %v2549
        %2559 = vst.msk [vmem:[#allocation3 + $0x68] sm:$0xf] %vm2556, %v2550
        %2560 = vst.msk [vmem:[#allocation3 + $0x94] sm:$0xf] %vm2556, %v2551
        %v2561 = vld [vmem:[#allocation2 + $0x24] sm:$0xff]
        %v2562 = vld [vmem:[#allocation2 + $0x7c] sm:$0xff]
        %v2563 = vld [vmem:[#allocation2 + $0xd4] sm:$0xff]
        %v2564 = vld [vmem:[#allocation2 + $0x12c] sm:$0xff]
        %v2565 = vld [vmem:[#allocation2 + $0x28] sm:$0xf]
        %v2566 = vld [vmem:[#allocation2 + $0x80] sm:$0xf]
        %v2567 = vld [vmem:[#allocation2 + $0xd8] sm:$0xf]
        %v2568 = vld [vmem:[#allocation2 + $0x130] sm:$0xf]
        %v2569 = vunpack.c.l.bf16 %v2561
        %v2570 = vunpack.c.h.bf16 %v2561
        %v2571 = vunpack.c.l.bf16 %v2562
        %v2572 = vunpack.c.h.bf16 %v2562
        %v2573 = vunpack.c.l.bf16 %v2563
        %v2574 = vunpack.c.h.bf16 %v2563
        %v2575 = vunpack.c.l.bf16 %v2564
        %v2576 = vunpack.c.h.bf16 %v2564
        %v2577 = vunpack.c.l.bf16 %v2565
        %v2578 = vunpack.c.l.bf16 %v2566
        %v2579 = vunpack.c.l.bf16 %v2567
        %v2580 = vunpack.c.l.bf16 %v2568
        %2585 = vrot.lane.b32.xlu0 %v2577, 65
        %v2586 = vpop.permute.xlu0 %2585
        %2587 = vrot.lane.b32.xlu0 %v2578, 65
        %v2588 = vpop.permute.xlu0 %2587
        %2589 = vrot.lane.b32.xlu0 %v2579, 65
        %v2590 = vpop.permute.xlu0 %2589
        %2591 = vrot.lane.b32.xlu0 %v2580, 65
        %v2592 = vpop.permute.xlu0 %2591
        %v2597 = vmax.f32 %v2569, %v2586
        %v2598 = vmax.f32 %v2570, %v2586
        %v2599 = vmax.f32 %v2571, %v2588
        %v2600 = vmax.f32 %v2572, %v2588
        %v2601 = vmax.f32 %v2573, %v2590
        %v2602 = vmax.f32 %v2574, %v2590
        %v2603 = vmax.f32 %v2575, %v2592
        %v2604 = vmax.f32 %v2576, %v2592
        %v2605 = vpack.c.bf16 %v2598, %v2597
        %v2606 = vpack.c.bf16 %v2600, %v2599
        %v2607 = vpack.c.bf16 %v2602, %v2601
        %v2608 = vpack.c.bf16 %v2604, %v2603
        %v2609 = vunpack.c.l.bf16 %v2605
        %v2610 = vunpack.c.h.bf16 %v2605
        %v2611 = vunpack.c.l.bf16 %v2606
        %v2612 = vunpack.c.h.bf16 %v2606
        %v2613 = vunpack.c.l.bf16 %v2607
        %v2614 = vunpack.c.h.bf16 %v2607
        %v2615 = vunpack.c.l.bf16 %v2608
        %v2616 = vunpack.c.h.bf16 %v2608
        %2625 = vrot.lane.b32.xlu0 %v2609, 127
        %v2626 = vpop.permute.xlu0 %2625
        %2627 = vrot.lane.b32.xlu0 %v2610, 127
        %v2628 = vpop.permute.xlu0 %2627
        %2629 = vrot.lane.b32.xlu0 %v2611, 127
        %v2630 = vpop.permute.xlu0 %2629
        %2631 = vrot.lane.b32.xlu0 %v2612, 127
        %v2632 = vpop.permute.xlu0 %2631
        %2633 = vrot.lane.b32.xlu0 %v2613, 127
        %v2634 = vpop.permute.xlu0 %2633
        %2635 = vrot.lane.b32.xlu0 %v2614, 127
        %v2636 = vpop.permute.xlu0 %2635
        %2637 = vrot.lane.b32.xlu0 %v2615, 127
        %v2638 = vpop.permute.xlu0 %2637
        %2639 = vrot.lane.b32.xlu0 %v2616, 127
        %v2640 = vpop.permute.xlu0 %2639
        %v2641 = vsel %vm1426, %v2626, %v2628
        %v2642 = vsel %vm1426, %v2630, %v2632
        %v2643 = vsel %vm1426, %v2634, %v2636
        %v2644 = vsel %vm1426, %v2638, %v2640
        %v2653 = vmax.f32 %v2609, %v2641
        %v2654 = vmax.f32 %v2610, %v2628
        %v2655 = vmax.f32 %v2611, %v2642
        %v2656 = vmax.f32 %v2612, %v2632
        %v2657 = vmax.f32 %v2613, %v2643
        %v2658 = vmax.f32 %v2614, %v2636
        %v2659 = vmax.f32 %v2615, %v2644
        %v2660 = vmax.f32 %v2616, %v2640
        %v2661 = vpack.c.bf16 %v2654, %v2653
        %v2662 = vpack.c.bf16 %v2656, %v2655
        %v2663 = vpack.c.bf16 %v2658, %v2657
        %v2664 = vpack.c.bf16 %v2660, %v2659
        %2669 = vrot.lane.b32.xlu0 %v2661, 108
        %v2670 = vpop.permute.xlu0 %2669
        %2671 = vrot.lane.b32.xlu0 %v2662, 108
        %v2672 = vpop.permute.xlu0 %2671
        %2673 = vrot.lane.b32.xlu0 %v2663, 108
        %v2674 = vpop.permute.xlu0 %2673
        %2675 = vrot.lane.b32.xlu0 %v2664, 108
        %v2676 = vpop.permute.xlu0 %2675
        %v2677 = vrot.slane %v2670, 4
        %v2678 = vrot.slane %v2672, 4
        %v2679 = vrot.slane %v2674, 4
        %v2680 = vrot.slane %v2676, 4
        %vm2681 = vcmask 883712
        %v2682 = vsel %vm2681, %v2670, %v2677
        %v2683 = vsel %vm2681, %v2672, %v2678
        %v2684 = vsel %vm2681, %v2674, %v2679
        %v2685 = vsel %vm2681, %v2676, %v2680
        %vm2690 = vcmask 1044160
        %vm2691 = vcmask 162820
        %vm2692 = vmor %vm2691, %vm2690
        %2693 = vst.msk [vmem:[#allocation3 + $0x10] sm:$0xff] %vm2692, %v2682
        %2694 = vst.msk [vmem:[#allocation3 + $0x3c] sm:$0xff] %vm2692, %v2683
        %2695 = vst.msk [vmem:[#allocation3 + $0x68] sm:$0xff] %vm2692, %v2684
        %2696 = vst.msk [vmem:[#allocation3 + $0x94] sm:$0xff] %vm2692, %v2685
        %v2697 = vld [vmem:[#allocation2 + $0x28] sm:$0xff]
        %v2698 = vld [vmem:[#allocation2 + $0x80] sm:$0xff]
        %v2699 = vld [vmem:[#allocation2 + $0xd8] sm:$0xff]
        %v2700 = vld [vmem:[#allocation2 + $0x130] sm:$0xff]
        %v2701 = vld [vmem:[#allocation2 + $0x2c] sm:$0xf]
        %v2702 = vld [vmem:[#allocation2 + $0x84] sm:$0xf]
        %v2703 = vld [vmem:[#allocation2 + $0xdc] sm:$0xf]
        %v2704 = vld [vmem:[#allocation2 + $0x134] sm:$0xf]
        %v2705 = vunpack.c.l.bf16 %v2697
        %v2706 = vunpack.c.h.bf16 %v2697
        %v2707 = vunpack.c.l.bf16 %v2698
        %v2708 = vunpack.c.h.bf16 %v2698
        %v2709 = vunpack.c.l.bf16 %v2699
        %v2710 = vunpack.c.h.bf16 %v2699
        %v2711 = vunpack.c.l.bf16 %v2700
        %v2712 = vunpack.c.h.bf16 %v2700
        %v2713 = vunpack.c.l.bf16 %v2701
        %v2714 = vunpack.c.l.bf16 %v2702
        %v2715 = vunpack.c.l.bf16 %v2703
        %v2716 = vunpack.c.l.bf16 %v2704
        %2721 = vrot.lane.b32.xlu0 %v2713, 65
        %v2722 = vpop.permute.xlu0 %2721
        %2723 = vrot.lane.b32.xlu0 %v2714, 65
        %v2724 = vpop.permute.xlu0 %2723
        %2725 = vrot.lane.b32.xlu0 %v2715, 65
        %v2726 = vpop.permute.xlu0 %2725
        %2727 = vrot.lane.b32.xlu0 %v2716, 65
        %v2728 = vpop.permute.xlu0 %2727
        %v2733 = vmax.f32 %v2705, %v2722
        %v2734 = vmax.f32 %v2706, %v2722
        %v2735 = vmax.f32 %v2707, %v2724
        %v2736 = vmax.f32 %v2708, %v2724
        %v2737 = vmax.f32 %v2709, %v2726
        %v2738 = vmax.f32 %v2710, %v2726
        %v2739 = vmax.f32 %v2711, %v2728
        %v2740 = vmax.f32 %v2712, %v2728
        %v2741 = vpack.c.bf16 %v2734, %v2733
        %v2742 = vpack.c.bf16 %v2736, %v2735
        %v2743 = vpack.c.bf16 %v2738, %v2737
        %v2744 = vpack.c.bf16 %v2740, %v2739
        %v2745 = vunpack.c.l.bf16 %v2741
        %v2746 = vunpack.c.h.bf16 %v2741
        %v2747 = vunpack.c.l.bf16 %v2742
        %v2748 = vunpack.c.h.bf16 %v2742
        %v2749 = vunpack.c.l.bf16 %v2743
        %v2750 = vunpack.c.h.bf16 %v2743
        %v2751 = vunpack.c.l.bf16 %v2744
        %v2752 = vunpack.c.h.bf16 %v2744
        %2761 = vrot.lane.b32.xlu0 %v2745, 127
        %v2762 = vpop.permute.xlu0 %2761
        %2763 = vrot.lane.b32.xlu0 %v2746, 127
        %v2764 = vpop.permute.xlu0 %2763
        %2765 = vrot.lane.b32.xlu0 %v2747, 127
        %v2766 = vpop.permute.xlu0 %2765
        %2767 = vrot.lane.b32.xlu0 %v2748, 127
        %v2768 = vpop.permute.xlu0 %2767
        %2769 = vrot.lane.b32.xlu0 %v2749, 127
        %v2770 = vpop.permute.xlu0 %2769
        %2771 = vrot.lane.b32.xlu0 %v2750, 127
        %v2772 = vpop.permute.xlu0 %2771
        %2773 = vrot.lane.b32.xlu0 %v2751, 127
        %v2774 = vpop.permute.xlu0 %2773
        %2775 = vrot.lane.b32.xlu0 %v2752, 127
        %v2776 = vpop.permute.xlu0 %2775
        %v2777 = vsel %vm1426, %v2762, %v2764
        %v2778 = vsel %vm1426, %v2766, %v2768
        %v2779 = vsel %vm1426, %v2770, %v2772
        %v2780 = vsel %vm1426, %v2774, %v2776
        %v2789 = vmax.f32 %v2745, %v2777
        %v2790 = vmax.f32 %v2746, %v2764
        %v2791 = vmax.f32 %v2747, %v2778
        %v2792 = vmax.f32 %v2748, %v2768
        %v2793 = vmax.f32 %v2749, %v2779
        %v2794 = vmax.f32 %v2750, %v2772
        %v2795 = vmax.f32 %v2751, %v2780
        %v2796 = vmax.f32 %v2752, %v2776
        %v2797 = vpack.c.bf16 %v2790, %v2789
        %v2798 = vpack.c.bf16 %v2792, %v2791
        %v2799 = vpack.c.bf16 %v2794, %v2793
        %v2800 = vpack.c.bf16 %v2796, %v2795
        %2805 = vrot.lane.b32.xlu0 %v2797, 42
        %v2806 = vpop.permute.xlu0 %2805
        %2807 = vrot.lane.b32.xlu0 %v2798, 42
        %v2808 = vpop.permute.xlu0 %2807
        %2809 = vrot.lane.b32.xlu0 %v2799, 42
        %v2810 = vpop.permute.xlu0 %2809
        %2811 = vrot.lane.b32.xlu0 %v2800, 42
        %v2812 = vpop.permute.xlu0 %2811
        %v2813 = vrot.slane %v2806, 4
        %v2814 = vrot.slane %v2808, 4
        %v2815 = vrot.slane %v2810, 4
        %v2816 = vrot.slane %v2812, 4
        %vm2817 = vcmask 343040
        %v2818 = vsel %vm2817, %v2806, %v2813
        %v2819 = vsel %vm2817, %v2808, %v2814
        %v2820 = vsel %vm2817, %v2810, %v2815
        %v2821 = vsel %vm2817, %v2812, %v2816
        %vm2826 = vcmask 650400
        %2827 = vst.msk [vmem:[#allocation3 + $0x14] sm:$0xf] %vm2826, %v2818
        %2828 = vst.msk [vmem:[#allocation3 + $0x40] sm:$0xf] %vm2826, %v2819
        %2829 = vst.msk [vmem:[#allocation3 + $0x6c] sm:$0xf] %vm2826, %v2820
        %2830 = vst.msk [vmem:[#allocation3 + $0x98] sm:$0xf] %vm2826, %v2821
        %v2831 = vld [vmem:[#allocation2 + $0x2c] sm:$0xff]
        %v2832 = vld [vmem:[#allocation2 + $0x84] sm:$0xff]
        %v2833 = vld [vmem:[#allocation2 + $0xdc] sm:$0xff]
        %v2834 = vld [vmem:[#allocation2 + $0x134] sm:$0xff]
        %v2835 = vld [vmem:[#allocation2 + $0x30] sm:$0xf]
        %v2836 = vld [vmem:[#allocation2 + $0x88] sm:$0xf]
        %v2837 = vld [vmem:[#allocation2 + $0xe0] sm:$0xf]
        %v2838 = vld [vmem:[#allocation2 + $0x138] sm:$0xf]
        %v2839 = vunpack.c.l.bf16 %v2831
        %v2840 = vunpack.c.h.bf16 %v2831
        %v2841 = vunpack.c.l.bf16 %v2832
        %v2842 = vunpack.c.h.bf16 %v2832
        %v2843 = vunpack.c.l.bf16 %v2833
        %v2844 = vunpack.c.h.bf16 %v2833
        %v2845 = vunpack.c.l.bf16 %v2834
        %v2846 = vunpack.c.h.bf16 %v2834
        %v2847 = vunpack.c.l.bf16 %v2835
        %v2848 = vunpack.c.l.bf16 %v2836
        %v2849 = vunpack.c.l.bf16 %v2837
        %v2850 = vunpack.c.l.bf16 %v2838
        %2855 = vrot.lane.b32.xlu0 %v2847, 65
        %v2856 = vpop.permute.xlu0 %2855
        %2857 = vrot.lane.b32.xlu0 %v2848, 65
        %v2858 = vpop.permute.xlu0 %2857
        %2859 = vrot.lane.b32.xlu0 %v2849, 65
        %v2860 = vpop.permute.xlu0 %2859
        %2861 = vrot.lane.b32.xlu0 %v2850, 65
        %v2862 = vpop.permute.xlu0 %2861
        %v2867 = vmax.f32 %v2839, %v2856
        %v2868 = vmax.f32 %v2840, %v2856
        %v2869 = vmax.f32 %v2841, %v2858
        %v2870 = vmax.f32 %v2842, %v2858
        %v2871 = vmax.f32 %v2843, %v2860
        %v2872 = vmax.f32 %v2844, %v2860
        %v2873 = vmax.f32 %v2845, %v2862
        %v2874 = vmax.f32 %v2846, %v2862
        %v2875 = vpack.c.bf16 %v2868, %v2867
        %v2876 = vpack.c.bf16 %v2870, %v2869
        %v2877 = vpack.c.bf16 %v2872, %v2871
        %v2878 = vpack.c.bf16 %v2874, %v2873
        %v2879 = vunpack.c.l.bf16 %v2875
        %v2880 = vunpack.c.h.bf16 %v2875
        %v2881 = vunpack.c.l.bf16 %v2876
        %v2882 = vunpack.c.h.bf16 %v2876
        %v2883 = vunpack.c.l.bf16 %v2877
        %v2884 = vunpack.c.h.bf16 %v2877
        %v2885 = vunpack.c.l.bf16 %v2878
        %v2886 = vunpack.c.h.bf16 %v2878
        %2895 = vrot.lane.b32.xlu0 %v2879, 127
        %v2896 = vpop.permute.xlu0 %2895
        %2897 = vrot.lane.b32.xlu0 %v2880, 127
        %v2898 = vpop.permute.xlu0 %2897
        %2899 = vrot.lane.b32.xlu0 %v2881, 127
        %v2900 = vpop.permute.xlu0 %2899
        %2901 = vrot.lane.b32.xlu0 %v2882, 127
        %v2902 = vpop.permute.xlu0 %2901
        %2903 = vrot.lane.b32.xlu0 %v2883, 127
        %v2904 = vpop.permute.xlu0 %2903
        %2905 = vrot.lane.b32.xlu0 %v2884, 127
        %v2906 = vpop.permute.xlu0 %2905
        %2907 = vrot.lane.b32.xlu0 %v2885, 127
        %v2908 = vpop.permute.xlu0 %2907
        %2909 = vrot.lane.b32.xlu0 %v2886, 127
        %v2910 = vpop.permute.xlu0 %2909
        %v2911 = vsel %vm1426, %v2896, %v2898
        %v2912 = vsel %vm1426, %v2900, %v2902
        %v2913 = vsel %vm1426, %v2904, %v2906
        %v2914 = vsel %vm1426, %v2908, %v2910
        %v2923 = vmax.f32 %v2879, %v2911
        %v2924 = vmax.f32 %v2880, %v2898
        %v2925 = vmax.f32 %v2881, %v2912
        %v2926 = vmax.f32 %v2882, %v2902
        %v2927 = vmax.f32 %v2883, %v2913
        %v2928 = vmax.f32 %v2884, %v2906
        %v2929 = vmax.f32 %v2885, %v2914
        %v2930 = vmax.f32 %v2886, %v2910
        %v2931 = vpack.c.bf16 %v2924, %v2923
        %v2932 = vpack.c.bf16 %v2926, %v2925
        %v2933 = vpack.c.bf16 %v2928, %v2927
        %v2934 = vpack.c.bf16 %v2930, %v2929
        %2939 = vrot.lane.b32.xlu0 %v2931, 104
        %v2940 = vpop.permute.xlu0 %2939
        %2941 = vrot.lane.b32.xlu0 %v2932, 104
        %v2942 = vpop.permute.xlu0 %2941
        %2943 = vrot.lane.b32.xlu0 %v2933, 104
        %v2944 = vpop.permute.xlu0 %2943
        %2945 = vrot.lane.b32.xlu0 %v2934, 104
        %v2946 = vpop.permute.xlu0 %2945
        %v2947 = vrot.slane %v2940, 4
        %v2948 = vrot.slane %v2942, 4
        %v2949 = vrot.slane %v2944, 4
        %v2950 = vrot.slane %v2946, 4
        %vm2951 = vcmask 850944
        %v2952 = vsel %vm2951, %v2940, %v2947
        %v2953 = vsel %vm2951, %v2942, %v2948
        %v2954 = vsel %vm2951, %v2944, %v2949
        %v2955 = vsel %vm2951, %v2946, %v2950
        %vm2960 = vcmask 1044096
        %vm2961 = vcmask 97284
        %vm2962 = vmor %vm2961, %vm2960
        %2963 = vst.msk [vmem:[#allocation3 + $0x14] sm:$0xff] %vm2962, %v2952
        %2964 = vst.msk [vmem:[#allocation3 + $0x40] sm:$0xff] %vm2962, %v2953
        %2965 = vst.msk [vmem:[#allocation3 + $0x6c] sm:$0xff] %vm2962, %v2954
        %2966 = vst.msk [vmem:[#allocation3 + $0x98] sm:$0xff] %vm2962, %v2955
        %v2967 = vld [vmem:[#allocation2 + $0x30] sm:$0xff]
        %v2968 = vld [vmem:[#allocation2 + $0x88] sm:$0xff]
        %v2969 = vld [vmem:[#allocation2 + $0xe0] sm:$0xff]
        %v2970 = vld [vmem:[#allocation2 + $0x138] sm:$0xff]
        %v2971 = vld [vmem:[#allocation2 + $0x34] sm:$0xf]
        %v2972 = vld [vmem:[#allocation2 + $0x8c] sm:$0xf]
        %v2973 = vld [vmem:[#allocation2 + $0xe4] sm:$0xf]
        %v2974 = vld [vmem:[#allocation2 + $0x13c] sm:$0xf]
        %v2975 = vunpack.c.l.bf16 %v2967
        %v2976 = vunpack.c.h.bf16 %v2967
        %v2977 = vunpack.c.l.bf16 %v2968
        %v2978 = vunpack.c.h.bf16 %v2968
        %v2979 = vunpack.c.l.bf16 %v2969
        %v2980 = vunpack.c.h.bf16 %v2969
        %v2981 = vunpack.c.l.bf16 %v2970
        %v2982 = vunpack.c.h.bf16 %v2970
        %v2983 = vunpack.c.l.bf16 %v2971
        %v2984 = vunpack.c.l.bf16 %v2972
        %v2985 = vunpack.c.l.bf16 %v2973
        %v2986 = vunpack.c.l.bf16 %v2974
        %2991 = vrot.lane.b32.xlu0 %v2983, 65
        %v2992 = vpop.permute.xlu0 %2991
        %2993 = vrot.lane.b32.xlu0 %v2984, 65
        %v2994 = vpop.permute.xlu0 %2993
        %2995 = vrot.lane.b32.xlu0 %v2985, 65
        %v2996 = vpop.permute.xlu0 %2995
        %2997 = vrot.lane.b32.xlu0 %v2986, 65
        %v2998 = vpop.permute.xlu0 %2997
        %v3003 = vmax.f32 %v2975, %v2992
        %v3004 = vmax.f32 %v2976, %v2992
        %v3005 = vmax.f32 %v2977, %v2994
        %v3006 = vmax.f32 %v2978, %v2994
        %v3007 = vmax.f32 %v2979, %v2996
        %v3008 = vmax.f32 %v2980, %v2996
        %v3009 = vmax.f32 %v2981, %v2998
        %v3010 = vmax.f32 %v2982, %v2998
        %v3011 = vpack.c.bf16 %v3004, %v3003
        %v3012 = vpack.c.bf16 %v3006, %v3005
        %v3013 = vpack.c.bf16 %v3008, %v3007
        %v3014 = vpack.c.bf16 %v3010, %v3009
        %v3015 = vunpack.c.l.bf16 %v3011
        %v3016 = vunpack.c.h.bf16 %v3011
        %v3017 = vunpack.c.l.bf16 %v3012
        %v3018 = vunpack.c.h.bf16 %v3012
        %v3019 = vunpack.c.l.bf16 %v3013
        %v3020 = vunpack.c.h.bf16 %v3013
        %v3021 = vunpack.c.l.bf16 %v3014
        %v3022 = vunpack.c.h.bf16 %v3014
        %3031 = vrot.lane.b32.xlu0 %v3015, 127
        %v3032 = vpop.permute.xlu0 %3031
        %3033 = vrot.lane.b32.xlu0 %v3016, 127
        %v3034 = vpop.permute.xlu0 %3033
        %3035 = vrot.lane.b32.xlu0 %v3017, 127
        %v3036 = vpop.permute.xlu0 %3035
        %3037 = vrot.lane.b32.xlu0 %v3018, 127
        %v3038 = vpop.permute.xlu0 %3037
        %3039 = vrot.lane.b32.xlu0 %v3019, 127
        %v3040 = vpop.permute.xlu0 %3039
        %3041 = vrot.lane.b32.xlu0 %v3020, 127
        %v3042 = vpop.permute.xlu0 %3041
        %3043 = vrot.lane.b32.xlu0 %v3021, 127
        %v3044 = vpop.permute.xlu0 %3043
        %3045 = vrot.lane.b32.xlu0 %v3022, 127
        %v3046 = vpop.permute.xlu0 %3045
        %v3047 = vsel %vm1426, %v3032, %v3034
        %v3048 = vsel %vm1426, %v3036, %v3038
        %v3049 = vsel %vm1426, %v3040, %v3042
        %v3050 = vsel %vm1426, %v3044, %v3046
        %v3059 = vmax.f32 %v3015, %v3047
        %v3060 = vmax.f32 %v3016, %v3034
        %v3061 = vmax.f32 %v3017, %v3048
        %v3062 = vmax.f32 %v3018, %v3038
        %v3063 = vmax.f32 %v3019, %v3049
        %v3064 = vmax.f32 %v3020, %v3042
        %v3065 = vmax.f32 %v3021, %v3050
        %v3066 = vmax.f32 %v3022, %v3046
        %v3067 = vpack.c.bf16 %v3060, %v3059
        %v3068 = vpack.c.bf16 %v3062, %v3061
        %v3069 = vpack.c.bf16 %v3064, %v3063
        %v3070 = vpack.c.bf16 %v3066, %v3065
        %3075 = vrot.lane.b32.xlu0 %v3067, 38
        %v3076 = vpop.permute.xlu0 %3075
        %3077 = vrot.lane.b32.xlu0 %v3068, 38
        %v3078 = vpop.permute.xlu0 %3077
        %3079 = vrot.lane.b32.xlu0 %v3069, 38
        %v3080 = vpop.permute.xlu0 %3079
        %3081 = vrot.lane.b32.xlu0 %v3070, 38
        %v3082 = vpop.permute.xlu0 %3081
        %v3083 = vrot.slane %v3076, 4
        %v3084 = vrot.slane %v3078, 4
        %v3085 = vrot.slane %v3080, 4
        %v3086 = vrot.slane %v3082, 4
        %vm3087 = vcmask 310272
        %v3088 = vsel %vm3087, %v3076, %v3083
        %v3089 = vsel %vm3087, %v3078, %v3084
        %v3090 = vsel %vm3087, %v3080, %v3085
        %v3091 = vsel %vm3087, %v3082, %v3086
        %vm3096 = vcmask 584800
        %3097 = vst.msk [vmem:[#allocation3 + $0x18] sm:$0xf] %vm3096, %v3088
        %3098 = vst.msk [vmem:[#allocation3 + $0x44] sm:$0xf] %vm3096, %v3089
        %3099 = vst.msk [vmem:[#allocation3 + $0x70] sm:$0xf] %vm3096, %v3090
        %3100 = vst.msk [vmem:[#allocation3 + $0x9c] sm:$0xf] %vm3096, %v3091
        %v3101 = vld [vmem:[#allocation2 + $0x34] sm:$0xff]
        %v3102 = vld [vmem:[#allocation2 + $0x8c] sm:$0xff]
        %v3103 = vld [vmem:[#allocation2 + $0xe4] sm:$0xff]
        %v3104 = vld [vmem:[#allocation2 + $0x13c] sm:$0xff]
        %v3105 = vld [vmem:[#allocation2 + $0x38] sm:$0xf]
        %v3106 = vld [vmem:[#allocation2 + $0x90] sm:$0xf]
        %v3107 = vld [vmem:[#allocation2 + $0xe8] sm:$0xf]
        %v3108 = vld [vmem:[#allocation2 + $0x140] sm:$0xf]
        %v3109 = vunpack.c.l.bf16 %v3101
        %v3110 = vunpack.c.h.bf16 %v3101
        %v3111 = vunpack.c.l.bf16 %v3102
        %v3112 = vunpack.c.h.bf16 %v3102
        %v3113 = vunpack.c.l.bf16 %v3103
        %v3114 = vunpack.c.h.bf16 %v3103
        %v3115 = vunpack.c.l.bf16 %v3104
        %v3116 = vunpack.c.h.bf16 %v3104
        %v3117 = vunpack.c.l.bf16 %v3105
        %v3118 = vunpack.c.l.bf16 %v3106
        %v3119 = vunpack.c.l.bf16 %v3107
        %v3120 = vunpack.c.l.bf16 %v3108
        %3125 = vrot.lane.b32.xlu0 %v3117, 65
        %v3126 = vpop.permute.xlu0 %3125
        %3127 = vrot.lane.b32.xlu0 %v3118, 65
        %v3128 = vpop.permute.xlu0 %3127
        %3129 = vrot.lane.b32.xlu0 %v3119, 65
        %v3130 = vpop.permute.xlu0 %3129
        %3131 = vrot.lane.b32.xlu0 %v3120, 65
        %v3132 = vpop.permute.xlu0 %3131
        %v3137 = vmax.f32 %v3109, %v3126
        %v3138 = vmax.f32 %v3110, %v3126
        %v3139 = vmax.f32 %v3111, %v3128
        %v3140 = vmax.f32 %v3112, %v3128
        %v3141 = vmax.f32 %v3113, %v3130
        %v3142 = vmax.f32 %v3114, %v3130
        %v3143 = vmax.f32 %v3115, %v3132
        %v3144 = vmax.f32 %v3116, %v3132
        %v3145 = vpack.c.bf16 %v3138, %v3137
        %v3146 = vpack.c.bf16 %v3140, %v3139
        %v3147 = vpack.c.bf16 %v3142, %v3141
        %v3148 = vpack.c.bf16 %v3144, %v3143
        %v3149 = vunpack.c.l.bf16 %v3145
        %v3150 = vunpack.c.h.bf16 %v3145
        %v3151 = vunpack.c.l.bf16 %v3146
        %v3152 = vunpack.c.h.bf16 %v3146
        %v3153 = vunpack.c.l.bf16 %v3147
        %v3154 = vunpack.c.h.bf16 %v3147
        %v3155 = vunpack.c.l.bf16 %v3148
        %v3156 = vunpack.c.h.bf16 %v3148
        %3165 = vrot.lane.b32.xlu0 %v3149, 127
        %v3166 = vpop.permute.xlu0 %3165
        %3167 = vrot.lane.b32.xlu0 %v3150, 127
        %v3168 = vpop.permute.xlu0 %3167
        %3169 = vrot.lane.b32.xlu0 %v3151, 127
        %v3170 = vpop.permute.xlu0 %3169
        %3171 = vrot.lane.b32.xlu0 %v3152, 127
        %v3172 = vpop.permute.xlu0 %3171
        %3173 = vrot.lane.b32.xlu0 %v3153, 127
        %v3174 = vpop.permute.xlu0 %3173
        %3175 = vrot.lane.b32.xlu0 %v3154, 127
        %v3176 = vpop.permute.xlu0 %3175
        %3177 = vrot.lane.b32.xlu0 %v3155, 127
        %v3178 = vpop.permute.xlu0 %3177
        %3179 = vrot.lane.b32.xlu0 %v3156, 127
        %v3180 = vpop.permute.xlu0 %3179
        %v3181 = vsel %vm1426, %v3166, %v3168
        %v3182 = vsel %vm1426, %v3170, %v3172
        %v3183 = vsel %vm1426, %v3174, %v3176
        %v3184 = vsel %vm1426, %v3178, %v3180
        %v3193 = vmax.f32 %v3149, %v3181
        %v3194 = vmax.f32 %v3150, %v3168
        %v3195 = vmax.f32 %v3151, %v3182
        %v3196 = vmax.f32 %v3152, %v3172
        %v3197 = vmax.f32 %v3153, %v3183
        %v3198 = vmax.f32 %v3154, %v3176
        %v3199 = vmax.f32 %v3155, %v3184
        %v3200 = vmax.f32 %v3156, %v3180
        %v3201 = vpack.c.bf16 %v3194, %v3193
        %v3202 = vpack.c.bf16 %v3196, %v3195
        %v3203 = vpack.c.bf16 %v3198, %v3197
        %v3204 = vpack.c.bf16 %v3200, %v3199
        %3209 = vrot.lane.b32.xlu0 %v3201, 100
        %v3210 = vpop.permute.xlu0 %3209
        %3211 = vrot.lane.b32.xlu0 %v3202, 100
        %v3212 = vpop.permute.xlu0 %3211
        %3213 = vrot.lane.b32.xlu0 %v3203, 100
        %v3214 = vpop.permute.xlu0 %3213
        %3215 = vrot.lane.b32.xlu0 %v3204, 100
        %v3216 = vpop.permute.xlu0 %3215
        %v3217 = vrot.slane %v3210, 4
        %v3218 = vrot.slane %v3212, 4
        %v3219 = vrot.slane %v3214, 4
        %v3220 = vrot.slane %v3216, 4
        %vm3221 = vcmask 818176
        %v3222 = vsel %vm3221, %v3210, %v3217
        %v3223 = vsel %vm3221, %v3212, %v3218
        %v3224 = vsel %vm3221, %v3214, %v3219
        %v3225 = vsel %vm3221, %v3216, %v3220
        %vm3230 = vcmask 1044032
        %vm3231 = vcmask 31748
        %vm3232 = vmor %vm3231, %vm3230
        %3233 = vst.msk [vmem:[#allocation3 + $0x18] sm:$0xff] %vm3232, %v3222
        %3234 = vst.msk [vmem:[#allocation3 + $0x44] sm:$0xff] %vm3232, %v3223
        %3235 = vst.msk [vmem:[#allocation3 + $0x70] sm:$0xff] %vm3232, %v3224
        %3236 = vst.msk [vmem:[#allocation3 + $0x9c] sm:$0xff] %vm3232, %v3225
        %v3237 = vld [vmem:[#allocation2 + $0x38] sm:$0xff]
        %v3238 = vld [vmem:[#allocation2 + $0x90] sm:$0xff]
        %v3239 = vld [vmem:[#allocation2 + $0xe8] sm:$0xff]
        %v3240 = vld [vmem:[#allocation2 + $0x140] sm:$0xff]
        %v3241 = vld [vmem:[#allocation2 + $0x3c] sm:$0xf]
        %v3242 = vld [vmem:[#allocation2 + $0x94] sm:$0xf]
        %v3243 = vld [vmem:[#allocation2 + $0xec] sm:$0xf]
        %v3244 = vld [vmem:[#allocation2 + $0x144] sm:$0xf]
        %v3245 = vunpack.c.l.bf16 %v3237
        %v3246 = vunpack.c.h.bf16 %v3237
        %v3247 = vunpack.c.l.bf16 %v3238
        %v3248 = vunpack.c.h.bf16 %v3238
        %v3249 = vunpack.c.l.bf16 %v3239
        %v3250 = vunpack.c.h.bf16 %v3239
        %v3251 = vunpack.c.l.bf16 %v3240
        %v3252 = vunpack.c.h.bf16 %v3240
        %v3253 = vunpack.c.l.bf16 %v3241
        %v3254 = vunpack.c.l.bf16 %v3242
        %v3255 = vunpack.c.l.bf16 %v3243
        %v3256 = vunpack.c.l.bf16 %v3244
        %3261 = vrot.lane.b32.xlu0 %v3253, 65
        %v3262 = vpop.permute.xlu0 %3261
        %3263 = vrot.lane.b32.xlu0 %v3254, 65
        %v3264 = vpop.permute.xlu0 %3263
        %3265 = vrot.lane.b32.xlu0 %v3255, 65
        %v3266 = vpop.permute.xlu0 %3265
        %3267 = vrot.lane.b32.xlu0 %v3256, 65
        %v3268 = vpop.permute.xlu0 %3267
        %v3273 = vmax.f32 %v3245, %v3262
        %v3274 = vmax.f32 %v3246, %v3262
        %v3275 = vmax.f32 %v3247, %v3264
        %v3276 = vmax.f32 %v3248, %v3264
        %v3277 = vmax.f32 %v3249, %v3266
        %v3278 = vmax.f32 %v3250, %v3266
        %v3279 = vmax.f32 %v3251, %v3268
        %v3280 = vmax.f32 %v3252, %v3268
        %v3281 = vpack.c.bf16 %v3274, %v3273
        %v3282 = vpack.c.bf16 %v3276, %v3275
        %v3283 = vpack.c.bf16 %v3278, %v3277
        %v3284 = vpack.c.bf16 %v3280, %v3279
        %v3285 = vunpack.c.l.bf16 %v3281
        %v3286 = vunpack.c.h.bf16 %v3281
        %v3287 = vunpack.c.l.bf16 %v3282
        %v3288 = vunpack.c.h.bf16 %v3282
        %v3289 = vunpack.c.l.bf16 %v3283
        %v3290 = vunpack.c.h.bf16 %v3283
        %v3291 = vunpack.c.l.bf16 %v3284
        %v3292 = vunpack.c.h.bf16 %v3284
        %3301 = vrot.lane.b32.xlu0 %v3285, 127
        %v3302 = vpop.permute.xlu0 %3301
        %3303 = vrot.lane.b32.xlu0 %v3286, 127
        %v3304 = vpop.permute.xlu0 %3303
        %3305 = vrot.lane.b32.xlu0 %v3287, 127
        %v3306 = vpop.permute.xlu0 %3305
        %3307 = vrot.lane.b32.xlu0 %v3288, 127
        %v3308 = vpop.permute.xlu0 %3307
        %3309 = vrot.lane.b32.xlu0 %v3289, 127
        %v3310 = vpop.permute.xlu0 %3309
        %3311 = vrot.lane.b32.xlu0 %v3290, 127
        %v3312 = vpop.permute.xlu0 %3311
        %3313 = vrot.lane.b32.xlu0 %v3291, 127
        %v3314 = vpop.permute.xlu0 %3313
        %3315 = vrot.lane.b32.xlu0 %v3292, 127
        %v3316 = vpop.permute.xlu0 %3315
        %v3317 = vsel %vm1426, %v3302, %v3304
        %v3318 = vsel %vm1426, %v3306, %v3308
        %v3319 = vsel %vm1426, %v3310, %v3312
        %v3320 = vsel %vm1426, %v3314, %v3316
        %v3329 = vmax.f32 %v3285, %v3317
        %v3330 = vmax.f32 %v3286, %v3304
        %v3331 = vmax.f32 %v3287, %v3318
        %v3332 = vmax.f32 %v3288, %v3308
        %v3333 = vmax.f32 %v3289, %v3319
        %v3334 = vmax.f32 %v3290, %v3312
        %v3335 = vmax.f32 %v3291, %v3320
        %v3336 = vmax.f32 %v3292, %v3316
        %v3337 = vpack.c.bf16 %v3330, %v3329
        %v3338 = vpack.c.bf16 %v3332, %v3331
        %v3339 = vpack.c.bf16 %v3334, %v3333
        %v3340 = vpack.c.bf16 %v3336, %v3335
        %3345 = vrot.lane.b32.xlu0 %v3337, 34
        %v3346 = vpop.permute.xlu0 %3345
        %3347 = vrot.lane.b32.xlu0 %v3338, 34
        %v3348 = vpop.permute.xlu0 %3347
        %3349 = vrot.lane.b32.xlu0 %v3339, 34
        %v3350 = vpop.permute.xlu0 %3349
        %3351 = vrot.lane.b32.xlu0 %v3340, 34
        %v3352 = vpop.permute.xlu0 %3351
        %v3353 = vrot.slane %v3346, 4
        %v3354 = vrot.slane %v3348, 4
        %v3355 = vrot.slane %v3350, 4
        %v3356 = vrot.slane %v3352, 4
        %vm3357 = vcmask 277504
        %v3358 = vsel %vm3357, %v3346, %v3353
        %v3359 = vsel %vm3357, %v3348, %v3354
        %v3360 = vsel %vm3357, %v3350, %v3355
        %v3361 = vsel %vm3357, %v3352, %v3356
        %vm3366 = vcmask 519200
        %3367 = vst.msk [vmem:[#allocation3 + $0x1c] sm:$0xf] %vm3366, %v3358
        %3368 = vst.msk [vmem:[#allocation3 + $0x48] sm:$0xf] %vm3366, %v3359
        %3369 = vst.msk [vmem:[#allocation3 + $0x74] sm:$0xf] %vm3366, %v3360
        %3370 = vst.msk [vmem:[#allocation3 + $0xa0] sm:$0xf] %vm3366, %v3361
        %v3371 = vld [vmem:[#allocation2 + $0x3c] sm:$0xff]
        %v3372 = vld [vmem:[#allocation2 + $0x94] sm:$0xff]
        %v3373 = vld [vmem:[#allocation2 + $0xec] sm:$0xff]
        %v3374 = vld [vmem:[#allocation2 + $0x144] sm:$0xff]
        %v3375 = vld [vmem:[#allocation2 + $0x40] sm:$0xf]
        %v3376 = vld [vmem:[#allocation2 + $0x98] sm:$0xf]
        %v3377 = vld [vmem:[#allocation2 + $0xf0] sm:$0xf]
        %v3378 = vld [vmem:[#allocation2 + $0x148] sm:$0xf]
        %v3379 = vunpack.c.l.bf16 %v3371
        %v3380 = vunpack.c.h.bf16 %v3371
        %v3381 = vunpack.c.l.bf16 %v3372
        %v3382 = vunpack.c.h.bf16 %v3372
        %v3383 = vunpack.c.l.bf16 %v3373
        %v3384 = vunpack.c.h.bf16 %v3373
        %v3385 = vunpack.c.l.bf16 %v3374
        %v3386 = vunpack.c.h.bf16 %v3374
        %v3387 = vunpack.c.l.bf16 %v3375
        %v3388 = vunpack.c.l.bf16 %v3376
        %v3389 = vunpack.c.l.bf16 %v3377
        %v3390 = vunpack.c.l.bf16 %v3378
        %3395 = vrot.lane.b32.xlu0 %v3387, 65
        %v3396 = vpop.permute.xlu0 %3395
        %3397 = vrot.lane.b32.xlu0 %v3388, 65
        %v3398 = vpop.permute.xlu0 %3397
        %3399 = vrot.lane.b32.xlu0 %v3389, 65
        %v3400 = vpop.permute.xlu0 %3399
        %3401 = vrot.lane.b32.xlu0 %v3390, 65
        %v3402 = vpop.permute.xlu0 %3401
        %v3407 = vmax.f32 %v3379, %v3396
        %v3408 = vmax.f32 %v3380, %v3396
        %v3409 = vmax.f32 %v3381, %v3398
        %v3410 = vmax.f32 %v3382, %v3398
        %v3411 = vmax.f32 %v3383, %v3400
        %v3412 = vmax.f32 %v3384, %v3400
        %v3413 = vmax.f32 %v3385, %v3402
        %v3414 = vmax.f32 %v3386, %v3402
        %v3415 = vpack.c.bf16 %v3408, %v3407
        %v3416 = vpack.c.bf16 %v3410, %v3409
        %v3417 = vpack.c.bf16 %v3412, %v3411
        %v3418 = vpack.c.bf16 %v3414, %v3413
        %v3419 = vunpack.c.l.bf16 %v3415
        %v3420 = vunpack.c.h.bf16 %v3415
        %v3421 = vunpack.c.l.bf16 %v3416
        %v3422 = vunpack.c.h.bf16 %v3416
        %v3423 = vunpack.c.l.bf16 %v3417
        %v3424 = vunpack.c.h.bf16 %v3417
        %v3425 = vunpack.c.l.bf16 %v3418
        %v3426 = vunpack.c.h.bf16 %v3418
        %3435 = vrot.lane.b32.xlu0 %v3419, 127
        %v3436 = vpop.permute.xlu0 %3435
        %3437 = vrot.lane.b32.xlu0 %v3420, 127
        %v3438 = vpop.permute.xlu0 %3437
        %3439 = vrot.lane.b32.xlu0 %v3421, 127
        %v3440 = vpop.permute.xlu0 %3439
        %3441 = vrot.lane.b32.xlu0 %v3422, 127
        %v3442 = vpop.permute.xlu0 %3441
        %3443 = vrot.lane.b32.xlu0 %v3423, 127
        %v3444 = vpop.permute.xlu0 %3443
        %3445 = vrot.lane.b32.xlu0 %v3424, 127
        %v3446 = vpop.permute.xlu0 %3445
        %3447 = vrot.lane.b32.xlu0 %v3425, 127
        %v3448 = vpop.permute.xlu0 %3447
        %3449 = vrot.lane.b32.xlu0 %v3426, 127
        %v3450 = vpop.permute.xlu0 %3449
        %v3451 = vsel %vm1426, %v3436, %v3438
        %v3452 = vsel %vm1426, %v3440, %v3442
        %v3453 = vsel %vm1426, %v3444, %v3446
        %v3454 = vsel %vm1426, %v3448, %v3450
        %v3463 = vmax.f32 %v3419, %v3451
        %v3464 = vmax.f32 %v3420, %v3438
        %v3465 = vmax.f32 %v3421, %v3452
        %v3466 = vmax.f32 %v3422, %v3442
        %v3467 = vmax.f32 %v3423, %v3453
        %v3468 = vmax.f32 %v3424, %v3446
        %v3469 = vmax.f32 %v3425, %v3454
        %v3470 = vmax.f32 %v3426, %v3450
        %v3471 = vpack.c.bf16 %v3464, %v3463
        %v3472 = vpack.c.bf16 %v3466, %v3465
        %v3473 = vpack.c.bf16 %v3468, %v3467
        %v3474 = vpack.c.bf16 %v3470, %v3469
        %3479 = vrot.lane.b32.xlu0 %v3471, 96
        %v3480 = vpop.permute.xlu0 %3479
        %3481 = vrot.lane.b32.xlu0 %v3472, 96
        %v3482 = vpop.permute.xlu0 %3481
        %3483 = vrot.lane.b32.xlu0 %v3473, 96
        %v3484 = vpop.permute.xlu0 %3483
        %3485 = vrot.lane.b32.xlu0 %v3474, 96
        %v3486 = vpop.permute.xlu0 %3485
        %v3487 = vrot.slane %v3480, 4
        %v3488 = vrot.slane %v3482, 4
        %v3489 = vrot.slane %v3484, 4
        %v3490 = vrot.slane %v3486, 4
        %vm3491 = vcmask 785408
        %v3492 = vsel %vm3491, %v3480, %v3487
        %v3493 = vsel %vm3491, %v3482, %v3488
        %v3494 = vsel %vm3491, %v3484, %v3489
        %v3495 = vsel %vm3491, %v3486, %v3490
        %vm3500 = vcmask 1011200
        %3501 = vst.msk [vmem:[#allocation3 + $0x1c] sm:$0xf] %vm3500, %v3492
        %3502 = vst.msk [vmem:[#allocation3 + $0x48] sm:$0xf] %vm3500, %v3493
        %3503 = vst.msk [vmem:[#allocation3 + $0x74] sm:$0xf] %vm3500, %v3494
        %3504 = vst.msk [vmem:[#allocation3 + $0xa0] sm:$0xf] %vm3500, %v3495
        %v3505 = vld [vmem:[#allocation2 + $0x40] sm:$0xff]
        %v3506 = vld [vmem:[#allocation2 + $0x98] sm:$0xff]
        %v3507 = vld [vmem:[#allocation2 + $0xf0] sm:$0xff]
        %v3508 = vld [vmem:[#allocation2 + $0x148] sm:$0xff]
        %v3509 = vld [vmem:[#allocation2 + $0x44] sm:$0xf]
        %v3510 = vld [vmem:[#allocation2 + $0x9c] sm:$0xf]
        %v3511 = vld [vmem:[#allocation2 + $0xf4] sm:$0xf]
        %v3512 = vld [vmem:[#allocation2 + $0x14c] sm:$0xf]
        %v3513 = vunpack.c.l.bf16 %v3505
        %v3514 = vunpack.c.h.bf16 %v3505
        %v3515 = vunpack.c.l.bf16 %v3506
        %v3516 = vunpack.c.h.bf16 %v3506
        %v3517 = vunpack.c.l.bf16 %v3507
        %v3518 = vunpack.c.h.bf16 %v3507
        %v3519 = vunpack.c.l.bf16 %v3508
        %v3520 = vunpack.c.h.bf16 %v3508
        %v3521 = vunpack.c.l.bf16 %v3509
        %v3522 = vunpack.c.l.bf16 %v3510
        %v3523 = vunpack.c.l.bf16 %v3511
        %v3524 = vunpack.c.l.bf16 %v3512
        %3529 = vrot.lane.b32.xlu0 %v3521, 65
        %v3530 = vpop.permute.xlu0 %3529
        %3531 = vrot.lane.b32.xlu0 %v3522, 65
        %v3532 = vpop.permute.xlu0 %3531
        %3533 = vrot.lane.b32.xlu0 %v3523, 65
        %v3534 = vpop.permute.xlu0 %3533
        %3535 = vrot.lane.b32.xlu0 %v3524, 65
        %v3536 = vpop.permute.xlu0 %3535
        %v3541 = vmax.f32 %v3513, %v3530
        %v3542 = vmax.f32 %v3514, %v3530
        %v3543 = vmax.f32 %v3515, %v3532
        %v3544 = vmax.f32 %v3516, %v3532
        %v3545 = vmax.f32 %v3517, %v3534
        %v3546 = vmax.f32 %v3518, %v3534
        %v3547 = vmax.f32 %v3519, %v3536
        %v3548 = vmax.f32 %v3520, %v3536
        %v3549 = vpack.c.bf16 %v3542, %v3541
        %v3550 = vpack.c.bf16 %v3544, %v3543
        %v3551 = vpack.c.bf16 %v3546, %v3545
        %v3552 = vpack.c.bf16 %v3548, %v3547
        %v3553 = vunpack.c.l.bf16 %v3549
        %v3554 = vunpack.c.h.bf16 %v3549
        %v3555 = vunpack.c.l.bf16 %v3550
        %v3556 = vunpack.c.h.bf16 %v3550
        %v3557 = vunpack.c.l.bf16 %v3551
        %v3558 = vunpack.c.h.bf16 %v3551
        %v3559 = vunpack.c.l.bf16 %v3552
        %v3560 = vunpack.c.h.bf16 %v3552
        %3569 = vrot.lane.b32.xlu0 %v3553, 127
        %v3570 = vpop.permute.xlu0 %3569
        %3571 = vrot.lane.b32.xlu0 %v3554, 127
        %v3572 = vpop.permute.xlu0 %3571
        %3573 = vrot.lane.b32.xlu0 %v3555, 127
        %v3574 = vpop.permute.xlu0 %3573
        %3575 = vrot.lane.b32.xlu0 %v3556, 127
        %v3576 = vpop.permute.xlu0 %3575
        %3577 = vrot.lane.b32.xlu0 %v3557, 127
        %v3578 = vpop.permute.xlu0 %3577
        %3579 = vrot.lane.b32.xlu0 %v3558, 127
        %v3580 = vpop.permute.xlu0 %3579
        %3581 = vrot.lane.b32.xlu0 %v3559, 127
        %v3582 = vpop.permute.xlu0 %3581
        %3583 = vrot.lane.b32.xlu0 %v3560, 127
        %v3584 = vpop.permute.xlu0 %3583
        %v3585 = vsel %vm1426, %v3570, %v3572
        %v3586 = vsel %vm1426, %v3574, %v3576
        %v3587 = vsel %vm1426, %v3578, %v3580
        %v3588 = vsel %vm1426, %v3582, %v3584
        %v3597 = vmax.f32 %v3553, %v3585
        %v3598 = vmax.f32 %v3554, %v3572
        %v3599 = vmax.f32 %v3555, %v3586
        %v3600 = vmax.f32 %v3556, %v3576
        %v3601 = vmax.f32 %v3557, %v3587
        %v3602 = vmax.f32 %v3558, %v3580
        %v3603 = vmax.f32 %v3559, %v3588
        %v3604 = vmax.f32 %v3560, %v3584
        %v3605 = vpack.c.bf16 %v3598, %v3597
        %v3606 = vpack.c.bf16 %v3600, %v3599
        %v3607 = vpack.c.bf16 %v3602, %v3601
        %v3608 = vpack.c.bf16 %v3604, %v3603
        %3613 = vrot.lane.b32.xlu0 %v3605, 30
        %v3614 = vpop.permute.xlu0 %3613
        %3615 = vrot.lane.b32.xlu0 %v3606, 30
        %v3616 = vpop.permute.xlu0 %3615
        %3617 = vrot.lane.b32.xlu0 %v3607, 30
        %v3618 = vpop.permute.xlu0 %3617
        %3619 = vrot.lane.b32.xlu0 %v3608, 30
        %v3620 = vpop.permute.xlu0 %3619
        %v3621 = vrot.slane %v3614, 4
        %v3622 = vrot.slane %v3616, 4
        %v3623 = vrot.slane %v3618, 4
        %v3624 = vrot.slane %v3620, 4
        %vm3625 = vcmask 244736
        %v3626 = vsel %vm3625, %v3621, %v3614
        %v3627 = vsel %vm3625, %v3622, %v3616
        %v3628 = vsel %vm3625, %v3623, %v3618
        %v3629 = vsel %vm3625, %v3624, %v3620
        %vm3634 = vcmask 1044448
        %vm3635 = vcmask 457732
        %vm3636 = vmor %vm3635, %vm3634
        %3637 = vst.msk [vmem:[#allocation3 + $0x1c] sm:$0xff] %vm3636, %v3626
        %3638 = vst.msk [vmem:[#allocation3 + $0x48] sm:$0xff] %vm3636, %v3627
        %3639 = vst.msk [vmem:[#allocation3 + $0x74] sm:$0xff] %vm3636, %v3628
        %3640 = vst.msk [vmem:[#allocation3 + $0xa0] sm:$0xff] %vm3636, %v3629
        %v3641 = vld [vmem:[#allocation2 + $0x44] sm:$0xff]
        %v3642 = vld [vmem:[#allocation2 + $0x9c] sm:$0xff]
        %v3643 = vld [vmem:[#allocation2 + $0xf4] sm:$0xff]
        %v3644 = vld [vmem:[#allocation2 + $0x14c] sm:$0xff]
        %v3645 = vld [vmem:[#allocation2 + $0x48] sm:$0xf]
        %v3646 = vld [vmem:[#allocation2 + $0xa0] sm:$0xf]
        %v3647 = vld [vmem:[#allocation2 + $0xf8] sm:$0xf]
        %v3648 = vld [vmem:[#allocation2 + $0x150] sm:$0xf]
        %v3649 = vunpack.c.l.bf16 %v3641
        %v3650 = vunpack.c.h.bf16 %v3641
        %v3651 = vunpack.c.l.bf16 %v3642
        %v3652 = vunpack.c.h.bf16 %v3642
        %v3653 = vunpack.c.l.bf16 %v3643
        %v3654 = vunpack.c.h.bf16 %v3643
        %v3655 = vunpack.c.l.bf16 %v3644
        %v3656 = vunpack.c.h.bf16 %v3644
        %v3657 = vunpack.c.l.bf16 %v3645
        %v3658 = vunpack.c.l.bf16 %v3646
        %v3659 = vunpack.c.l.bf16 %v3647
        %v3660 = vunpack.c.l.bf16 %v3648
        %3665 = vrot.lane.b32.xlu0 %v3657, 65
        %v3666 = vpop.permute.xlu0 %3665
        %3667 = vrot.lane.b32.xlu0 %v3658, 65
        %v3668 = vpop.permute.xlu0 %3667
        %3669 = vrot.lane.b32.xlu0 %v3659, 65
        %v3670 = vpop.permute.xlu0 %3669
        %3671 = vrot.lane.b32.xlu0 %v3660, 65
        %v3672 = vpop.permute.xlu0 %3671
        %v3677 = vmax.f32 %v3649, %v3666
        %v3678 = vmax.f32 %v3650, %v3666
        %v3679 = vmax.f32 %v3651, %v3668
        %v3680 = vmax.f32 %v3652, %v3668
        %v3681 = vmax.f32 %v3653, %v3670
        %v3682 = vmax.f32 %v3654, %v3670
        %v3683 = vmax.f32 %v3655, %v3672
        %v3684 = vmax.f32 %v3656, %v3672
        %v3685 = vpack.c.bf16 %v3678, %v3677
        %v3686 = vpack.c.bf16 %v3680, %v3679
        %v3687 = vpack.c.bf16 %v3682, %v3681
        %v3688 = vpack.c.bf16 %v3684, %v3683
        %v3689 = vunpack.c.l.bf16 %v3685
        %v3690 = vunpack.c.h.bf16 %v3685
        %v3691 = vunpack.c.l.bf16 %v3686
        %v3692 = vunpack.c.h.bf16 %v3686
        %v3693 = vunpack.c.l.bf16 %v3687
        %v3694 = vunpack.c.h.bf16 %v3687
        %v3695 = vunpack.c.l.bf16 %v3688
        %v3696 = vunpack.c.h.bf16 %v3688
        %3705 = vrot.lane.b32.xlu0 %v3689, 127
        %v3706 = vpop.permute.xlu0 %3705
        %3707 = vrot.lane.b32.xlu0 %v3690, 127
        %v3708 = vpop.permute.xlu0 %3707
        %3709 = vrot.lane.b32.xlu0 %v3691, 127
        %v3710 = vpop.permute.xlu0 %3709
        %3711 = vrot.lane.b32.xlu0 %v3692, 127
        %v3712 = vpop.permute.xlu0 %3711
        %3713 = vrot.lane.b32.xlu0 %v3693, 127
        %v3714 = vpop.permute.xlu0 %3713
        %3715 = vrot.lane.b32.xlu0 %v3694, 127
        %v3716 = vpop.permute.xlu0 %3715
        %3717 = vrot.lane.b32.xlu0 %v3695, 127
        %v3718 = vpop.permute.xlu0 %3717
        %3719 = vrot.lane.b32.xlu0 %v3696, 127
        %v3720 = vpop.permute.xlu0 %3719
        %v3721 = vsel %vm1426, %v3706, %v3708
        %v3722 = vsel %vm1426, %v3710, %v3712
        %v3723 = vsel %vm1426, %v3714, %v3716
        %v3724 = vsel %vm1426, %v3718, %v3720
        %v3733 = vmax.f32 %v3689, %v3721
        %v3734 = vmax.f32 %v3690, %v3708
        %v3735 = vmax.f32 %v3691, %v3722
        %v3736 = vmax.f32 %v3692, %v3712
        %v3737 = vmax.f32 %v3693, %v3723
        %v3738 = vmax.f32 %v3694, %v3716
        %v3739 = vmax.f32 %v3695, %v3724
        %v3740 = vmax.f32 %v3696, %v3720
        %v3741 = vpack.c.bf16 %v3734, %v3733
        %v3742 = vpack.c.bf16 %v3736, %v3735
        %v3743 = vpack.c.bf16 %v3738, %v3737
        %v3744 = vpack.c.bf16 %v3740, %v3739
        %3749 = vrot.lane.b32.xlu0 %v3741, 92
        %v3750 = vpop.permute.xlu0 %3749
        %3751 = vrot.lane.b32.xlu0 %v3742, 92
        %v3752 = vpop.permute.xlu0 %3751
        %3753 = vrot.lane.b32.xlu0 %v3743, 92
        %v3754 = vpop.permute.xlu0 %3753
        %3755 = vrot.lane.b32.xlu0 %v3744, 92
        %v3756 = vpop.permute.xlu0 %3755
        %v3757 = vrot.slane %v3750, 4
        %v3758 = vrot.slane %v3752, 4
        %v3759 = vrot.slane %v3754, 4
        %v3760 = vrot.slane %v3756, 4
        %vm3761 = vcmask 752640
        %v3762 = vsel %vm3761, %v3750, %v3757
        %v3763 = vsel %vm3761, %v3752, %v3758
        %v3764 = vsel %vm3761, %v3754, %v3759
        %v3765 = vsel %vm3761, %v3756, %v3760
        %vm3770 = vcmask 945600
        %3771 = vst.msk [vmem:[#allocation3 + $0x20] sm:$0xf] %vm3770, %v3762
        %3772 = vst.msk [vmem:[#allocation3 + $0x4c] sm:$0xf] %vm3770, %v3763
        %3773 = vst.msk [vmem:[#allocation3 + $0x78] sm:$0xf] %vm3770, %v3764
        %3774 = vst.msk [vmem:[#allocation3 + $0xa4] sm:$0xf] %vm3770, %v3765
        %v3775 = vld [vmem:[#allocation2 + $0x48] sm:$0xff]
        %v3776 = vld [vmem:[#allocation2 + $0xa0] sm:$0xff]
        %v3777 = vld [vmem:[#allocation2 + $0xf8] sm:$0xff]
        %v3778 = vld [vmem:[#allocation2 + $0x150] sm:$0xff]
        %v3779 = vld [vmem:[#allocation2 + $0x4c] sm:$0xf]
        %v3780 = vld [vmem:[#allocation2 + $0xa4] sm:$0xf]
        %v3781 = vld [vmem:[#allocation2 + $0xfc] sm:$0xf]
        %v3782 = vld [vmem:[#allocation2 + $0x154] sm:$0xf]
        %v3783 = vunpack.c.l.bf16 %v3775
        %v3784 = vunpack.c.h.bf16 %v3775
        %v3785 = vunpack.c.l.bf16 %v3776
        %v3786 = vunpack.c.h.bf16 %v3776
        %v3787 = vunpack.c.l.bf16 %v3777
        %v3788 = vunpack.c.h.bf16 %v3777
        %v3789 = vunpack.c.l.bf16 %v3778
        %v3790 = vunpack.c.h.bf16 %v3778
        %v3791 = vunpack.c.l.bf16 %v3779
        %v3792 = vunpack.c.l.bf16 %v3780
        %v3793 = vunpack.c.l.bf16 %v3781
        %v3794 = vunpack.c.l.bf16 %v3782
        %3799 = vrot.lane.b32.xlu0 %v3791, 65
        %v3800 = vpop.permute.xlu0 %3799
        %3801 = vrot.lane.b32.xlu0 %v3792, 65
        %v3802 = vpop.permute.xlu0 %3801
        %3803 = vrot.lane.b32.xlu0 %v3793, 65
        %v3804 = vpop.permute.xlu0 %3803
        %3805 = vrot.lane.b32.xlu0 %v3794, 65
        %v3806 = vpop.permute.xlu0 %3805
        %v3811 = vmax.f32 %v3783, %v3800
        %v3812 = vmax.f32 %v3784, %v3800
        %v3813 = vmax.f32 %v3785, %v3802
        %v3814 = vmax.f32 %v3786, %v3802
        %v3815 = vmax.f32 %v3787, %v3804
        %v3816 = vmax.f32 %v3788, %v3804
        %v3817 = vmax.f32 %v3789, %v3806
        %v3818 = vmax.f32 %v3790, %v3806
        %v3819 = vpack.c.bf16 %v3812, %v3811
        %v3820 = vpack.c.bf16 %v3814, %v3813
        %v3821 = vpack.c.bf16 %v3816, %v3815
        %v3822 = vpack.c.bf16 %v3818, %v3817
        %v3823 = vunpack.c.l.bf16 %v3819
        %v3824 = vunpack.c.h.bf16 %v3819
        %v3825 = vunpack.c.l.bf16 %v3820
        %v3826 = vunpack.c.h.bf16 %v3820
        %v3827 = vunpack.c.l.bf16 %v3821
        %v3828 = vunpack.c.h.bf16 %v3821
        %v3829 = vunpack.c.l.bf16 %v3822
        %v3830 = vunpack.c.h.bf16 %v3822
        %3839 = vrot.lane.b32.xlu0 %v3823, 127
        %v3840 = vpop.permute.xlu0 %3839
        %3841 = vrot.lane.b32.xlu0 %v3824, 127
        %v3842 = vpop.permute.xlu0 %3841
        %3843 = vrot.lane.b32.xlu0 %v3825, 127
        %v3844 = vpop.permute.xlu0 %3843
        %3845 = vrot.lane.b32.xlu0 %v3826, 127
        %v3846 = vpop.permute.xlu0 %3845
        %3847 = vrot.lane.b32.xlu0 %v3827, 127
        %v3848 = vpop.permute.xlu0 %3847
        %3849 = vrot.lane.b32.xlu0 %v3828, 127
        %v3850 = vpop.permute.xlu0 %3849
        %3851 = vrot.lane.b32.xlu0 %v3829, 127
        %v3852 = vpop.permute.xlu0 %3851
        %3853 = vrot.lane.b32.xlu0 %v3830, 127
        %v3854 = vpop.permute.xlu0 %3853
        %v3855 = vsel %vm1426, %v3840, %v3842
        %v3856 = vsel %vm1426, %v3844, %v3846
        %v3857 = vsel %vm1426, %v3848, %v3850
        %v3858 = vsel %vm1426, %v3852, %v3854
        %v3867 = vmax.f32 %v3823, %v3855
        %v3868 = vmax.f32 %v3824, %v3842
        %v3869 = vmax.f32 %v3825, %v3856
        %v3870 = vmax.f32 %v3826, %v3846
        %v3871 = vmax.f32 %v3827, %v3857
        %v3872 = vmax.f32 %v3828, %v3850
        %v3873 = vmax.f32 %v3829, %v3858
        %v3874 = vmax.f32 %v3830, %v3854
        %v3875 = vpack.c.bf16 %v3868, %v3867
        %v3876 = vpack.c.bf16 %v3870, %v3869
        %v3877 = vpack.c.bf16 %v3872, %v3871
        %v3878 = vpack.c.bf16 %v3874, %v3873
        %3883 = vrot.lane.b32.xlu0 %v3875, 26
        %v3884 = vpop.permute.xlu0 %3883
        %3885 = vrot.lane.b32.xlu0 %v3876, 26
        %v3886 = vpop.permute.xlu0 %3885
        %3887 = vrot.lane.b32.xlu0 %v3877, 26
        %v3888 = vpop.permute.xlu0 %3887
        %3889 = vrot.lane.b32.xlu0 %v3878, 26
        %v3890 = vpop.permute.xlu0 %3889
        %v3891 = vrot.slane %v3884, 4
        %v3892 = vrot.slane %v3886, 4
        %v3893 = vrot.slane %v3888, 4
        %v3894 = vrot.slane %v3890, 4
        %vm3895 = vcmask 211968
        %v3896 = vsel %vm3895, %v3891, %v3884
        %v3897 = vsel %vm3895, %v3892, %v3886
        %v3898 = vsel %vm3895, %v3893, %v3888
        %v3899 = vsel %vm3895, %v3894, %v3890
        %vm3904 = vcmask 1044384
        %vm3905 = vcmask 392196
        %vm3906 = vmor %vm3905, %vm3904
        %3907 = vst.msk [vmem:[#allocation3 + $0x20] sm:$0xff] %vm3906, %v3896
        %3908 = vst.msk [vmem:[#allocation3 + $0x4c] sm:$0xff] %vm3906, %v3897
        %3909 = vst.msk [vmem:[#allocation3 + $0x78] sm:$0xff] %vm3906, %v3898
        %3910 = vst.msk [vmem:[#allocation3 + $0xa4] sm:$0xff] %vm3906, %v3899
        %v3911 = vld [vmem:[#allocation2 + $0x4c] sm:$0xff]
        %v3912 = vld [vmem:[#allocation2 + $0xa4] sm:$0xff]
        %v3913 = vld [vmem:[#allocation2 + $0xfc] sm:$0xff]
        %v3914 = vld [vmem:[#allocation2 + $0x154] sm:$0xff]
        %v3915 = vld [vmem:[#allocation2 + $0x50] sm:$0xf]
        %v3916 = vld [vmem:[#allocation2 + $0xa8] sm:$0xf]
        %v3917 = vld [vmem:[#allocation2 + $0x100] sm:$0xf]
        %v3918 = vld [vmem:[#allocation2 + $0x158] sm:$0xf]
        %v3919 = vunpack.c.l.bf16 %v3911
        %v3920 = vunpack.c.h.bf16 %v3911
        %v3921 = vunpack.c.l.bf16 %v3912
        %v3922 = vunpack.c.h.bf16 %v3912
        %v3923 = vunpack.c.l.bf16 %v3913
        %v3924 = vunpack.c.h.bf16 %v3913
        %v3925 = vunpack.c.l.bf16 %v3914
        %v3926 = vunpack.c.h.bf16 %v3914
        %v3927 = vunpack.c.l.bf16 %v3915
        %v3928 = vunpack.c.l.bf16 %v3916
        %v3929 = vunpack.c.l.bf16 %v3917
        %v3930 = vunpack.c.l.bf16 %v3918
        %3935 = vrot.lane.b32.xlu0 %v3927, 65
        %v3936 = vpop.permute.xlu0 %3935
        %3937 = vrot.lane.b32.xlu0 %v3928, 65
        %v3938 = vpop.permute.xlu0 %3937
        %3939 = vrot.lane.b32.xlu0 %v3929, 65
        %v3940 = vpop.permute.xlu0 %3939
        %3941 = vrot.lane.b32.xlu0 %v3930, 65
        %v3942 = vpop.permute.xlu0 %3941
        %v3947 = vmax.f32 %v3919, %v3936
        %v3948 = vmax.f32 %v3920, %v3936
        %v3949 = vmax.f32 %v3921, %v3938
        %v3950 = vmax.f32 %v3922, %v3938
        %v3951 = vmax.f32 %v3923, %v3940
        %v3952 = vmax.f32 %v3924, %v3940
        %v3953 = vmax.f32 %v3925, %v3942
        %v3954 = vmax.f32 %v3926, %v3942
        %v3955 = vpack.c.bf16 %v3948, %v3947
        %v3956 = vpack.c.bf16 %v3950, %v3949
        %v3957 = vpack.c.bf16 %v3952, %v3951
        %v3958 = vpack.c.bf16 %v3954, %v3953
        %v3959 = vunpack.c.l.bf16 %v3955
        %v3960 = vunpack.c.h.bf16 %v3955
        %v3961 = vunpack.c.l.bf16 %v3956
        %v3962 = vunpack.c.h.bf16 %v3956
        %v3963 = vunpack.c.l.bf16 %v3957
        %v3964 = vunpack.c.h.bf16 %v3957
        %v3965 = vunpack.c.l.bf16 %v3958
        %v3966 = vunpack.c.h.bf16 %v3958
        %3975 = vrot.lane.b32.xlu0 %v3959, 127
        %v3976 = vpop.permute.xlu0 %3975
        %3977 = vrot.lane.b32.xlu0 %v3960, 127
        %v3978 = vpop.permute.xlu0 %3977
        %3979 = vrot.lane.b32.xlu0 %v3961, 127
        %v3980 = vpop.permute.xlu0 %3979
        %3981 = vrot.lane.b32.xlu0 %v3962, 127
        %v3982 = vpop.permute.xlu0 %3981
        %3983 = vrot.lane.b32.xlu0 %v3963, 127
        %v3984 = vpop.permute.xlu0 %3983
        %3985 = vrot.lane.b32.xlu0 %v3964, 127
        %v3986 = vpop.permute.xlu0 %3985
        %3987 = vrot.lane.b32.xlu0 %v3965, 127
        %v3988 = vpop.permute.xlu0 %3987
        %3989 = vrot.lane.b32.xlu0 %v3966, 127
        %v3990 = vpop.permute.xlu0 %3989
        %v3991 = vsel %vm1426, %v3976, %v3978
        %v3992 = vsel %vm1426, %v3980, %v3982
        %v3993 = vsel %vm1426, %v3984, %v3986
        %v3994 = vsel %vm1426, %v3988, %v3990
        %v4003 = vmax.f32 %v3959, %v3991
        %v4004 = vmax.f32 %v3960, %v3978
        %v4005 = vmax.f32 %v3961, %v3992
        %v4006 = vmax.f32 %v3962, %v3982
        %v4007 = vmax.f32 %v3963, %v3993
        %v4008 = vmax.f32 %v3964, %v3986
        %v4009 = vmax.f32 %v3965, %v3994
        %v4010 = vmax.f32 %v3966, %v3990
        %v4011 = vpack.c.bf16 %v4004, %v4003
        %v4012 = vpack.c.bf16 %v4006, %v4005
        %v4013 = vpack.c.bf16 %v4008, %v4007
        %v4014 = vpack.c.bf16 %v4010, %v4009
        %4019 = vrot.lane.b32.xlu0 %v4011, 88
        %v4020 = vpop.permute.xlu0 %4019
        %4021 = vrot.lane.b32.xlu0 %v4012, 88
        %v4022 = vpop.permute.xlu0 %4021
        %4023 = vrot.lane.b32.xlu0 %v4013, 88
        %v4024 = vpop.permute.xlu0 %4023
        %4025 = vrot.lane.b32.xlu0 %v4014, 88
        %v4026 = vpop.permute.xlu0 %4025
        %v4027 = vrot.slane %v4020, 4
        %v4028 = vrot.slane %v4022, 4
        %v4029 = vrot.slane %v4024, 4
        %v4030 = vrot.slane %v4026, 4
        %vm4031 = vcmask 719872
        %v4032 = vsel %vm4031, %v4020, %v4027
        %v4033 = vsel %vm4031, %v4022, %v4028
        %v4034 = vsel %vm4031, %v4024, %v4029
        %v4035 = vsel %vm4031, %v4026, %v4030
        %vm4040 = vcmask 880000
        %4041 = vst.msk [vmem:[#allocation3 + $0x24] sm:$0xf] %vm4040, %v4032
        %4042 = vst.msk [vmem:[#allocation3 + $0x50] sm:$0xf] %vm4040, %v4033
        %4043 = vst.msk [vmem:[#allocation3 + $0x7c] sm:$0xf] %vm4040, %v4034
        %4044 = vst.msk [vmem:[#allocation3 + $0xa8] sm:$0xf] %vm4040, %v4035
        %v4045 = vld [vmem:[#allocation2 + $0x50] sm:$0xff]
        %v4046 = vld [vmem:[#allocation2 + $0xa8] sm:$0xff]
        %v4047 = vld [vmem:[#allocation2 + $0x100] sm:$0xff]
        %v4048 = vld [vmem:[#allocation2 + $0x158] sm:$0xff]
        %v4049 = vld [vmem:[#allocation2 + $0x54] sm:$0xf]
        %v4050 = vld [vmem:[#allocation2 + $0xac] sm:$0xf]
        %v4051 = vld [vmem:[#allocation2 + $0x104] sm:$0xf]
        %v4052 = vld [vmem:[#allocation2 + $0x15c] sm:$0xf]
        %v4053 = vunpack.c.l.bf16 %v4045
        %v4054 = vunpack.c.h.bf16 %v4045
        %v4055 = vunpack.c.l.bf16 %v4046
        %v4056 = vunpack.c.h.bf16 %v4046
        %v4057 = vunpack.c.l.bf16 %v4047
        %v4058 = vunpack.c.h.bf16 %v4047
        %v4059 = vunpack.c.l.bf16 %v4048
        %v4060 = vunpack.c.h.bf16 %v4048
        %v4061 = vunpack.c.l.bf16 %v4049
        %v4062 = vunpack.c.l.bf16 %v4050
        %v4063 = vunpack.c.l.bf16 %v4051
        %v4064 = vunpack.c.l.bf16 %v4052
        %4069 = vrot.lane.b32.xlu0 %v4061, 65
        %v4070 = vpop.permute.xlu0 %4069
        %4071 = vrot.lane.b32.xlu0 %v4062, 65
        %v4072 = vpop.permute.xlu0 %4071
        %4073 = vrot.lane.b32.xlu0 %v4063, 65
        %v4074 = vpop.permute.xlu0 %4073
        %4075 = vrot.lane.b32.xlu0 %v4064, 65
        %v4076 = vpop.permute.xlu0 %4075
        %v4081 = vmax.f32 %v4053, %v4070
        %v4082 = vmax.f32 %v4054, %v4070
        %v4083 = vmax.f32 %v4055, %v4072
        %v4084 = vmax.f32 %v4056, %v4072
        %v4085 = vmax.f32 %v4057, %v4074
        %v4086 = vmax.f32 %v4058, %v4074
        %v4087 = vmax.f32 %v4059, %v4076
        %v4088 = vmax.f32 %v4060, %v4076
        %v4089 = vpack.c.bf16 %v4082, %v4081
        %v4090 = vpack.c.bf16 %v4084, %v4083
        %v4091 = vpack.c.bf16 %v4086, %v4085
        %v4092 = vpack.c.bf16 %v4088, %v4087
        %v4093 = vunpack.c.l.bf16 %v4089
        %v4094 = vunpack.c.h.bf16 %v4089
        %v4095 = vunpack.c.l.bf16 %v4090
        %v4096 = vunpack.c.h.bf16 %v4090
        %v4097 = vunpack.c.l.bf16 %v4091
        %v4098 = vunpack.c.h.bf16 %v4091
        %v4099 = vunpack.c.l.bf16 %v4092
        %v4100 = vunpack.c.h.bf16 %v4092
        %4109 = vrot.lane.b32.xlu0 %v4093, 127
        %v4110 = vpop.permute.xlu0 %4109
        %4111 = vrot.lane.b32.xlu0 %v4094, 127
        %v4112 = vpop.permute.xlu0 %4111
        %4113 = vrot.lane.b32.xlu0 %v4095, 127
        %v4114 = vpop.permute.xlu0 %4113
        %4115 = vrot.lane.b32.xlu0 %v4096, 127
        %v4116 = vpop.permute.xlu0 %4115
        %4117 = vrot.lane.b32.xlu0 %v4097, 127
        %v4118 = vpop.permute.xlu0 %4117
        %4119 = vrot.lane.b32.xlu0 %v4098, 127
        %v4120 = vpop.permute.xlu0 %4119
        %4121 = vrot.lane.b32.xlu0 %v4099, 127
        %v4122 = vpop.permute.xlu0 %4121
        %4123 = vrot.lane.b32.xlu0 %v4100, 127
        %v4124 = vpop.permute.xlu0 %4123
        %v4125 = vsel %vm1426, %v4110, %v4112
        %v4126 = vsel %vm1426, %v4114, %v4116
        %v4127 = vsel %vm1426, %v4118, %v4120
        %v4128 = vsel %vm1426, %v4122, %v4124
        %v4137 = vmax.f32 %v4093, %v4125
        %v4138 = vmax.f32 %v4094, %v4112
        %v4139 = vmax.f32 %v4095, %v4126
        %v4140 = vmax.f32 %v4096, %v4116
        %v4141 = vmax.f32 %v4097, %v4127
        %v4142 = vmax.f32 %v4098, %v4120
        %v4143 = vmax.f32 %v4099, %v4128
        %v4144 = vmax.f32 %v4100, %v4124
        %v4145 = vpack.c.bf16 %v4138, %v4137
        %v4146 = vpack.c.bf16 %v4140, %v4139
        %v4147 = vpack.c.bf16 %v4142, %v4141
        %v4148 = vpack.c.bf16 %v4144, %v4143
        %4153 = vrot.lane.b32.xlu0 %v4145, 22
        %v4154 = vpop.permute.xlu0 %4153
        %4155 = vrot.lane.b32.xlu0 %v4146, 22
        %v4156 = vpop.permute.xlu0 %4155
        %4157 = vrot.lane.b32.xlu0 %v4147, 22
        %v4158 = vpop.permute.xlu0 %4157
        %4159 = vrot.lane.b32.xlu0 %v4148, 22
        %v4160 = vpop.permute.xlu0 %4159
        %v4161 = vrot.slane %v4154, 4
        %v4162 = vrot.slane %v4156, 4
        %v4163 = vrot.slane %v4158, 4
        %v4164 = vrot.slane %v4160, 4
        %vm4165 = vcmask 179200
        %v4166 = vsel %vm4165, %v4161, %v4154
        %v4167 = vsel %vm4165, %v4162, %v4156
        %v4168 = vsel %vm4165, %v4163, %v4158
        %v4169 = vsel %vm4165, %v4164, %v4160
        %vm4174 = vcmask 1044320
        %vm4175 = vcmask 326660
        %vm4176 = vmor %vm4175, %vm4174
        %4177 = vst.msk [vmem:[#allocation3 + $0x24] sm:$0xff] %vm4176, %v4166
        %4178 = vst.msk [vmem:[#allocation3 + $0x50] sm:$0xff] %vm4176, %v4167
        %4179 = vst.msk [vmem:[#allocation3 + $0x7c] sm:$0xff] %vm4176, %v4168
        %4180 = vst.msk [vmem:[#allocation3 + $0xa8] sm:$0xff] %vm4176, %v4169
        %v4181 = vld [vmem:[%s5] sm:$0xff]
        %v4182 = vld [vmem:[%s5 + $0x8] sm:$0xff]
        %v4183 = vld [vmem:[#allocation3] sm:$0xff]
        %v4184 = vld [vmem:[#allocation3 + $0x8] sm:$0xff]
        %v4185 = vld [vmem:[#allocation3 + $0x2c] sm:$0xff]
        %v4186 = vld [vmem:[#allocation3 + $0x34] sm:$0xff]
        %v4187 = vld [vmem:[#allocation3 + $0x58] sm:$0xff]
        %v4188 = vld [vmem:[#allocation3 + $0x60] sm:$0xff]
        %v4189 = vld [vmem:[#allocation3 + $0x84] sm:$0xff]
        %v4190 = vld [vmem:[#allocation3 + $0x8c] sm:$0xff]
        %v4199 = vunpack.c.l.b16 %v4183
        %v4200 = vunpack.c.h.b16 %v4183
        %v4201 = vunpack.c.l.b16 %v4184
        %v4202 = vunpack.c.h.b16 %v4184
        %v4203 = vunpack.c.l.b16 %v4185
        %v4204 = vunpack.c.h.b16 %v4185
        %v4205 = vunpack.c.l.b16 %v4186
        %v4206 = vunpack.c.h.b16 %v4186
        %v4207 = vunpack.c.l.b16 %v4187
        %v4208 = vunpack.c.h.b16 %v4187
        %v4209 = vunpack.c.l.b16 %v4188
        %v4210 = vunpack.c.h.b16 %v4188
        %v4211 = vunpack.c.l.b16 %v4189
        %v4212 = vunpack.c.h.b16 %v4189
        %v4213 = vunpack.c.l.b16 %v4190
        %v4214 = vunpack.c.h.b16 %v4190
        %v4215 = vpack.c.b16 %v4203, %v4199
        %v4216 = vpack.c.b16 %v4204, %v4200
        %v4217 = vpack.c.b16 %v4205, %v4201
        %v4218 = vpack.c.b16 %v4206, %v4202
        %v4219 = vpack.c.b16 %v4211, %v4207
        %v4220 = vpack.c.b16 %v4212, %v4208
        %v4221 = vpack.c.b16 %v4213, %v4209
        %v4222 = vpack.c.b16 %v4214, %v4210
        %4231 = vrot.lane.b32.xlu0 %v4215, 126
        %v4232 = vpop.permute.xlu0 %4231
        %4233 = vrot.lane.b32.xlu0 %v4216, 126
        %v4234 = vpop.permute.xlu0 %4233
        %4235 = vrot.lane.b32.xlu0 %v4217, 126
        %v4236 = vpop.permute.xlu0 %4235
        %4237 = vrot.lane.b32.xlu0 %v4218, 126
        %v4238 = vpop.permute.xlu0 %4237
        %4239 = vrot.lane.b32.xlu0 %v4219, 126
        %v4240 = vpop.permute.xlu0 %4239
        %4241 = vrot.lane.b32.xlu0 %v4220, 126
        %v4242 = vpop.permute.xlu0 %4241
        %4243 = vrot.lane.b32.xlu0 %v4221, 126
        %v4244 = vpop.permute.xlu0 %4243
        %4245 = vrot.lane.b32.xlu0 %v4222, 126
        %v4246 = vpop.permute.xlu0 %4245
        %vm4247 = vcmask 1031168
        %v4248 = vsel %vm4247, %v4232, %v4234
        %v4249 = vsel %vm4247, %v4234, %v4236
        %v4250 = vsel %vm4247, %v4236, %v4238
        %v4251 = vsel %vm4247, %v4240, %v4242
        %v4252 = vsel %vm4247, %v4242, %v4244
        %v4253 = vsel %vm4247, %v4244, %v4246
        %4262 = vrot.lane.b32.xlu0 %v4215, 124
        %v4263 = vpop.permute.xlu0 %4262
        %4264 = vrot.lane.b32.xlu0 %v4216, 124
        %v4265 = vpop.permute.xlu0 %4264
        %4266 = vrot.lane.b32.xlu0 %v4217, 124
        %v4267 = vpop.permute.xlu0 %4266
        %4268 = vrot.lane.b32.xlu0 %v4218, 124
        %v4269 = vpop.permute.xlu0 %4268
        %4270 = vrot.lane.b32.xlu0 %v4219, 124
        %v4271 = vpop.permute.xlu0 %4270
        %4272 = vrot.lane.b32.xlu0 %v4220, 124
        %v4273 = vpop.permute.xlu0 %4272
        %4274 = vrot.lane.b32.xlu0 %v4221, 124
        %v4275 = vpop.permute.xlu0 %4274
        %4276 = vrot.lane.b32.xlu0 %v4222, 124
        %v4277 = vpop.permute.xlu0 %4276
        %v4278 = vsel %vm1601, %v4263, %v4265
        %v4279 = vsel %vm1601, %v4265, %v4267
        %v4280 = vsel %vm1601, %v4267, %v4269
        %v4281 = vsel %vm1601, %v4271, %v4273
        %v4282 = vsel %vm1601, %v4273, %v4275
        %v4283 = vsel %vm1601, %v4275, %v4277
        %v4292 = vld [vmem:[%s4] sm:$0xf]
        %v4293 = vld [vmem:[%s4 + $0x4] sm:$0xf]
        %s4294 = scalar_lea.vmem %s4, 8
        %v4295 = vld [vmem:[%s4294] sm:$0xf]
        %v4296 = vld [vmem:[%s4294 + $0x4] sm:$0xf]
        %v4299 = vunpack.c.l.b16 %v4295
        %v4300 = vunpack.c.l.b16 %v4296
        %v4301 = vpack.c.b16 %v4300, %v4299
        %4302 = vrot.lane.b32.xlu0 %v4215, 68
        %v4303 = vpop.permute.xlu0 %4302
        %4304 = vrot.lane.b32.xlu0 %v4216, 68
        %v4305 = vpop.permute.xlu0 %4304
        %4306 = vrot.lane.b32.xlu0 %v4217, 68
        %v4307 = vpop.permute.xlu0 %4306
        %4308 = vrot.lane.b32.xlu0 %v4218, 68
        %v4309 = vpop.permute.xlu0 %4308
        %4310 = vrot.lane.b32.xlu0 %v4219, 68
        %v4311 = vpop.permute.xlu0 %4310
        %4312 = vrot.lane.b32.xlu0 %v4220, 68
        %v4313 = vpop.permute.xlu0 %4312
        %4314 = vrot.lane.b32.xlu0 %v4221, 68
        %v4315 = vpop.permute.xlu0 %4314
        %4316 = vrot.lane.b32.xlu0 %v4222, 68
        %v4317 = vpop.permute.xlu0 %4316
        %4318 = vrot.lane.b32.xlu0 %v4248, 68
        %v4319 = vpop.permute.xlu0 %4318
        %4320 = vrot.lane.b32.xlu0 %v4249, 68
        %v4321 = vpop.permute.xlu0 %4320
        %4322 = vrot.lane.b32.xlu0 %v4250, 68
        %v4323 = vpop.permute.xlu0 %4322
        %4324 = vrot.lane.b32.xlu0 %v4238, 68
        %v4325 = vpop.permute.xlu0 %4324
        %4326 = vrot.lane.b32.xlu0 %v4251, 68
        %v4327 = vpop.permute.xlu0 %4326
        %4328 = vrot.lane.b32.xlu0 %v4252, 68
        %v4329 = vpop.permute.xlu0 %4328
        %4330 = vrot.lane.b32.xlu0 %v4253, 68
        %v4331 = vpop.permute.xlu0 %4330
        %4332 = vrot.lane.b32.xlu0 %v4246, 68
        %v4333 = vpop.permute.xlu0 %4332
        %4334 = vrot.lane.b32.xlu0 %v4278, 68
        %v4335 = vpop.permute.xlu0 %4334
        %4336 = vrot.lane.b32.xlu0 %v4279, 68
        %v4337 = vpop.permute.xlu0 %4336
        %4338 = vrot.lane.b32.xlu0 %v4280, 68
        %v4339 = vpop.permute.xlu0 %4338
        %4340 = vrot.lane.b32.xlu0 %v4269, 68
        %v4341 = vpop.permute.xlu0 %4340
        %4342 = vrot.lane.b32.xlu0 %v4281, 68
        %v4343 = vpop.permute.xlu0 %4342
        %4344 = vrot.lane.b32.xlu0 %v4282, 68
        %v4345 = vpop.permute.xlu0 %4344
        %4346 = vrot.lane.b32.xlu0 %v4283, 68
        %v4347 = vpop.permute.xlu0 %4346
        %4348 = vrot.lane.b32.xlu0 %v4277, 68
        %v4349 = vpop.permute.xlu0 %4348
        %vm4350 = vcmask 556032
        %v4351 = vsel %vm4350, %v4303, %v4305
        %v4352 = vsel %vm4350, %v4305, %v4307
        %v4353 = vsel %vm4350, %v4307, %v4309
        %v4354 = vsel %vm4350, %v4311, %v4313
        %v4355 = vsel %vm4350, %v4313, %v4315
        %v4356 = vsel %vm4350, %v4315, %v4317
        %v4357 = vsel %vm4350, %v4319, %v4321
        %v4358 = vsel %vm4350, %v4321, %v4323
        %v4359 = vsel %vm4350, %v4323, %v4325
        %v4360 = vsel %vm4350, %v4327, %v4329
        %v4361 = vsel %vm4350, %v4329, %v4331
        %v4362 = vsel %vm4350, %v4331, %v4333
        %v4363 = vsel %vm4350, %v4335, %v4337
        %v4364 = vsel %vm4350, %v4337, %v4339
        %v4365 = vsel %vm4350, %v4339, %v4341
        %v4366 = vsel %vm4350, %v4343, %v4345
        %v4367 = vsel %vm4350, %v4345, %v4347
        %v4368 = vsel %vm4350, %v4347, %v4349
        %vm4393 = vcmask 785408
        %v4395 = vsel %vm4393, %v4301, 0
        %4397 = vmatpush.bf16.msra.mxu0 0
        %4398 = vmatpush.bf16.msra.mxu0 0
        %4399 = vmatpush.bf16.msra.mxu0 %v4366
        %4400 = vmatpush.bf16.msra.mxu0 %v4363
        %4401 = vmatpush.bf16.msra.mxu0 %v4360
        %4402 = vmatpush.bf16.msra.mxu0 %v4357
        %4403 = vmatpush.bf16.msra.mxu0 %v4354
        %4404 = vmatpush.bf16.msra.mxu0 %v4351
        %4405 = vmatmul.bf16.gmra.mxu0 %v4395
        %v4406 = vpop.f32.mrf.mxu0
        %v4407 = vadd.f32 0.0, %v4406
        %v4408 = vpop.f32.mrf.mxu0
        %v4409 = vadd.f32 0.0, %v4408
        %4410 = vdwg.mxu0
        %4411 = vmatpush.bf16.msra.mxu0 0
        %4412 = vmatpush.bf16.msra.mxu0 0
        %4413 = vmatpush.bf16.msra.mxu0 %v4367
        %4414 = vmatpush.bf16.msra.mxu0 %v4364
        %4415 = vmatpush.bf16.msra.mxu0 %v4361
        %4416 = vmatpush.bf16.msra.mxu0 %v4358
        %4417 = vmatpush.bf16.msra.mxu0 %v4355
        %4418 = vmatpush.bf16.msra.mxu0 %v4352
        %4419 = vmatmul.bf16.gmra.mxu0 %v4395
        %v4420 = vpop.f32.mrf.mxu0
        %v4421 = vadd.f32 0.0, %v4420
        %v4422 = vpop.f32.mrf.mxu0
        %v4423 = vadd.f32 0.0, %v4422
        %4424 = vdwg.mxu0
        %4425 = vmatpush.bf16.msra.mxu0 0
        %4426 = vmatpush.bf16.msra.mxu0 0
        %4427 = vmatpush.bf16.msra.mxu0 %v4368
        %4428 = vmatpush.bf16.msra.mxu0 %v4365
        %4429 = vmatpush.bf16.msra.mxu0 %v4362
        %4430 = vmatpush.bf16.msra.mxu0 %v4359
        %4431 = vmatpush.bf16.msra.mxu0 %v4356
        %4432 = vmatpush.bf16.msra.mxu0 %v4353
        %4433 = vmatmul.bf16.gmra.mxu0 %v4395
        %v4434 = vpop.f32.mrf.mxu0
        %v4435 = vadd.f32 0.0, %v4434
        %v4436 = vpop.f32.mrf.mxu0
        %v4437 = vadd.f32 0.0, %v4436
        %4438 = vdwg.mxu0
        %4439 = vmatpush.bf16.msra.mxu0 0
        %4440 = vmatpush.bf16.msra.mxu0 0
        %4441 = vmatpush.bf16.msra.mxu0 %v4349
        %4442 = vmatpush.bf16.msra.mxu0 %v4341
        %4443 = vmatpush.bf16.msra.mxu0 %v4333
        %4444 = vmatpush.bf16.msra.mxu0 %v4325
        %4445 = vmatpush.bf16.msra.mxu0 %v4317
        %4446 = vmatpush.bf16.msra.mxu0 %v4309
        %4447 = vmatmul.bf16.gmra.mxu0 %v4395
        %v4448 = vpop.f32.mrf.mxu0
        %v4449 = vadd.f32 0.0, %v4448
        %v4450 = vpop.f32.mrf.mxu0
        %v4451 = vadd.f32 0.0, %v4450
        %4452 = vdwg.mxu0
        %v4455 = vunpack.c.l.b16 %v4292
        %v4456 = vunpack.c.l.b16 %v4293
        %v4457 = vpack.c.b16 %v4456, %v4455
        %v4459 = vsel %vm4393, %v4457, 0
        %4461 = vmatpush.bf16.msra.mxu0 0
        %4462 = vmatpush.bf16.msra.mxu0 0
        %4463 = vmatpush.bf16.msra.mxu0 %v4281
        %4464 = vmatpush.bf16.msra.mxu0 %v4278
        %4465 = vmatpush.bf16.msra.mxu0 %v4251
        %4466 = vmatpush.bf16.msra.mxu0 %v4248
        %4467 = vmatpush.bf16.msra.mxu0 %v4219
        %4468 = vmatpush.bf16.msra.mxu0 %v4215
        %4469 = vmatmul.bf16.gmra.mxu0 %v4459
        %v4470 = vpop.f32.mrf.mxu0
        %v4471 = vadd.f32 %v4407, %v4470
        %v4472 = vpop.f32.mrf.mxu0
        %v4473 = vadd.f32 %v4409, %v4472
        %4474 = vdwg.mxu0
        %4475 = vmatpush.bf16.msra.mxu0 0
        %4476 = vmatpush.bf16.msra.mxu0 0
        %4477 = vmatpush.bf16.msra.mxu0 %v4282
        %4478 = vmatpush.bf16.msra.mxu0 %v4279
        %4479 = vmatpush.bf16.msra.mxu0 %v4252
        %4480 = vmatpush.bf16.msra.mxu0 %v4249
        %4481 = vmatpush.bf16.msra.mxu0 %v4220
        %4482 = vmatpush.bf16.msra.mxu0 %v4216
        %4483 = vmatmul.bf16.gmra.mxu0 %v4459
        %v4484 = vpop.f32.mrf.mxu0
        %v4485 = vadd.f32 %v4421, %v4484
        %v4486 = vpop.f32.mrf.mxu0
        %v4487 = vadd.f32 %v4423, %v4486
        %4488 = vdwg.mxu0
        %4489 = vmatpush.bf16.msra.mxu0 0
        %4490 = vmatpush.bf16.msra.mxu0 0
        %4491 = vmatpush.bf16.msra.mxu0 %v4283
        %4492 = vmatpush.bf16.msra.mxu0 %v4280
        %4493 = vmatpush.bf16.msra.mxu0 %v4253
        %4494 = vmatpush.bf16.msra.mxu0 %v4250
        %4495 = vmatpush.bf16.msra.mxu0 %v4221
        %4496 = vmatpush.bf16.msra.mxu0 %v4217
        %4497 = vmatmul.bf16.gmra.mxu0 %v4459
        %v4498 = vpop.f32.mrf.mxu0
        %v4499 = vadd.f32 %v4435, %v4498
        %v4500 = vpop.f32.mrf.mxu0
        %v4501 = vadd.f32 %v4437, %v4500
        %4502 = vdwg.mxu0
        %4503 = vmatpush.bf16.msra.mxu0 0
        %4504 = vmatpush.bf16.msra.mxu0 0
        %4505 = vmatpush.bf16.msra.mxu0 %v4277
        %4506 = vmatpush.bf16.msra.mxu0 %v4269
        %4507 = vmatpush.bf16.msra.mxu0 %v4246
        %4508 = vmatpush.bf16.msra.mxu0 %v4238
        %4509 = vmatpush.bf16.msra.mxu0 %v4222
        %4510 = vmatpush.bf16.msra.mxu0 %v4218
        %4511 = vmatmul.bf16.gmra.mxu0 %v4459
        %v4512 = vpop.f32.mrf.mxu0
        %v4513 = vadd.f32 %v4449, %v4512
        %v4514 = vpop.f32.mrf.mxu0
        %v4515 = vadd.f32 %v4451, %v4514
        %4516 = vdwg.mxu0
        %v4517 = vld [vmem:[#allocation3] sm:$0xff]
        %v4518 = vld [vmem:[#allocation3 + $0x8] sm:$0xff]
        %v4519 = vld [vmem:[#allocation3 + $0x10] sm:$0xf]
        %v4520 = vld [vmem:[#allocation3 + $0x2c] sm:$0xff]
        %v4521 = vld [vmem:[#allocation3 + $0x34] sm:$0xff]
        %v4522 = vld [vmem:[#allocation3 + $0x3c] sm:$0xf]
        %v4523 = vld [vmem:[#allocation3 + $0x58] sm:$0xff]
        %v4524 = vld [vmem:[#allocation3 + $0x60] sm:$0xff]
        %v4525 = vld [vmem:[#allocation3 + $0x68] sm:$0xf]
        %v4526 = vld [vmem:[#allocation3 + $0x84] sm:$0xff]
        %v4527 = vld [vmem:[#allocation3 + $0x8c] sm:$0xff]
        %v4528 = vld [vmem:[#allocation3 + $0x94] sm:$0xf]
        %v4541 = vunpack.c.l.b16 %v4517
        %v4542 = vunpack.c.h.b16 %v4517
        %v4543 = vunpack.c.l.b16 %v4518
        %v4544 = vunpack.c.h.b16 %v4518
        %v4545 = vunpack.c.l.b16 %v4519
        %v4546 = vunpack.c.l.b16 %v4520
        %v4547 = vunpack.c.h.b16 %v4520
        %v4548 = vunpack.c.l.b16 %v4521
        %v4549 = vunpack.c.h.b16 %v4521
        %v4550 = vunpack.c.l.b16 %v4522
        %v4551 = vunpack.c.l.b16 %v4523
        %v4552 = vunpack.c.h.b16 %v4523
        %v4553 = vunpack.c.l.b16 %v4524
        %v4554 = vunpack.c.h.b16 %v4524
        %v4555 = vunpack.c.l.b16 %v4525
        %v4556 = vunpack.c.l.b16 %v4526
        %v4557 = vunpack.c.h.b16 %v4526
        %v4558 = vunpack.c.l.b16 %v4527
        %v4559 = vunpack.c.h.b16 %v4527
        %v4560 = vunpack.c.l.b16 %v4528
        %v4561 = vpack.c.b16 %v4546, %v4541
        %v4562 = vpack.c.b16 %v4547, %v4542
        %v4563 = vpack.c.b16 %v4548, %v4543
        %v4564 = vpack.c.b16 %v4549, %v4544
        %v4565 = vpack.c.b16 %v4550, %v4545
        %v4566 = vpack.c.b16 %v4556, %v4551
        %v4567 = vpack.c.b16 %v4557, %v4552
        %v4568 = vpack.c.b16 %v4558, %v4553
        %v4569 = vpack.c.b16 %v4559, %v4554
        %v4570 = vpack.c.b16 %v4560, %v4555
        %4571 = vrot.lane.b32.xlu0 %v4561, 126
        %v4572 = vpop.permute.xlu0 %4571
        %4573 = vrot.lane.b32.xlu0 %v4562, 126
        %v4574 = vpop.permute.xlu0 %4573
        %4575 = vrot.lane.b32.xlu0 %v4563, 126
        %v4576 = vpop.permute.xlu0 %4575
        %4577 = vrot.lane.b32.xlu0 %v4564, 126
        %v4578 = vpop.permute.xlu0 %4577
        %4579 = vrot.lane.b32.xlu0 %v4565, 126
        %v4580 = vpop.permute.xlu0 %4579
        %4581 = vrot.lane.b32.xlu0 %v4566, 126
        %v4582 = vpop.permute.xlu0 %4581
        %4583 = vrot.lane.b32.xlu0 %v4567, 126
        %v4584 = vpop.permute.xlu0 %4583
        %4585 = vrot.lane.b32.xlu0 %v4568, 126
        %v4586 = vpop.permute.xlu0 %4585
        %4587 = vrot.lane.b32.xlu0 %v4569, 126
        %v4588 = vpop.permute.xlu0 %4587
        %4589 = vrot.lane.b32.xlu0 %v4570, 126
        %v4590 = vpop.permute.xlu0 %4589
        %v4591 = vsel %vm4247, %v4572, %v4574
        %v4592 = vsel %vm4247, %v4574, %v4576
        %v4593 = vsel %vm4247, %v4576, %v4578
        %v4594 = vsel %vm4247, %v4578, %v4580
        %v4595 = vsel %vm4247, %v4582, %v4584
        %v4596 = vsel %vm4247, %v4584, %v4586
        %v4597 = vsel %vm4247, %v4586, %v4588
        %v4598 = vsel %vm4247, %v4588, %v4590
        %4599 = vrot.lane.b32.xlu0 %v4561, 124
        %v4600 = vpop.permute.xlu0 %4599
        %4601 = vrot.lane.b32.xlu0 %v4562, 124
        %v4602 = vpop.permute.xlu0 %4601
        %4603 = vrot.lane.b32.xlu0 %v4563, 124
        %v4604 = vpop.permute.xlu0 %4603
        %4605 = vrot.lane.b32.xlu0 %v4564, 124
        %v4606 = vpop.permute.xlu0 %4605
        %4607 = vrot.lane.b32.xlu0 %v4565, 124
        %v4608 = vpop.permute.xlu0 %4607
        %4609 = vrot.lane.b32.xlu0 %v4566, 124
        %v4610 = vpop.permute.xlu0 %4609
        %4611 = vrot.lane.b32.xlu0 %v4567, 124
        %v4612 = vpop.permute.xlu0 %4611
        %4613 = vrot.lane.b32.xlu0 %v4568, 124
        %v4614 = vpop.permute.xlu0 %4613
        %4615 = vrot.lane.b32.xlu0 %v4569, 124
        %v4616 = vpop.permute.xlu0 %4615
        %4617 = vrot.lane.b32.xlu0 %v4570, 124
        %v4618 = vpop.permute.xlu0 %4617
        %v4619 = vsel %vm1601, %v4600, %v4602
        %v4620 = vsel %vm1601, %v4602, %v4604
        %v4621 = vsel %vm1601, %v4604, %v4606
        %v4622 = vsel %vm1601, %v4606, %v4608
        %v4623 = vsel %vm1601, %v4610, %v4612
        %v4624 = vsel %vm1601, %v4612, %v4614
        %v4625 = vsel %vm1601, %v4614, %v4616
        %v4626 = vsel %vm1601, %v4616, %v4618
        %s4627 = scalar_lea.vmem %s4, 16
        %v4628 = vld [vmem:[%s4627] sm:$0xf]
        %v4629 = vld [vmem:[%s4627 + $0x4] sm:$0xf]
        %v4632 = vunpack.c.l.b16 %v4628
        %v4633 = vunpack.c.l.b16 %v4629
        %v4634 = vpack.c.b16 %v4633, %v4632
        %4635 = vrot.lane.b32.xlu0 %v4561, 8
        %v4636 = vpop.permute.xlu0 %4635
        %4637 = vrot.lane.b32.xlu0 %v4562, 8
        %v4638 = vpop.permute.xlu0 %4637
        %4639 = vrot.lane.b32.xlu0 %v4563, 8
        %v4640 = vpop.permute.xlu0 %4639
        %4641 = vrot.lane.b32.xlu0 %v4564, 8
        %v4642 = vpop.permute.xlu0 %4641
        %4643 = vrot.lane.b32.xlu0 %v4565, 8
        %v4644 = vpop.permute.xlu0 %4643
        %4645 = vrot.lane.b32.xlu0 %v4566, 8
        %v4646 = vpop.permute.xlu0 %4645
        %4647 = vrot.lane.b32.xlu0 %v4567, 8
        %v4648 = vpop.permute.xlu0 %4647
        %4649 = vrot.lane.b32.xlu0 %v4568, 8
        %v4650 = vpop.permute.xlu0 %4649
        %4651 = vrot.lane.b32.xlu0 %v4569, 8
        %v4652 = vpop.permute.xlu0 %4651
        %4653 = vrot.lane.b32.xlu0 %v4570, 8
        %v4654 = vpop.permute.xlu0 %4653
        %4655 = vrot.lane.b32.xlu0 %v4591, 8
        %v4656 = vpop.permute.xlu0 %4655
        %4657 = vrot.lane.b32.xlu0 %v4592, 8
        %v4658 = vpop.permute.xlu0 %4657
        %4659 = vrot.lane.b32.xlu0 %v4593, 8
        %v4660 = vpop.permute.xlu0 %4659
        %4661 = vrot.lane.b32.xlu0 %v4594, 8
        %v4662 = vpop.permute.xlu0 %4661
        %4663 = vrot.lane.b32.xlu0 %v4580, 8
        %v4664 = vpop.permute.xlu0 %4663
        %4665 = vrot.lane.b32.xlu0 %v4595, 8
        %v4666 = vpop.permute.xlu0 %4665
        %4667 = vrot.lane.b32.xlu0 %v4596, 8
        %v4668 = vpop.permute.xlu0 %4667
        %4669 = vrot.lane.b32.xlu0 %v4597, 8
        %v4670 = vpop.permute.xlu0 %4669
        %4671 = vrot.lane.b32.xlu0 %v4598, 8
        %v4672 = vpop.permute.xlu0 %4671
        %4673 = vrot.lane.b32.xlu0 %v4590, 8
        %v4674 = vpop.permute.xlu0 %4673
        %4675 = vrot.lane.b32.xlu0 %v4619, 8
        %v4676 = vpop.permute.xlu0 %4675
        %4677 = vrot.lane.b32.xlu0 %v4620, 8
        %v4678 = vpop.permute.xlu0 %4677
        %4679 = vrot.lane.b32.xlu0 %v4621, 8
        %v4680 = vpop.permute.xlu0 %4679
        %4681 = vrot.lane.b32.xlu0 %v4622, 8
        %v4682 = vpop.permute.xlu0 %4681
        %4683 = vrot.lane.b32.xlu0 %v4608, 8
        %v4684 = vpop.permute.xlu0 %4683
        %4685 = vrot.lane.b32.xlu0 %v4623, 8
        %v4686 = vpop.permute.xlu0 %4685
        %4687 = vrot.lane.b32.xlu0 %v4624, 8
        %v4688 = vpop.permute.xlu0 %4687
        %4689 = vrot.lane.b32.xlu0 %v4625, 8
        %v4690 = vpop.permute.xlu0 %4689
        %4691 = vrot.lane.b32.xlu0 %v4626, 8
        %v4692 = vpop.permute.xlu0 %4691
        %4693 = vrot.lane.b32.xlu0 %v4618, 8
        %v4694 = vpop.permute.xlu0 %4693
        %vm4695 = vcmask 64512
        %v4696 = vsel %vm4695, %v4636, %v4638
        %v4697 = vsel %vm4695, %v4638, %v4640
        %v4698 = vsel %vm4695, %v4640, %v4642
        %v4699 = vsel %vm4695, %v4642, %v4644
        %v4700 = vsel %vm4695, %v4646, %v4648
        %v4701 = vsel %vm4695, %v4648, %v4650
        %v4702 = vsel %vm4695, %v4650, %v4652
        %v4703 = vsel %vm4695, %v4652, %v4654
        %v4704 = vsel %vm4695, %v4656, %v4658
        %v4705 = vsel %vm4695, %v4658, %v4660
        %v4706 = vsel %vm4695, %v4660, %v4662
        %v4707 = vsel %vm4695, %v4662, %v4664
        %v4708 = vsel %vm4695, %v4666, %v4668
        %v4709 = vsel %vm4695, %v4668, %v4670
        %v4710 = vsel %vm4695, %v4670, %v4672
        %v4711 = vsel %vm4695, %v4672, %v4674
        %v4712 = vsel %vm4695, %v4676, %v4678
        %v4713 = vsel %vm4695, %v4678, %v4680
        %v4714 = vsel %vm4695, %v4680, %v4682
        %v4715 = vsel %vm4695, %v4682, %v4684
        %v4716 = vsel %vm4695, %v4686, %v4688
        %v4717 = vsel %vm4695, %v4688, %v4690
        %v4718 = vsel %vm4695, %v4690, %v4692
        %v4719 = vsel %vm4695, %v4692, %v4694
        %v4745 = vsel %vm4393, %v4634, 0
        %4747 = vmatpush.bf16.msra.mxu0 0
        %4748 = vmatpush.bf16.msra.mxu0 0
        %4749 = vmatpush.bf16.msra.mxu0 %v4716
        %4750 = vmatpush.bf16.msra.mxu0 %v4712
        %4751 = vmatpush.bf16.msra.mxu0 %v4708
        %4752 = vmatpush.bf16.msra.mxu0 %v4704
        %4753 = vmatpush.bf16.msra.mxu0 %v4700
        %4754 = vmatpush.bf16.msra.mxu0 %v4696
        %4755 = vmatmul.bf16.gmra.mxu0 %v4745
        %v4756 = vpop.f32.mrf.mxu0
        %v4757 = vadd.f32 0.0, %v4756
        %v4758 = vpop.f32.mrf.mxu0
        %v4759 = vadd.f32 0.0, %v4758
        %4760 = vdwg.mxu0
        %4761 = vmatpush.bf16.msra.mxu0 0
        %4762 = vmatpush.bf16.msra.mxu0 0
        %4763 = vmatpush.bf16.msra.mxu0 %v4717
        %4764 = vmatpush.bf16.msra.mxu0 %v4713
        %4765 = vmatpush.bf16.msra.mxu0 %v4709
        %4766 = vmatpush.bf16.msra.mxu0 %v4705
        %4767 = vmatpush.bf16.msra.mxu0 %v4701
        %4768 = vmatpush.bf16.msra.mxu0 %v4697
        %4769 = vmatmul.bf16.gmra.mxu0 %v4745
        %v4770 = vpop.f32.mrf.mxu0
        %v4771 = vadd.f32 0.0, %v4770
        %v4772 = vpop.f32.mrf.mxu0
        %v4773 = vadd.f32 0.0, %v4772
        %4774 = vdwg.mxu0
        %4775 = vmatpush.bf16.msra.mxu0 0
        %4776 = vmatpush.bf16.msra.mxu0 0
        %4777 = vmatpush.bf16.msra.mxu0 %v4718
        %4778 = vmatpush.bf16.msra.mxu0 %v4714
        %4779 = vmatpush.bf16.msra.mxu0 %v4710
        %4780 = vmatpush.bf16.msra.mxu0 %v4706
        %4781 = vmatpush.bf16.msra.mxu0 %v4702
        %4782 = vmatpush.bf16.msra.mxu0 %v4698
        %4783 = vmatmul.bf16.gmra.mxu0 %v4745
        %v4784 = vpop.f32.mrf.mxu0
        %v4785 = vadd.f32 0.0, %v4784
        %v4786 = vpop.f32.mrf.mxu0
        %v4787 = vadd.f32 0.0, %v4786
        %4788 = vdwg.mxu0
        %4789 = vmatpush.bf16.msra.mxu0 0
        %4790 = vmatpush.bf16.msra.mxu0 0
        %4791 = vmatpush.bf16.msra.mxu0 %v4719
        %4792 = vmatpush.bf16.msra.mxu0 %v4715
        %4793 = vmatpush.bf16.msra.mxu0 %v4711
        %4794 = vmatpush.bf16.msra.mxu0 %v4707
        %4795 = vmatpush.bf16.msra.mxu0 %v4703
        %4796 = vmatpush.bf16.msra.mxu0 %v4699
        %4797 = vmatmul.bf16.gmra.mxu0 %v4745
        %v4798 = vpop.f32.mrf.mxu0
        %v4799 = vadd.f32 0.0, %v4798
        %v4800 = vpop.f32.mrf.mxu0
        %v4801 = vadd.f32 0.0, %v4800
        %4802 = vdwg.mxu0
        %v4803 = vadd.f32 %v4471, %v4757
        %v4804 = vadd.f32 %v4485, %v4771
        %v4805 = vadd.f32 %v4499, %v4785
        %v4806 = vadd.f32 %v4513, %v4799
        %v4807 = vadd.f32 %v4473, %v4759
        %v4808 = vadd.f32 %v4487, %v4773
        %v4809 = vadd.f32 %v4501, %v4787
        %v4810 = vadd.f32 %v4515, %v4801
        %4812 = vset.pattern.permute.xlu0 0
        %4813 = vperm.xlu0 %4812, %v4181
        %v4814 = vpop.permute.xlu0 %4813
        %4817 = vset.pattern.permute.xlu0 0
        %4818 = vperm.xlu0 %4817, %v4182
        %v4819 = vpop.permute.xlu0 %4818
        %v4821 = vadd.f32 %v4803, %v4814
        %v4822 = vadd.f32 %v4804, %v4814
        %v4823 = vadd.f32 %v4805, %v4814
        %v4824 = vadd.f32 %v4806, %v4814
        %v4825 = vadd.f32 %v4807, %v4819
        %v4826 = vadd.f32 %v4808, %v4819
        %v4827 = vadd.f32 %v4809, %v4819
        %v4828 = vadd.f32 %v4810, %v4819
        %v4829 = vmax.f32 %v4821, 0.0
        %v4830 = vmax.f32 %v4822, 0.0
        %v4831 = vmax.f32 %v4823, 0.0
        %v4832 = vmax.f32 %v4824, 0.0
        %v4833 = vmax.f32 %v4825, 0.0
        %v4834 = vmax.f32 %v4826, 0.0
        %v4835 = vmax.f32 %v4827, 0.0
        %v4836 = vmax.f32 %v4828, 0.0
        %v4837 = vpack.c.bf16 %v4830, %v4829
        %v4838 = vpack.c.bf16 %v4832, %v4831
        %v4839 = vpack.c.bf16 %v4834, %v4833
        %v4840 = vpack.c.bf16 %v4836, %v4835
        %4841 = vst [vmem:[#allocation4] sm:$0xff] %v4837
        %vm4842 = vcmask 130052
        %vm4843 = vmor %vm4842, %vm1271
        %4844 = vst.msk [vmem:[#allocation4 + $0x8] sm:$0xff] %vm4843, %v4838
        %4845 = vst [vmem:[#allocation4 + $0x28] sm:$0xff] %v4839
        %4846 = vst.msk [vmem:[#allocation4 + $0x30] sm:$0xff] %vm4843, %v4840
        %v4847 = vld [vmem:[#allocation3 + $0xc] sm:$0xff]
        %v4848 = vld [vmem:[#allocation3 + $0x14] sm:$0xff]
        %v4849 = vld [vmem:[#allocation3 + $0x38] sm:$0xff]
        %v4850 = vld [vmem:[#allocation3 + $0x40] sm:$0xff]
        %v4851 = vld [vmem:[#allocation3 + $0x64] sm:$0xff]
        %v4852 = vld [vmem:[#allocation3 + $0x6c] sm:$0xff]
        %v4853 = vld [vmem:[#allocation3 + $0x90] sm:$0xff]
        %v4854 = vld [vmem:[#allocation3 + $0x98] sm:$0xff]
        %v4863 = vunpack.c.l.b16 %v4847
        %v4864 = vunpack.c.h.b16 %v4847
        %v4865 = vunpack.c.l.b16 %v4848
        %v4866 = vunpack.c.h.b16 %v4848
        %v4867 = vunpack.c.l.b16 %v4849
        %v4868 = vunpack.c.h.b16 %v4849
        %v4869 = vunpack.c.l.b16 %v4850
        %v4870 = vunpack.c.h.b16 %v4850
        %v4871 = vunpack.c.l.b16 %v4851
        %v4872 = vunpack.c.h.b16 %v4851
        %v4873 = vunpack.c.l.b16 %v4852
        %v4874 = vunpack.c.h.b16 %v4852
        %v4875 = vunpack.c.l.b16 %v4853
        %v4876 = vunpack.c.h.b16 %v4853
        %v4877 = vunpack.c.l.b16 %v4854
        %v4878 = vunpack.c.h.b16 %v4854
        %v4879 = vpack.c.b16 %v4867, %v4863
        %v4880 = vpack.c.b16 %v4868, %v4864
        %v4881 = vpack.c.b16 %v4869, %v4865
        %v4882 = vpack.c.b16 %v4870, %v4866
        %v4883 = vpack.c.b16 %v4875, %v4871
        %v4884 = vpack.c.b16 %v4876, %v4872
        %v4885 = vpack.c.b16 %v4877, %v4873
        %v4886 = vpack.c.b16 %v4878, %v4874
        %4887 = vrot.lane.b32.xlu0 %v4879, 126
        %v4888 = vpop.permute.xlu0 %4887
        %4889 = vrot.lane.b32.xlu0 %v4880, 126
        %v4890 = vpop.permute.xlu0 %4889
        %4891 = vrot.lane.b32.xlu0 %v4881, 126
        %v4892 = vpop.permute.xlu0 %4891
        %4893 = vrot.lane.b32.xlu0 %v4882, 126
        %v4894 = vpop.permute.xlu0 %4893
        %4895 = vrot.lane.b32.xlu0 %v4883, 126
        %v4896 = vpop.permute.xlu0 %4895
        %4897 = vrot.lane.b32.xlu0 %v4884, 126
        %v4898 = vpop.permute.xlu0 %4897
        %4899 = vrot.lane.b32.xlu0 %v4885, 126
        %v4900 = vpop.permute.xlu0 %4899
        %4901 = vrot.lane.b32.xlu0 %v4886, 126
        %v4902 = vpop.permute.xlu0 %4901
        %v4903 = vsel %vm4247, %v4888, %v4890
        %v4904 = vsel %vm4247, %v4890, %v4892
        %v4905 = vsel %vm4247, %v4892, %v4894
        %v4906 = vsel %vm4247, %v4896, %v4898
        %v4907 = vsel %vm4247, %v4898, %v4900
        %v4908 = vsel %vm4247, %v4900, %v4902
        %4909 = vrot.lane.b32.xlu0 %v4879, 124
        %v4910 = vpop.permute.xlu0 %4909
        %4911 = vrot.lane.b32.xlu0 %v4880, 124
        %v4912 = vpop.permute.xlu0 %4911
        %4913 = vrot.lane.b32.xlu0 %v4881, 124
        %v4914 = vpop.permute.xlu0 %4913
        %4915 = vrot.lane.b32.xlu0 %v4882, 124
        %v4916 = vpop.permute.xlu0 %4915
        %4917 = vrot.lane.b32.xlu0 %v4883, 124
        %v4918 = vpop.permute.xlu0 %4917
        %4919 = vrot.lane.b32.xlu0 %v4884, 124
        %v4920 = vpop.permute.xlu0 %4919
        %4921 = vrot.lane.b32.xlu0 %v4885, 124
        %v4922 = vpop.permute.xlu0 %4921
        %4923 = vrot.lane.b32.xlu0 %v4886, 124
        %v4924 = vpop.permute.xlu0 %4923
        %v4925 = vsel %vm1601, %v4910, %v4912
        %v4926 = vsel %vm1601, %v4912, %v4914
        %v4927 = vsel %vm1601, %v4914, %v4916
        %v4928 = vsel %vm1601, %v4918, %v4920
        %v4929 = vsel %vm1601, %v4920, %v4922
        %v4930 = vsel %vm1601, %v4922, %v4924
        %v4931 = vld [vmem:[%s4] sm:$0xf]
        %v4932 = vld [vmem:[%s4 + $0x4] sm:$0xf]
        %v4933 = vld [vmem:[%s4294] sm:$0xf]
        %v4934 = vld [vmem:[%s4294 + $0x4] sm:$0xf]
        %v4937 = vunpack.c.l.b16 %v4933
        %v4938 = vunpack.c.l.b16 %v4934
        %v4939 = vpack.c.b16 %v4938, %v4937
        %4940 = vrot.lane.b32.xlu0 %v4879, 52
        %v4941 = vpop.permute.xlu0 %4940
        %4942 = vrot.lane.b32.xlu0 %v4880, 52
        %v4943 = vpop.permute.xlu0 %4942
        %4944 = vrot.lane.b32.xlu0 %v4881, 52
        %v4945 = vpop.permute.xlu0 %4944
        %4946 = vrot.lane.b32.xlu0 %v4882, 52
        %v4947 = vpop.permute.xlu0 %4946
        %4948 = vrot.lane.b32.xlu0 %v4883, 52
        %v4949 = vpop.permute.xlu0 %4948
        %4950 = vrot.lane.b32.xlu0 %v4884, 52
        %v4951 = vpop.permute.xlu0 %4950
        %4952 = vrot.lane.b32.xlu0 %v4885, 52
        %v4953 = vpop.permute.xlu0 %4952
        %4954 = vrot.lane.b32.xlu0 %v4886, 52
        %v4955 = vpop.permute.xlu0 %4954
        %4956 = vrot.lane.b32.xlu0 %v4903, 52
        %v4957 = vpop.permute.xlu0 %4956
        %4958 = vrot.lane.b32.xlu0 %v4904, 52
        %v4959 = vpop.permute.xlu0 %4958
        %4960 = vrot.lane.b32.xlu0 %v4905, 52
        %v4961 = vpop.permute.xlu0 %4960
        %4962 = vrot.lane.b32.xlu0 %v4894, 52
        %v4963 = vpop.permute.xlu0 %4962
        %4964 = vrot.lane.b32.xlu0 %v4906, 52
        %v4965 = vpop.permute.xlu0 %4964
        %4966 = vrot.lane.b32.xlu0 %v4907, 52
        %v4967 = vpop.permute.xlu0 %4966
        %4968 = vrot.lane.b32.xlu0 %v4908, 52
        %v4969 = vpop.permute.xlu0 %4968
        %4970 = vrot.lane.b32.xlu0 %v4902, 52
        %v4971 = vpop.permute.xlu0 %4970
        %4972 = vrot.lane.b32.xlu0 %v4925, 52
        %v4973 = vpop.permute.xlu0 %4972
        %4974 = vrot.lane.b32.xlu0 %v4926, 52
        %v4975 = vpop.permute.xlu0 %4974
        %4976 = vrot.lane.b32.xlu0 %v4927, 52
        %v4977 = vpop.permute.xlu0 %4976
        %4978 = vrot.lane.b32.xlu0 %v4916, 52
        %v4979 = vpop.permute.xlu0 %4978
        %4980 = vrot.lane.b32.xlu0 %v4928, 52
        %v4981 = vpop.permute.xlu0 %4980
        %4982 = vrot.lane.b32.xlu0 %v4929, 52
        %v4983 = vpop.permute.xlu0 %4982
        %4984 = vrot.lane.b32.xlu0 %v4930, 52
        %v4985 = vpop.permute.xlu0 %4984
        %4986 = vrot.lane.b32.xlu0 %v4924, 52
        %v4987 = vpop.permute.xlu0 %4986
        %vm4988 = vcmask 424960
        %v4989 = vsel %vm4988, %v4941, %v4943
        %v4990 = vsel %vm4988, %v4943, %v4945
        %v4991 = vsel %vm4988, %v4945, %v4947
        %v4992 = vsel %vm4988, %v4949, %v4951
        %v4993 = vsel %vm4988, %v4951, %v4953
        %v4994 = vsel %vm4988, %v4953, %v4955
        %v4995 = vsel %vm4988, %v4957, %v4959
        %v4996 = vsel %vm4988, %v4959, %v4961
        %v4997 = vsel %vm4988, %v4961, %v4963
        %v4998 = vsel %vm4988, %v4965, %v4967
        %v4999 = vsel %vm4988, %v4967, %v4969
        %v5000 = vsel %vm4988, %v4969, %v4971
        %v5001 = vsel %vm4988, %v4973, %v4975
        %v5002 = vsel %vm4988, %v4975, %v4977
        %v5003 = vsel %vm4988, %v4977, %v4979
        %v5004 = vsel %vm4988, %v4981, %v4983
        %v5005 = vsel %vm4988, %v4983, %v4985
        %v5006 = vsel %vm4988, %v4985, %v4987
        %v5032 = vsel %vm4393, %v4939, 0
        %5034 = vmatpush.bf16.msra.mxu0 0
        %5035 = vmatpush.bf16.msra.mxu0 0
        %5036 = vmatpush.bf16.msra.mxu0 %v5004
        %5037 = vmatpush.bf16.msra.mxu0 %v5001
        %5038 = vmatpush.bf16.msra.mxu0 %v4998
        %5039 = vmatpush.bf16.msra.mxu0 %v4995
        %5040 = vmatpush.bf16.msra.mxu0 %v4992
        %5041 = vmatpush.bf16.msra.mxu0 %v4989
        %5042 = vmatmul.bf16.gmra.mxu0 %v5032
        %v5043 = vpop.f32.mrf.mxu0
        %v5044 = vadd.f32 0.0, %v5043
        %v5045 = vpop.f32.mrf.mxu0
        %v5046 = vadd.f32 0.0, %v5045
        %5047 = vdwg.mxu0
        %5048 = vmatpush.bf16.msra.mxu0 0
        %5049 = vmatpush.bf16.msra.mxu0 0
        %5050 = vmatpush.bf16.msra.mxu0 %v5005
        %5051 = vmatpush.bf16.msra.mxu0 %v5002
        %5052 = vmatpush.bf16.msra.mxu0 %v4999
        %5053 = vmatpush.bf16.msra.mxu0 %v4996
        %5054 = vmatpush.bf16.msra.mxu0 %v4993
        %5055 = vmatpush.bf16.msra.mxu0 %v4990
        %5056 = vmatmul.bf16.gmra.mxu0 %v5032
        %v5057 = vpop.f32.mrf.mxu0
        %v5058 = vadd.f32 0.0, %v5057
        %v5059 = vpop.f32.mrf.mxu0
        %v5060 = vadd.f32 0.0, %v5059
        %5061 = vdwg.mxu0
        %5062 = vmatpush.bf16.msra.mxu0 0
        %5063 = vmatpush.bf16.msra.mxu0 0
        %5064 = vmatpush.bf16.msra.mxu0 %v5006
        %5065 = vmatpush.bf16.msra.mxu0 %v5003
        %5066 = vmatpush.bf16.msra.mxu0 %v5000
        %5067 = vmatpush.bf16.msra.mxu0 %v4997
        %5068 = vmatpush.bf16.msra.mxu0 %v4994
        %5069 = vmatpush.bf16.msra.mxu0 %v4991
        %5070 = vmatmul.bf16.gmra.mxu0 %v5032
        %v5071 = vpop.f32.mrf.mxu0
        %v5072 = vadd.f32 0.0, %v5071
        %v5073 = vpop.f32.mrf.mxu0
        %v5074 = vadd.f32 0.0, %v5073
        %5075 = vdwg.mxu0
        %5076 = vmatpush.bf16.msra.mxu0 0
        %5077 = vmatpush.bf16.msra.mxu0 0
        %5078 = vmatpush.bf16.msra.mxu0 %v4987
        %5079 = vmatpush.bf16.msra.mxu0 %v4979
        %5080 = vmatpush.bf16.msra.mxu0 %v4971
        %5081 = vmatpush.bf16.msra.mxu0 %v4963
        %5082 = vmatpush.bf16.msra.mxu0 %v4955
        %5083 = vmatpush.bf16.msra.mxu0 %v4947
        %5084 = vmatmul.bf16.gmra.mxu0 %v5032
        %v5085 = vpop.f32.mrf.mxu0
        %v5086 = vadd.f32 0.0, %v5085
        %v5087 = vpop.f32.mrf.mxu0
        %v5088 = vadd.f32 0.0, %v5087
        %5089 = vdwg.mxu0
        %v5092 = vunpack.c.l.b16 %v4931
        %v5093 = vunpack.c.l.b16 %v4932
        %v5094 = vpack.c.b16 %v5093, %v5092
        %5095 = vrot.lane.b32.xlu0 %v4879, 112
        %v5096 = vpop.permute.xlu0 %5095
        %5097 = vrot.lane.b32.xlu0 %v4880, 112
        %v5098 = vpop.permute.xlu0 %5097
        %5099 = vrot.lane.b32.xlu0 %v4881, 112
        %v5100 = vpop.permute.xlu0 %5099
        %5101 = vrot.lane.b32.xlu0 %v4882, 112
        %v5102 = vpop.permute.xlu0 %5101
        %5103 = vrot.lane.b32.xlu0 %v4883, 112
        %v5104 = vpop.permute.xlu0 %5103
        %5105 = vrot.lane.b32.xlu0 %v4884, 112
        %v5106 = vpop.permute.xlu0 %5105
        %5107 = vrot.lane.b32.xlu0 %v4885, 112
        %v5108 = vpop.permute.xlu0 %5107
        %5109 = vrot.lane.b32.xlu0 %v4886, 112
        %v5110 = vpop.permute.xlu0 %5109
        %5111 = vrot.lane.b32.xlu0 %v4903, 112
        %v5112 = vpop.permute.xlu0 %5111
        %5113 = vrot.lane.b32.xlu0 %v4904, 112
        %v5114 = vpop.permute.xlu0 %5113
        %5115 = vrot.lane.b32.xlu0 %v4905, 112
        %v5116 = vpop.permute.xlu0 %5115
        %5117 = vrot.lane.b32.xlu0 %v4894, 112
        %v5118 = vpop.permute.xlu0 %5117
        %5119 = vrot.lane.b32.xlu0 %v4906, 112
        %v5120 = vpop.permute.xlu0 %5119
        %5121 = vrot.lane.b32.xlu0 %v4907, 112
        %v5122 = vpop.permute.xlu0 %5121
        %5123 = vrot.lane.b32.xlu0 %v4908, 112
        %v5124 = vpop.permute.xlu0 %5123
        %5125 = vrot.lane.b32.xlu0 %v4902, 112
        %v5126 = vpop.permute.xlu0 %5125
        %5127 = vrot.lane.b32.xlu0 %v4925, 112
        %v5128 = vpop.permute.xlu0 %5127
        %5129 = vrot.lane.b32.xlu0 %v4926, 112
        %v5130 = vpop.permute.xlu0 %5129
        %5131 = vrot.lane.b32.xlu0 %v4927, 112
        %v5132 = vpop.permute.xlu0 %5131
        %5133 = vrot.lane.b32.xlu0 %v4916, 112
        %v5134 = vpop.permute.xlu0 %5133
        %5135 = vrot.lane.b32.xlu0 %v4928, 112
        %v5136 = vpop.permute.xlu0 %5135
        %5137 = vrot.lane.b32.xlu0 %v4929, 112
        %v5138 = vpop.permute.xlu0 %5137
        %5139 = vrot.lane.b32.xlu0 %v4930, 112
        %v5140 = vpop.permute.xlu0 %5139
        %5141 = vrot.lane.b32.xlu0 %v4924, 112
        %v5142 = vpop.permute.xlu0 %5141
        %v5143 = vsel %vm2411, %v5096, %v5098
        %v5144 = vsel %vm2411, %v5098, %v5100
        %v5145 = vsel %vm2411, %v5100, %v5102
        %v5146 = vsel %vm2411, %v5104, %v5106
        %v5147 = vsel %vm2411, %v5106, %v5108
        %v5148 = vsel %vm2411, %v5108, %v5110
        %v5149 = vsel %vm2411, %v5112, %v5114
        %v5150 = vsel %vm2411, %v5114, %v5116
        %v5151 = vsel %vm2411, %v5116, %v5118
        %v5152 = vsel %vm2411, %v5120, %v5122
        %v5153 = vsel %vm2411, %v5122, %v5124
        %v5154 = vsel %vm2411, %v5124, %v5126
        %v5155 = vsel %vm2411, %v5128, %v5130
        %v5156 = vsel %vm2411, %v5130, %v5132
        %v5157 = vsel %vm2411, %v5132, %v5134
        %v5158 = vsel %vm2411, %v5136, %v5138
        %v5159 = vsel %vm2411, %v5138, %v5140
        %v5160 = vsel %vm2411, %v5140, %v5142
        %v5186 = vsel %vm4393, %v5094, 0
        %5188 = vmatpush.bf16.msra.mxu0 0
        %5189 = vmatpush.bf16.msra.mxu0 0
        %5190 = vmatpush.bf16.msra.mxu0 %v5158
        %5191 = vmatpush.bf16.msra.mxu0 %v5155
        %5192 = vmatpush.bf16.msra.mxu0 %v5152
        %5193 = vmatpush.bf16.msra.mxu0 %v5149
        %5194 = vmatpush.bf16.msra.mxu0 %v5146
        %5195 = vmatpush.bf16.msra.mxu0 %v5143
        %5196 = vmatmul.bf16.gmra.mxu0 %v5186
        %v5197 = vpop.f32.mrf.mxu0
        %v5198 = vadd.f32 %v5044, %v5197
        %v5199 = vpop.f32.mrf.mxu0
        %v5200 = vadd.f32 %v5046, %v5199
        %5201 = vdwg.mxu0
        %5202 = vmatpush.bf16.msra.mxu0 0
        %5203 = vmatpush.bf16.msra.mxu0 0
        %5204 = vmatpush.bf16.msra.mxu0 %v5159
        %5205 = vmatpush.bf16.msra.mxu0 %v5156
        %5206 = vmatpush.bf16.msra.mxu0 %v5153
        %5207 = vmatpush.bf16.msra.mxu0 %v5150
        %5208 = vmatpush.bf16.msra.mxu0 %v5147
        %5209 = vmatpush.bf16.msra.mxu0 %v5144
        %5210 = vmatmul.bf16.gmra.mxu0 %v5186
        %v5211 = vpop.f32.mrf.mxu0
        %v5212 = vadd.f32 %v5058, %v5211
        %v5213 = vpop.f32.mrf.mxu0
        %v5214 = vadd.f32 %v5060, %v5213
        %5215 = vdwg.mxu0
        %5216 = vmatpush.bf16.msra.mxu0 0
        %5217 = vmatpush.bf16.msra.mxu0 0
        %5218 = vmatpush.bf16.msra.mxu0 %v5160
        %5219 = vmatpush.bf16.msra.mxu0 %v5157
        %5220 = vmatpush.bf16.msra.mxu0 %v5154
        %5221 = vmatpush.bf16.msra.mxu0 %v5151
        %5222 = vmatpush.bf16.msra.mxu0 %v5148
        %5223 = vmatpush.bf16.msra.mxu0 %v5145
        %5224 = vmatmul.bf16.gmra.mxu0 %v5186
        %v5225 = vpop.f32.mrf.mxu0
        %v5226 = vadd.f32 %v5072, %v5225
        %v5227 = vpop.f32.mrf.mxu0
        %v5228 = vadd.f32 %v5074, %v5227
        %5229 = vdwg.mxu0
        %5230 = vmatpush.bf16.msra.mxu0 0
        %5231 = vmatpush.bf16.msra.mxu0 0
        %5232 = vmatpush.bf16.msra.mxu0 %v5142
        %5233 = vmatpush.bf16.msra.mxu0 %v5134
        %5234 = vmatpush.bf16.msra.mxu0 %v5126
        %5235 = vmatpush.bf16.msra.mxu0 %v5118
        %5236 = vmatpush.bf16.msra.mxu0 %v5110
        %5237 = vmatpush.bf16.msra.mxu0 %v5102
        %5238 = vmatmul.bf16.gmra.mxu0 %v5186
        %v5239 = vpop.f32.mrf.mxu0
        %v5240 = vadd.f32 %v5086, %v5239
        %v5241 = vpop.f32.mrf.mxu0
        %v5242 = vadd.f32 %v5088, %v5241
        %5243 = vdwg.mxu0
        %v5244 = vld [vmem:[#allocation3 + $0x10] sm:$0xff]
        %v5245 = vld [vmem:[#allocation3 + $0x18] sm:$0xff]
        %v5246 = vld [vmem:[#allocation3 + $0x3c] sm:$0xff]
        %v5247 = vld [vmem:[#allocation3 + $0x44] sm:$0xff]
        %v5248 = vld [vmem:[#allocation3 + $0x68] sm:$0xff]
        %v5249 = vld [vmem:[#allocation3 + $0x70] sm:$0xff]
        %v5250 = vld [vmem:[#allocation3 + $0x94] sm:$0xff]
        %v5251 = vld [vmem:[#allocation3 + $0x9c] sm:$0xff]
        %v5260 = vunpack.c.l.b16 %v5244
        %v5261 = vunpack.c.h.b16 %v5244
        %v5262 = vunpack.c.l.b16 %v5245
        %v5263 = vunpack.c.h.b16 %v5245
        %v5264 = vunpack.c.l.b16 %v5246
        %v5265 = vunpack.c.h.b16 %v5246
        %v5266 = vunpack.c.l.b16 %v5247
        %v5267 = vunpack.c.h.b16 %v5247
        %v5268 = vunpack.c.l.b16 %v5248
        %v5269 = vunpack.c.h.b16 %v5248
        %v5270 = vunpack.c.l.b16 %v5249
        %v5271 = vunpack.c.h.b16 %v5249
        %v5272 = vunpack.c.l.b16 %v5250
        %v5273 = vunpack.c.h.b16 %v5250
        %v5274 = vunpack.c.l.b16 %v5251
        %v5275 = vunpack.c.h.b16 %v5251
        %v5276 = vpack.c.b16 %v5264, %v5260
        %v5277 = vpack.c.b16 %v5265, %v5261
        %v5278 = vpack.c.b16 %v5266, %v5262
        %v5279 = vpack.c.b16 %v5267, %v5263
        %v5280 = vpack.c.b16 %v5272, %v5268
        %v5281 = vpack.c.b16 %v5273, %v5269
        %v5282 = vpack.c.b16 %v5274, %v5270
        %v5283 = vpack.c.b16 %v5275, %v5271
        %5284 = vrot.lane.b32.xlu0 %v5276, 126
        %v5285 = vpop.permute.xlu0 %5284
        %5286 = vrot.lane.b32.xlu0 %v5277, 126
        %v5287 = vpop.permute.xlu0 %5286
        %5288 = vrot.lane.b32.xlu0 %v5278, 126
        %v5289 = vpop.permute.xlu0 %5288
        %5290 = vrot.lane.b32.xlu0 %v5279, 126
        %v5291 = vpop.permute.xlu0 %5290
        %5292 = vrot.lane.b32.xlu0 %v5280, 126
        %v5293 = vpop.permute.xlu0 %5292
        %5294 = vrot.lane.b32.xlu0 %v5281, 126
        %v5295 = vpop.permute.xlu0 %5294
        %5296 = vrot.lane.b32.xlu0 %v5282, 126
        %v5297 = vpop.permute.xlu0 %5296
        %5298 = vrot.lane.b32.xlu0 %v5283, 126
        %v5299 = vpop.permute.xlu0 %5298
        %v5300 = vsel %vm4247, %v5285, %v5287
        %v5301 = vsel %vm4247, %v5287, %v5289
        %v5302 = vsel %vm4247, %v5289, %v5291
        %v5303 = vsel %vm4247, %v5293, %v5295
        %v5304 = vsel %vm4247, %v5295, %v5297
        %v5305 = vsel %vm4247, %v5297, %v5299
        %5306 = vrot.lane.b32.xlu0 %v5276, 124
        %v5307 = vpop.permute.xlu0 %5306
        %5308 = vrot.lane.b32.xlu0 %v5277, 124
        %v5309 = vpop.permute.xlu0 %5308
        %5310 = vrot.lane.b32.xlu0 %v5278, 124
        %v5311 = vpop.permute.xlu0 %5310
        %5312 = vrot.lane.b32.xlu0 %v5279, 124
        %v5313 = vpop.permute.xlu0 %5312
        %5314 = vrot.lane.b32.xlu0 %v5280, 124
        %v5315 = vpop.permute.xlu0 %5314
        %5316 = vrot.lane.b32.xlu0 %v5281, 124
        %v5317 = vpop.permute.xlu0 %5316
        %5318 = vrot.lane.b32.xlu0 %v5282, 124
        %v5319 = vpop.permute.xlu0 %5318
        %5320 = vrot.lane.b32.xlu0 %v5283, 124
        %v5321 = vpop.permute.xlu0 %5320
        %v5322 = vsel %vm1601, %v5307, %v5309
        %v5323 = vsel %vm1601, %v5309, %v5311
        %v5324 = vsel %vm1601, %v5311, %v5313
        %v5325 = vsel %vm1601, %v5315, %v5317
        %v5326 = vsel %vm1601, %v5317, %v5319
        %v5327 = vsel %vm1601, %v5319, %v5321
        %v5328 = vld [vmem:[%s4627] sm:$0xf]
        %v5329 = vld [vmem:[%s4627 + $0x4] sm:$0xf]
        %v5332 = vunpack.c.l.b16 %v5328
        %v5333 = vunpack.c.l.b16 %v5329
        %v5334 = vpack.c.b16 %v5333, %v5332
        %5335 = vrot.lane.b32.xlu0 %v5276, 120
        %v5336 = vpop.permute.xlu0 %5335
        %5337 = vrot.lane.b32.xlu0 %v5277, 120
        %v5338 = vpop.permute.xlu0 %5337
        %5339 = vrot.lane.b32.xlu0 %v5278, 120
        %v5340 = vpop.permute.xlu0 %5339
        %5341 = vrot.lane.b32.xlu0 %v5279, 120
        %v5342 = vpop.permute.xlu0 %5341
        %5343 = vrot.lane.b32.xlu0 %v5280, 120
        %v5344 = vpop.permute.xlu0 %5343
        %5345 = vrot.lane.b32.xlu0 %v5281, 120
        %v5346 = vpop.permute.xlu0 %5345
        %5347 = vrot.lane.b32.xlu0 %v5282, 120
        %v5348 = vpop.permute.xlu0 %5347
        %5349 = vrot.lane.b32.xlu0 %v5283, 120
        %v5350 = vpop.permute.xlu0 %5349
        %5351 = vrot.lane.b32.xlu0 %v5300, 120
        %v5352 = vpop.permute.xlu0 %5351
        %5353 = vrot.lane.b32.xlu0 %v5301, 120
        %v5354 = vpop.permute.xlu0 %5353
        %5355 = vrot.lane.b32.xlu0 %v5302, 120
        %v5356 = vpop.permute.xlu0 %5355
        %5357 = vrot.lane.b32.xlu0 %v5291, 120
        %v5358 = vpop.permute.xlu0 %5357
        %5359 = vrot.lane.b32.xlu0 %v5303, 120
        %v5360 = vpop.permute.xlu0 %5359
        %5361 = vrot.lane.b32.xlu0 %v5304, 120
        %v5362 = vpop.permute.xlu0 %5361
        %5363 = vrot.lane.b32.xlu0 %v5305, 120
        %v5364 = vpop.permute.xlu0 %5363
        %5365 = vrot.lane.b32.xlu0 %v5299, 120
        %v5366 = vpop.permute.xlu0 %5365
        %5367 = vrot.lane.b32.xlu0 %v5322, 120
        %v5368 = vpop.permute.xlu0 %5367
        %5369 = vrot.lane.b32.xlu0 %v5323, 120
        %v5370 = vpop.permute.xlu0 %5369
        %5371 = vrot.lane.b32.xlu0 %v5324, 120
        %v5372 = vpop.permute.xlu0 %5371
        %5373 = vrot.lane.b32.xlu0 %v5313, 120
        %v5374 = vpop.permute.xlu0 %5373
        %5375 = vrot.lane.b32.xlu0 %v5325, 120
        %v5376 = vpop.permute.xlu0 %5375
        %5377 = vrot.lane.b32.xlu0 %v5326, 120
        %v5378 = vpop.permute.xlu0 %5377
        %5379 = vrot.lane.b32.xlu0 %v5327, 120
        %v5380 = vpop.permute.xlu0 %5379
        %5381 = vrot.lane.b32.xlu0 %v5321, 120
        %v5382 = vpop.permute.xlu0 %5381
        %v5383 = vsel %vm1871, %v5336, %v5338
        %v5384 = vsel %vm1871, %v5338, %v5340
        %v5385 = vsel %vm1871, %v5340, %v5342
        %v5386 = vsel %vm1871, %v5344, %v5346
        %v5387 = vsel %vm1871, %v5346, %v5348
        %v5388 = vsel %vm1871, %v5348, %v5350
        %v5389 = vsel %vm1871, %v5352, %v5354
        %v5390 = vsel %vm1871, %v5354, %v5356
        %v5391 = vsel %vm1871, %v5356, %v5358
        %v5392 = vsel %vm1871, %v5360, %v5362
        %v5393 = vsel %vm1871, %v5362, %v5364
        %v5394 = vsel %vm1871, %v5364, %v5366
        %v5395 = vsel %vm1871, %v5368, %v5370
        %v5396 = vsel %vm1871, %v5370, %v5372
        %v5397 = vsel %vm1871, %v5372, %v5374
        %v5398 = vsel %vm1871, %v5376, %v5378
        %v5399 = vsel %vm1871, %v5378, %v5380
        %v5400 = vsel %vm1871, %v5380, %v5382
        %v5426 = vsel %vm4393, %v5334, 0
        %5428 = vmatpush.bf16.msra.mxu0 0
        %5429 = vmatpush.bf16.msra.mxu0 0
        %5430 = vmatpush.bf16.msra.mxu0 %v5398
        %5431 = vmatpush.bf16.msra.mxu0 %v5395
        %5432 = vmatpush.bf16.msra.mxu0 %v5392
        %5433 = vmatpush.bf16.msra.mxu0 %v5389
        %5434 = vmatpush.bf16.msra.mxu0 %v5386
        %5435 = vmatpush.bf16.msra.mxu0 %v5383
        %5436 = vmatmul.bf16.gmra.mxu0 %v5426
        %v5437 = vpop.f32.mrf.mxu0
        %v5438 = vadd.f32 0.0, %v5437
        %v5439 = vpop.f32.mrf.mxu0
        %v5440 = vadd.f32 0.0, %v5439
        %5441 = vdwg.mxu0
        %5442 = vmatpush.bf16.msra.mxu0 0
        %5443 = vmatpush.bf16.msra.mxu0 0
        %5444 = vmatpush.bf16.msra.mxu0 %v5399
        %5445 = vmatpush.bf16.msra.mxu0 %v5396
        %5446 = vmatpush.bf16.msra.mxu0 %v5393
        %5447 = vmatpush.bf16.msra.mxu0 %v5390
        %5448 = vmatpush.bf16.msra.mxu0 %v5387
        %5449 = vmatpush.bf16.msra.mxu0 %v5384
        %5450 = vmatmul.bf16.gmra.mxu0 %v5426
        %v5451 = vpop.f32.mrf.mxu0
        %v5452 = vadd.f32 0.0, %v5451
        %v5453 = vpop.f32.mrf.mxu0
        %v5454 = vadd.f32 0.0, %v5453
        %5455 = vdwg.mxu0
        %5456 = vmatpush.bf16.msra.mxu0 0
        %5457 = vmatpush.bf16.msra.mxu0 0
        %5458 = vmatpush.bf16.msra.mxu0 %v5400
        %5459 = vmatpush.bf16.msra.mxu0 %v5397
        %5460 = vmatpush.bf16.msra.mxu0 %v5394
        %5461 = vmatpush.bf16.msra.mxu0 %v5391
        %5462 = vmatpush.bf16.msra.mxu0 %v5388
        %5463 = vmatpush.bf16.msra.mxu0 %v5385
        %5464 = vmatmul.bf16.gmra.mxu0 %v5426
        %v5465 = vpop.f32.mrf.mxu0
        %v5466 = vadd.f32 0.0, %v5465
        %v5467 = vpop.f32.mrf.mxu0
        %v5468 = vadd.f32 0.0, %v5467
        %5469 = vdwg.mxu0
        %5470 = vmatpush.bf16.msra.mxu0 0
        %5471 = vmatpush.bf16.msra.mxu0 0
        %5472 = vmatpush.bf16.msra.mxu0 %v5382
        %5473 = vmatpush.bf16.msra.mxu0 %v5374
        %5474 = vmatpush.bf16.msra.mxu0 %v5366
        %5475 = vmatpush.bf16.msra.mxu0 %v5358
        %5476 = vmatpush.bf16.msra.mxu0 %v5350
        %5477 = vmatpush.bf16.msra.mxu0 %v5342
        %5478 = vmatmul.bf16.gmra.mxu0 %v5426
        %v5479 = vpop.f32.mrf.mxu0
        %v5480 = vadd.f32 0.0, %v5479
        %v5481 = vpop.f32.mrf.mxu0
        %v5482 = vadd.f32 0.0, %v5481
        %5483 = vdwg.mxu0
        %v5484 = vadd.f32 %v5198, %v5438
        %v5485 = vadd.f32 %v5212, %v5452
        %v5486 = vadd.f32 %v5226, %v5466
        %v5487 = vadd.f32 %v5240, %v5480
        %v5488 = vadd.f32 %v5200, %v5440
        %v5489 = vadd.f32 %v5214, %v5454
        %v5490 = vadd.f32 %v5228, %v5468
        %v5491 = vadd.f32 %v5242, %v5482
        %v5492 = vadd.f32 %v5484, %v4814
        %v5493 = vadd.f32 %v5485, %v4814
        %v5494 = vadd.f32 %v5486, %v4814
        %v5495 = vadd.f32 %v5487, %v4814
        %v5496 = vadd.f32 %v5488, %v4819
        %v5497 = vadd.f32 %v5489, %v4819
        %v5498 = vadd.f32 %v5490, %v4819
        %v5499 = vadd.f32 %v5491, %v4819
        %v5500 = vmax.f32 %v5492, 0.0
        %v5501 = vmax.f32 %v5493, 0.0
        %v5502 = vmax.f32 %v5494, 0.0
        %v5503 = vmax.f32 %v5495, 0.0
        %v5504 = vmax.f32 %v5496, 0.0
        %v5505 = vmax.f32 %v5497, 0.0
        %v5506 = vmax.f32 %v5498, 0.0
        %v5507 = vmax.f32 %v5499, 0.0
        %v5508 = vpack.c.bf16 %v5501, %v5500
        %v5509 = vpack.c.bf16 %v5503, %v5502
        %v5510 = vpack.c.bf16 %v5505, %v5504
        %v5511 = vpack.c.bf16 %v5507, %v5506
        %5516 = vrot.lane.b32.xlu0 %v5508, 16
        %v5517 = vpop.permute.xlu0 %5516
        %5518 = vrot.lane.b32.xlu0 %v5509, 16
        %v5519 = vpop.permute.xlu0 %5518
        %5520 = vrot.lane.b32.xlu0 %v5510, 16
        %v5521 = vpop.permute.xlu0 %5520
        %5522 = vrot.lane.b32.xlu0 %v5511, 16
        %v5523 = vpop.permute.xlu0 %5522
        %v5524 = vrot.slane %v5517, 4
        %v5525 = vrot.slane %v5519, 4
        %v5526 = vrot.slane %v5521, 4
        %v5527 = vrot.slane %v5523, 4
        %vm5528 = vcmask 130048
        %v5529 = vsel %vm5528, %v5524, %v5517
        %vm5530 = vcmask 1043456
        %v5531 = vsel %vm5530, %v5524, %v5525
        %v5532 = vsel %vm5528, %v5531, %v5519
        %v5533 = vsel %vm5528, %v5526, %v5521
        %v5534 = vsel %vm5530, %v5526, %v5527
        %v5535 = vsel %vm5528, %v5534, %v5523
        %vm5540 = vcmask 1043584
        %vm5541 = vcmask 1047556
        %vm5542 = vmor %vm5541, %vm5540
        %5543 = vst.msk [vmem:[#allocation4 + $0xc] sm:$0xff] %vm5542, %v5529
        %vm5544 = vcmask 261124
        %vm5545 = vmor %vm5544, %vm1271
        %5546 = vst.msk [vmem:[#allocation4 + $0x14] sm:$0xff] %vm5545, %v5532
        %5547 = vst.msk [vmem:[#allocation4 + $0x34] sm:$0xff] %vm5542, %v5533
        %5548 = vst.msk [vmem:[#allocation4 + $0x3c] sm:$0xff] %vm5545, %v5535
        %v5549 = vld [vmem:[#allocation3 + $0x18] sm:$0xff]
        %v5550 = vld [vmem:[#allocation3 + $0x20] sm:$0xff]
        %v5551 = vld [vmem:[#allocation3 + $0x44] sm:$0xff]
        %v5552 = vld [vmem:[#allocation3 + $0x4c] sm:$0xff]
        %v5553 = vld [vmem:[#allocation3 + $0x70] sm:$0xff]
        %v5554 = vld [vmem:[#allocation3 + $0x78] sm:$0xff]
        %v5555 = vld [vmem:[#allocation3 + $0x9c] sm:$0xff]
        %v5556 = vld [vmem:[#allocation3 + $0xa4] sm:$0xff]
        %v5565 = vunpack.c.l.b16 %v5549
        %v5566 = vunpack.c.h.b16 %v5549
        %v5567 = vunpack.c.l.b16 %v5550
        %v5568 = vunpack.c.h.b16 %v5550
        %v5569 = vunpack.c.l.b16 %v5551
        %v5570 = vunpack.c.h.b16 %v5551
        %v5571 = vunpack.c.l.b16 %v5552
        %v5572 = vunpack.c.h.b16 %v5552
        %v5573 = vunpack.c.l.b16 %v5553
        %v5574 = vunpack.c.h.b16 %v5553
        %v5575 = vunpack.c.l.b16 %v5554
        %v5576 = vunpack.c.h.b16 %v5554
        %v5577 = vunpack.c.l.b16 %v5555
        %v5578 = vunpack.c.h.b16 %v5555
        %v5579 = vunpack.c.l.b16 %v5556
        %v5580 = vunpack.c.h.b16 %v5556
        %v5581 = vpack.c.b16 %v5569, %v5565
        %v5582 = vpack.c.b16 %v5570, %v5566
        %v5583 = vpack.c.b16 %v5571, %v5567
        %v5584 = vpack.c.b16 %v5572, %v5568
        %v5585 = vpack.c.b16 %v5577, %v5573
        %v5586 = vpack.c.b16 %v5578, %v5574
        %v5587 = vpack.c.b16 %v5579, %v5575
        %v5588 = vpack.c.b16 %v5580, %v5576
        %5589 = vrot.lane.b32.xlu0 %v5581, 126
        %v5590 = vpop.permute.xlu0 %5589
        %5591 = vrot.lane.b32.xlu0 %v5582, 126
        %v5592 = vpop.permute.xlu0 %5591
        %5593 = vrot.lane.b32.xlu0 %v5583, 126
        %v5594 = vpop.permute.xlu0 %5593
        %5595 = vrot.lane.b32.xlu0 %v5584, 126
        %v5596 = vpop.permute.xlu0 %5595
        %5597 = vrot.lane.b32.xlu0 %v5585, 126
        %v5598 = vpop.permute.xlu0 %5597
        %5599 = vrot.lane.b32.xlu0 %v5586, 126
        %v5600 = vpop.permute.xlu0 %5599
        %5601 = vrot.lane.b32.xlu0 %v5587, 126
        %v5602 = vpop.permute.xlu0 %5601
        %5603 = vrot.lane.b32.xlu0 %v5588, 126
        %v5604 = vpop.permute.xlu0 %5603
        %v5605 = vsel %vm4247, %v5590, %v5592
        %v5606 = vsel %vm4247, %v5592, %v5594
        %v5607 = vsel %vm4247, %v5594, %v5596
        %v5608 = vsel %vm4247, %v5598, %v5600
        %v5609 = vsel %vm4247, %v5600, %v5602
        %v5610 = vsel %vm4247, %v5602, %v5604
        %5611 = vrot.lane.b32.xlu0 %v5581, 124
        %v5612 = vpop.permute.xlu0 %5611
        %5613 = vrot.lane.b32.xlu0 %v5582, 124
        %v5614 = vpop.permute.xlu0 %5613
        %5615 = vrot.lane.b32.xlu0 %v5583, 124
        %v5616 = vpop.permute.xlu0 %5615
        %5617 = vrot.lane.b32.xlu0 %v5584, 124
        %v5618 = vpop.permute.xlu0 %5617
        %5619 = vrot.lane.b32.xlu0 %v5585, 124
        %v5620 = vpop.permute.xlu0 %5619
        %5621 = vrot.lane.b32.xlu0 %v5586, 124
        %v5622 = vpop.permute.xlu0 %5621
        %5623 = vrot.lane.b32.xlu0 %v5587, 124
        %v5624 = vpop.permute.xlu0 %5623
        %5625 = vrot.lane.b32.xlu0 %v5588, 124
        %v5626 = vpop.permute.xlu0 %5625
        %v5627 = vsel %vm1601, %v5612, %v5614
        %v5628 = vsel %vm1601, %v5614, %v5616
        %v5629 = vsel %vm1601, %v5616, %v5618
        %v5630 = vsel %vm1601, %v5620, %v5622
        %v5631 = vsel %vm1601, %v5622, %v5624
        %v5632 = vsel %vm1601, %v5624, %v5626
        %v5633 = vld [vmem:[%s4] sm:$0xf]
        %v5634 = vld [vmem:[%s4 + $0x4] sm:$0xf]
        %v5635 = vld [vmem:[%s4294] sm:$0xf]
        %v5636 = vld [vmem:[%s4294 + $0x4] sm:$0xf]
        %v5639 = vunpack.c.l.b16 %v5635
        %v5640 = vunpack.c.l.b16 %v5636
        %v5641 = vpack.c.b16 %v5640, %v5639
        %5642 = vrot.lane.b32.xlu0 %v5581, 36
        %v5643 = vpop.permute.xlu0 %5642
        %5644 = vrot.lane.b32.xlu0 %v5582, 36
        %v5645 = vpop.permute.xlu0 %5644
        %5646 = vrot.lane.b32.xlu0 %v5583, 36
        %v5647 = vpop.permute.xlu0 %5646
        %5648 = vrot.lane.b32.xlu0 %v5584, 36
        %v5649 = vpop.permute.xlu0 %5648
        %5650 = vrot.lane.b32.xlu0 %v5585, 36
        %v5651 = vpop.permute.xlu0 %5650
        %5652 = vrot.lane.b32.xlu0 %v5586, 36
        %v5653 = vpop.permute.xlu0 %5652
        %5654 = vrot.lane.b32.xlu0 %v5587, 36
        %v5655 = vpop.permute.xlu0 %5654
        %5656 = vrot.lane.b32.xlu0 %v5588, 36
        %v5657 = vpop.permute.xlu0 %5656
        %5658 = vrot.lane.b32.xlu0 %v5605, 36
        %v5659 = vpop.permute.xlu0 %5658
        %5660 = vrot.lane.b32.xlu0 %v5606, 36
        %v5661 = vpop.permute.xlu0 %5660
        %5662 = vrot.lane.b32.xlu0 %v5607, 36
        %v5663 = vpop.permute.xlu0 %5662
        %5664 = vrot.lane.b32.xlu0 %v5596, 36
        %v5665 = vpop.permute.xlu0 %5664
        %5666 = vrot.lane.b32.xlu0 %v5608, 36
        %v5667 = vpop.permute.xlu0 %5666
        %5668 = vrot.lane.b32.xlu0 %v5609, 36
        %v5669 = vpop.permute.xlu0 %5668
        %5670 = vrot.lane.b32.xlu0 %v5610, 36
        %v5671 = vpop.permute.xlu0 %5670
        %5672 = vrot.lane.b32.xlu0 %v5604, 36
        %v5673 = vpop.permute.xlu0 %5672
        %5674 = vrot.lane.b32.xlu0 %v5627, 36
        %v5675 = vpop.permute.xlu0 %5674
        %5676 = vrot.lane.b32.xlu0 %v5628, 36
        %v5677 = vpop.permute.xlu0 %5676
        %5678 = vrot.lane.b32.xlu0 %v5629, 36
        %v5679 = vpop.permute.xlu0 %5678
        %5680 = vrot.lane.b32.xlu0 %v5618, 36
        %v5681 = vpop.permute.xlu0 %5680
        %5682 = vrot.lane.b32.xlu0 %v5630, 36
        %v5683 = vpop.permute.xlu0 %5682
        %5684 = vrot.lane.b32.xlu0 %v5631, 36
        %v5685 = vpop.permute.xlu0 %5684
        %5686 = vrot.lane.b32.xlu0 %v5632, 36
        %v5687 = vpop.permute.xlu0 %5686
        %5688 = vrot.lane.b32.xlu0 %v5626, 36
        %v5689 = vpop.permute.xlu0 %5688
        %vm5690 = vcmask 293888
        %v5691 = vsel %vm5690, %v5643, %v5645
        %v5692 = vsel %vm5690, %v5645, %v5647
        %v5693 = vsel %vm5690, %v5647, %v5649
        %v5694 = vsel %vm5690, %v5651, %v5653
        %v5695 = vsel %vm5690, %v5653, %v5655
        %v5696 = vsel %vm5690, %v5655, %v5657
        %v5697 = vsel %vm5690, %v5659, %v5661
        %v5698 = vsel %vm5690, %v5661, %v5663
        %v5699 = vsel %vm5690, %v5663, %v5665
        %v5700 = vsel %vm5690, %v5667, %v5669
        %v5701 = vsel %vm5690, %v5669, %v5671
        %v5702 = vsel %vm5690, %v5671, %v5673
        %v5703 = vsel %vm5690, %v5675, %v5677
        %v5704 = vsel %vm5690, %v5677, %v5679
        %v5705 = vsel %vm5690, %v5679, %v5681
        %v5706 = vsel %vm5690, %v5683, %v5685
        %v5707 = vsel %vm5690, %v5685, %v5687
        %v5708 = vsel %vm5690, %v5687, %v5689
        %v5734 = vsel %vm4393, %v5641, 0
        %5736 = vmatpush.bf16.msra.mxu0 0
        %5737 = vmatpush.bf16.msra.mxu0 0
        %5738 = vmatpush.bf16.msra.mxu0 %v5706
        %5739 = vmatpush.bf16.msra.mxu0 %v5703
        %5740 = vmatpush.bf16.msra.mxu0 %v5700
        %5741 = vmatpush.bf16.msra.mxu0 %v5697
        %5742 = vmatpush.bf16.msra.mxu0 %v5694
        %5743 = vmatpush.bf16.msra.mxu0 %v5691
        %5744 = vmatmul.bf16.gmra.mxu0 %v5734
        %v5745 = vpop.f32.mrf.mxu0
        %v5746 = vadd.f32 0.0, %v5745
        %v5747 = vpop.f32.mrf.mxu0
        %v5748 = vadd.f32 0.0, %v5747
        %5749 = vdwg.mxu0
        %5750 = vmatpush.bf16.msra.mxu0 0
        %5751 = vmatpush.bf16.msra.mxu0 0
        %5752 = vmatpush.bf16.msra.mxu0 %v5707
        %5753 = vmatpush.bf16.msra.mxu0 %v5704
        %5754 = vmatpush.bf16.msra.mxu0 %v5701
        %5755 = vmatpush.bf16.msra.mxu0 %v5698
        %5756 = vmatpush.bf16.msra.mxu0 %v5695
        %5757 = vmatpush.bf16.msra.mxu0 %v5692
        %5758 = vmatmul.bf16.gmra.mxu0 %v5734
        %v5759 = vpop.f32.mrf.mxu0
        %v5760 = vadd.f32 0.0, %v5759
        %v5761 = vpop.f32.mrf.mxu0
        %v5762 = vadd.f32 0.0, %v5761
        %5763 = vdwg.mxu0
        %5764 = vmatpush.bf16.msra.mxu0 0
        %5765 = vmatpush.bf16.msra.mxu0 0
        %5766 = vmatpush.bf16.msra.mxu0 %v5708
        %5767 = vmatpush.bf16.msra.mxu0 %v5705
        %5768 = vmatpush.bf16.msra.mxu0 %v5702
        %5769 = vmatpush.bf16.msra.mxu0 %v5699
        %5770 = vmatpush.bf16.msra.mxu0 %v5696
        %5771 = vmatpush.bf16.msra.mxu0 %v5693
        %5772 = vmatmul.bf16.gmra.mxu0 %v5734
        %v5773 = vpop.f32.mrf.mxu0
        %v5774 = vadd.f32 0.0, %v5773
        %v5775 = vpop.f32.mrf.mxu0
        %v5776 = vadd.f32 0.0, %v5775
        %5777 = vdwg.mxu0
        %5778 = vmatpush.bf16.msra.mxu0 0
        %5779 = vmatpush.bf16.msra.mxu0 0
        %5780 = vmatpush.bf16.msra.mxu0 %v5689
        %5781 = vmatpush.bf16.msra.mxu0 %v5681
        %5782 = vmatpush.bf16.msra.mxu0 %v5673
        %5783 = vmatpush.bf16.msra.mxu0 %v5665
        %5784 = vmatpush.bf16.msra.mxu0 %v5657
        %5785 = vmatpush.bf16.msra.mxu0 %v5649
        %5786 = vmatmul.bf16.gmra.mxu0 %v5734
        %v5787 = vpop.f32.mrf.mxu0
        %v5788 = vadd.f32 0.0, %v5787
        %v5789 = vpop.f32.mrf.mxu0
        %v5790 = vadd.f32 0.0, %v5789
        %5791 = vdwg.mxu0
        %v5794 = vunpack.c.l.b16 %v5633
        %v5795 = vunpack.c.l.b16 %v5634
        %v5796 = vpack.c.b16 %v5795, %v5794
        %5797 = vrot.lane.b32.xlu0 %v5581, 96
        %v5798 = vpop.permute.xlu0 %5797
        %5799 = vrot.lane.b32.xlu0 %v5582, 96
        %v5800 = vpop.permute.xlu0 %5799
        %5801 = vrot.lane.b32.xlu0 %v5583, 96
        %v5802 = vpop.permute.xlu0 %5801
        %5803 = vrot.lane.b32.xlu0 %v5584, 96
        %v5804 = vpop.permute.xlu0 %5803
        %5805 = vrot.lane.b32.xlu0 %v5585, 96
        %v5806 = vpop.permute.xlu0 %5805
        %5807 = vrot.lane.b32.xlu0 %v5586, 96
        %v5808 = vpop.permute.xlu0 %5807
        %5809 = vrot.lane.b32.xlu0 %v5587, 96
        %v5810 = vpop.permute.xlu0 %5809
        %5811 = vrot.lane.b32.xlu0 %v5588, 96
        %v5812 = vpop.permute.xlu0 %5811
        %5813 = vrot.lane.b32.xlu0 %v5605, 96
        %v5814 = vpop.permute.xlu0 %5813
        %5815 = vrot.lane.b32.xlu0 %v5606, 96
        %v5816 = vpop.permute.xlu0 %5815
        %5817 = vrot.lane.b32.xlu0 %v5607, 96
        %v5818 = vpop.permute.xlu0 %5817
        %5819 = vrot.lane.b32.xlu0 %v5596, 96
        %v5820 = vpop.permute.xlu0 %5819
        %5821 = vrot.lane.b32.xlu0 %v5608, 96
        %v5822 = vpop.permute.xlu0 %5821
        %5823 = vrot.lane.b32.xlu0 %v5609, 96
        %v5824 = vpop.permute.xlu0 %5823
        %5825 = vrot.lane.b32.xlu0 %v5610, 96
        %v5826 = vpop.permute.xlu0 %5825
        %5827 = vrot.lane.b32.xlu0 %v5604, 96
        %v5828 = vpop.permute.xlu0 %5827
        %5829 = vrot.lane.b32.xlu0 %v5627, 96
        %v5830 = vpop.permute.xlu0 %5829
        %5831 = vrot.lane.b32.xlu0 %v5628, 96
        %v5832 = vpop.permute.xlu0 %5831
        %5833 = vrot.lane.b32.xlu0 %v5629, 96
        %v5834 = vpop.permute.xlu0 %5833
        %5835 = vrot.lane.b32.xlu0 %v5618, 96
        %v5836 = vpop.permute.xlu0 %5835
        %5837 = vrot.lane.b32.xlu0 %v5630, 96
        %v5838 = vpop.permute.xlu0 %5837
        %5839 = vrot.lane.b32.xlu0 %v5631, 96
        %v5840 = vpop.permute.xlu0 %5839
        %5841 = vrot.lane.b32.xlu0 %v5632, 96
        %v5842 = vpop.permute.xlu0 %5841
        %5843 = vrot.lane.b32.xlu0 %v5626, 96
        %v5844 = vpop.permute.xlu0 %5843
        %v5845 = vsel %vm3491, %v5798, %v5800
        %v5846 = vsel %vm3491, %v5800, %v5802
        %v5847 = vsel %vm3491, %v5802, %v5804
        %v5848 = vsel %vm3491, %v5806, %v5808
        %v5849 = vsel %vm3491, %v5808, %v5810
        %v5850 = vsel %vm3491, %v5810, %v5812
        %v5851 = vsel %vm3491, %v5814, %v5816
        %v5852 = vsel %vm3491, %v5816, %v5818
        %v5853 = vsel %vm3491, %v5818, %v5820
        %v5854 = vsel %vm3491, %v5822, %v5824
        %v5855 = vsel %vm3491, %v5824, %v5826
        %v5856 = vsel %vm3491, %v5826, %v5828
        %v5857 = vsel %vm3491, %v5830, %v5832
        %v5858 = vsel %vm3491, %v5832, %v5834
        %v5859 = vsel %vm3491, %v5834, %v5836
        %v5860 = vsel %vm3491, %v5838, %v5840
        %v5861 = vsel %vm3491, %v5840, %v5842
        %v5862 = vsel %vm3491, %v5842, %v5844
        %v5888 = vsel %vm4393, %v5796, 0
        %5890 = vmatpush.bf16.msra.mxu0 0
        %5891 = vmatpush.bf16.msra.mxu0 0
        %5892 = vmatpush.bf16.msra.mxu0 %v5860
        %5893 = vmatpush.bf16.msra.mxu0 %v5857
        %5894 = vmatpush.bf16.msra.mxu0 %v5854
        %5895 = vmatpush.bf16.msra.mxu0 %v5851
        %5896 = vmatpush.bf16.msra.mxu0 %v5848
        %5897 = vmatpush.bf16.msra.mxu0 %v5845
        %5898 = vmatmul.bf16.gmra.mxu0 %v5888
        %v5899 = vpop.f32.mrf.mxu0
        %v5900 = vadd.f32 %v5746, %v5899
        %v5901 = vpop.f32.mrf.mxu0
        %v5902 = vadd.f32 %v5748, %v5901
        %5903 = vdwg.mxu0
        %5904 = vmatpush.bf16.msra.mxu0 0
        %5905 = vmatpush.bf16.msra.mxu0 0
        %5906 = vmatpush.bf16.msra.mxu0 %v5861
        %5907 = vmatpush.bf16.msra.mxu0 %v5858
        %5908 = vmatpush.bf16.msra.mxu0 %v5855
        %5909 = vmatpush.bf16.msra.mxu0 %v5852
        %5910 = vmatpush.bf16.msra.mxu0 %v5849
        %5911 = vmatpush.bf16.msra.mxu0 %v5846
        %5912 = vmatmul.bf16.gmra.mxu0 %v5888
        %v5913 = vpop.f32.mrf.mxu0
        %v5914 = vadd.f32 %v5760, %v5913
        %v5915 = vpop.f32.mrf.mxu0
        %v5916 = vadd.f32 %v5762, %v5915
        %5917 = vdwg.mxu0
        %5918 = vmatpush.bf16.msra.mxu0 0
        %5919 = vmatpush.bf16.msra.mxu0 0
        %5920 = vmatpush.bf16.msra.mxu0 %v5862
        %5921 = vmatpush.bf16.msra.mxu0 %v5859
        %5922 = vmatpush.bf16.msra.mxu0 %v5856
        %5923 = vmatpush.bf16.msra.mxu0 %v5853
        %5924 = vmatpush.bf16.msra.mxu0 %v5850
        %5925 = vmatpush.bf16.msra.mxu0 %v5847
        %5926 = vmatmul.bf16.gmra.mxu0 %v5888
        %v5927 = vpop.f32.mrf.mxu0
        %v5928 = vadd.f32 %v5774, %v5927
        %v5929 = vpop.f32.mrf.mxu0
        %v5930 = vadd.f32 %v5776, %v5929
        %5931 = vdwg.mxu0
        %5932 = vmatpush.bf16.msra.mxu0 0
        %5933 = vmatpush.bf16.msra.mxu0 0
        %5934 = vmatpush.bf16.msra.mxu0 %v5844
        %5935 = vmatpush.bf16.msra.mxu0 %v5836
        %5936 = vmatpush.bf16.msra.mxu0 %v5828
        %5937 = vmatpush.bf16.msra.mxu0 %v5820
        %5938 = vmatpush.bf16.msra.mxu0 %v5812
        %5939 = vmatpush.bf16.msra.mxu0 %v5804
        %5940 = vmatmul.bf16.gmra.mxu0 %v5888
        %v5941 = vpop.f32.mrf.mxu0
        %v5942 = vadd.f32 %v5788, %v5941
        %v5943 = vpop.f32.mrf.mxu0
        %v5944 = vadd.f32 %v5790, %v5943
        %5945 = vdwg.mxu0
        %v5946 = vld [vmem:[#allocation3 + $0x1c] sm:$0xff]
        %v5947 = vld [vmem:[#allocation3 + $0x24] sm:$0xff]
        %v5948 = vld [vmem:[#allocation3 + $0x48] sm:$0xff]
        %v5949 = vld [vmem:[#allocation3 + $0x50] sm:$0xff]
        %v5950 = vld [vmem:[#allocation3 + $0x74] sm:$0xff]
        %v5951 = vld [vmem:[#allocation3 + $0x7c] sm:$0xff]
        %v5952 = vld [vmem:[#allocation3 + $0xa0] sm:$0xff]
        %v5953 = vld [vmem:[#allocation3 + $0xa8] sm:$0xff]
        %v5962 = vunpack.c.l.b16 %v5946
        %v5963 = vunpack.c.h.b16 %v5946
        %v5964 = vunpack.c.l.b16 %v5947
        %v5965 = vunpack.c.h.b16 %v5947
        %v5966 = vunpack.c.l.b16 %v5948
        %v5967 = vunpack.c.h.b16 %v5948
        %v5968 = vunpack.c.l.b16 %v5949
        %v5969 = vunpack.c.h.b16 %v5949
        %v5970 = vunpack.c.l.b16 %v5950
        %v5971 = vunpack.c.h.b16 %v5950
        %v5972 = vunpack.c.l.b16 %v5951
        %v5973 = vunpack.c.h.b16 %v5951
        %v5974 = vunpack.c.l.b16 %v5952
        %v5975 = vunpack.c.h.b16 %v5952
        %v5976 = vunpack.c.l.b16 %v5953
        %v5977 = vunpack.c.h.b16 %v5953
        %v5978 = vpack.c.b16 %v5966, %v5962
        %v5979 = vpack.c.b16 %v5967, %v5963
        %v5980 = vpack.c.b16 %v5968, %v5964
        %v5981 = vpack.c.b16 %v5969, %v5965
        %v5982 = vpack.c.b16 %v5974, %v5970
        %v5983 = vpack.c.b16 %v5975, %v5971
        %v5984 = vpack.c.b16 %v5976, %v5972
        %v5985 = vpack.c.b16 %v5977, %v5973
        %5986 = vrot.lane.b32.xlu0 %v5978, 126
        %v5987 = vpop.permute.xlu0 %5986
        %5988 = vrot.lane.b32.xlu0 %v5979, 126
        %v5989 = vpop.permute.xlu0 %5988
        %5990 = vrot.lane.b32.xlu0 %v5980, 126
        %v5991 = vpop.permute.xlu0 %5990
        %5992 = vrot.lane.b32.xlu0 %v5981, 126
        %v5993 = vpop.permute.xlu0 %5992
        %5994 = vrot.lane.b32.xlu0 %v5982, 126
        %v5995 = vpop.permute.xlu0 %5994
        %5996 = vrot.lane.b32.xlu0 %v5983, 126
        %v5997 = vpop.permute.xlu0 %5996
        %5998 = vrot.lane.b32.xlu0 %v5984, 126
        %v5999 = vpop.permute.xlu0 %5998
        %6000 = vrot.lane.b32.xlu0 %v5985, 126
        %v6001 = vpop.permute.xlu0 %6000
        %v6002 = vsel %vm4247, %v5987, %v5989
        %v6003 = vsel %vm4247, %v5989, %v5991
        %v6004 = vsel %vm4247, %v5991, %v5993
        %v6005 = vsel %vm4247, %v5995, %v5997
        %v6006 = vsel %vm4247, %v5997, %v5999
        %v6007 = vsel %vm4247, %v5999, %v6001
        %6008 = vrot.lane.b32.xlu0 %v5978, 124
        %v6009 = vpop.permute.xlu0 %6008
        %6010 = vrot.lane.b32.xlu0 %v5979, 124
        %v6011 = vpop.permute.xlu0 %6010
        %6012 = vrot.lane.b32.xlu0 %v5980, 124
        %v6013 = vpop.permute.xlu0 %6012
        %6014 = vrot.lane.b32.xlu0 %v5981, 124
        %v6015 = vpop.permute.xlu0 %6014
        %6016 = vrot.lane.b32.xlu0 %v5982, 124
        %v6017 = vpop.permute.xlu0 %6016
        %6018 = vrot.lane.b32.xlu0 %v5983, 124
        %v6019 = vpop.permute.xlu0 %6018
        %6020 = vrot.lane.b32.xlu0 %v5984, 124
        %v6021 = vpop.permute.xlu0 %6020
        %6022 = vrot.lane.b32.xlu0 %v5985, 124
        %v6023 = vpop.permute.xlu0 %6022
        %v6024 = vsel %vm1601, %v6009, %v6011
        %v6025 = vsel %vm1601, %v6011, %v6013
        %v6026 = vsel %vm1601, %v6013, %v6015
        %v6027 = vsel %vm1601, %v6017, %v6019
        %v6028 = vsel %vm1601, %v6019, %v6021
        %v6029 = vsel %vm1601, %v6021, %v6023
        %v6030 = vld [vmem:[%s4627] sm:$0xf]
        %v6031 = vld [vmem:[%s4627 + $0x4] sm:$0xf]
        %v6034 = vunpack.c.l.b16 %v6030
        %v6035 = vunpack.c.l.b16 %v6031
        %v6036 = vpack.c.b16 %v6035, %v6034
        %6037 = vrot.lane.b32.xlu0 %v5978, 104
        %v6038 = vpop.permute.xlu0 %6037
        %6039 = vrot.lane.b32.xlu0 %v5979, 104
        %v6040 = vpop.permute.xlu0 %6039
        %6041 = vrot.lane.b32.xlu0 %v5980, 104
        %v6042 = vpop.permute.xlu0 %6041
        %6043 = vrot.lane.b32.xlu0 %v5981, 104
        %v6044 = vpop.permute.xlu0 %6043
        %6045 = vrot.lane.b32.xlu0 %v5982, 104
        %v6046 = vpop.permute.xlu0 %6045
        %6047 = vrot.lane.b32.xlu0 %v5983, 104
        %v6048 = vpop.permute.xlu0 %6047
        %6049 = vrot.lane.b32.xlu0 %v5984, 104
        %v6050 = vpop.permute.xlu0 %6049
        %6051 = vrot.lane.b32.xlu0 %v5985, 104
        %v6052 = vpop.permute.xlu0 %6051
        %6053 = vrot.lane.b32.xlu0 %v6002, 104
        %v6054 = vpop.permute.xlu0 %6053
        %6055 = vrot.lane.b32.xlu0 %v6003, 104
        %v6056 = vpop.permute.xlu0 %6055
        %6057 = vrot.lane.b32.xlu0 %v6004, 104
        %v6058 = vpop.permute.xlu0 %6057
        %6059 = vrot.lane.b32.xlu0 %v5993, 104
        %v6060 = vpop.permute.xlu0 %6059
        %6061 = vrot.lane.b32.xlu0 %v6005, 104
        %v6062 = vpop.permute.xlu0 %6061
        %6063 = vrot.lane.b32.xlu0 %v6006, 104
        %v6064 = vpop.permute.xlu0 %6063
        %6065 = vrot.lane.b32.xlu0 %v6007, 104
        %v6066 = vpop.permute.xlu0 %6065
        %6067 = vrot.lane.b32.xlu0 %v6001, 104
        %v6068 = vpop.permute.xlu0 %6067
        %6069 = vrot.lane.b32.xlu0 %v6024, 104
        %v6070 = vpop.permute.xlu0 %6069
        %6071 = vrot.lane.b32.xlu0 %v6025, 104
        %v6072 = vpop.permute.xlu0 %6071
        %6073 = vrot.lane.b32.xlu0 %v6026, 104
        %v6074 = vpop.permute.xlu0 %6073
        %6075 = vrot.lane.b32.xlu0 %v6015, 104
        %v6076 = vpop.permute.xlu0 %6075
        %6077 = vrot.lane.b32.xlu0 %v6027, 104
        %v6078 = vpop.permute.xlu0 %6077
        %6079 = vrot.lane.b32.xlu0 %v6028, 104
        %v6080 = vpop.permute.xlu0 %6079
        %6081 = vrot.lane.b32.xlu0 %v6029, 104
        %v6082 = vpop.permute.xlu0 %6081
        %6083 = vrot.lane.b32.xlu0 %v6023, 104
        %v6084 = vpop.permute.xlu0 %6083
        %v6085 = vsel %vm2951, %v6038, %v6040
        %v6086 = vsel %vm2951, %v6040, %v6042
        %v6087 = vsel %vm2951, %v6042, %v6044
        %v6088 = vsel %vm2951, %v6046, %v6048
        %v6089 = vsel %vm2951, %v6048, %v6050
        %v6090 = vsel %vm2951, %v6050, %v6052
        %v6091 = vsel %vm2951, %v6054, %v6056
        %v6092 = vsel %vm2951, %v6056, %v6058
        %v6093 = vsel %vm2951, %v6058, %v6060
        %v6094 = vsel %vm2951, %v6062, %v6064
        %v6095 = vsel %vm2951, %v6064, %v6066
        %v6096 = vsel %vm2951, %v6066, %v6068
        %v6097 = vsel %vm2951, %v6070, %v6072
        %v6098 = vsel %vm2951, %v6072, %v6074
        %v6099 = vsel %vm2951, %v6074, %v6076
        %v6100 = vsel %vm2951, %v6078, %v6080
        %v6101 = vsel %vm2951, %v6080, %v6082
        %v6102 = vsel %vm2951, %v6082, %v6084
        %v6128 = vsel %vm4393, %v6036, 0
        %6130 = vmatpush.bf16.msra.mxu0 0
        %6131 = vmatpush.bf16.msra.mxu0 0
        %6132 = vmatpush.bf16.msra.mxu0 %v6100
        %6133 = vmatpush.bf16.msra.mxu0 %v6097
        %6134 = vmatpush.bf16.msra.mxu0 %v6094
        %6135 = vmatpush.bf16.msra.mxu0 %v6091
        %6136 = vmatpush.bf16.msra.mxu0 %v6088
        %6137 = vmatpush.bf16.msra.mxu0 %v6085
        %6138 = vmatmul.bf16.gmra.mxu0 %v6128
        %v6139 = vpop.f32.mrf.mxu0
        %v6140 = vadd.f32 0.0, %v6139
        %v6141 = vpop.f32.mrf.mxu0
        %v6142 = vadd.f32 0.0, %v6141
        %6143 = vdwg.mxu0
        %6144 = vmatpush.bf16.msra.mxu0 0
        %6145 = vmatpush.bf16.msra.mxu0 0
        %6146 = vmatpush.bf16.msra.mxu0 %v6101
        %6147 = vmatpush.bf16.msra.mxu0 %v6098
        %6148 = vmatpush.bf16.msra.mxu0 %v6095
        %6149 = vmatpush.bf16.msra.mxu0 %v6092
        %6150 = vmatpush.bf16.msra.mxu0 %v6089
        %6151 = vmatpush.bf16.msra.mxu0 %v6086
        %6152 = vmatmul.bf16.gmra.mxu0 %v6128
        %v6153 = vpop.f32.mrf.mxu0
        %v6154 = vadd.f32 0.0, %v6153
        %v6155 = vpop.f32.mrf.mxu0
        %v6156 = vadd.f32 0.0, %v6155
        %6157 = vdwg.mxu0
        %6158 = vmatpush.bf16.msra.mxu0 0
        %6159 = vmatpush.bf16.msra.mxu0 0
        %6160 = vmatpush.bf16.msra.mxu0 %v6102
        %6161 = vmatpush.bf16.msra.mxu0 %v6099
        %6162 = vmatpush.bf16.msra.mxu0 %v6096
        %6163 = vmatpush.bf16.msra.mxu0 %v6093
        %6164 = vmatpush.bf16.msra.mxu0 %v6090
        %6165 = vmatpush.bf16.msra.mxu0 %v6087
        %6166 = vmatmul.bf16.gmra.mxu0 %v6128
        %v6167 = vpop.f32.mrf.mxu0
        %v6168 = vadd.f32 0.0, %v6167
        %v6169 = vpop.f32.mrf.mxu0
        %v6170 = vadd.f32 0.0, %v6169
        %6171 = vdwg.mxu0
        %6172 = vmatpush.bf16.msra.mxu0 0
        %6173 = vmatpush.bf16.msra.mxu0 0
        %6174 = vmatpush.bf16.msra.mxu0 %v6084
        %6175 = vmatpush.bf16.msra.mxu0 %v6076
        %6176 = vmatpush.bf16.msra.mxu0 %v6068
        %6177 = vmatpush.bf16.msra.mxu0 %v6060
        %6178 = vmatpush.bf16.msra.mxu0 %v6052
        %6179 = vmatpush.bf16.msra.mxu0 %v6044
        %6180 = vmatmul.bf16.gmra.mxu0 %v6128
        %v6181 = vpop.f32.mrf.mxu0
        %v6182 = vadd.f32 0.0, %v6181
        %v6183 = vpop.f32.mrf.mxu0
        %v6184 = vadd.f32 0.0, %v6183
        %6185 = vdwg.mxu0
        %v6186 = vadd.f32 %v5900, %v6140
        %v6187 = vadd.f32 %v5914, %v6154
        %v6188 = vadd.f32 %v5928, %v6168
        %v6189 = vadd.f32 %v5942, %v6182
        %v6190 = vadd.f32 %v5902, %v6142
        %v6191 = vadd.f32 %v5916, %v6156
        %v6192 = vadd.f32 %v5930, %v6170
        %v6193 = vadd.f32 %v5944, %v6184
        %v6194 = vadd.f32 %v6186, %v4814
        %v6195 = vadd.f32 %v6187, %v4814
        %v6196 = vadd.f32 %v6188, %v4814
        %v6197 = vadd.f32 %v6189, %v4814
        %v6198 = vadd.f32 %v6190, %v4819
        %v6199 = vadd.f32 %v6191, %v4819
        %v6200 = vadd.f32 %v6192, %v4819
        %v6201 = vadd.f32 %v6193, %v4819
        %v6202 = vmax.f32 %v6194, 0.0
        %v6203 = vmax.f32 %v6195, 0.0
        %v6204 = vmax.f32 %v6196, 0.0
        %v6205 = vmax.f32 %v6197, 0.0
        %v6206 = vmax.f32 %v6198, 0.0
        %v6207 = vmax.f32 %v6199, 0.0
        %v6208 = vmax.f32 %v6200, 0.0
        %v6209 = vmax.f32 %v6201, 0.0
        %v6210 = vpack.c.bf16 %v6203, %v6202
        %v6211 = vpack.c.bf16 %v6205, %v6204
        %v6212 = vpack.c.bf16 %v6207, %v6206
        %v6213 = vpack.c.bf16 %v6209, %v6208
        %6218 = vrot.lane.b32.xlu0 %v6210, 32
        %v6219 = vpop.permute.xlu0 %6218
        %6220 = vrot.lane.b32.xlu0 %v6211, 32
        %v6221 = vpop.permute.xlu0 %6220
        %6222 = vrot.lane.b32.xlu0 %v6212, 32
        %v6223 = vpop.permute.xlu0 %6222
        %6224 = vrot.lane.b32.xlu0 %v6213, 32
        %v6225 = vpop.permute.xlu0 %6224
        %v6226 = vrot.slane %v6219, 4
        %v6227 = vrot.slane %v6221, 4
        %v6228 = vrot.slane %v6223, 4
        %v6229 = vrot.slane %v6225, 4
        %vm6230 = vcmask 261120
        %v6231 = vsel %vm6230, %v6226, %v6219
        %v6232 = vsel %vm5530, %v6226, %v6227
        %v6233 = vsel %vm6230, %v6232, %v6221
        %v6234 = vsel %vm6230, %v6228, %v6223
        %v6235 = vsel %vm5530, %v6228, %v6229
        %v6236 = vsel %vm6230, %v6235, %v6225
        %vm6241 = vcmask 1043712
        %vm6242 = vmor %vm5541, %vm6241
        %6243 = vst.msk [vmem:[#allocation4 + $0x18] sm:$0xff] %vm6242, %v6231
        %vm6244 = vcmask 351236
        %vm6245 = vmor %vm6244, %vm1271
        %6246 = vst.msk [vmem:[#allocation4 + $0x20] sm:$0xff] %vm6245, %v6233
        %6247 = vst.msk [vmem:[#allocation4 + $0x40] sm:$0xff] %vm6242, %v6234
        %6248 = vst.msk [vmem:[#allocation4 + $0x48] sm:$0xff] %vm6245, %v6236
        %v6249 = vld [vmem:[#allocation4] sm:$0xf]
        %v6250 = vld [vmem:[#allocation4 + $0x28] sm:$0xf]
        %v6251 = vunpack.c.l.bf16 %v6249
        %v6252 = vunpack.c.l.bf16 %v6250
        %6255 = vrot.lane.b32.xlu0 %v6251, 68
        %v6256 = vpop.permute.xlu0 %6255
        %6257 = vrot.lane.b32.xlu0 %v6252, 68
        %v6258 = vpop.permute.xlu0 %6257
        %v6261 = vmax.f32 %v6251, %v6256
        %v6262 = vmax.f32 %v6252, %v6258
        %v6263 = vpack.c.bf16 %v6261, %v6261
        %v6264 = vpack.c.bf16 %v6262, %v6262
        %v6265 = vunpack.c.l.bf16 %v6263
        %v6266 = vunpack.c.l.bf16 %v6264
        %6269 = vrot.lane.b32.xlu0 %v6265, 126
        %v6270 = vpop.permute.xlu0 %6269
        %6271 = vrot.lane.b32.xlu0 %v6266, 126
        %v6272 = vpop.permute.xlu0 %6271
        %v6275 = vmax.f32 %v6265, %v6270
        %v6276 = vmax.f32 %v6266, %v6272
        %v6277 = vpack.c.bf16 %v6275, %v6275
        %v6278 = vpack.c.bf16 %v6276, %v6276
        %vm6279 = vcmask 453632
        %6280 = vst.msk [vmem:[#allocation5] sm:$0xf] %vm6279, %v6277
        %6281 = vst.msk [vmem:[#allocation5 + $0x14] sm:$0xf] %vm6279, %v6278
        %v6282 = vld [vmem:[#allocation4] sm:$0xff]
        %v6283 = vld [vmem:[#allocation4 + $0x28] sm:$0xff]
        %v6284 = vld [vmem:[#allocation4 + $0x4] sm:$0xf]
        %v6285 = vld [vmem:[#allocation4 + $0x2c] sm:$0xf]
        %v6286 = vunpack.c.l.bf16 %v6282
        %v6287 = vunpack.c.h.bf16 %v6282
        %v6288 = vunpack.c.l.bf16 %v6283
        %v6289 = vunpack.c.h.bf16 %v6283
        %v6290 = vunpack.c.l.bf16 %v6284
        %v6291 = vunpack.c.l.bf16 %v6285
        %6294 = vrot.lane.b32.xlu0 %v6290, 68
        %v6295 = vpop.permute.xlu0 %6294
        %6296 = vrot.lane.b32.xlu0 %v6291, 68
        %v6297 = vpop.permute.xlu0 %6296
        %v6300 = vmax.f32 %v6286, %v6295
        %v6301 = vmax.f32 %v6287, %v6295
        %v6302 = vmax.f32 %v6288, %v6297
        %v6303 = vmax.f32 %v6289, %v6297
        %v6304 = vpack.c.bf16 %v6301, %v6300
        %v6305 = vpack.c.bf16 %v6303, %v6302
        %v6306 = vunpack.c.l.bf16 %v6304
        %v6307 = vunpack.c.h.bf16 %v6304
        %v6308 = vunpack.c.l.bf16 %v6305
        %v6309 = vunpack.c.h.bf16 %v6305
        %6314 = vrot.lane.b32.xlu0 %v6306, 126
        %v6315 = vpop.permute.xlu0 %6314
        %6316 = vrot.lane.b32.xlu0 %v6307, 126
        %v6317 = vpop.permute.xlu0 %6316
        %6318 = vrot.lane.b32.xlu0 %v6308, 126
        %v6319 = vpop.permute.xlu0 %6318
        %6320 = vrot.lane.b32.xlu0 %v6309, 126
        %v6321 = vpop.permute.xlu0 %6320
        %vm6322 = vcmask 1031168
        %v6323 = vsel %vm6322, %v6315, %v6317
        %v6324 = vsel %vm6322, %v6319, %v6321
        %v6329 = vmax.f32 %v6306, %v6323
        %v6330 = vmax.f32 %v6307, %v6317
        %v6331 = vmax.f32 %v6308, %v6324
        %v6332 = vmax.f32 %v6309, %v6321
        %v6333 = vpack.c.bf16 %v6330, %v6329
        %v6334 = vpack.c.bf16 %v6332, %v6331
        %6337 = vrot.lane.b32.xlu0 %v6333, 64
        %v6338 = vpop.permute.xlu0 %6337
        %6339 = vrot.lane.b32.xlu0 %v6334, 64
        %v6340 = vpop.permute.xlu0 %6339
        %v6341 = vrot.slane %v6338, 4
        %v6342 = vrot.slane %v6340, 4
        %vm6343 = vcmask 523264
        %v6344 = vsel %vm6343, %v6338, %v6341
        %v6345 = vsel %vm6343, %v6340, %v6342
        %vm6348 = vcmask 912832
        %6349 = vst.msk [vmem:[#allocation5] sm:$0xf] %vm6348, %v6344
        %6350 = vst.msk [vmem:[#allocation5 + $0x14] sm:$0xf] %vm6348, %v6345
        %v6351 = vld [vmem:[#allocation4 + $0x4] sm:$0xff]
        %v6352 = vld [vmem:[#allocation4 + $0x2c] sm:$0xff]
        %v6353 = vld [vmem:[#allocation4 + $0x8] sm:$0xf]
        %v6354 = vld [vmem:[#allocation4 + $0x30] sm:$0xf]
        %v6355 = vunpack.c.l.bf16 %v6351
        %v6356 = vunpack.c.h.bf16 %v6351
        %v6357 = vunpack.c.l.bf16 %v6352
        %v6358 = vunpack.c.h.bf16 %v6352
        %v6359 = vunpack.c.l.bf16 %v6353
        %v6360 = vunpack.c.l.bf16 %v6354
        %6363 = vrot.lane.b32.xlu0 %v6359, 68
        %v6364 = vpop.permute.xlu0 %6363
        %6365 = vrot.lane.b32.xlu0 %v6360, 68
        %v6366 = vpop.permute.xlu0 %6365
        %v6369 = vmax.f32 %v6355, %v6364
        %v6370 = vmax.f32 %v6356, %v6364
        %v6371 = vmax.f32 %v6357, %v6366
        %v6372 = vmax.f32 %v6358, %v6366
        %v6373 = vpack.c.bf16 %v6370, %v6369
        %v6374 = vpack.c.bf16 %v6372, %v6371
        %v6375 = vunpack.c.l.bf16 %v6373
        %v6376 = vunpack.c.h.bf16 %v6373
        %v6377 = vunpack.c.l.bf16 %v6374
        %v6378 = vunpack.c.h.bf16 %v6374
        %6383 = vrot.lane.b32.xlu0 %v6375, 126
        %v6384 = vpop.permute.xlu0 %6383
        %6385 = vrot.lane.b32.xlu0 %v6376, 126
        %v6386 = vpop.permute.xlu0 %6385
        %6387 = vrot.lane.b32.xlu0 %v6377, 126
        %v6388 = vpop.permute.xlu0 %6387
        %6389 = vrot.lane.b32.xlu0 %v6378, 126
        %v6390 = vpop.permute.xlu0 %6389
        %v6391 = vsel %vm6322, %v6384, %v6386
        %v6392 = vsel %vm6322, %v6388, %v6390
        %v6397 = vmax.f32 %v6375, %v6391
        %v6398 = vmax.f32 %v6376, %v6386
        %v6399 = vmax.f32 %v6377, %v6392
        %v6400 = vmax.f32 %v6378, %v6390
        %v6401 = vpack.c.bf16 %v6398, %v6397
        %v6402 = vpack.c.bf16 %v6400, %v6399
        %vm6403 = vmor %vm4175, %vm1880
        %6404 = vst.msk [vmem:[#allocation5] sm:$0xff] %vm6403, %v6401
        %6405 = vst.msk [vmem:[#allocation5 + $0x14] sm:$0xff] %vm6403, %v6402
        %v6406 = vld [vmem:[#allocation4 + $0x8] sm:$0xff]
        %v6407 = vld [vmem:[#allocation4 + $0x30] sm:$0xff]
        %v6408 = vld [vmem:[#allocation4 + $0xc] sm:$0xf]
        %v6409 = vld [vmem:[#allocation4 + $0x34] sm:$0xf]
        %v6410 = vunpack.c.l.bf16 %v6406
        %v6411 = vunpack.c.h.bf16 %v6406
        %v6412 = vunpack.c.l.bf16 %v6407
        %v6413 = vunpack.c.h.bf16 %v6407
        %v6414 = vunpack.c.l.bf16 %v6408
        %v6415 = vunpack.c.l.bf16 %v6409
        %6418 = vrot.lane.b32.xlu0 %v6414, 68
        %v6419 = vpop.permute.xlu0 %6418
        %6420 = vrot.lane.b32.xlu0 %v6415, 68
        %v6421 = vpop.permute.xlu0 %6420
        %v6424 = vmax.f32 %v6410, %v6419
        %v6425 = vmax.f32 %v6411, %v6419
        %v6426 = vmax.f32 %v6412, %v6421
        %v6427 = vmax.f32 %v6413, %v6421
        %v6428 = vpack.c.bf16 %v6425, %v6424
        %v6429 = vpack.c.bf16 %v6427, %v6426
        %v6430 = vunpack.c.l.bf16 %v6428
        %v6431 = vunpack.c.h.bf16 %v6428
        %v6432 = vunpack.c.l.bf16 %v6429
        %v6433 = vunpack.c.h.bf16 %v6429
        %6438 = vrot.lane.b32.xlu0 %v6430, 126
        %v6439 = vpop.permute.xlu0 %6438
        %6440 = vrot.lane.b32.xlu0 %v6431, 126
        %v6441 = vpop.permute.xlu0 %6440
        %6442 = vrot.lane.b32.xlu0 %v6432, 126
        %v6443 = vpop.permute.xlu0 %6442
        %6444 = vrot.lane.b32.xlu0 %v6433, 126
        %v6445 = vpop.permute.xlu0 %6444
        %v6446 = vsel %vm6322, %v6439, %v6441
        %v6447 = vsel %vm6322, %v6443, %v6445
        %v6452 = vmax.f32 %v6430, %v6446
        %v6453 = vmax.f32 %v6431, %v6441
        %v6454 = vmax.f32 %v6432, %v6447
        %v6455 = vmax.f32 %v6433, %v6445
        %v6456 = vpack.c.bf16 %v6453, %v6452
        %v6457 = vpack.c.bf16 %v6455, %v6454
        %6460 = vrot.lane.b32.xlu0 %v6456, 64
        %v6461 = vpop.permute.xlu0 %6460
        %6462 = vrot.lane.b32.xlu0 %v6457, 64
        %v6463 = vpop.permute.xlu0 %6462
        %v6464 = vrot.slane %v6461, 4
        %v6465 = vrot.slane %v6463, 4
        %v6466 = vsel %vm6343, %v6461, %v6464
        %v6467 = vsel %vm6343, %v6463, %v6465
        %vm6470 = vcmask 781632
        %6471 = vst.msk [vmem:[#allocation5 + $0x4] sm:$0xf] %vm6470, %v6466
        %6472 = vst.msk [vmem:[#allocation5 + $0x18] sm:$0xf] %vm6470, %v6467
        %v6473 = vld [vmem:[#allocation4 + $0xc] sm:$0xff]
        %v6474 = vld [vmem:[#allocation4 + $0x34] sm:$0xff]
        %v6475 = vld [vmem:[#allocation4 + $0x10] sm:$0xf]
        %v6476 = vld [vmem:[#allocation4 + $0x38] sm:$0xf]
        %v6477 = vunpack.c.l.bf16 %v6473
        %v6478 = vunpack.c.h.bf16 %v6473
        %v6479 = vunpack.c.l.bf16 %v6474
        %v6480 = vunpack.c.h.bf16 %v6474
        %v6481 = vunpack.c.l.bf16 %v6475
        %v6482 = vunpack.c.l.bf16 %v6476
        %6485 = vrot.lane.b32.xlu0 %v6481, 68
        %v6486 = vpop.permute.xlu0 %6485
        %6487 = vrot.lane.b32.xlu0 %v6482, 68
        %v6488 = vpop.permute.xlu0 %6487
        %v6491 = vmax.f32 %v6477, %v6486
        %v6492 = vmax.f32 %v6478, %v6486
        %v6493 = vmax.f32 %v6479, %v6488
        %v6494 = vmax.f32 %v6480, %v6488
        %v6495 = vpack.c.bf16 %v6492, %v6491
        %v6496 = vpack.c.bf16 %v6494, %v6493
        %v6497 = vunpack.c.l.bf16 %v6495
        %v6498 = vunpack.c.h.bf16 %v6495
        %v6499 = vunpack.c.l.bf16 %v6496
        %v6500 = vunpack.c.h.bf16 %v6496
        %6505 = vrot.lane.b32.xlu0 %v6497, 126
        %v6506 = vpop.permute.xlu0 %6505
        %6507 = vrot.lane.b32.xlu0 %v6498, 126
        %v6508 = vpop.permute.xlu0 %6507
        %6509 = vrot.lane.b32.xlu0 %v6499, 126
        %v6510 = vpop.permute.xlu0 %6509
        %6511 = vrot.lane.b32.xlu0 %v6500, 126
        %v6512 = vpop.permute.xlu0 %6511
        %v6513 = vsel %vm6322, %v6506, %v6508
        %v6514 = vsel %vm6322, %v6510, %v6512
        %v6519 = vmax.f32 %v6497, %v6513
        %v6520 = vmax.f32 %v6498, %v6508
        %v6521 = vmax.f32 %v6499, %v6514
        %v6522 = vmax.f32 %v6500, %v6512
        %v6523 = vpack.c.bf16 %v6520, %v6519
        %v6524 = vpack.c.bf16 %v6522, %v6521
        %vm6525 = vcmask 195588
        %vm6526 = vmor %vm6525, %vm2420
        %6527 = vst.msk [vmem:[#allocation5 + $0x4] sm:$0xff] %vm6526, %v6523
        %6528 = vst.msk [vmem:[#allocation5 + $0x18] sm:$0xff] %vm6526, %v6524
        %v6529 = vld [vmem:[#allocation4 + $0x10] sm:$0xff]
        %v6530 = vld [vmem:[#allocation4 + $0x38] sm:$0xff]
        %v6531 = vld [vmem:[#allocation4 + $0x14] sm:$0xf]
        %v6532 = vld [vmem:[#allocation4 + $0x3c] sm:$0xf]
        %v6533 = vunpack.c.l.bf16 %v6529
        %v6534 = vunpack.c.h.bf16 %v6529
        %v6535 = vunpack.c.l.bf16 %v6530
        %v6536 = vunpack.c.h.bf16 %v6530
        %v6537 = vunpack.c.l.bf16 %v6531
        %v6538 = vunpack.c.l.bf16 %v6532
        %6541 = vrot.lane.b32.xlu0 %v6537, 68
        %v6542 = vpop.permute.xlu0 %6541
        %6543 = vrot.lane.b32.xlu0 %v6538, 68
        %v6544 = vpop.permute.xlu0 %6543
        %v6547 = vmax.f32 %v6533, %v6542
        %v6548 = vmax.f32 %v6534, %v6542
        %v6549 = vmax.f32 %v6535, %v6544
        %v6550 = vmax.f32 %v6536, %v6544
        %v6551 = vpack.c.bf16 %v6548, %v6547
        %v6552 = vpack.c.bf16 %v6550, %v6549
        %v6553 = vunpack.c.l.bf16 %v6551
        %v6554 = vunpack.c.h.bf16 %v6551
        %v6555 = vunpack.c.l.bf16 %v6552
        %v6556 = vunpack.c.h.bf16 %v6552
        %6561 = vrot.lane.b32.xlu0 %v6553, 126
        %v6562 = vpop.permute.xlu0 %6561
        %6563 = vrot.lane.b32.xlu0 %v6554, 126
        %v6564 = vpop.permute.xlu0 %6563
        %6565 = vrot.lane.b32.xlu0 %v6555, 126
        %v6566 = vpop.permute.xlu0 %6565
        %6567 = vrot.lane.b32.xlu0 %v6556, 126
        %v6568 = vpop.permute.xlu0 %6567
        %v6569 = vsel %vm6322, %v6562, %v6564
        %v6570 = vsel %vm6322, %v6566, %v6568
        %v6575 = vmax.f32 %v6553, %v6569
        %v6576 = vmax.f32 %v6554, %v6564
        %v6577 = vmax.f32 %v6555, %v6570
        %v6578 = vmax.f32 %v6556, %v6568
        %v6579 = vpack.c.bf16 %v6576, %v6575
        %v6580 = vpack.c.bf16 %v6578, %v6577
        %6583 = vrot.lane.b32.xlu0 %v6579, 64
        %v6584 = vpop.permute.xlu0 %6583
        %6585 = vrot.lane.b32.xlu0 %v6580, 64
        %v6586 = vpop.permute.xlu0 %6585
        %v6587 = vrot.slane %v6584, 4
        %v6588 = vrot.slane %v6586, 4
        %v6589 = vsel %vm6343, %v6584, %v6587
        %v6590 = vsel %vm6343, %v6586, %v6588
        %vm6593 = vcmask 650432
        %6594 = vst.msk [vmem:[#allocation5 + $0x8] sm:$0xf] %vm6593, %v6589
        %6595 = vst.msk [vmem:[#allocation5 + $0x1c] sm:$0xf] %vm6593, %v6590
        %v6596 = vld [vmem:[#allocation4 + $0x14] sm:$0xff]
        %v6597 = vld [vmem:[#allocation4 + $0x3c] sm:$0xff]
        %v6598 = vld [vmem:[#allocation4 + $0x18] sm:$0xf]
        %v6599 = vld [vmem:[#allocation4 + $0x40] sm:$0xf]
        %v6600 = vunpack.c.l.bf16 %v6596
        %v6601 = vunpack.c.h.bf16 %v6596
        %v6602 = vunpack.c.l.bf16 %v6597
        %v6603 = vunpack.c.h.bf16 %v6597
        %v6604 = vunpack.c.l.bf16 %v6598
        %v6605 = vunpack.c.l.bf16 %v6599
        %6608 = vrot.lane.b32.xlu0 %v6604, 68
        %v6609 = vpop.permute.xlu0 %6608
        %6610 = vrot.lane.b32.xlu0 %v6605, 68
        %v6611 = vpop.permute.xlu0 %6610
        %v6614 = vmax.f32 %v6600, %v6609
        %v6615 = vmax.f32 %v6601, %v6609
        %v6616 = vmax.f32 %v6602, %v6611
        %v6617 = vmax.f32 %v6603, %v6611
        %v6618 = vpack.c.bf16 %v6615, %v6614
        %v6619 = vpack.c.bf16 %v6617, %v6616
        %v6620 = vunpack.c.l.bf16 %v6618
        %v6621 = vunpack.c.h.bf16 %v6618
        %v6622 = vunpack.c.l.bf16 %v6619
        %v6623 = vunpack.c.h.bf16 %v6619
        %6628 = vrot.lane.b32.xlu0 %v6620, 126
        %v6629 = vpop.permute.xlu0 %6628
        %6630 = vrot.lane.b32.xlu0 %v6621, 126
        %v6631 = vpop.permute.xlu0 %6630
        %6632 = vrot.lane.b32.xlu0 %v6622, 126
        %v6633 = vpop.permute.xlu0 %6632
        %6634 = vrot.lane.b32.xlu0 %v6623, 126
        %v6635 = vpop.permute.xlu0 %6634
        %v6636 = vsel %vm6322, %v6629, %v6631
        %v6637 = vsel %vm6322, %v6633, %v6635
        %v6642 = vmax.f32 %v6620, %v6636
        %v6643 = vmax.f32 %v6621, %v6631
        %v6644 = vmax.f32 %v6622, %v6637
        %v6645 = vmax.f32 %v6623, %v6635
        %v6646 = vpack.c.bf16 %v6643, %v6642
        %v6647 = vpack.c.bf16 %v6645, %v6644
        %vm6648 = vcmask 64516
        %vm6649 = vmor %vm6648, %vm2960
        %6650 = vst.msk [vmem:[#allocation5 + $0x8] sm:$0xff] %vm6649, %v6646
        %6651 = vst.msk [vmem:[#allocation5 + $0x1c] sm:$0xff] %vm6649, %v6647
        %v6652 = vld [vmem:[#allocation4 + $0x18] sm:$0xff]
        %v6653 = vld [vmem:[#allocation4 + $0x40] sm:$0xff]
        %v6654 = vld [vmem:[#allocation4 + $0x1c] sm:$0xf]
        %v6655 = vld [vmem:[#allocation4 + $0x44] sm:$0xf]
        %v6656 = vunpack.c.l.bf16 %v6652
        %v6657 = vunpack.c.h.bf16 %v6652
        %v6658 = vunpack.c.l.bf16 %v6653
        %v6659 = vunpack.c.h.bf16 %v6653
        %v6660 = vunpack.c.l.bf16 %v6654
        %v6661 = vunpack.c.l.bf16 %v6655
        %6664 = vrot.lane.b32.xlu0 %v6660, 68
        %v6665 = vpop.permute.xlu0 %6664
        %6666 = vrot.lane.b32.xlu0 %v6661, 68
        %v6667 = vpop.permute.xlu0 %6666
        %v6670 = vmax.f32 %v6656, %v6665
        %v6671 = vmax.f32 %v6657, %v6665
        %v6672 = vmax.f32 %v6658, %v6667
        %v6673 = vmax.f32 %v6659, %v6667
        %v6674 = vpack.c.bf16 %v6671, %v6670
        %v6675 = vpack.c.bf16 %v6673, %v6672
        %v6676 = vunpack.c.l.bf16 %v6674
        %v6677 = vunpack.c.l.bf16 %v6675
        %v6678 = vunpack.c.h.bf16 %v6674
        %v6679 = vunpack.c.h.bf16 %v6675
        %6684 = vrot.lane.b32.xlu0 %v6676, 126
        %v6685 = vpop.permute.xlu0 %6684
        %6686 = vrot.lane.b32.xlu0 %v6678, 126
        %v6687 = vpop.permute.xlu0 %6686
        %6688 = vrot.lane.b32.xlu0 %v6677, 126
        %v6689 = vpop.permute.xlu0 %6688
        %6690 = vrot.lane.b32.xlu0 %v6679, 126
        %v6691 = vpop.permute.xlu0 %6690
        %v6692 = vsel %vm6322, %v6685, %v6687
        %v6693 = vsel %vm6322, %v6689, %v6691
        %v6696 = vmax.f32 %v6676, %v6692
        %v6697 = vmax.f32 %v6677, %v6693
        %v6698 = vpack.c.bf16 %v6696, %v6696
        %v6699 = vpack.c.bf16 %v6697, %v6697
        %6702 = vrot.lane.b32.xlu0 %v6698, 64
        %v6703 = vpop.permute.xlu0 %6702
        %6704 = vrot.lane.b32.xlu0 %v6699, 64
        %v6705 = vpop.permute.xlu0 %6704
        %vm6708 = vcmask 519232
        %6709 = vst.msk [vmem:[#allocation5 + $0xc] sm:$0xf] %vm6708, %v6703
        %6710 = vst.msk [vmem:[#allocation5 + $0x20] sm:$0xf] %vm6708, %v6705
        %v6711 = vld [vmem:[#allocation4 + $0x1c] sm:$0xf]
        %v6712 = vld [vmem:[#allocation4 + $0x44] sm:$0xf]
        %v6713 = vld [vmem:[#allocation4 + $0x1c] sm:$0xff]
        %v6714 = vld [vmem:[#allocation4 + $0x44] sm:$0xff]
        %v6715 = vunpack.c.l.bf16 %v6711
        %v6716 = vunpack.c.l.bf16 %v6712
        %v6717 = vunpack.c.l.bf16 %v6713
        %v6718 = vunpack.c.h.bf16 %v6713
        %v6719 = vunpack.c.l.bf16 %v6714
        %v6720 = vunpack.c.h.bf16 %v6714
        %6725 = vrot.lane.b32.xlu0 %v6717, 68
        %v6726 = vpop.permute.xlu0 %6725
        %6727 = vrot.lane.b32.xlu0 %v6718, 68
        %v6728 = vpop.permute.xlu0 %6727
        %6729 = vrot.lane.b32.xlu0 %v6719, 68
        %v6730 = vpop.permute.xlu0 %6729
        %6731 = vrot.lane.b32.xlu0 %v6720, 68
        %v6732 = vpop.permute.xlu0 %6731
        %vm6733 = vcmask 556032
        %v6734 = vsel %vm6733, %v6726, %v6728
        %v6735 = vsel %vm6733, %v6730, %v6732
        %v6738 = vmax.f32 %v6715, %v6734
        %v6739 = vmax.f32 %v6716, %v6735
        %v6740 = vpack.c.bf16 %v6738, %v6738
        %v6741 = vpack.c.bf16 %v6739, %v6739
        %v6742 = vunpack.c.l.bf16 %v6740
        %v6743 = vunpack.c.l.bf16 %v6741
        %6746 = vrot.lane.b32.xlu0 %v6742, 126
        %v6747 = vpop.permute.xlu0 %6746
        %6748 = vrot.lane.b32.xlu0 %v6743, 126
        %v6749 = vpop.permute.xlu0 %6748
        %v6752 = vmax.f32 %v6742, %v6747
        %v6753 = vmax.f32 %v6743, %v6749
        %v6754 = vpack.c.bf16 %v6752, %v6752
        %v6755 = vpack.c.bf16 %v6753, %v6753
        %vm6756 = vcmask 978432
        %6757 = vst.msk [vmem:[#allocation5 + $0xc] sm:$0xf] %vm6756, %v6754
        %6758 = vst.msk [vmem:[#allocation5 + $0x20] sm:$0xf] %vm6756, %v6755
        %v6759 = vld [vmem:[#allocation4 + $0x20] sm:$0xf]
        %v6760 = vld [vmem:[#allocation4 + $0x48] sm:$0xf]
        %v6761 = vld [vmem:[#allocation4 + $0x20] sm:$0xff]
        %v6762 = vld [vmem:[#allocation4 + $0x48] sm:$0xff]
        %v6763 = vunpack.c.l.bf16 %v6759
        %v6764 = vunpack.c.l.bf16 %v6760
        %v6765 = vunpack.c.l.bf16 %v6761
        %v6766 = vunpack.c.h.bf16 %v6761
        %v6767 = vunpack.c.l.bf16 %v6762
        %v6768 = vunpack.c.h.bf16 %v6762
        %6773 = vrot.lane.b32.xlu0 %v6765, 68
        %v6774 = vpop.permute.xlu0 %6773
        %6775 = vrot.lane.b32.xlu0 %v6766, 68
        %v6776 = vpop.permute.xlu0 %6775
        %6777 = vrot.lane.b32.xlu0 %v6767, 68
        %v6778 = vpop.permute.xlu0 %6777
        %6779 = vrot.lane.b32.xlu0 %v6768, 68
        %v6780 = vpop.permute.xlu0 %6779
        %v6781 = vsel %vm6733, %v6774, %v6776
        %v6782 = vsel %vm6733, %v6778, %v6780
        %v6785 = vmax.f32 %v6763, %v6781
        %v6786 = vmax.f32 %v6764, %v6782
        %v6787 = vpack.c.bf16 %v6785, %v6785
        %v6788 = vpack.c.bf16 %v6786, %v6786
        %v6789 = vunpack.c.l.bf16 %v6787
        %v6790 = vunpack.c.l.bf16 %v6788
        %6793 = vrot.lane.b32.xlu0 %v6789, 126
        %v6794 = vpop.permute.xlu0 %6793
        %6795 = vrot.lane.b32.xlu0 %v6790, 126
        %v6796 = vpop.permute.xlu0 %6795
        %v6799 = vmax.f32 %v6789, %v6794
        %v6800 = vmax.f32 %v6790, %v6796
        %v6801 = vpack.c.bf16 %v6799, %v6799
        %v6802 = vpack.c.bf16 %v6800, %v6800
        %6805 = vrot.lane.b32.xlu0 %v6801, 64
        %v6806 = vpop.permute.xlu0 %6805
        %6807 = vrot.lane.b32.xlu0 %v6802, 64
        %v6808 = vpop.permute.xlu0 %6807
        %v6809 = vrot.slane %v6806, 4
        %v6810 = vrot.slane %v6808, 4
        %v6811 = vsel %vm6343, %v6809, %v6806
        %v6812 = vsel %vm6343, %v6810, %v6808
        %vm6815 = vmor %vm3905, %vm1610
        %6816 = vst.msk [vmem:[#allocation5 + $0xc] sm:$0xff] %vm6815, %v6811
        %6817 = vst.msk [vmem:[#allocation5 + $0x20] sm:$0xff] %vm6815, %v6812
        %v6818 = vld [vmem:[%s7] sm:$0xff]
        %v6819 = vld [vmem:[%s7 + $0x8] sm:$0xff]
        %v6820 = vld [vmem:[#allocation5] sm:$0xff]
        %v6821 = vld [vmem:[#allocation5 + $0x8] sm:$0xff]
        %v6822 = vld [vmem:[#allocation5 + $0x14] sm:$0xff]
        %v6823 = vld [vmem:[#allocation5 + $0x1c] sm:$0xff]
        %v6828 = vunpack.c.l.b16 %v6820
        %v6829 = vunpack.c.h.b16 %v6820
        %v6830 = vunpack.c.l.b16 %v6821
        %v6831 = vunpack.c.h.b16 %v6821
        %v6832 = vunpack.c.l.b16 %v6822
        %v6833 = vunpack.c.h.b16 %v6822
        %v6834 = vunpack.c.l.b16 %v6823
        %v6835 = vunpack.c.h.b16 %v6823
        %v6836 = vpack.c.b16 %v6832, %v6828
        %v6837 = vpack.c.b16 %v6833, %v6829
        %v6838 = vpack.c.b16 %v6834, %v6830
        %v6839 = vpack.c.b16 %v6835, %v6831
        %6844 = vrot.lane.b32.xlu0 %v6836, 124
        %v6845 = vpop.permute.xlu0 %6844
        %6846 = vrot.lane.b32.xlu0 %v6837, 124
        %v6847 = vpop.permute.xlu0 %6846
        %6848 = vrot.lane.b32.xlu0 %v6838, 124
        %v6849 = vpop.permute.xlu0 %6848
        %6850 = vrot.lane.b32.xlu0 %v6839, 124
        %v6851 = vpop.permute.xlu0 %6850
        %v6852 = vsel %vm1601, %v6845, %v6847
        %v6853 = vsel %vm1601, %v6847, %v6849
        %v6854 = vsel %vm1601, %v6849, %v6851
        %6859 = vrot.lane.b32.xlu0 %v6836, 120
        %v6860 = vpop.permute.xlu0 %6859
        %6861 = vrot.lane.b32.xlu0 %v6837, 120
        %v6862 = vpop.permute.xlu0 %6861
        %6863 = vrot.lane.b32.xlu0 %v6838, 120
        %v6864 = vpop.permute.xlu0 %6863
        %6865 = vrot.lane.b32.xlu0 %v6839, 120
        %v6866 = vpop.permute.xlu0 %6865
        %v6867 = vsel %vm1871, %v6860, %v6862
        %v6868 = vsel %vm1871, %v6862, %v6864
        %v6869 = vsel %vm1871, %v6864, %v6866
        %v6874 = vld [vmem:[%s6] sm:$0xf]
        %v6875 = vld [vmem:[%s6 + $0x4] sm:$0xf]
        %s6876 = scalar_lea.vmem %s6, 8
        %v6877 = vld [vmem:[%s6876] sm:$0xf]
        %v6878 = vld [vmem:[%s6876 + $0x4] sm:$0xf]
        %v6881 = vunpack.c.l.b16 %v6877
        %v6882 = vunpack.c.l.b16 %v6878
        %v6883 = vpack.c.b16 %v6882, %v6881
        %6884 = vrot.lane.b32.xlu0 %v6836, 72
        %v6885 = vpop.permute.xlu0 %6884
        %6886 = vrot.lane.b32.xlu0 %v6837, 72
        %v6887 = vpop.permute.xlu0 %6886
        %6888 = vrot.lane.b32.xlu0 %v6838, 72
        %v6889 = vpop.permute.xlu0 %6888
        %6890 = vrot.lane.b32.xlu0 %v6839, 72
        %v6891 = vpop.permute.xlu0 %6890
        %6892 = vrot.lane.b32.xlu0 %v6852, 72
        %v6893 = vpop.permute.xlu0 %6892
        %6894 = vrot.lane.b32.xlu0 %v6853, 72
        %v6895 = vpop.permute.xlu0 %6894
        %6896 = vrot.lane.b32.xlu0 %v6854, 72
        %v6897 = vpop.permute.xlu0 %6896
        %6898 = vrot.lane.b32.xlu0 %v6851, 72
        %v6899 = vpop.permute.xlu0 %6898
        %6900 = vrot.lane.b32.xlu0 %v6867, 72
        %v6901 = vpop.permute.xlu0 %6900
        %6902 = vrot.lane.b32.xlu0 %v6868, 72
        %v6903 = vpop.permute.xlu0 %6902
        %6904 = vrot.lane.b32.xlu0 %v6869, 72
        %v6905 = vpop.permute.xlu0 %6904
        %6906 = vrot.lane.b32.xlu0 %v6866, 72
        %v6907 = vpop.permute.xlu0 %6906
        %vm6908 = vcmask 588800
        %v6909 = vsel %vm6908, %v6885, %v6887
        %v6910 = vsel %vm6908, %v6887, %v6889
        %v6911 = vsel %vm6908, %v6889, %v6891
        %v6912 = vsel %vm6908, %v6893, %v6895
        %v6913 = vsel %vm6908, %v6895, %v6897
        %v6914 = vsel %vm6908, %v6897, %v6899
        %v6915 = vsel %vm6908, %v6901, %v6903
        %v6916 = vsel %vm6908, %v6903, %v6905
        %v6917 = vsel %vm6908, %v6905, %v6907
        %vm6930 = vcmask 392192
        %v6932 = vsel %vm6930, %v6883, 0
        %6934 = vmatpush.bf16.msra.mxu0 0
        %6935 = vmatpush.bf16.msra.mxu0 0
        %6936 = vmatpush.bf16.msra.mxu0 0
        %6937 = vmatpush.bf16.msra.mxu0 0
        %6938 = vmatpush.bf16.msra.mxu0 0
        %6939 = vmatpush.bf16.msra.mxu0 %v6915
        %6940 = vmatpush.bf16.msra.mxu0 %v6912
        %6941 = vmatpush.bf16.msra.mxu0 %v6909
        %6942 = vmatmul.bf16.gmra.mxu0 %v6932
        %v6943 = vpop.f32.mrf.mxu0
        %v6944 = vadd.f32 0.0, %v6943
        %v6945 = vpop.f32.mrf.mxu0
        %v6946 = vadd.f32 0.0, %v6945
        %6947 = vdwg.mxu0
        %6948 = vmatpush.bf16.msra.mxu0 0
        %6949 = vmatpush.bf16.msra.mxu0 0
        %6950 = vmatpush.bf16.msra.mxu0 0
        %6951 = vmatpush.bf16.msra.mxu0 0
        %6952 = vmatpush.bf16.msra.mxu0 0
        %6953 = vmatpush.bf16.msra.mxu0 %v6916
        %6954 = vmatpush.bf16.msra.mxu0 %v6913
        %6955 = vmatpush.bf16.msra.mxu0 %v6910
        %6956 = vmatmul.bf16.gmra.mxu0 %v6932
        %v6957 = vpop.f32.mrf.mxu0
        %v6958 = vadd.f32 0.0, %v6957
        %v6959 = vpop.f32.mrf.mxu0
        %v6960 = vadd.f32 0.0, %v6959
        %6961 = vdwg.mxu0
        %6962 = vmatpush.bf16.msra.mxu0 0
        %6963 = vmatpush.bf16.msra.mxu0 0
        %6964 = vmatpush.bf16.msra.mxu0 0
        %6965 = vmatpush.bf16.msra.mxu0 0
        %6966 = vmatpush.bf16.msra.mxu0 0
        %6967 = vmatpush.bf16.msra.mxu0 %v6917
        %6968 = vmatpush.bf16.msra.mxu0 %v6914
        %6969 = vmatpush.bf16.msra.mxu0 %v6911
        %6970 = vmatmul.bf16.gmra.mxu0 %v6932
        %v6971 = vpop.f32.mrf.mxu0
        %v6972 = vadd.f32 0.0, %v6971
        %v6973 = vpop.f32.mrf.mxu0
        %v6974 = vadd.f32 0.0, %v6973
        %6975 = vdwg.mxu0
        %6976 = vmatpush.bf16.msra.mxu0 0
        %6977 = vmatpush.bf16.msra.mxu0 0
        %6978 = vmatpush.bf16.msra.mxu0 0
        %6979 = vmatpush.bf16.msra.mxu0 0
        %6980 = vmatpush.bf16.msra.mxu0 0
        %6981 = vmatpush.bf16.msra.mxu0 %v6907
        %6982 = vmatpush.bf16.msra.mxu0 %v6899
        %6983 = vmatpush.bf16.msra.mxu0 %v6891
        %6984 = vmatmul.bf16.gmra.mxu0 %v6932
        %v6985 = vpop.f32.mrf.mxu0
        %v6986 = vadd.f32 0.0, %v6985
        %v6987 = vpop.f32.mrf.mxu0
        %v6988 = vadd.f32 0.0, %v6987
        %6989 = vdwg.mxu0
        %v6992 = vunpack.c.l.b16 %v6874
        %v6993 = vunpack.c.l.b16 %v6875
        %v6994 = vpack.c.b16 %v6993, %v6992
        %v6996 = vsel %vm6930, %v6994, 0
        %6998 = vmatpush.bf16.msra.mxu0 0
        %6999 = vmatpush.bf16.msra.mxu0 0
        %7000 = vmatpush.bf16.msra.mxu0 0
        %7001 = vmatpush.bf16.msra.mxu0 0
        %7002 = vmatpush.bf16.msra.mxu0 0
        %7003 = vmatpush.bf16.msra.mxu0 %v6867
        %7004 = vmatpush.bf16.msra.mxu0 %v6852
        %7005 = vmatpush.bf16.msra.mxu0 %v6836
        %7006 = vmatmul.bf16.gmra.mxu0 %v6996
        %v7007 = vpop.f32.mrf.mxu0
        %v7008 = vadd.f32 %v6944, %v7007
        %v7009 = vpop.f32.mrf.mxu0
        %v7010 = vadd.f32 %v6946, %v7009
        %7011 = vdwg.mxu0
        %7012 = vmatpush.bf16.msra.mxu0 0
        %7013 = vmatpush.bf16.msra.mxu0 0
        %7014 = vmatpush.bf16.msra.mxu0 0
        %7015 = vmatpush.bf16.msra.mxu0 0
        %7016 = vmatpush.bf16.msra.mxu0 0
        %7017 = vmatpush.bf16.msra.mxu0 %v6868
        %7018 = vmatpush.bf16.msra.mxu0 %v6853
        %7019 = vmatpush.bf16.msra.mxu0 %v6837
        %7020 = vmatmul.bf16.gmra.mxu0 %v6996
        %v7021 = vpop.f32.mrf.mxu0
        %v7022 = vadd.f32 %v6958, %v7021
        %v7023 = vpop.f32.mrf.mxu0
        %v7024 = vadd.f32 %v6960, %v7023
        %7025 = vdwg.mxu0
        %7026 = vmatpush.bf16.msra.mxu0 0
        %7027 = vmatpush.bf16.msra.mxu0 0
        %7028 = vmatpush.bf16.msra.mxu0 0
        %7029 = vmatpush.bf16.msra.mxu0 0
        %7030 = vmatpush.bf16.msra.mxu0 0
        %7031 = vmatpush.bf16.msra.mxu0 %v6869
        %7032 = vmatpush.bf16.msra.mxu0 %v6854
        %7033 = vmatpush.bf16.msra.mxu0 %v6838
        %7034 = vmatmul.bf16.gmra.mxu0 %v6996
        %v7035 = vpop.f32.mrf.mxu0
        %v7036 = vadd.f32 %v6972, %v7035
        %v7037 = vpop.f32.mrf.mxu0
        %v7038 = vadd.f32 %v6974, %v7037
        %7039 = vdwg.mxu0
        %7040 = vmatpush.bf16.msra.mxu0 0
        %7041 = vmatpush.bf16.msra.mxu0 0
        %7042 = vmatpush.bf16.msra.mxu0 0
        %7043 = vmatpush.bf16.msra.mxu0 0
        %7044 = vmatpush.bf16.msra.mxu0 0
        %7045 = vmatpush.bf16.msra.mxu0 %v6866
        %7046 = vmatpush.bf16.msra.mxu0 %v6851
        %7047 = vmatpush.bf16.msra.mxu0 %v6839
        %7048 = vmatmul.bf16.gmra.mxu0 %v6996
        %v7049 = vpop.f32.mrf.mxu0
        %v7050 = vadd.f32 %v6986, %v7049
        %v7051 = vpop.f32.mrf.mxu0
        %v7052 = vadd.f32 %v6988, %v7051
        %7053 = vdwg.mxu0
        %v7054 = vld [vmem:[#allocation5] sm:$0xff]
        %v7055 = vld [vmem:[#allocation5 + $0x8] sm:$0xff]
        %v7056 = vld [vmem:[#allocation5 + $0x10] sm:$0xf]
        %v7057 = vld [vmem:[#allocation5 + $0x14] sm:$0xff]
        %v7058 = vld [vmem:[#allocation5 + $0x1c] sm:$0xff]
        %v7059 = vld [vmem:[#allocation5 + $0x24] sm:$0xf]
        %v7066 = vunpack.c.l.b16 %v7054
        %v7067 = vunpack.c.h.b16 %v7054
        %v7068 = vunpack.c.l.b16 %v7055
        %v7069 = vunpack.c.h.b16 %v7055
        %v7070 = vunpack.c.l.b16 %v7056
        %v7071 = vunpack.c.l.b16 %v7057
        %v7072 = vunpack.c.h.b16 %v7057
        %v7073 = vunpack.c.l.b16 %v7058
        %v7074 = vunpack.c.h.b16 %v7058
        %v7075 = vunpack.c.l.b16 %v7059
        %v7076 = vpack.c.b16 %v7071, %v7066
        %v7077 = vpack.c.b16 %v7072, %v7067
        %v7078 = vpack.c.b16 %v7073, %v7068
        %v7079 = vpack.c.b16 %v7074, %v7069
        %v7080 = vpack.c.b16 %v7075, %v7070
        %7081 = vrot.lane.b32.xlu0 %v7076, 124
        %v7082 = vpop.permute.xlu0 %7081
        %7083 = vrot.lane.b32.xlu0 %v7077, 124
        %v7084 = vpop.permute.xlu0 %7083
        %7085 = vrot.lane.b32.xlu0 %v7078, 124
        %v7086 = vpop.permute.xlu0 %7085
        %7087 = vrot.lane.b32.xlu0 %v7079, 124
        %v7088 = vpop.permute.xlu0 %7087
        %7089 = vrot.lane.b32.xlu0 %v7080, 124
        %v7090 = vpop.permute.xlu0 %7089
        %v7091 = vsel %vm1601, %v7082, %v7084
        %v7092 = vsel %vm1601, %v7084, %v7086
        %v7093 = vsel %vm1601, %v7086, %v7088
        %v7094 = vsel %vm1601, %v7088, %v7090
        %7095 = vrot.lane.b32.xlu0 %v7076, 120
        %v7096 = vpop.permute.xlu0 %7095
        %7097 = vrot.lane.b32.xlu0 %v7077, 120
        %v7098 = vpop.permute.xlu0 %7097
        %7099 = vrot.lane.b32.xlu0 %v7078, 120
        %v7100 = vpop.permute.xlu0 %7099
        %7101 = vrot.lane.b32.xlu0 %v7079, 120
        %v7102 = vpop.permute.xlu0 %7101
        %7103 = vrot.lane.b32.xlu0 %v7080, 120
        %v7104 = vpop.permute.xlu0 %7103
        %v7105 = vsel %vm1871, %v7096, %v7098
        %v7106 = vsel %vm1871, %v7098, %v7100
        %v7107 = vsel %vm1871, %v7100, %v7102
        %v7108 = vsel %vm1871, %v7102, %v7104
        %s7109 = scalar_lea.vmem %s6, 16
        %v7110 = vld [vmem:[%s7109] sm:$0xf]
        %v7111 = vld [vmem:[%s7109 + $0x4] sm:$0xf]
        %v7114 = vunpack.c.l.b16 %v7110
        %v7115 = vunpack.c.l.b16 %v7111
        %v7116 = vpack.c.b16 %v7115, %v7114
        %7117 = vrot.lane.b32.xlu0 %v7076, 16
        %v7118 = vpop.permute.xlu0 %7117
        %7119 = vrot.lane.b32.xlu0 %v7077, 16
        %v7120 = vpop.permute.xlu0 %7119
        %7121 = vrot.lane.b32.xlu0 %v7078, 16
        %v7122 = vpop.permute.xlu0 %7121
        %7123 = vrot.lane.b32.xlu0 %v7079, 16
        %v7124 = vpop.permute.xlu0 %7123
        %7125 = vrot.lane.b32.xlu0 %v7080, 16
        %v7126 = vpop.permute.xlu0 %7125
        %7127 = vrot.lane.b32.xlu0 %v7091, 16
        %v7128 = vpop.permute.xlu0 %7127
        %7129 = vrot.lane.b32.xlu0 %v7092, 16
        %v7130 = vpop.permute.xlu0 %7129
        %7131 = vrot.lane.b32.xlu0 %v7093, 16
        %v7132 = vpop.permute.xlu0 %7131
        %7133 = vrot.lane.b32.xlu0 %v7094, 16
        %v7134 = vpop.permute.xlu0 %7133
        %7135 = vrot.lane.b32.xlu0 %v7090, 16
        %v7136 = vpop.permute.xlu0 %7135
        %7137 = vrot.lane.b32.xlu0 %v7105, 16
        %v7138 = vpop.permute.xlu0 %7137
        %7139 = vrot.lane.b32.xlu0 %v7106, 16
        %v7140 = vpop.permute.xlu0 %7139
        %7141 = vrot.lane.b32.xlu0 %v7107, 16
        %v7142 = vpop.permute.xlu0 %7141
        %7143 = vrot.lane.b32.xlu0 %v7108, 16
        %v7144 = vpop.permute.xlu0 %7143
        %7145 = vrot.lane.b32.xlu0 %v7104, 16
        %v7146 = vpop.permute.xlu0 %7145
        %v7147 = vsel %vm5528, %v7118, %v7120
        %v7148 = vsel %vm5528, %v7120, %v7122
        %v7149 = vsel %vm5528, %v7122, %v7124
        %v7150 = vsel %vm5528, %v7124, %v7126
        %v7151 = vsel %vm5528, %v7128, %v7130
        %v7152 = vsel %vm5528, %v7130, %v7132
        %v7153 = vsel %vm5528, %v7132, %v7134
        %v7154 = vsel %vm5528, %v7134, %v7136
        %v7155 = vsel %vm5528, %v7138, %v7140
        %v7156 = vsel %vm5528, %v7140, %v7142
        %v7157 = vsel %vm5528, %v7142, %v7144
        %v7158 = vsel %vm5528, %v7144, %v7146
        %v7172 = vsel %vm6930, %v7116, 0
        %7174 = vmatpush.bf16.msra.mxu0 0
        %7175 = vmatpush.bf16.msra.mxu0 0
        %7176 = vmatpush.bf16.msra.mxu0 0
        %7177 = vmatpush.bf16.msra.mxu0 0
        %7178 = vmatpush.bf16.msra.mxu0 0
        %7179 = vmatpush.bf16.msra.mxu0 %v7155
        %7180 = vmatpush.bf16.msra.mxu0 %v7151
        %7181 = vmatpush.bf16.msra.mxu0 %v7147
        %7182 = vmatmul.bf16.gmra.mxu0 %v7172
        %v7183 = vpop.f32.mrf.mxu0
        %v7184 = vadd.f32 0.0, %v7183
        %v7185 = vpop.f32.mrf.mxu0
        %v7186 = vadd.f32 0.0, %v7185
        %7187 = vdwg.mxu0
        %7188 = vmatpush.bf16.msra.mxu0 0
        %7189 = vmatpush.bf16.msra.mxu0 0
        %7190 = vmatpush.bf16.msra.mxu0 0
        %7191 = vmatpush.bf16.msra.mxu0 0
        %7192 = vmatpush.bf16.msra.mxu0 0
        %7193 = vmatpush.bf16.msra.mxu0 %v7156
        %7194 = vmatpush.bf16.msra.mxu0 %v7152
        %7195 = vmatpush.bf16.msra.mxu0 %v7148
        %7196 = vmatmul.bf16.gmra.mxu0 %v7172
        %v7197 = vpop.f32.mrf.mxu0
        %v7198 = vadd.f32 0.0, %v7197
        %v7199 = vpop.f32.mrf.mxu0
        %v7200 = vadd.f32 0.0, %v7199
        %7201 = vdwg.mxu0
        %7202 = vmatpush.bf16.msra.mxu0 0
        %7203 = vmatpush.bf16.msra.mxu0 0
        %7204 = vmatpush.bf16.msra.mxu0 0
        %7205 = vmatpush.bf16.msra.mxu0 0
        %7206 = vmatpush.bf16.msra.mxu0 0
        %7207 = vmatpush.bf16.msra.mxu0 %v7157
        %7208 = vmatpush.bf16.msra.mxu0 %v7153
        %7209 = vmatpush.bf16.msra.mxu0 %v7149
        %7210 = vmatmul.bf16.gmra.mxu0 %v7172
        %v7211 = vpop.f32.mrf.mxu0
        %v7212 = vadd.f32 0.0, %v7211
        %v7213 = vpop.f32.mrf.mxu0
        %v7214 = vadd.f32 0.0, %v7213
        %7215 = vdwg.mxu0
        %7216 = vmatpush.bf16.msra.mxu0 0
        %7217 = vmatpush.bf16.msra.mxu0 0
        %7218 = vmatpush.bf16.msra.mxu0 0
        %7219 = vmatpush.bf16.msra.mxu0 0
        %7220 = vmatpush.bf16.msra.mxu0 0
        %7221 = vmatpush.bf16.msra.mxu0 %v7158
        %7222 = vmatpush.bf16.msra.mxu0 %v7154
        %7223 = vmatpush.bf16.msra.mxu0 %v7150
        %7224 = vmatmul.bf16.gmra.mxu0 %v7172
        %v7225 = vpop.f32.mrf.mxu0
        %v7226 = vadd.f32 0.0, %v7225
        %v7227 = vpop.f32.mrf.mxu0
        %v7228 = vadd.f32 0.0, %v7227
        %7229 = vdwg.mxu0
        %v7230 = vadd.f32 %v7008, %v7184
        %v7231 = vadd.f32 %v7022, %v7198
        %v7232 = vadd.f32 %v7036, %v7212
        %v7233 = vadd.f32 %v7050, %v7226
        %v7234 = vadd.f32 %v7010, %v7186
        %v7235 = vadd.f32 %v7024, %v7200
        %v7236 = vadd.f32 %v7038, %v7214
        %v7237 = vadd.f32 %v7052, %v7228
        %7239 = vset.pattern.permute.xlu0 0
        %7240 = vperm.xlu0 %7239, %v6818
        %v7241 = vpop.permute.xlu0 %7240
        %7244 = vset.pattern.permute.xlu0 0
        %7245 = vperm.xlu0 %7244, %v6819
        %v7246 = vpop.permute.xlu0 %7245
        %v7248 = vadd.f32 %v7230, %v7241
        %v7249 = vadd.f32 %v7231, %v7241
        %v7250 = vadd.f32 %v7232, %v7241
        %v7251 = vadd.f32 %v7233, %v7241
        %v7252 = vadd.f32 %v7234, %v7246
        %v7253 = vadd.f32 %v7235, %v7246
        %v7254 = vadd.f32 %v7236, %v7246
        %v7255 = vadd.f32 %v7237, %v7246
        %v7256 = vmax.f32 %v7248, 0.0
        %v7257 = vmax.f32 %v7249, 0.0
        %v7258 = vmax.f32 %v7250, 0.0
        %v7259 = vmax.f32 %v7251, 0.0
        %v7260 = vmax.f32 %v7252, 0.0
        %v7261 = vmax.f32 %v7253, 0.0
        %v7262 = vmax.f32 %v7254, 0.0
        %v7263 = vmax.f32 %v7255, 0.0
        %v7264 = vpack.c.bf16 %v7257, %v7256
        %v7265 = vpack.c.bf16 %v7259, %v7258
        %v7266 = vpack.c.bf16 %v7261, %v7260
        %v7267 = vpack.c.bf16 %v7263, %v7262
        %7268 = vst [vmem:[#allocation6] sm:$0xff] %v7264
        %vm7269 = vcmask 433156
        %vm7270 = vmor %vm7269, %vm1271
        %7271 = vst.msk [vmem:[#allocation6 + $0x8] sm:$0xff] %vm7270, %v7265
        %7272 = vst [vmem:[#allocation6 + $0x10] sm:$0xff] %v7266
        %7273 = vst.msk [vmem:[#allocation6 + $0x18] sm:$0xff] %vm7270, %v7267
        %v7274 = vld [vmem:[#allocation6] sm:$0xf]
        %v7275 = vld [vmem:[#allocation6 + $0x10] sm:$0xf]
        %v7276 = vunpack.c.l.bf16 %v7274
        %v7277 = vunpack.c.l.bf16 %v7275
        %7280 = vrot.lane.b32.xlu0 %v7276, 72
        %v7281 = vpop.permute.xlu0 %7280
        %7282 = vrot.lane.b32.xlu0 %v7277, 72
        %v7283 = vpop.permute.xlu0 %7282
        %v7286 = vmax.f32 %v7276, %v7281
        %v7287 = vmax.f32 %v7277, %v7283
        %v7288 = vpack.c.bf16 %v7286, %v7286
        %v7289 = vpack.c.bf16 %v7287, %v7287
        %v7290 = vunpack.c.l.bf16 %v7288
        %v7291 = vunpack.c.l.bf16 %v7289
        %7294 = vrot.lane.b32.xlu0 %v7290, 124
        %v7295 = vpop.permute.xlu0 %7294
        %7296 = vrot.lane.b32.xlu0 %v7291, 124
        %v7297 = vpop.permute.xlu0 %7296
        %v7300 = vmax.f32 %v7290, %v7295
        %v7301 = vmax.f32 %v7291, %v7297
        %v7302 = vpack.c.bf16 %v7300, %v7300
        %v7303 = vpack.c.bf16 %v7301, %v7301
        %v7304 = vunpack.c.l.bf16 %v7302
        %v7305 = vunpack.c.l.bf16 %v7303
        %vm7306 = vcmask 7168
        %7307 = vst.msk [vmem:[#allocation7] sm:$0xff] %vm7306, %v7304
        %7308 = vst.msk [vmem:[#allocation7 + $0x8] sm:$0xff] %vm7306, %v7305
        %7311 = vrot.lane.b32.xlu0 %v7304, 121
        %v7312 = vpop.permute.xlu0 %7311
        %7313 = vrot.lane.b32.xlu0 %v7305, 121
        %v7314 = vpop.permute.xlu0 %7313
        %vm7317 = vcmask 15368
        %7318 = vst.msk [vmem:[#allocation7] sm:$0xff] %vm7317, %v7312
        %7319 = vst.msk [vmem:[#allocation7 + $0x8] sm:$0xff] %vm7317, %v7314
        %7320 = vrot.lane.b32.xlu0 %v7304, 114
        %v7321 = vpop.permute.xlu0 %7320
        %7322 = vrot.lane.b32.xlu0 %v7305, 114
        %v7323 = vpop.permute.xlu0 %7322
        %vm7326 = vcmask 23568
        %7327 = vst.msk [vmem:[#allocation7] sm:$0xff] %vm7326, %v7321
        %7328 = vst.msk [vmem:[#allocation7 + $0x8] sm:$0xff] %vm7326, %v7323
        %7329 = vrot.lane.b32.xlu0 %v7304, 107
        %v7330 = vpop.permute.xlu0 %7329
        %7331 = vrot.lane.b32.xlu0 %v7305, 107
        %v7332 = vpop.permute.xlu0 %7331
        %vm7335 = vcmask 31768
        %7336 = vst.msk [vmem:[#allocation7] sm:$0xff] %vm7335, %v7330
        %7337 = vst.msk [vmem:[#allocation7 + $0x8] sm:$0xff] %vm7335, %v7332
        %7338 = vrot.lane.b32.xlu0 %v7304, 100
        %v7339 = vpop.permute.xlu0 %7338
        %7340 = vrot.lane.b32.xlu0 %v7305, 100
        %v7341 = vpop.permute.xlu0 %7340
        %vm7344 = vcmask 39968
        %7345 = vst.msk [vmem:[#allocation7] sm:$0xff] %vm7344, %v7339
        %7346 = vst.msk [vmem:[#allocation7 + $0x8] sm:$0xff] %vm7344, %v7341
        %7347 = vrot.lane.b32.xlu0 %v7304, 93
        %v7348 = vpop.permute.xlu0 %7347
        %7349 = vrot.lane.b32.xlu0 %v7305, 93
        %v7350 = vpop.permute.xlu0 %7349
        %vm7353 = vcmask 48168
        %7354 = vst.msk [vmem:[#allocation7] sm:$0xff] %vm7353, %v7348
        %7355 = vst.msk [vmem:[#allocation7 + $0x8] sm:$0xff] %vm7353, %v7350
        %v7356 = vld [vmem:[#allocation6] sm:$0xff]
        %v7357 = vld [vmem:[#allocation6 + $0x10] sm:$0xff]
        %v7358 = vld [vmem:[#allocation6 + $0x4] sm:$0xf]
        %v7359 = vld [vmem:[#allocation6 + $0x14] sm:$0xf]
        %v7360 = vunpack.c.l.bf16 %v7356
        %v7361 = vunpack.c.h.bf16 %v7356
        %v7362 = vunpack.c.l.bf16 %v7357
        %v7363 = vunpack.c.h.bf16 %v7357
        %v7364 = vunpack.c.l.bf16 %v7358
        %v7365 = vunpack.c.l.bf16 %v7359
        %7368 = vrot.lane.b32.xlu0 %v7364, 72
        %v7369 = vpop.permute.xlu0 %7368
        %7370 = vrot.lane.b32.xlu0 %v7365, 72
        %v7371 = vpop.permute.xlu0 %7370
        %v7374 = vmax.f32 %v7360, %v7369
        %v7375 = vmax.f32 %v7361, %v7369
        %v7376 = vmax.f32 %v7362, %v7371
        %v7377 = vmax.f32 %v7363, %v7371
        %v7378 = vpack.c.bf16 %v7375, %v7374
        %v7379 = vpack.c.bf16 %v7377, %v7376
        %v7380 = vunpack.c.l.bf16 %v7378
        %v7381 = vunpack.c.h.bf16 %v7378
        %v7382 = vunpack.c.l.bf16 %v7379
        %v7383 = vunpack.c.h.bf16 %v7379
        %7388 = vrot.lane.b32.xlu0 %v7380, 124
        %v7389 = vpop.permute.xlu0 %7388
        %7390 = vrot.lane.b32.xlu0 %v7381, 124
        %v7391 = vpop.permute.xlu0 %7390
        %7392 = vrot.lane.b32.xlu0 %v7382, 124
        %v7393 = vpop.permute.xlu0 %7392
        %7394 = vrot.lane.b32.xlu0 %v7383, 124
        %v7395 = vpop.permute.xlu0 %7394
        %vm7396 = vcmask 1014784
        %v7397 = vsel %vm7396, %v7389, %v7391
        %v7398 = vsel %vm7396, %v7393, %v7395
        %v7403 = vmax.f32 %v7380, %v7397
        %v7404 = vmax.f32 %v7381, %v7391
        %v7405 = vmax.f32 %v7382, %v7398
        %v7406 = vmax.f32 %v7383, %v7395
        %v7407 = vpack.c.bf16 %v7404, %v7403
        %v7408 = vpack.c.bf16 %v7406, %v7405
        %v7409 = vunpack.c.l.bf16 %v7407
        %v7410 = vunpack.c.h.bf16 %v7407
        %v7411 = vunpack.c.l.bf16 %v7408
        %v7412 = vunpack.c.h.bf16 %v7408
        %7415 = vrot.lane.b32.xlu0 %v7409, 22
        %v7416 = vpop.permute.xlu0 %7415
        %7417 = vrot.lane.b32.xlu0 %v7411, 22
        %v7418 = vpop.permute.xlu0 %7417
        %vm7421 = vcmask 56368
        %7422 = vst.msk [vmem:[#allocation7] sm:$0xff] %vm7421, %v7416
        %7423 = vst.msk [vmem:[#allocation7 + $0x8] sm:$0xff] %vm7421, %v7418
        %7424 = vrot.lane.b32.xlu0 %v7409, 15
        %v7425 = vpop.permute.xlu0 %7424
        %7426 = vrot.lane.b32.xlu0 %v7411, 15
        %v7427 = vpop.permute.xlu0 %7426
        %vm7430 = vcmask 64568
        %7431 = vst.msk [vmem:[#allocation7] sm:$0xff] %vm7430, %v7425
        %7432 = vst.msk [vmem:[#allocation7 + $0x8] sm:$0xff] %vm7430, %v7427
        %7435 = vrot.lane.b32.xlu0 %v7410, 8
        %v7436 = vpop.permute.xlu0 %7435
        %7437 = vrot.lane.b32.xlu0 %v7412, 8
        %v7438 = vpop.permute.xlu0 %7437
        %vm7441 = vcmask 72768
        %7442 = vst.msk [vmem:[#allocation7] sm:$0xff] %vm7441, %v7436
        %7443 = vst.msk [vmem:[#allocation7 + $0x8] sm:$0xff] %vm7441, %v7438
        %7444 = vrot.lane.b32.xlu0 %v7410, 1
        %v7445 = vpop.permute.xlu0 %7444
        %7446 = vrot.lane.b32.xlu0 %v7412, 1
        %v7447 = vpop.permute.xlu0 %7446
        %vm7450 = vcmask 80968
        %7451 = vst.msk [vmem:[#allocation7] sm:$0xff] %vm7450, %v7445
        %7452 = vst.msk [vmem:[#allocation7 + $0x8] sm:$0xff] %vm7450, %v7447
        %7453 = vrot.lane.b32.xlu0 %v7410, 122
        %v7454 = vpop.permute.xlu0 %7453
        %7455 = vrot.lane.b32.xlu0 %v7412, 122
        %v7456 = vpop.permute.xlu0 %7455
        %vm7459 = vcmask 89168
        %7460 = vst.msk [vmem:[#allocation7] sm:$0xff] %vm7459, %v7454
        %7461 = vst.msk [vmem:[#allocation7 + $0x8] sm:$0xff] %vm7459, %v7456
        %7462 = vrot.lane.b32.xlu0 %v7410, 115
        %v7463 = vpop.permute.xlu0 %7462
        %7464 = vrot.lane.b32.xlu0 %v7412, 115
        %v7465 = vpop.permute.xlu0 %7464
        %vm7468 = vcmask 97368
        %7469 = vst.msk [vmem:[#allocation7] sm:$0xff] %vm7468, %v7463
        %7470 = vst.msk [vmem:[#allocation7 + $0x8] sm:$0xff] %vm7468, %v7465
        %v7471 = vld [vmem:[#allocation6 + $0x4] sm:$0xff]
        %v7472 = vld [vmem:[#allocation6 + $0x14] sm:$0xff]
        %v7473 = vld [vmem:[#allocation6 + $0x8] sm:$0xf]
        %v7474 = vld [vmem:[#allocation6 + $0x18] sm:$0xf]
        %v7475 = vunpack.c.l.bf16 %v7471
        %v7476 = vunpack.c.h.bf16 %v7471
        %v7477 = vunpack.c.l.bf16 %v7472
        %v7478 = vunpack.c.h.bf16 %v7472
        %v7479 = vunpack.c.l.bf16 %v7473
        %v7480 = vunpack.c.l.bf16 %v7474
        %7483 = vrot.lane.b32.xlu0 %v7479, 72
        %v7484 = vpop.permute.xlu0 %7483
        %7485 = vrot.lane.b32.xlu0 %v7480, 72
        %v7486 = vpop.permute.xlu0 %7485
        %v7489 = vmax.f32 %v7475, %v7484
        %v7490 = vmax.f32 %v7476, %v7484
        %v7491 = vmax.f32 %v7477, %v7486
        %v7492 = vmax.f32 %v7478, %v7486
        %v7493 = vpack.c.bf16 %v7490, %v7489
        %v7494 = vpack.c.bf16 %v7492, %v7491
        %v7495 = vunpack.c.l.bf16 %v7493
        %v7496 = vunpack.c.h.bf16 %v7493
        %v7497 = vunpack.c.l.bf16 %v7494
        %v7498 = vunpack.c.h.bf16 %v7494
        %7503 = vrot.lane.b32.xlu0 %v7495, 124
        %v7504 = vpop.permute.xlu0 %7503
        %7505 = vrot.lane.b32.xlu0 %v7496, 124
        %v7506 = vpop.permute.xlu0 %7505
        %7507 = vrot.lane.b32.xlu0 %v7497, 124
        %v7508 = vpop.permute.xlu0 %7507
        %7509 = vrot.lane.b32.xlu0 %v7498, 124
        %v7510 = vpop.permute.xlu0 %7509
        %v7511 = vsel %vm7396, %v7504, %v7506
        %v7512 = vsel %vm7396, %v7508, %v7510
        %v7517 = vmax.f32 %v7495, %v7511
        %v7518 = vmax.f32 %v7496, %v7506
        %v7519 = vmax.f32 %v7497, %v7512
        %v7520 = vmax.f32 %v7498, %v7510
        %v7521 = vpack.c.bf16 %v7518, %v7517
        %v7522 = vpack.c.bf16 %v7520, %v7519
        %v7523 = vunpack.c.l.bf16 %v7521
        %v7524 = vunpack.c.h.bf16 %v7521
        %v7525 = vunpack.c.l.bf16 %v7522
        %v7526 = vunpack.c.h.bf16 %v7522
        %7529 = vrot.lane.b32.xlu0 %v7523, 44
        %v7530 = vpop.permute.xlu0 %7529
        %7531 = vrot.lane.b32.xlu0 %v7525, 44
        %v7532 = vpop.permute.xlu0 %7531
        %vm7535 = vcmask 105568
        %7536 = vst.msk [vmem:[#allocation7] sm:$0xff] %vm7535, %v7530
        %7537 = vst.msk [vmem:[#allocation7 + $0x8] sm:$0xff] %vm7535, %v7532
        %7538 = vrot.lane.b32.xlu0 %v7523, 37
        %v7539 = vpop.permute.xlu0 %7538
        %7540 = vrot.lane.b32.xlu0 %v7525, 37
        %v7541 = vpop.permute.xlu0 %7540
        %vm7544 = vcmask 113768
        %7545 = vst.msk [vmem:[#allocation7] sm:$0xff] %vm7544, %v7539
        %7546 = vst.msk [vmem:[#allocation7 + $0x8] sm:$0xff] %vm7544, %v7541
        %7547 = vrot.lane.b32.xlu0 %v7523, 30
        %v7548 = vpop.permute.xlu0 %7547
        %7549 = vrot.lane.b32.xlu0 %v7525, 30
        %v7550 = vpop.permute.xlu0 %7549
        %vm7553 = vcmask 121968
        %7554 = vst.msk [vmem:[#allocation7] sm:$0xff] %vm7553, %v7548
        %7555 = vst.msk [vmem:[#allocation7 + $0x8] sm:$0xff] %vm7553, %v7550
        %7556 = vrot.lane.b32.xlu0 %v7523, 23
        %v7557 = vpop.permute.xlu0 %7556
        %7558 = vrot.lane.b32.xlu0 %v7525, 23
        %v7559 = vpop.permute.xlu0 %7558
        %vm7562 = vcmask 130168
        %7563 = vst.msk [vmem:[#allocation7] sm:$0xff] %vm7562, %v7557
        %7564 = vst.msk [vmem:[#allocation7 + $0x8] sm:$0xff] %vm7562, %v7559
        %7567 = vrot.lane.b32.xlu0 %v7524, 16
        %v7568 = vpop.permute.xlu0 %7567
        %7569 = vrot.lane.b32.xlu0 %v7526, 16
        %v7570 = vpop.permute.xlu0 %7569
        %vm7573 = vcmask 138368
        %7574 = vst.msk [vmem:[#allocation7] sm:$0xff] %vm7573, %v7568
        %7575 = vst.msk [vmem:[#allocation7 + $0x8] sm:$0xff] %vm7573, %v7570
        %7576 = vrot.lane.b32.xlu0 %v7524, 9
        %v7577 = vpop.permute.xlu0 %7576
        %7578 = vrot.lane.b32.xlu0 %v7526, 9
        %v7579 = vpop.permute.xlu0 %7578
        %vm7582 = vcmask 146568
        %7583 = vst.msk [vmem:[#allocation7] sm:$0xff] %vm7582, %v7577
        %7584 = vst.msk [vmem:[#allocation7 + $0x8] sm:$0xff] %vm7582, %v7579
        %v7585 = vld [vmem:[#allocation6 + $0x8] sm:$0xf]
        %v7586 = vld [vmem:[#allocation6 + $0x18] sm:$0xf]
        %v7587 = vld [vmem:[#allocation6 + $0xc] sm:$0xf]
        %v7588 = vld [vmem:[#allocation6 + $0x1c] sm:$0xf]
        %v7589 = vunpack.c.l.bf16 %v7585
        %v7590 = vunpack.c.l.bf16 %v7586
        %v7591 = vunpack.c.l.bf16 %v7587
        %v7592 = vunpack.c.l.bf16 %v7588
        %7595 = vrot.lane.b32.xlu0 %v7591, 72
        %v7596 = vpop.permute.xlu0 %7595
        %7597 = vrot.lane.b32.xlu0 %v7592, 72
        %v7598 = vpop.permute.xlu0 %7597
        %v7601 = vmax.f32 %v7589, %v7596
        %v7602 = vmax.f32 %v7590, %v7598
        %v7603 = vpack.c.bf16 %v7601, %v7601
        %v7604 = vpack.c.bf16 %v7602, %v7602
        %v7605 = vunpack.c.l.bf16 %v7603
        %v7606 = vunpack.c.l.bf16 %v7604
        %7609 = vrot.lane.b32.xlu0 %v7605, 124
        %v7610 = vpop.permute.xlu0 %7609
        %7611 = vrot.lane.b32.xlu0 %v7606, 124
        %v7612 = vpop.permute.xlu0 %7611
        %v7615 = vmax.f32 %v7605, %v7610
        %v7616 = vmax.f32 %v7606, %v7612
        %v7617 = vpack.c.bf16 %v7615, %v7615
        %v7618 = vpack.c.bf16 %v7616, %v7616
        %v7619 = vunpack.c.l.bf16 %v7617
        %v7620 = vunpack.c.l.bf16 %v7618
        %7623 = vrot.lane.b32.xlu0 %v7619, 66
        %v7624 = vpop.permute.xlu0 %7623
        %7625 = vrot.lane.b32.xlu0 %v7620, 66
        %v7626 = vpop.permute.xlu0 %7625
        %vm7629 = vcmask 154768
        %7630 = vst.msk [vmem:[#allocation7] sm:$0xff] %vm7629, %v7624
        %7631 = vst.msk [vmem:[#allocation7 + $0x8] sm:$0xff] %vm7629, %v7626
        %7632 = vrot.lane.b32.xlu0 %v7619, 59
        %v7633 = vpop.permute.xlu0 %7632
        %7634 = vrot.lane.b32.xlu0 %v7620, 59
        %v7635 = vpop.permute.xlu0 %7634
        %vm7638 = vcmask 162968
        %7639 = vst.msk [vmem:[#allocation7] sm:$0xff] %vm7638, %v7633
        %7640 = vst.msk [vmem:[#allocation7 + $0x8] sm:$0xff] %vm7638, %v7635
        %7641 = vrot.lane.b32.xlu0 %v7619, 52
        %v7642 = vpop.permute.xlu0 %7641
        %7643 = vrot.lane.b32.xlu0 %v7620, 52
        %v7644 = vpop.permute.xlu0 %7643
        %vm7647 = vcmask 171168
        %7648 = vst.msk [vmem:[#allocation7] sm:$0xff] %vm7647, %v7642
        %7649 = vst.msk [vmem:[#allocation7 + $0x8] sm:$0xff] %vm7647, %v7644
        %7650 = vrot.lane.b32.xlu0 %v7619, 45
        %v7651 = vpop.permute.xlu0 %7650
        %7652 = vrot.lane.b32.xlu0 %v7620, 45
        %v7653 = vpop.permute.xlu0 %7652
        %vm7656 = vcmask 179368
        %7657 = vst.msk [vmem:[#allocation7] sm:$0xff] %vm7656, %v7651
        %7658 = vst.msk [vmem:[#allocation7 + $0x8] sm:$0xff] %vm7656, %v7653
        %7659 = vrot.lane.b32.xlu0 %v7619, 38
        %v7660 = vpop.permute.xlu0 %7659
        %7661 = vrot.lane.b32.xlu0 %v7620, 38
        %v7662 = vpop.permute.xlu0 %7661
        %vm7665 = vcmask 187568
        %7666 = vst.msk [vmem:[#allocation7] sm:$0xff] %vm7665, %v7660
        %7667 = vst.msk [vmem:[#allocation7 + $0x8] sm:$0xff] %vm7665, %v7662
        %7668 = vrot.lane.b32.xlu0 %v7619, 31
        %v7669 = vpop.permute.xlu0 %7668
        %7670 = vrot.lane.b32.xlu0 %v7620, 31
        %v7671 = vpop.permute.xlu0 %7670
        %vm7674 = vcmask 195768
        %7675 = vst.msk [vmem:[#allocation7] sm:$0xff] %vm7674, %v7669
        %7676 = vst.msk [vmem:[#allocation7 + $0x8] sm:$0xff] %vm7674, %v7671
        %7677 = vst [vmem:[#allocation8] sm:$0xff] 0.0
        %7678 = vst [vmem:[#allocation8 + $0x8] sm:$0xff] 0.0
        %7679 = vst [vmem:[#allocation8 + $0x10] sm:$0xff] 0.0
        %v7680 = vld [vmem:[#allocation7] sm:$0x1]
        %vm7681 = vcmask 188416
        %7682 = vst.msk [vmem:[#allocation8] sm:$0x1] %vm7681, %v7680
        %v7683 = vld [vmem:[#allocation7 + $0x1] sm:$0x1]
        %7685 = vrot.lane.b32.xlu0 %v7683, 24
        %v7686 = vpop.permute.xlu0 %7685
        %vm7688 = vcmask 385216
        %7689 = vst.msk [vmem:[#allocation8] sm:$0x1] %vm7688, %v7686
        %v7690 = vld [vmem:[#allocation7 + $0x2] sm:$0x1]
        %7692 = vrot.lane.b32.xlu0 %v7690, 48
        %v7693 = vpop.permute.xlu0 %7692
        %vm7695 = vcmask 582016
        %7696 = vst.msk [vmem:[#allocation8] sm:$0x1] %vm7695, %v7693
        %v7697 = vld [vmem:[#allocation7 + $0x3] sm:$0x1]
        %7699 = vrot.lane.b32.xlu0 %v7697, 72
        %v7700 = vpop.permute.xlu0 %7699
        %vm7702 = vcmask 778816
        %7703 = vst.msk [vmem:[#allocation8] sm:$0x1] %vm7702, %v7700
        %v7704 = vld [vmem:[#allocation7 + $0x4] sm:$0x1]
        %7706 = vrot.lane.b32.xlu0 %v7704, 96
        %v7707 = vpop.permute.xlu0 %7706
        %vm7709 = vcmask 975616
        %7710 = vst.msk [vmem:[#allocation8] sm:$0x1] %vm7709, %v7707
        %v7711 = vld [vmem:[#allocation7 + $0x5] sm:$0x1]
        %7713 = vrot.lane.b32.xlu0 %v7711, 120
        %v7714 = vpop.permute.xlu0 %7713
        %vm7716 = vcmask 1041344
        %7717 = vst.msk [vmem:[#allocation8] sm:$0x1] %vm7716, %v7714
        %vm7718 = vcmask 122880
        %7719 = vst.msk [vmem:[#allocation8 + $0x8] sm:$0x1] %vm7718, %v7714
        %v7720 = vld [vmem:[#allocation7 + $0x6] sm:$0x1]
        %7722 = vrot.lane.b32.xlu0 %v7720, 16
        %v7723 = vpop.permute.xlu0 %7722
        %vm7725 = vcmask 319616
        %7726 = vst.msk [vmem:[#allocation8 + $0x8] sm:$0x1] %vm7725, %v7723
        %v7727 = vld [vmem:[#allocation7 + $0x7] sm:$0x1]
        %7729 = vrot.lane.b32.xlu0 %v7727, 40
        %v7730 = vpop.permute.xlu0 %7729
        %vm7732 = vcmask 516416
        %7733 = vst.msk [vmem:[#allocation8 + $0x8] sm:$0x1] %vm7732, %v7730
        %v7734 = vld [vmem:[#allocation7 + $0x8] sm:$0x1]
        %7736 = vrot.lane.b32.xlu0 %v7734, 64
        %v7737 = vpop.permute.xlu0 %7736
        %vm7739 = vcmask 713216
        %7740 = vst.msk [vmem:[#allocation8 + $0x8] sm:$0x1] %vm7739, %v7737
        %v7741 = vld [vmem:[#allocation7 + $0x9] sm:$0x1]
        %7743 = vrot.lane.b32.xlu0 %v7741, 88
        %v7744 = vpop.permute.xlu0 %7743
        %vm7746 = vcmask 910016
        %7747 = vst.msk [vmem:[#allocation8 + $0x8] sm:$0x1] %vm7746, %v7744
        %v7748 = vld [vmem:[#allocation7 + $0xa] sm:$0x1]
        %7750 = vrot.lane.b32.xlu0 %v7748, 112
        %v7751 = vpop.permute.xlu0 %7750
        %vm7753 = vcmask 1041280
        %7754 = vst.msk [vmem:[#allocation8 + $0x8] sm:$0x1] %vm7753, %v7751
        %vm7755 = vcmask 57344
        %7756 = vst.msk [vmem:[#allocation8 + $0x10] sm:$0x1] %vm7755, %v7751
        %v7757 = vld [vmem:[#allocation7 + $0xb] sm:$0x1]
        %7759 = vrot.lane.b32.xlu0 %v7757, 8
        %v7760 = vpop.permute.xlu0 %7759
        %vm7762 = vcmask 254016
        %7763 = vst.msk [vmem:[#allocation8 + $0x10] sm:$0x1] %vm7762, %v7760
        %v7764 = vld [vmem:[#allocation7 + $0xc] sm:$0x1]
        %7766 = vrot.lane.b32.xlu0 %v7764, 32
        %v7767 = vpop.permute.xlu0 %7766
        %vm7769 = vcmask 450816
        %7770 = vst.msk [vmem:[#allocation8 + $0x10] sm:$0x1] %vm7769, %v7767
        %v7771 = vld [vmem:[#allocation7 + $0xd] sm:$0x1]
        %7773 = vrot.lane.b32.xlu0 %v7771, 56
        %v7774 = vpop.permute.xlu0 %7773
        %vm7776 = vcmask 647616
        %7777 = vst.msk [vmem:[#allocation8 + $0x10] sm:$0x1] %vm7776, %v7774
        %v7778 = vld [vmem:[#allocation7 + $0xe] sm:$0x1]
        %7780 = vrot.lane.b32.xlu0 %v7778, 80
        %v7781 = vpop.permute.xlu0 %7780
        %vm7783 = vcmask 844416
        %7784 = vst.msk [vmem:[#allocation8 + $0x10] sm:$0x1] %vm7783, %v7781
        %v7785 = vld [vmem:[#allocation7 + $0xf] sm:$0x1]
        %7787 = vrot.lane.b32.xlu0 %v7785, 104
        %v7788 = vpop.permute.xlu0 %7787
        %vm7790 = vcmask 1041216
        %7791 = vst.msk [vmem:[#allocation8 + $0x10] sm:$0x1] %vm7790, %v7788
        %v7792 = vld [vmem:[#allocation8] sm:$0xff]
        %v7793 = vld [vmem:[#allocation8 + $0x8] sm:$0xff]
        %v7794 = vld [vmem:[#allocation8 + $0x10] sm:$0xff]
        %s7795 = sld [smem:[#allocation9 + %s30]]
        %v7796 = vld [vmem:[%s8] sm:$0xff]
        %v7797 = vld [vmem:[%s8 + $0x8] sm:$0xff]
        %v7798 = vld [vmem:[%s8 + $0x10] sm:$0xff]
        %v7799 = vld [vmem:[%s8 + $0x18] sm:$0xff]
        %v7800 = vld [vmem:[%s8 + $0x20] sm:$0xff]
        %v7801 = vld [vmem:[%s8 + $0x28] sm:$0xff]
        %v7802 = vld [vmem:[%s8 + $0x30] sm:$0xff]
        %v7803 = vld [vmem:[%s8 + $0x38] sm:$0xff]
        %v7804 = vld [vmem:[%s8 + $0x40] sm:$0xff]
        %v7805 = vld [vmem:[%s8 + $0x48] sm:$0xff]
        %v7806 = vld [vmem:[%s8 + $0x50] sm:$0xff]
        %v7807 = vld [vmem:[%s8 + $0x58] sm:$0xff]
        %v7808 = vld [vmem:[%s8 + $0x60] sm:$0xff]
        %v7809 = vld [vmem:[%s8 + $0x68] sm:$0xff]
        %v7810 = vld [vmem:[%s8 + $0x70] sm:$0xff]
        %v7811 = vld [vmem:[%s8 + $0x78] sm:$0xff]
        %v7812 = vld [vmem:[%s8 + $0x80] sm:$0xff]
        %v7813 = vld [vmem:[%s8 + $0x88] sm:$0xff]
        %v7814 = vld [vmem:[%s8 + $0x90] sm:$0xff]
        %v7815 = vld [vmem:[%s8 + $0x98] sm:$0xff]
        %v7816 = vld [vmem:[%s8 + $0xa0] sm:$0xff]
        %v7817 = vld [vmem:[%s8 + $0xa8] sm:$0xff]
        %v7818 = vld [vmem:[%s8 + $0xb0] sm:$0xff]
        %v7819 = vld [vmem:[%s8 + $0xb8] sm:$0xff]
        %v7820 = vld [vmem:[%s8 + $0xc0] sm:$0xff]
        %v7821 = vld [vmem:[%s8 + $0xc8] sm:$0xff]
        %v7822 = vld [vmem:[%s8 + $0xd0] sm:$0xff]
        %v7823 = vld [vmem:[%s8 + $0xd8] sm:$0xff]
        %v7824 = vld [vmem:[%s8 + $0xe0] sm:$0xff]
        %v7825 = vld [vmem:[%s8 + $0xe8] sm:$0xff]
        %v7826 = vld [vmem:[%s8 + $0xf0] sm:$0xff]
        %v7827 = vld [vmem:[%s8 + $0xf8] sm:$0xff]
        %v7828 = vld [vmem:[%s8 + $0x100] sm:$0xff]
        %v7829 = vld [vmem:[%s8 + $0x108] sm:$0xff]
        %v7830 = vld [vmem:[%s8 + $0x110] sm:$0xff]
        %v7831 = vld [vmem:[%s8 + $0x118] sm:$0xff]
        %v7832 = vld [vmem:[%s8 + $0x120] sm:$0xff]
        %v7833 = vld [vmem:[%s8 + $0x128] sm:$0xff]
        %v7834 = vld [vmem:[%s8 + $0x130] sm:$0xff]
        %v7835 = vld [vmem:[%s8 + $0x138] sm:$0xff]
        %v7836 = vld [vmem:[%s8 + $0x140] sm:$0xff]
        %v7837 = vld [vmem:[%s8 + $0x148] sm:$0xff]
        %v7838 = vld [vmem:[%s8 + $0x150] sm:$0xff]
        %v7839 = vld [vmem:[%s8 + $0x158] sm:$0xff]
        %v7840 = vld [vmem:[%s8 + $0x160] sm:$0xff]
        %v7841 = vld [vmem:[%s8 + $0x168] sm:$0xff]
        %v7842 = vld [vmem:[%s8 + $0x170] sm:$0xff]
        %v7843 = vld [vmem:[%s8 + $0x178] sm:$0xff]
        %v7844 = vld [vmem:[%s9] sm:$0x1]
        %v7845 = vstv %s7795
        %v7846 = vmul.f32 %v7845, %v7844
        %v7848 = vperm.slane %v7846, 0
        %7850 = vmatpush.msra.mxu0 %v7811
        %7851 = vmatpush.msra.mxu0 %v7810
        %7852 = vmatpush.msra.mxu0 %v7809
        %7853 = vmatpush.msra.mxu0 %v7808
        %7854 = vmatpush.msra.mxu0 %v7807
        %7855 = vmatpush.msra.mxu0 %v7806
        %7856 = vmatpush.msra.mxu0 %v7805
        %7857 = vmatpush.msra.mxu0 %v7804
        %7858 = vmatpush.msra.mxu0 %v7803
        %7859 = vmatpush.msra.mxu0 %v7802
        %7860 = vmatpush.msra.mxu0 %v7801
        %7861 = vmatpush.msra.mxu0 %v7800
        %7862 = vmatpush.msra.mxu0 %v7799
        %7863 = vmatpush.msra.mxu0 %v7798
        %7864 = vmatpush.msra.mxu0 %v7797
        %7865 = vmatpush.msra.mxu0 %v7796
        %7866 = vmatmul.f32.gmra.mxu0 %v7792
        %v7867 = vpop.f32.mrf.mxu0
        %v7868 = vadd.f32 %v7848, %v7867
        %7869 = vdwg.mxu0
        %7870 = vmatpush.msra.mxu0 %v7827
        %7871 = vmatpush.msra.mxu0 %v7826
        %7872 = vmatpush.msra.mxu0 %v7825
        %7873 = vmatpush.msra.mxu0 %v7824
        %7874 = vmatpush.msra.mxu0 %v7823
        %7875 = vmatpush.msra.mxu0 %v7822
        %7876 = vmatpush.msra.mxu0 %v7821
        %7877 = vmatpush.msra.mxu0 %v7820
        %7878 = vmatpush.msra.mxu0 %v7819
        %7879 = vmatpush.msra.mxu0 %v7818
        %7880 = vmatpush.msra.mxu0 %v7817
        %7881 = vmatpush.msra.mxu0 %v7816
        %7882 = vmatpush.msra.mxu0 %v7815
        %7883 = vmatpush.msra.mxu0 %v7814
        %7884 = vmatpush.msra.mxu0 %v7813
        %7885 = vmatpush.msra.mxu0 %v7812
        %7886 = vmatmul.f32.gmra.mxu0 %v7793
        %v7887 = vpop.f32.mrf.mxu0
        %v7888 = vadd.f32 %v7868, %v7887
        %7889 = vdwg.mxu0
        %7890 = vmatpush.msra.mxu0 %v7843
        %7891 = vmatpush.msra.mxu0 %v7842
        %7892 = vmatpush.msra.mxu0 %v7841
        %7893 = vmatpush.msra.mxu0 %v7840
        %7894 = vmatpush.msra.mxu0 %v7839
        %7895 = vmatpush.msra.mxu0 %v7838
        %7896 = vmatpush.msra.mxu0 %v7837
        %7897 = vmatpush.msra.mxu0 %v7836
        %7898 = vmatpush.msra.mxu0 %v7835
        %7899 = vmatpush.msra.mxu0 %v7834
        %7900 = vmatpush.msra.mxu0 %v7833
        %7901 = vmatpush.msra.mxu0 %v7832
        %7902 = vmatpush.msra.mxu0 %v7831
        %7903 = vmatpush.msra.mxu0 %v7830
        %7904 = vmatpush.msra.mxu0 %v7829
        %7905 = vmatpush.msra.mxu0 %v7828
        %7906 = vmatmul.f32.gmra.mxu0 %v7794
        %v7907 = vpop.f32.mrf.mxu0
        %v7908 = vadd.f32 %v7888, %v7907
        %7909 = vdwg.mxu0
        %v7910 = vld [vmem:[%s10] sm:$0x1]
        %v7912 = vperm.slane %v7910, 0
        %v7914 = vadd.f32 %v7908, %v7912
        %v7915 = vmax.f32 %v7914, 0.0
        %v7916 = vld [vmem:[%s11] sm:$0xff]
        %v7917 = vld [vmem:[%s11 + $0x8] sm:$0xff]
        %v7918 = vld [vmem:[%s11 + $0x10] sm:$0xff]
        %v7919 = vld [vmem:[%s11 + $0x18] sm:$0xff]
        %v7920 = vld [vmem:[%s11 + $0x20] sm:$0xff]
        %v7921 = vld [vmem:[%s11 + $0x28] sm:$0xff]
        %v7922 = vld [vmem:[%s11 + $0x30] sm:$0xff]
        %v7923 = vld [vmem:[%s11 + $0x38] sm:$0xff]
        %v7924 = vld [vmem:[%s11 + $0x40] sm:$0xff]
        %v7925 = vld [vmem:[%s11 + $0x48] sm:$0xff]
        %v7926 = vld [vmem:[%s11 + $0x50] sm:$0xff]
        %v7927 = vld [vmem:[%s11 + $0x58] sm:$0xff]
        %v7928 = vld [vmem:[%s11 + $0x60] sm:$0xff]
        %v7929 = vld [vmem:[%s11 + $0x68] sm:$0xff]
        %v7930 = vld [vmem:[%s11 + $0x70] sm:$0xff]
        %v7931 = vld [vmem:[%s11 + $0x78] sm:$0xff]
        %v7932 = vld [vmem:[%s12] sm:$0x1]
        %v7934 = vperm.slane %v7932, 0
        %7936 = vmatpush.msra.mxu0 %v7931
        %7937 = vmatpush.msra.mxu0 %v7930
        %7938 = vmatpush.msra.mxu0 %v7929
        %7939 = vmatpush.msra.mxu0 %v7928
        %7940 = vmatpush.msra.mxu0 %v7927
        %7941 = vmatpush.msra.mxu0 %v7926
        %7942 = vmatpush.msra.mxu0 %v7925
        %7943 = vmatpush.msra.mxu0 %v7924
        %7944 = vmatpush.msra.mxu0 %v7923
        %7945 = vmatpush.msra.mxu0 %v7922
        %7946 = vmatpush.msra.mxu0 %v7921
        %7947 = vmatpush.msra.mxu0 %v7920
        %7948 = vmatpush.msra.mxu0 %v7919
        %7949 = vmatpush.msra.mxu0 %v7918
        %7950 = vmatpush.msra.mxu0 %v7917
        %7951 = vmatpush.msra.mxu0 %v7916
        %7952 = vmatmul.f32.gmra.mxu0 %v7915
        %v7953 = vpop.f32.mrf.mxu0
        %v7954 = vadd.f32 %v7934, %v7953
        %7955 = vdwg.mxu0
        %v7956 = vmax.f32 %v7954, 0.0
        %v7957 = vld [vmem:[%s13] sm:$0xff]
        %v7958 = vld [vmem:[%s13 + $0x8] sm:$0xff]
        %v7959 = vld [vmem:[%s13 + $0x10] sm:$0xff]
        %v7960 = vld [vmem:[%s13 + $0x18] sm:$0xff]
        %v7961 = vld [vmem:[%s13 + $0x20] sm:$0xff]
        %v7962 = vld [vmem:[%s13 + $0x28] sm:$0xff]
        %v7963 = vld [vmem:[%s13 + $0x30] sm:$0xff]
        %v7964 = vld [vmem:[%s13 + $0x38] sm:$0xff]
        %v7965 = vld [vmem:[%s14] sm:$0x1]
        %v7967 = vperm.slane %v7965, 0
        %vm7969 = vcmask 523264
        %v7971 = vsel %vm7969, %v7956, 0
        %7973 = vmatpush.msra.mxu0 0.0
        %7974 = vmatpush.msra.mxu0 0.0
        %7975 = vmatpush.msra.mxu0 0.0
        %7976 = vmatpush.msra.mxu0 0.0
        %7977 = vmatpush.msra.mxu0 0.0
        %7978 = vmatpush.msra.mxu0 0.0
        %7979 = vmatpush.msra.mxu0 0.0
        %7980 = vmatpush.msra.mxu0 0.0
        %7981 = vmatpush.msra.mxu0 %v7964
        %7982 = vmatpush.msra.mxu0 %v7963
        %7983 = vmatpush.msra.mxu0 %v7962
        %7984 = vmatpush.msra.mxu0 %v7961
        %7985 = vmatpush.msra.mxu0 %v7960
        %7986 = vmatpush.msra.mxu0 %v7959
        %7987 = vmatpush.msra.mxu0 %v7958
        %7988 = vmatpush.msra.mxu0 %v7957
        %7989 = vmatmul.f32.gmra.mxu0 %v7971
        %v7990 = vpop.f32.mrf.mxu0
        %v7991 = vadd.f32 %v7967, %v7990
        %7992 = vdwg.mxu0
        %vm7993 = vcmask 8192
        %7994 = vst.msk [vmem:[%s500] sm:$0x1] %vm7993, %v7991
        %s7995 = sand.u32 %s358, 1
        %s7996 = scalar_lea.sflag [#allocation10], %s7995
        %s7997 = sand.u32 %s358, 1
        %s7998 = scalar_lea.vmem [#allocation12], %s7997
        // Predicated region
        $region85: #{cnn_forward.1} parent=79 // pred_check
          %p7999 = pneg %p368
        $region86: #{cnn_forward.1} parent=79 // pred_check_branch
          %8001 = sbr.rel (%p7999) target = $region88
        $region87: #{cnn_forward.1} parent=79 // pred_region
          %8003 = vsyncadd %s7996, 0
          %s8004 = scalar_lea.hbm %s15, %s30
          %s8006 = sshll.u32 %s7998, 4
          %s8007 = int_to_ptr.vmem [resolvable:$true] %s8006
          %s8008 = sshll.u32 %s8004, 4
          %s8009 = int_to_ptr.hbm [resolvable:$true] %s8008
          %8011 = dma.vmem_to_hbm [thread:$0]  %s8007, 16, %s8009, %s7996
        $region88: #{cnn_forward.1} parent=79 // pred_fallthru
          _
      $region80: #{cnn_forward.1} parent=5 // pred_fallthru
        _
      %p8012 = scmp.le.s32.totalorder 2, %s25
      // Predicated region
      $region89: #{cnn_forward.1} parent=5 // pred_check
        %p8013 = pneg %p8012
      $region90: #{cnn_forward.1} parent=5 // pred_check_branch
        %8015 = sbr.rel (%p8013) target = $region92
      $region91: #{cnn_forward.1} parent=5 // pred_region
        %s8016 = ssub.s32 %s25, 2
        // Predicated region
        $region93: #{cnn_forward.1} parent=91 // pred_check
          %p8017 = pneg %p374
        $region94: #{cnn_forward.1} parent=91 // pred_check_branch
          %8019 = sbr.rel (%p8017) target = $region96
        $region95: #{cnn_forward.1} parent=91 // pred_region
          %s8020 = sand.u32 %s359, 1
          %s8021 = scalar_lea.sflag [#allocation10], %s8020
          %s8022 = sand.u32 %s359, 1
          %s8023 = scalar_lea.vmem [#allocation12], %s8022
          %8025 = dma.done %s8021, 16
        $region96: #{cnn_forward.1} parent=91 // pred_fallthru
          _
      $region92: #{cnn_forward.1} parent=5 // pred_fallthru
        _
    $region6: #{cnn_forward.1} parent=1 // loop_footer
      %s29 = sadd.s32 1, %s25
    $region7: #{cnn_forward.1} parent=1 // loop_footer_branch
      %24 = sbr.rel target = $region3
    $region8: #{cnn_forward.1} parent=1 // loop_exit
      _
    %8026 = vsyncpa [#allocation10], 1
    %s8027 = scalar_lea.sflag [#allocation10], 1
    %8028 = vsyncpa %s8027, 1
    %8029 = vsyncpa [#allocation11], 1
    %s8030 = scalar_lea.sflag [#allocation11], 1
    %8031 = vsyncpa %s8030, 1

</llo_original>
